<compile_context>
chip_gen: v7x
topology: tpu7x:2x2x1
jax: 0.10.0
libtpu: 0.0.40
codegen_flags: <defaults>
</compile_context>

<pallas_src>
import functools
import math

import numpy as np
import jax
import jax.numpy as jnp
from jax.experimental import pallas as pl
from jax.experimental.pallas import tpu as pltpu


# ----------------------------------------------------------------------------
# Config (consistent with the module's __init__)
# ----------------------------------------------------------------------------
CFG = dict(
    n_embd=32,
    n_head=4,
    n_layer=2,
    dropout=0.0,
    bias=True,
    block_size=64,
    max_episode_len=64,
    state_size=16,
    action_size=4,
    command_size=10,
    hand_pos_size=6,
    num_tasks=5,
    pool_size=4,
    lora_rank=4,
    step_len=3,          # (returns, states, actions)
    ret_hidden=False,
    use_task_idx=True,   # -> keys_pool is bypassed (its source was not provided)
)

_HEAD_PAD = 128                 # lane-dense output width of the fused heads matmul
_SQRT1_2 = 0.7071067811865476


# ----------------------------------------------------------------------------
# Helpers traced inside the kernel
# ----------------------------------------------------------------------------
def _ln(v, w, b):
    m = jnp.mean(v, axis=-1, keepdims=True)
    var = jnp.mean((v - m) ** 2, axis=-1, keepdims=True)
    return (v - m) * jax.lax.rsqrt(var + 1e-5) * w + b


def _gelu_erf(x):
    """Exact-erf GELU (torch.nn.GELU default) via Abramowitz&Stegun 7.1.26.

    |erf error| < 1.5e-7; uses only exp/mul/add/where so it lowers on every TPU gen."""
    z = x * _SQRT1_2
    az = jnp.abs(z)
    t = 1.0 / (1.0 + 0.3275911 * az)
    poly = ((((1.061405429 * t - 1.453152027) * t + 1.421413741) * t
             - 0.284496736) * t + 0.254829592) * t
    erf_abs = 1.0 - poly * jnp.exp(-az * az)
    erf_z = jnp.where(z >= 0, erf_abs, -erf_abs)
    return 0.5 * x * (1.0 + erf_z)


# ----------------------------------------------------------------------------
# THE fused kernel: embed + L transformer blocks + heads, per batch element.
# ----------------------------------------------------------------------------
def _gpt_fused_kernel(idx_sref,
                      rtg_ref, st_ref, ac_ref, cm_ref, te_ref,
                      qA_ref, qB_ref, vA_ref, vB_ref,
                      f1A_ref, f1B_ref, f2A_ref, f2B_ref,
                      wr_ref, br_ref, ws_ref, bs_ref,
                      wa_ref, ba_ref, wc_ref, bc_ref,
                      lnfw_ref, lnfb_ref,
                      ln1w_ref, ln1b_ref, wqkv_ref, bqkv_ref,
                      wproj_ref, bproj_ref,
                      ln2w_ref, ln2b_ref, wfc_ref, bfc_ref, wfp_ref, bfp_ref,
                      mask_ref, wh_ref, bh_ref,
                      out_ref,
                      seq_ref,
                      *, n_head, n_layer, t, act_size):
    del idx_sref  # consumed by the LoRA index_maps (scalar prefetch), not the body
    Tp, C = seq_ref.shape
    hd = C // n_head
    scale = 1.0 / math.sqrt(hd)

    lnfw, lnfb = lnfw_ref[...], lnfb_ref[...]
    te = te_ref[0]                                                   # (t, C)

    # ---- embeddings (encoders + time emb), then ln_f (the reference applies ln_f
    # BEFORE the blocks).  Written grouped-by-modality into the seq scratch. --------
    cmd_e = jnp.dot(cm_ref[0], wc_ref[...], preferred_element_type=jnp.float32) + bc_ref[...]
    # returns_encoder has in_features == 1 -> broadcast multiply (no K=1 MXU dot)
    rtg_e = rtg_ref[0] * wr_ref[...] + br_ref[...] + te
    st_e = jnp.dot(st_ref[0], ws_ref[...], preferred_element_type=jnp.float32) + bs_ref[...] + te
    ac_e = jnp.dot(ac_ref[0], wa_ref[...], preferred_element_type=jnp.float32) + ba_ref[...] + te

    seq_ref[pl.ds(0, 1), :] = _ln(cmd_e, lnfw, lnfb)
    seq_ref[pl.ds(1, t), :] = _ln(rtg_e, lnfw, lnfb)
    seq_ref[pl.ds(1 + t, t), :] = _ln(st_e, lnfw, lnfb)
    seq_ref[pl.ds(1 + 2 * t, t), :] = _ln(ac_e, lnfw, lnfb)
    n_pad = Tp - (1 + 3 * t)
    if n_pad:  # pad rows must be finite: they feed k/v (masked) and the MLP
        seq_ref[pl.ds(1 + 3 * t, n_pad), :] = jnp.zeros((n_pad, C), jnp.float32)

    x = seq_ref[...]                                                 # (Tp, C)
    mask_add = mask_ref[...]                                         # (Tp, Tp), 0 / -1e30

    # ---- transformer blocks (static unroll over layers, weights layer-stacked) ----
    for l in range(n_layer):
        # causal self-attention
        h = _ln(x, ln1w_ref[l], ln1b_ref[l])
        qkv = jnp.dot(h, wqkv_ref[l], preferred_element_type=jnp.float32) + bqkv_ref[l]
        # in-kernel rank-r LoRA (q, v), matching q = q + x @ (A @ B) of the reference
        q_lo = jnp.dot(jnp.dot(h, qA_ref[0, l], preferred_element_type=jnp.float32),
                       qB_ref[0, l], preferred_element_type=jnp.float32)
        v_lo = jnp.dot(jnp.dot(h, vA_ref[0, l], preferred_element_type=jnp.float32),
                       vB_ref[0, l], preferred_element_type=jnp.float32)
        q = (qkv[:, :C] + q_lo) * scale            # scale folded into q once
        k = qkv[:, C:2 * C]
        v = qkv[:, 2 * C:] + v_lo

        y = jnp.zeros((Tp, C), jnp.float32)
        for hi in range(n_head):                   # static unroll (H = 4)
            qh = q[:, hi * hd:(hi + 1) * hd]
            kh = k[:, hi * hd:(hi + 1) * hd]
            vh = v[:, hi * hd:(hi + 1) * hd]
            s = jax.lax.dot_general(qh, kh, (((1,), (1,)), ((), ())),
                                    preferred_element_type=jnp.float32)      # (Tp, Tp)
            s = s + mask_add
            s = s - jnp.max(s, axis=-1, keepdims=True)
            p = jnp.exp(s)
            p = p / jnp.sum(p, axis=-1, keepdims=True)   # exact division (parity-safe)
            oh = jnp.dot(p, vh, preferred_element_type=jnp.float32)          # (Tp, hd)
            # fold the head concat into the output projection (head-major w_proj)
            y = y + jnp.dot(oh, wproj_ref[l, hi], preferred_element_type=jnp.float32)
        x = x + y + bproj_ref[l]

        # MLP with in-kernel rank-r LoRA (ff1, ff2)
        h2 = _ln(x, ln2w_ref[l], ln2b_ref[l])
        f = jnp.dot(h2, wfc_ref[l], preferred_element_type=jnp.float32) + bfc_ref[l]
        f = f + jnp.dot(jnp.dot(h2, f1A_ref[0, l], preferred_element_type=jnp.float32),
                        f1B_ref[0, l], preferred_element_type=jnp.float32)
        f = _gelu_erf(f)
        g = jnp.dot(f, wfp_ref[l], preferred_element_type=jnp.float32) + bfp_ref[l]
        g = g + jnp.dot(jnp.dot(f, f2A_ref[0, l], preferred_element_type=jnp.float32),
                        f2B_ref[0, l], preferred_element_type=jnp.float32)
        x = x + g

    # ---- fused heads: ONE (Tp, C) @ (C, 128) matmul for action+reward+task --------
    yh = jnp.dot(x, wh_ref[...], preferred_element_type=jnp.float32) + bh_ref[...]
    lane = jax.lax.broadcasted_iota(jnp.int32, yh.shape, 1)
    # lanes [0, A): tanh(action); lane A: sigmoid(reward); lanes (A, A+NT]: task logits
    yh = jnp.where(lane < act_size, jnp.tanh(yh),
                   jnp.where(lane == act_size, jax.nn.sigmoid(yh), yh))
    out_ref[0] = yh


# ----------------------------------------------------------------------------
# Parameter initialization (deterministic, synthetic; layer-stacked, kernel-ready)
# ----------------------------------------------------------------------------
def init_params(key, cfg):
    C = cfg["n_embd"]
    L = cfg["n_layer"]
    r = cfg["lora_rank"]
    P = cfg["pool_size"]
    A = cfg["action_size"]
    NT = cfg["num_tasks"]
    keys = iter(jax.random.split(key, 40))

    def nrm(shape, std=0.02):
        return std * jax.random.normal(next(keys), shape, dtype=jnp.float32)

    def lin(din, dout, std=0.02):
        return nrm((din, dout), std), jnp.zeros((1, dout), jnp.float32)

    proj_std = 0.02 / math.sqrt(2 * L)

    blk = dict(
        ln1_w=jnp.ones((L, 1, C), jnp.float32), ln1_b=jnp.zeros((L, 1, C), jnp.float32),
        w_qkv=nrm((L, C, 3 * C)), b_qkv=jnp.zeros((L, 1, 3 * C), jnp.float32),
        w_proj=nrm((L, C, C), proj_std), b_proj=jnp.zeros((L, 1, C), jnp.float32),
        ln2_w=jnp.ones((L, 1, C), jnp.float32), ln2_b=jnp.zeros((L, 1, C), jnp.float32),
        w_fc=nrm((L, C, 4 * C)), b_fc=jnp.zeros((L, 1, 4 * C), jnp.float32),
        w_fproj=nrm((L, 4 * C, C), proj_std), b_fproj=jnp.zeros((L, 1, C), jnp.float32),
    )

    # TODO(synk): LoRA class source was not provided; assumed per-(pool entry, layer)
    # low-rank factors with extract_prompt(idx) -> A[idx] @ B[idx].
    lora = dict(
        qA=nrm((P, L, C, r)), qB=nrm((P, L, r, C)),
        vA=nrm((P, L, C, r)), vB=nrm((P, L, r, C)),
        f1A=nrm((P, L, C, r)), f1B=nrm((P, L, r, 4 * C)),
        f2A=nrm((P, L, 4 * C, r)), f2B=nrm((P, L, r, C)),
    )

    # fused lane-dense head slab: columns [action | reward | task | zero pad]
    w_act, b_act = lin(C, A)
    w_rew, b_rew = lin(C, 1)
    w_task, b_task = lin(C, NT)
    w_head = jnp.zeros((C, _HEAD_PAD), jnp.float32)
    w_head = w_head.at[:, :A].set(w_act).at[:, A:A + 1].set(w_rew)
    w_head = w_head.at[:, A + 1:A + 1 + NT].set(w_task)
    b_head = jnp.zeros((1, _HEAD_PAD), jnp.float32)
    b_head = b_head.at[:, :A].set(b_act).at[:, A:A + 1].set(b_rew)
    b_head = b_head.at[:, A + 1:A + 1 + NT].set(b_task)

    return dict(
        time_emb=nrm((cfg["max_episode_len"], C)),
        returns_enc=lin(1, C),
        state_enc=lin(cfg["state_size"], C),
        actions_enc=lin(cfg["action_size"], C),
        commands_enc=lin(cfg["command_size"], C),
        # hand_pos_encoder exists in __init__ but is unused by forward().
        ln_f_w=jnp.ones((1, C), jnp.float32),
        ln_f_b=jnp.zeros((1, C), jnp.float32),
        blk=blk,
        lora=lora,
        w_head=w_head,
        b_head=b_head,
    )


# ----------------------------------------------------------------------------
# Grouped-by-modality causal mask (static) — reproduces the interleaved causal
# semantics exactly: mask[r, c] allows c iff orig_pos[c] <= orig_pos[r].
# ----------------------------------------------------------------------------
def _build_mask(t, step_len, Tp):
    pos = np.full((Tp,), 1_000_000, dtype=np.int64)   # pad rows: never valid keys
    pos[0] = 0                                        # command token
    for m in range(step_len):                         # modality block m at 1 + m*t
        pos[1 + m * t: 1 + (m + 1) * t] = step_len * np.arange(t) + m + 1
    allow = pos[None, :] <= pos[:, None]
    return jnp.asarray(np.where(allow, 0.0, -1e30).astype(np.float32))


# ----------------------------------------------------------------------------
# GPT forward: ONE pallas_call for the whole model
# ----------------------------------------------------------------------------
def gpt_forward(params, cfg, commands, returns_to_go, states, hand_poses, actions,
                time_steps, idx):
    del hand_poses  # defined in __init__ but never used by forward()
    B, t, _ = states.shape
    C = cfg["n_embd"]
    H = cfg["n_head"]
    L = cfg["n_layer"]
    A = cfg["action_size"]
    NT = cfg["num_tasks"]
    SL = cfg["step_len"]
    T = 1 + SL * t
    Tp = ((T + 7) // 8) * 8       # 25 -> 32 rows (full sublane groups)
    hd = C // H

    # use_task_idx=True -> `idx` used directly (keys_pool bypassed).
    # Tiny embedding gather stays in plain JAX (no clean Pallas win at this size).
    time_emb = params["time_emb"][time_steps]                        # (B, t, C)
    mask_add = _build_mask(t, SL, Tp)                                # (Tp, Tp) constant

    blk = params["blk"]
    lora = params["lora"]
    wr, br = params["returns_enc"]
    ws, bs = params["state_enc"]
    wa, ba = params["actions_enc"]
    wc, bc = params["commands_enc"]
    wproj_hm = blk["w_proj"].reshape(L, H, hd, C)    # head-major rows (pure reshape)

    ins = [
        returns_to_go, states, actions, commands, time_emb,          # per-batch
        lora["qA"], lora["qB"], lora["vA"], lora["vB"],               # LoRA pool
        lora["f1A"], lora["f1B"], lora["f2A"], lora["f2B"],
        wr, br, ws, bs, wa, ba, wc, bc,                               # shared
        params["ln_f_w"], params["ln_f_b"],
        blk["ln1_w"], blk["ln1_b"], blk["w_qkv"], blk["b_qkv"],
        wproj_hm, blk["b_proj"],
        blk["ln2_w"], blk["ln2_b"], blk["w_fc"], blk["b_fc"],
        blk["w_fproj"], blk["b_fproj"],
        mask_add, params["w_head"], params["b_head"],
    ]

    def per_batch(a):
        return pl.BlockSpec((1,) + a.shape[1:],
                            lambda b, i: (b,) + (0,) * (a.ndim - 1))

    def lora_pool(a):   # scalar-prefetched idx selects the pool entry per batch
        return pl.BlockSpec((1,) + a.shape[1:],
                            lambda b, i: (i[b],) + (0,) * (a.ndim - 1))

    def shared(a):      # constant block index -> DMA'd once, VMEM-resident
        return pl.BlockSpec(a.shape, lambda b, i: (0,) * a.ndim)

    in_specs = ([per_batch(a) for a in ins[:5]]
                + [lora_pool(a) for a in ins[5:13]]
                + [shared(a) for a in ins[13:]])
    out_spec = pl.BlockSpec((1, Tp, _HEAD_PAD), lambda b, i: (b, 0, 0))

    flops = int(B * (2 * L * (Tp * C * 3 * C + 2 * Tp * Tp * C + 9 * Tp * C * C
                              + 8 * Tp * C * cfg["lora_rank"])
                     + 2 * Tp * C * _HEAD_PAD))
    transcendentals = int(B * (L * (H * Tp * Tp + Tp * 4 * C) + Tp * _HEAD_PAD))
    bytes_accessed = int(sum(int(a.size) * 4 for a in ins) + B * Tp * _HEAD_PAD * 4)

    out = pl.pallas_call(
        functools.partial(_gpt_fused_kernel, n_head=H, n_layer=L, t=t, act_size=A),
        out_shape=jax.ShapeDtypeStruct((B, Tp, _HEAD_PAD), jnp.float32),
        grid_spec=pltpu.PrefetchScalarGridSpec(
            num_scalar_prefetch=1,
            grid=(B,),
            in_specs=in_specs,
            out_specs=out_spec,
            scratch_shapes=[pltpu.VMEM((Tp, C), jnp.float32)],
        ),
        # "parallel" over batch: v7x puts one batch element per TensorCore; on v5e/v6e
        # it is one extra sequential grid step (~0.35 us) for the whole forward.
        compiler_params=pltpu.CompilerParams(dimension_semantics=("parallel",)),
        cost_estimate=pl.CostEstimate(flops=flops, transcendentals=transcendentals,
                                      bytes_accessed=bytes_accessed),
    )(idx, *ins)

    # grouped layout: row 0 = command, rows [1+t, 1+2t) = state rows,
    # rows [1+2t, 1+3t) = action rows.
    actions_pred = out[:, 1 + t:1 + 2 * t, :A]                 # tanh lanes
    rewards_pred = out[:, 1 + 2 * t:1 + 3 * t, A:A + 1]        # sigmoid lane
    task_pred = out[:, 0, A + 1:A + 1 + NT]                    # logit lanes
    return actions_pred, rewards_pred, task_pred


# ----------------------------------------------------------------------------
if __name__ == "__main__":
    cfg = CFG
    B, t = 2, 8

    root = jax.random.PRNGKey(0)
    kp, k1, k2, k3, k4, k5, k6, k7 = jax.random.split(root, 8)

    params = init_params(kp, cfg)

    commands = jax.random.normal(k1, (B, 1, cfg["command_size"]), jnp.float32)
    returns_to_go = jax.random.normal(k2, (B, t, 1), jnp.float32)
    states = jax.random.normal(k3, (B, t, cfg["state_size"]), jnp.float32)
    hand_poses = jax.random.normal(k4, (B, t, cfg["hand_pos_size"]), jnp.float32)
    actions = jax.random.normal(k5, (B, t, cfg["action_size"]), jnp.float32)
    time_steps = jax.random.randint(k6, (B, t), 0, cfg["max_episode_len"], jnp.int32)
    idx = jax.random.randint(k7, (B,), 0, cfg["pool_size"], jnp.int32)

    fwd = jax.jit(lambda p, cm, rtg, st, hp, ac, ts, ix:
                  gpt_forward(p, cfg, cm, rtg, st, hp, ac, ts, ix))

    actions_pred, rewards_pred, task_pred = fwd(
        params, commands, returns_to_go, states, hand_poses, actions, time_steps, idx)
    jax.block_until_ready((actions_pred, rewards_pred, task_pred))

    assert actions_pred.shape == (B, t, cfg["action_size"])
    assert rewards_pred.shape == (B, t, 1)
    assert task_pred.shape == (B, cfg["num_tasks"])
    assert bool(jnp.all(jnp.isfinite(actions_pred)))
    assert bool(jnp.all(jnp.isfinite(rewards_pred)))
    assert bool(jnp.all(jnp.isfinite(task_pred)))
    assert bool(jnp.all(jnp.abs(actions_pred) <= 1.0))
    assert bool(jnp.all((rewards_pred >= 0.0) & (rewards_pred <= 1.0)))

    print("KERNEL_OK")
</pallas_src>

<mosaic_0001>
module attributes {stable_mosaic.version = 11 : i64} {
  func.func @_gpt_fused_kernel(%arg0: i32, %arg1: memref<2xi32, #tpu.memory_space<smem>>, %arg2: memref<1x8x1xf32, #tpu.memory_space<vmem>>, %arg3: memref<1x8x16xf32, #tpu.memory_space<vmem>>, %arg4: memref<1x8x4xf32, #tpu.memory_space<vmem>>, %arg5: memref<1x1x10xf32, #tpu.memory_space<vmem>>, %arg6: memref<1x8x32xf32, #tpu.memory_space<vmem>>, %arg7: memref<1x2x32x4xf32, #tpu.memory_space<vmem>>, %arg8: memref<1x2x4x32xf32, #tpu.memory_space<vmem>>, %arg9: memref<1x2x32x4xf32, #tpu.memory_space<vmem>>, %arg10: memref<1x2x4x32xf32, #tpu.memory_space<vmem>>, %arg11: memref<1x2x32x4xf32, #tpu.memory_space<vmem>>, %arg12: memref<1x2x4x128xf32, #tpu.memory_space<vmem>>, %arg13: memref<1x2x128x4xf32, #tpu.memory_space<vmem>>, %arg14: memref<1x2x4x32xf32, #tpu.memory_space<vmem>>, %arg15: memref<1x32xf32, #tpu.memory_space<vmem>>, %arg16: memref<1x32xf32, #tpu.memory_space<vmem>>, %arg17: memref<16x32xf32, #tpu.memory_space<vmem>>, %arg18: memref<1x32xf32, #tpu.memory_space<vmem>>, %arg19: memref<4x32xf32, #tpu.memory_space<vmem>>, %arg20: memref<1x32xf32, #tpu.memory_space<vmem>>, %arg21: memref<10x32xf32, #tpu.memory_space<vmem>>, %arg22: memref<1x32xf32, #tpu.memory_space<vmem>>, %arg23: memref<1x32xf32, #tpu.memory_space<vmem>>, %arg24: memref<1x32xf32, #tpu.memory_space<vmem>>, %arg25: memref<2x1x32xf32, #tpu.memory_space<vmem>>, %arg26: memref<2x1x32xf32, #tpu.memory_space<vmem>>, %arg27: memref<2x32x96xf32, #tpu.memory_space<vmem>>, %arg28: memref<2x1x96xf32, #tpu.memory_space<vmem>>, %arg29: memref<2x4x8x32xf32, #tpu.memory_space<vmem>>, %arg30: memref<2x1x32xf32, #tpu.memory_space<vmem>>, %arg31: memref<2x1x32xf32, #tpu.memory_space<vmem>>, %arg32: memref<2x1x32xf32, #tpu.memory_space<vmem>>, %arg33: memref<2x32x128xf32, #tpu.memory_space<vmem>>, %arg34: memref<2x1x128xf32, #tpu.memory_space<vmem>>, %arg35: memref<2x128x32xf32, #tpu.memory_space<vmem>>, %arg36: memref<2x1x32xf32, #tpu.memory_space<vmem>>, %arg37: memref<32x32xf32, #tpu.memory_space<vmem>>, %arg38: memref<32x128xf32, #tpu.memory_space<vmem>>, %arg39: memref<1x128xf32, #tpu.memory_space<vmem>>, %arg40: memref<1x32x128xf32, #tpu.memory_space<vmem>>, %arg41: memref<32x32xf32, #tpu.memory_space<vmem>>) attributes {dimension_semantics = [#tpu.dimension_semantics<parallel>], iteration_bounds = array<i64: 2>, scalar_prefetch = 1 : i64, scratch_operands = 1 : i64, tpu.core_type = #tpu.core_type<tc>, window_params = [{transform_indices = @transform_0, window_bounds = array<i64: 1, 8, 1>}, {transform_indices = @transform_1, window_bounds = array<i64: 1, 8, 16>}, {transform_indices = @transform_2, window_bounds = array<i64: 1, 8, 4>}, {transform_indices = @transform_3, window_bounds = array<i64: 1, 1, 10>}, {transform_indices = @transform_4, window_bounds = array<i64: 1, 8, 32>}, {transform_indices = @transform_5, window_bounds = array<i64: 1, 2, 32, 4>}, {transform_indices = @transform_6, window_bounds = array<i64: 1, 2, 4, 32>}, {transform_indices = @transform_7, window_bounds = array<i64: 1, 2, 32, 4>}, {transform_indices = @transform_8, window_bounds = array<i64: 1, 2, 4, 32>}, {transform_indices = @transform_9, window_bounds = array<i64: 1, 2, 32, 4>}, {transform_indices = @transform_10, window_bounds = array<i64: 1, 2, 4, 128>}, {transform_indices = @transform_11, window_bounds = array<i64: 1, 2, 128, 4>}, {transform_indices = @transform_12, window_bounds = array<i64: 1, 2, 4, 32>}, {pipeline_mode = #tpu.pipeline_mode<synchronous>, transform_indices = @transform_13, window_bounds = array<i64: 1, 32>}, {pipeline_mode = #tpu.pipeline_mode<synchronous>, transform_indices = @transform_14, window_bounds = array<i64: 1, 32>}, {pipeline_mode = #tpu.pipeline_mode<synchronous>, transform_indices = @transform_15, window_bounds = array<i64: 16, 32>}, {pipeline_mode = #tpu.pipeline_mode<synchronous>, transform_indices = @transform_16, window_bounds = array<i64: 1, 32>}, {pipeline_mode = #tpu.pipeline_mode<synchronous>, transform_indices = @transform_17, window_bounds = array<i64: 4, 32>}, {pipeline_mode = #tpu.pipeline_mode<synchronous>, transform_indices = @transform_18, window_bounds = array<i64: 1, 32>}, {pipeline_mode = #tpu.pipeline_mode<synchronous>, transform_indices = @transform_19, window_bounds = array<i64: 10, 32>}, {pipeline_mode = #tpu.pipeline_mode<synchronous>, transform_indices = @transform_20, window_bounds = array<i64: 1, 32>}, {pipeline_mode = #tpu.pipeline_mode<synchronous>, transform_indices = @transform_21, window_bounds = array<i64: 1, 32>}, {pipeline_mode = #tpu.pipeline_mode<synchronous>, transform_indices = @transform_22, window_bounds = array<i64: 1, 32>}, {pipeline_mode = #tpu.pipeline_mode<synchronous>, transform_indices = @transform_23, window_bounds = array<i64: 2, 1, 32>}, {pipeline_mode = #tpu.pipeline_mode<synchronous>, transform_indices = @transform_24, window_bounds = array<i64: 2, 1, 32>}, {pipeline_mode = #tpu.pipeline_mode<synchronous>, transform_indices = @transform_25, window_bounds = array<i64: 2, 32, 96>}, {pipeline_mode = #tpu.pipeline_mode<synchronous>, transform_indices = @transform_26, window_bounds = array<i64: 2, 1, 96>}, {pipeline_mode = #tpu.pipeline_mode<synchronous>, transform_indices = @transform_27, window_bounds = array<i64: 2, 4, 8, 32>}, {pipeline_mode = #tpu.pipeline_mode<synchronous>, transform_indices = @transform_28, window_bounds = array<i64: 2, 1, 32>}, {pipeline_mode = #tpu.pipeline_mode<synchronous>, transform_indices = @transform_29, window_bounds = array<i64: 2, 1, 32>}, {pipeline_mode = #tpu.pipeline_mode<synchronous>, transform_indices = @transform_30, window_bounds = array<i64: 2, 1, 32>}, {pipeline_mode = #tpu.pipeline_mode<synchronous>, transform_indices = @transform_31, window_bounds = array<i64: 2, 32, 128>}, {pipeline_mode = #tpu.pipeline_mode<synchronous>, transform_indices = @transform_32, window_bounds = array<i64: 2, 1, 128>}, {pipeline_mode = #tpu.pipeline_mode<synchronous>, transform_indices = @transform_33, window_bounds = array<i64: 2, 128, 32>}, {pipeline_mode = #tpu.pipeline_mode<synchronous>, transform_indices = @transform_34, window_bounds = array<i64: 2, 1, 32>}, {pipeline_mode = #tpu.pipeline_mode<synchronous>, transform_indices = @transform_35, window_bounds = array<i64: 32, 32>}, {pipeline_mode = #tpu.pipeline_mode<synchronous>, transform_indices = @transform_36, window_bounds = array<i64: 32, 128>}, {pipeline_mode = #tpu.pipeline_mode<synchronous>, transform_indices = @transform_37, window_bounds = array<i64: 1, 128>}, {transform_indices = @transform_38, window_bounds = array<i64: 1, 32, 128>}]} {
    %c0 = arith.constant 0 : index
    %c0_0 = arith.constant 0 : index
    %0 = vector.load %arg23[%c0, %c0_0] : memref<1x32xf32, #tpu.memory_space<vmem>>, vector<1x32xf32>
    %c0_1 = arith.constant 0 : index
    %c0_2 = arith.constant 0 : index
    %1 = vector.load %arg24[%c0_1, %c0_2] : memref<1x32xf32, #tpu.memory_space<vmem>>, vector<1x32xf32>
    %c0_3 = arith.constant 0 : index
    %c0_4 = arith.constant 0 : index
    %c0_5 = arith.constant 0 : index
    %2 = vector.load %arg6[%c0_3, %c0_4, %c0_5] : memref<1x8x32xf32, #tpu.memory_space<vmem>>, vector<1x8x32xf32>
    %3 = vector.shape_cast %2 : vector<1x8x32xf32> to vector<8x32xf32>
    %c0_6 = arith.constant 0 : index
    %c0_7 = arith.constant 0 : index
    %c0_8 = arith.constant 0 : index
    %4 = vector.load %arg5[%c0_6, %c0_7, %c0_8] : memref<1x1x10xf32, #tpu.memory_space<vmem>>, vector<1x1x10xf32>
    %5 = vector.shape_cast %4 : vector<1x1x10xf32> to vector<1x10xf32>
    %c0_9 = arith.constant 0 : index
    %c0_10 = arith.constant 0 : index
    %6 = vector.load %arg21[%c0_9, %c0_10] : memref<10x32xf32, #tpu.memory_space<vmem>>, vector<10x32xf32>
    %cst = arith.constant dense<0.000000e+00> : vector<1x32xf32>
    %7 = tpu.matmul %5, %6, %cst {dimension_numbers = #tpu.dot_dimension_numbers<[1], [0], [0], [1], [0, 0, 1, 1], [], []>} : vector<1x10xf32>, vector<10x32xf32>, vector<1x32xf32> -> vector<1x32xf32>
    %c0_11 = arith.constant 0 : index
    %c0_12 = arith.constant 0 : index
    %8 = vector.load %arg22[%c0_11, %c0_12] : memref<1x32xf32, #tpu.memory_space<vmem>>, vector<1x32xf32>
    %9 = arith.addf %7, %8 : vector<1x32xf32>
    %c0_13 = arith.constant 0 : index
    %c0_14 = arith.constant 0 : index
    %c0_15 = arith.constant 0 : index
    %10 = vector.load %arg2[%c0_13, %c0_14, %c0_15] : memref<1x8x1xf32, #tpu.memory_space<vmem>>, vector<1x8x1xf32>
    %11 = vector.shape_cast %10 : vector<1x8x1xf32> to vector<8x1xf32>
    %c0_16 = arith.constant 0 : index
    %c0_17 = arith.constant 0 : index
    %12 = vector.load %arg15[%c0_16, %c0_17] : memref<1x32xf32, #tpu.memory_space<vmem>>, vector<1x32xf32>
    %13 = vector.broadcast %11 : vector<8x1xf32> to vector<8x32xf32>
    %14 = vector.broadcast %12 : vector<1x32xf32> to vector<8x32xf32>
    %15 = arith.mulf %13, %14 : vector<8x32xf32>
    %c0_18 = arith.constant 0 : index
    %c0_19 = arith.constant 0 : index
    %16 = vector.load %arg16[%c0_18, %c0_19] : memref<1x32xf32, #tpu.memory_space<vmem>>, vector<1x32xf32>
    %17 = vector.broadcast %16 : vector<1x32xf32> to vector<8x32xf32>
    %18 = arith.addf %15, %17 : vector<8x32xf32>
    %19 = arith.addf %18, %3 : vector<8x32xf32>
    %c0_20 = arith.constant 0 : index
    %c0_21 = arith.constant 0 : index
    %c0_22 = arith.constant 0 : index
    %20 = vector.load %arg3[%c0_20, %c0_21, %c0_22] : memref<1x8x16xf32, #tpu.memory_space<vmem>>, vector<1x8x16xf32>
    %21 = vector.shape_cast %20 : vector<1x8x16xf32> to vector<8x16xf32>
    %c0_23 = arith.constant 0 : index
    %c0_24 = arith.constant 0 : index
    %22 = vector.load %arg17[%c0_23, %c0_24] : memref<16x32xf32, #tpu.memory_space<vmem>>, vector<16x32xf32>
    %cst_25 = arith.constant dense<0.000000e+00> : vector<8x32xf32>
    %23 = tpu.matmul %21, %22, %cst_25 {dimension_numbers = #tpu.dot_dimension_numbers<[1], [0], [0], [1], [0, 0, 1, 1], [], []>} : vector<8x16xf32>, vector<16x32xf32>, vector<8x32xf32> -> vector<8x32xf32>
    %c0_26 = arith.constant 0 : index
    %c0_27 = arith.constant 0 : index
    %24 = vector.load %arg18[%c0_26, %c0_27] : memref<1x32xf32, #tpu.memory_space<vmem>>, vector<1x32xf32>
    %25 = vector.broadcast %24 : vector<1x32xf32> to vector<8x32xf32>
    %26 = arith.addf %23, %25 : vector<8x32xf32>
    %27 = arith.addf %26, %3 : vector<8x32xf32>
    %c0_28 = arith.constant 0 : index
    %c0_29 = arith.constant 0 : index
    %c0_30 = arith.constant 0 : index
    %28 = vector.load %arg4[%c0_28, %c0_29, %c0_30] : memref<1x8x4xf32, #tpu.memory_space<vmem>>, vector<1x8x4xf32>
    %29 = vector.shape_cast %28 : vector<1x8x4xf32> to vector<8x4xf32>
    %c0_31 = arith.constant 0 : index
    %c0_32 = arith.constant 0 : index
    %30 = vector.load %arg19[%c0_31, %c0_32] : memref<4x32xf32, #tpu.memory_space<vmem>>, vector<4x32xf32>
    %cst_33 = arith.constant dense<0.000000e+00> : vector<8x32xf32>
    %31 = tpu.matmul %29, %30, %cst_33 {dimension_numbers = #tpu.dot_dimension_numbers<[1], [0], [0], [1], [0, 0, 1, 1], [], []>} : vector<8x4xf32>, vector<4x32xf32>, vector<8x32xf32> -> vector<8x32xf32>
    %c0_34 = arith.constant 0 : index
    %c0_35 = arith.constant 0 : index
    %32 = vector.load %arg20[%c0_34, %c0_35] : memref<1x32xf32, #tpu.memory_space<vmem>>, vector<1x32xf32>
    %33 = vector.broadcast %32 : vector<1x32xf32> to vector<8x32xf32>
    %34 = arith.addf %31, %33 : vector<8x32xf32>
    %35 = arith.addf %34, %3 : vector<8x32xf32>
    %cst_36 = arith.constant dense<0.000000e+00> : vector<1xf32>
    %36 = vector.multi_reduction <add>, %9, %cst_36 [1] : vector<1x32xf32> to vector<1xf32>
    %37 = vector.shape_cast %36 : vector<1xf32> to vector<1x1xf32>
    %cst_37 = arith.constant 3.200000e+01 : f32
    %38 = vector.broadcast %cst_37 : f32 to vector<1x1xf32>
    %39 = arith.divf %37, %38 : vector<1x1xf32>
    %40 = vector.broadcast %39 : vector<1x1xf32> to vector<1x32xf32>
    %41 = arith.subf %9, %40 : vector<1x32xf32>
    %42 = arith.mulf %41, %41 : vector<1x32xf32>
    %cst_38 = arith.constant dense<0.000000e+00> : vector<1xf32>
    %43 = vector.multi_reduction <add>, %42, %cst_38 [1] : vector<1x32xf32> to vector<1xf32>
    %44 = vector.shape_cast %43 : vector<1xf32> to vector<1x1xf32>
    %cst_39 = arith.constant 3.200000e+01 : f32
    %45 = vector.broadcast %cst_39 : f32 to vector<1x1xf32>
    %46 = arith.divf %44, %45 : vector<1x1xf32>
    %47 = vector.broadcast %39 : vector<1x1xf32> to vector<1x32xf32>
    %48 = arith.subf %9, %47 : vector<1x32xf32>
    %cst_40 = arith.constant 9.99999974E-6 : f32
    %49 = vector.broadcast %cst_40 : f32 to vector<1x1xf32>
    %50 = arith.addf %46, %49 : vector<1x1xf32>
    %51 = math.rsqrt %50 : vector<1x1xf32>
    %52 = vector.broadcast %51 : vector<1x1xf32> to vector<1x32xf32>
    %53 = arith.mulf %48, %52 : vector<1x32xf32>
    %54 = arith.mulf %53, %0 : vector<1x32xf32>
    %55 = arith.addf %54, %1 : vector<1x32xf32>
    %c0_41 = arith.constant 0 : index
    %c0_42 = arith.constant 0 : index
    %56 = vector.load %arg41[%c0_41, %c0_42] : memref<32x32xf32, #tpu.memory_space<vmem>>, vector<1x32xf32>
    tpu.vector_store %arg41[%c0_41, %c0_42], %55 {strides = array<i32>} : memref<32x32xf32, #tpu.memory_space<vmem>>, vector<1x32xf32>,
    %cst_43 = arith.constant dense<0.000000e+00> : vector<8xf32>
    %57 = vector.multi_reduction <add>, %19, %cst_43 [1] : vector<8x32xf32> to vector<8xf32>
    %58 = vector.shape_cast %57 : vector<8xf32> to vector<8x1xf32>
    %cst_44 = arith.constant 3.200000e+01 : f32
    %59 = vector.broadcast %cst_44 : f32 to vector<8x1xf32>
    %60 = arith.divf %58, %59 : vector<8x1xf32>
    %61 = vector.broadcast %60 : vector<8x1xf32> to vector<8x32xf32>
    %62 = arith.subf %19, %61 : vector<8x32xf32>
    %63 = arith.mulf %62, %62 : vector<8x32xf32>
    %cst_45 = arith.constant dense<0.000000e+00> : vector<8xf32>
    %64 = vector.multi_reduction <add>, %63, %cst_45 [1] : vector<8x32xf32> to vector<8xf32>
    %65 = vector.shape_cast %64 : vector<8xf32> to vector<8x1xf32>
    %cst_46 = arith.constant 3.200000e+01 : f32
    %66 = vector.broadcast %cst_46 : f32 to vector<8x1xf32>
    %67 = arith.divf %65, %66 : vector<8x1xf32>
    %68 = vector.broadcast %60 : vector<8x1xf32> to vector<8x32xf32>
    %69 = arith.subf %19, %68 : vector<8x32xf32>
    %cst_47 = arith.constant 9.99999974E-6 : f32
    %70 = vector.broadcast %cst_47 : f32 to vector<8x1xf32>
    %71 = arith.addf %67, %70 : vector<8x1xf32>
    %72 = math.rsqrt %71 : vector<8x1xf32>
    %73 = vector.broadcast %72 : vector<8x1xf32> to vector<8x32xf32>
    %74 = arith.mulf %69, %73 : vector<8x32xf32>
    %75 = vector.broadcast %0 : vector<1x32xf32> to vector<8x32xf32>
    %76 = arith.mulf %74, %75 : vector<8x32xf32>
    %77 = vector.broadcast %1 : vector<1x32xf32> to vector<8x32xf32>
    %78 = arith.addf %76, %77 : vector<8x32xf32>
    %c1 = arith.constant 1 : index
    %c0_48 = arith.constant 0 : index
    %79 = vector.load %arg41[%c1, %c0_48] : memref<32x32xf32, #tpu.memory_space<vmem>>, vector<8x32xf32>
    tpu.vector_store %arg41[%c1, %c0_48], %78 {strides = array<i32>} : memref<32x32xf32, #tpu.memory_space<vmem>>, vector<8x32xf32>,
    %cst_49 = arith.constant dense<0.000000e+00> : vector<8xf32>
    %80 = vector.multi_reduction <add>, %27, %cst_49 [1] : vector<8x32xf32> to vector<8xf32>
    %81 = vector.shape_cast %80 : vector<8xf32> to vector<8x1xf32>
    %cst_50 = arith.constant 3.200000e+01 : f32
    %82 = vector.broadcast %cst_50 : f32 to vector<8x1xf32>
    %83 = arith.divf %81, %82 : vector<8x1xf32>
    %84 = vector.broadcast %83 : vector<8x1xf32> to vector<8x32xf32>
    %85 = arith.subf %27, %84 : vector<8x32xf32>
    %86 = arith.mulf %85, %85 : vector<8x32xf32>
    %cst_51 = arith.constant dense<0.000000e+00> : vector<8xf32>
    %87 = vector.multi_reduction <add>, %86, %cst_51 [1] : vector<8x32xf32> to vector<8xf32>
    %88 = vector.shape_cast %87 : vector<8xf32> to vector<8x1xf32>
    %cst_52 = arith.constant 3.200000e+01 : f32
    %89 = vector.broadcast %cst_52 : f32 to vector<8x1xf32>
    %90 = arith.divf %88, %89 : vector<8x1xf32>
    %91 = vector.broadcast %83 : vector<8x1xf32> to vector<8x32xf32>
    %92 = arith.subf %27, %91 : vector<8x32xf32>
    %cst_53 = arith.constant 9.99999974E-6 : f32
    %93 = vector.broadcast %cst_53 : f32 to vector<8x1xf32>
    %94 = arith.addf %90, %93 : vector<8x1xf32>
    %95 = math.rsqrt %94 : vector<8x1xf32>
    %96 = vector.broadcast %95 : vector<8x1xf32> to vector<8x32xf32>
    %97 = arith.mulf %92, %96 : vector<8x32xf32>
    %98 = vector.broadcast %0 : vector<1x32xf32> to vector<8x32xf32>
    %99 = arith.mulf %97, %98 : vector<8x32xf32>
    %100 = vector.broadcast %1 : vector<1x32xf32> to vector<8x32xf32>
    %101 = arith.addf %99, %100 : vector<8x32xf32>
    %c9 = arith.constant 9 : index
    %c0_54 = arith.constant 0 : index
    %102 = vector.load %arg41[%c9, %c0_54] : memref<32x32xf32, #tpu.memory_space<vmem>>, vector<8x32xf32>
    tpu.vector_store %arg41[%c9, %c0_54], %101 {strides = array<i32>} : memref<32x32xf32, #tpu.memory_space<vmem>>, vector<8x32xf32>,
    %cst_55 = arith.constant dense<0.000000e+00> : vector<8xf32>
    %103 = vector.multi_reduction <add>, %35, %cst_55 [1] : vector<8x32xf32> to vector<8xf32>
    %104 = vector.shape_cast %103 : vector<8xf32> to vector<8x1xf32>
    %cst_56 = arith.constant 3.200000e+01 : f32
    %105 = vector.broadcast %cst_56 : f32 to vector<8x1xf32>
    %106 = arith.divf %104, %105 : vector<8x1xf32>
    %107 = vector.broadcast %106 : vector<8x1xf32> to vector<8x32xf32>
    %108 = arith.subf %35, %107 : vector<8x32xf32>
    %109 = arith.mulf %108, %108 : vector<8x32xf32>
    %cst_57 = arith.constant dense<0.000000e+00> : vector<8xf32>
    %110 = vector.multi_reduction <add>, %109, %cst_57 [1] : vector<8x32xf32> to vector<8xf32>
    %111 = vector.shape_cast %110 : vector<8xf32> to vector<8x1xf32>
    %cst_58 = arith.constant 3.200000e+01 : f32
    %112 = vector.broadcast %cst_58 : f32 to vector<8x1xf32>
    %113 = arith.divf %111, %112 : vector<8x1xf32>
    %114 = vector.broadcast %106 : vector<8x1xf32> to vector<8x32xf32>
    %115 = arith.subf %35, %114 : vector<8x32xf32>
    %cst_59 = arith.constant 9.99999974E-6 : f32
    %116 = vector.broadcast %cst_59 : f32 to vector<8x1xf32>
    %117 = arith.addf %113, %116 : vector<8x1xf32>
    %118 = math.rsqrt %117 : vector<8x1xf32>
    %119 = vector.broadcast %118 : vector<8x1xf32> to vector<8x32xf32>
    %120 = arith.mulf %115, %119 : vector<8x32xf32>
    %121 = vector.broadcast %0 : vector<1x32xf32> to vector<8x32xf32>
    %122 = arith.mulf %120, %121 : vector<8x32xf32>
    %123 = vector.broadcast %1 : vector<1x32xf32> to vector<8x32xf32>
    %124 = arith.addf %122, %123 : vector<8x32xf32>
    %c17 = arith.constant 17 : index
    %c0_60 = arith.constant 0 : index
    %125 = vector.load %arg41[%c17, %c0_60] : memref<32x32xf32, #tpu.memory_space<vmem>>, vector<8x32xf32>
    tpu.vector_store %arg41[%c17, %c0_60], %124 {strides = array<i32>} : memref<32x32xf32, #tpu.memory_space<vmem>>, vector<8x32xf32>,
    %cst_61 = arith.constant 0.000000e+00 : f32
    %126 = vector.broadcast %cst_61 : f32 to vector<7x32xf32>
    %c25 = arith.constant 25 : index
    %c0_62 = arith.constant 0 : index
    %127 = vector.load %arg41[%c25, %c0_62] : memref<32x32xf32, #tpu.memory_space<vmem>>, vector<7x32xf32>
    tpu.vector_store %arg41[%c25, %c0_62], %126 {strides = array<i32>} : memref<32x32xf32, #tpu.memory_space<vmem>>, vector<7x32xf32>,
    %c0_63 = arith.constant 0 : index
    %c0_64 = arith.constant 0 : index
    %128 = vector.load %arg41[%c0_63, %c0_64] : memref<32x32xf32, #tpu.memory_space<vmem>>, vector<32x32xf32>
    %c0_65 = arith.constant 0 : index
    %c0_66 = arith.constant 0 : index
    %129 = vector.load %arg37[%c0_65, %c0_66] : memref<32x32xf32, #tpu.memory_space<vmem>>, vector<32x32xf32>
    %c0_67 = arith.constant 0 : index
    %c0_68 = arith.constant 0 : index
    %c0_69 = arith.constant 0 : index
    %130 = vector.load %arg25[%c0_67, %c0_68, %c0_69] : memref<2x1x32xf32, #tpu.memory_space<vmem>>, vector<1x1x32xf32>
    %131 = vector.shape_cast %130 : vector<1x1x32xf32> to vector<1x32xf32>
    %c0_70 = arith.constant 0 : index
    %c0_71 = arith.constant 0 : index
    %c0_72 = arith.constant 0 : index
    %132 = vector.load %arg26[%c0_70, %c0_71, %c0_72] : memref<2x1x32xf32, #tpu.memory_space<vmem>>, vector<1x1x32xf32>
    %133 = vector.shape_cast %132 : vector<1x1x32xf32> to vector<1x32xf32>
    %cst_73 = arith.constant dense<0.000000e+00> : vector<32xf32>
    %134 = vector.multi_reduction <add>, %128, %cst_73 [1] : vector<32x32xf32> to vector<32xf32>
    %135 = vector.shape_cast %134 : vector<32xf32> to vector<32x1xf32>
    %cst_74 = arith.constant 3.200000e+01 : f32
    %136 = vector.broadcast %cst_74 : f32 to vector<32x1xf32>
    %137 = arith.divf %135, %136 : vector<32x1xf32>
    %138 = vector.broadcast %137 : vector<32x1xf32> to vector<32x32xf32>
    %139 = arith.subf %128, %138 : vector<32x32xf32>
    %140 = arith.mulf %139, %139 : vector<32x32xf32>
    %cst_75 = arith.constant dense<0.000000e+00> : vector<32xf32>
    %141 = vector.multi_reduction <add>, %140, %cst_75 [1] : vector<32x32xf32> to vector<32xf32>
    %142 = vector.shape_cast %141 : vector<32xf32> to vector<32x1xf32>
    %cst_76 = arith.constant 3.200000e+01 : f32
    %143 = vector.broadcast %cst_76 : f32 to vector<32x1xf32>
    %144 = arith.divf %142, %143 : vector<32x1xf32>
    %145 = vector.broadcast %137 : vector<32x1xf32> to vector<32x32xf32>
    %146 = arith.subf %128, %145 : vector<32x32xf32>
    %cst_77 = arith.constant 9.99999974E-6 : f32
    %147 = vector.broadcast %cst_77 : f32 to vector<32x1xf32>
    %148 = arith.addf %144, %147 : vector<32x1xf32>
    %149 = math.rsqrt %148 : vector<32x1xf32>
    %150 = vector.broadcast %149 : vector<32x1xf32> to vector<32x32xf32>
    %151 = arith.mulf %146, %150 : vector<32x32xf32>
    %152 = vector.broadcast %131 : vector<1x32xf32> to vector<32x32xf32>
    %153 = arith.mulf %151, %152 : vector<32x32xf32>
    %154 = vector.broadcast %133 : vector<1x32xf32> to vector<32x32xf32>
    %155 = arith.addf %153, %154 : vector<32x32xf32>
    %c0_78 = arith.constant 0 : index
    %c0_79 = arith.constant 0 : index
    %c0_80 = arith.constant 0 : index
    %156 = vector.load %arg27[%c0_78, %c0_79, %c0_80] : memref<2x32x96xf32, #tpu.memory_space<vmem>>, vector<1x32x96xf32>
    %157 = vector.shape_cast %156 : vector<1x32x96xf32> to vector<32x96xf32>
    %cst_81 = arith.constant dense<0.000000e+00> : vector<32x96xf32>
    %158 = tpu.matmul %155, %157, %cst_81 {dimension_numbers = #tpu.dot_dimension_numbers<[1], [0], [0], [1], [0, 0, 1, 1], [], []>} : vector<32x32xf32>, vector<32x96xf32>, vector<32x96xf32> -> vector<32x96xf32>
    %c0_82 = arith.constant 0 : index
    %c0_83 = arith.constant 0 : index
    %c0_84 = arith.constant 0 : index
    %159 = vector.load %arg28[%c0_82, %c0_83, %c0_84] : memref<2x1x96xf32, #tpu.memory_space<vmem>>, vector<1x1x96xf32>
    %160 = vector.shape_cast %159 : vector<1x1x96xf32> to vector<1x96xf32>
    %161 = vector.broadcast %160 : vector<1x96xf32> to vector<32x96xf32>
    %162 = arith.addf %158, %161 : vector<32x96xf32>
    %c0_85 = arith.constant 0 : index
    %c0_86 = arith.constant 0 : index
    %c0_87 = arith.constant 0 : index
    %c0_88 = arith.constant 0 : index
    %163 = vector.load %arg7[%c0_85, %c0_86, %c0_87, %c0_88] : memref<1x2x32x4xf32, #tpu.memory_space<vmem>>, vector<1x1x32x4xf32>
    %164 = vector.shape_cast %163 : vector<1x1x32x4xf32> to vector<32x4xf32>
    %cst_89 = arith.constant dense<0.000000e+00> : vector<32x4xf32>
    %165 = tpu.matmul %155, %164, %cst_89 {dimension_numbers = #tpu.dot_dimension_numbers<[1], [0], [0], [1], [0, 0, 1, 1], [], []>} : vector<32x32xf32>, vector<32x4xf32>, vector<32x4xf32> -> vector<32x4xf32>
    %c0_90 = arith.constant 0 : index
    %c0_91 = arith.constant 0 : index
    %c0_92 = arith.constant 0 : index
    %c0_93 = arith.constant 0 : index
    %166 = vector.load %arg8[%c0_90, %c0_91, %c0_92, %c0_93] : memref<1x2x4x32xf32, #tpu.memory_space<vmem>>, vector<1x1x4x32xf32>
    %167 = vector.shape_cast %166 : vector<1x1x4x32xf32> to vector<4x32xf32>
    %cst_94 = arith.constant dense<0.000000e+00> : vector<32x32xf32>
    %168 = tpu.matmul %165, %167, %cst_94 {dimension_numbers = #tpu.dot_dimension_numbers<[1], [0], [0], [1], [0, 0, 1, 1], [], []>} : vector<32x4xf32>, vector<4x32xf32>, vector<32x32xf32> -> vector<32x32xf32>
    %c0_95 = arith.constant 0 : index
    %c0_96 = arith.constant 0 : index
    %c0_97 = arith.constant 0 : index
    %c0_98 = arith.constant 0 : index
    %169 = vector.load %arg9[%c0_95, %c0_96, %c0_97, %c0_98] : memref<1x2x32x4xf32, #tpu.memory_space<vmem>>, vector<1x1x32x4xf32>
    %170 = vector.shape_cast %169 : vector<1x1x32x4xf32> to vector<32x4xf32>
    %cst_99 = arith.constant dense<0.000000e+00> : vector<32x4xf32>
    %171 = tpu.matmul %155, %170, %cst_99 {dimension_numbers = #tpu.dot_dimension_numbers<[1], [0], [0], [1], [0, 0, 1, 1], [], []>} : vector<32x32xf32>, vector<32x4xf32>, vector<32x4xf32> -> vector<32x4xf32>
    %c0_100 = arith.constant 0 : index
    %c0_101 = arith.constant 0 : index
    %c0_102 = arith.constant 0 : index
    %c0_103 = arith.constant 0 : index
    %172 = vector.load %arg10[%c0_100, %c0_101, %c0_102, %c0_103] : memref<1x2x4x32xf32, #tpu.memory_space<vmem>>, vector<1x1x4x32xf32>
    %173 = vector.shape_cast %172 : vector<1x1x4x32xf32> to vector<4x32xf32>
    %cst_104 = arith.constant dense<0.000000e+00> : vector<32x32xf32>
    %174 = tpu.matmul %171, %173, %cst_104 {dimension_numbers = #tpu.dot_dimension_numbers<[1], [0], [0], [1], [0, 0, 1, 1], [], []>} : vector<32x4xf32>, vector<4x32xf32>, vector<32x32xf32> -> vector<32x32xf32>
    %175 = vector.extract_strided_slice %162 {offsets = [0, 0], sizes = [32, 32], strides = [1, 1]} : vector<32x96xf32> to vector<32x32xf32>
    %176 = arith.addf %175, %168 : vector<32x32xf32>
    %cst_105 = arith.constant 0.353553385 : f32
    %177 = vector.broadcast %cst_105 : f32 to vector<32x32xf32>
    %178 = arith.mulf %176, %177 : vector<32x32xf32>
    %179 = vector.extract_strided_slice %162 {offsets = [0, 32], sizes = [32, 32], strides = [1, 1]} : vector<32x96xf32> to vector<32x32xf32>
    %180 = vector.extract_strided_slice %162 {offsets = [0, 64], sizes = [32, 32], strides = [1, 1]} : vector<32x96xf32> to vector<32x32xf32>
    %181 = arith.addf %180, %174 : vector<32x32xf32>
    %cst_106 = arith.constant 0.000000e+00 : f32
    %182 = vector.broadcast %cst_106 : f32 to vector<32x32xf32>
    %183 = vector.extract_strided_slice %178 {offsets = [0, 0], sizes = [32, 8], strides = [1, 1]} : vector<32x32xf32> to vector<32x8xf32>
    %184 = vector.extract_strided_slice %179 {offsets = [0, 0], sizes = [32, 8], strides = [1, 1]} : vector<32x32xf32> to vector<32x8xf32>
    %185 = vector.extract_strided_slice %181 {offsets = [0, 0], sizes = [32, 8], strides = [1, 1]} : vector<32x32xf32> to vector<32x8xf32>
    %cst_107 = arith.constant dense<0.000000e+00> : vector<32x32xf32>
    %186 = tpu.matmul %183, %184, %cst_107 {dimension_numbers = #tpu.dot_dimension_numbers<[1], [1], [0], [0], [0, 0, 1, 0], [], []>} : vector<32x8xf32>, vector<32x8xf32>, vector<32x32xf32> -> vector<32x32xf32>
    %187 = arith.addf %186, %129 : vector<32x32xf32>
    %cst_108 = arith.constant dense<0xFF800000> : vector<32xf32>
    %188 = vector.multi_reduction <maximumf>, %187, %cst_108 [1] : vector<32x32xf32> to vector<32xf32>
    %189 = vector.shape_cast %188 : vector<32xf32> to vector<32x1xf32>
    %190 = vector.broadcast %189 : vector<32x1xf32> to vector<32x32xf32>
    %191 = arith.subf %187, %190 : vector<32x32xf32>
    %192 = math.exp %191 : vector<32x32xf32>
    %cst_109 = arith.constant dense<0.000000e+00> : vector<32xf32>
    %193 = vector.multi_reduction <add>, %192, %cst_109 [1] : vector<32x32xf32> to vector<32xf32>
    %194 = vector.shape_cast %193 : vector<32xf32> to vector<32x1xf32>
    %195 = vector.broadcast %194 : vector<32x1xf32> to vector<32x32xf32>
    %196 = arith.divf %192, %195 : vector<32x32xf32>
    %cst_110 = arith.constant dense<0.000000e+00> : vector<32x8xf32>
    %197 = tpu.matmul %196, %185, %cst_110 {dimension_numbers = #tpu.dot_dimension_numbers<[1], [0], [0], [1], [0, 0, 1, 1], [], []>} : vector<32x32xf32>, vector<32x8xf32>, vector<32x8xf32> -> vector<32x8xf32>
    %c0_111 = arith.constant 0 : index
    %c0_112 = arith.constant 0 : index
    %c0_113 = arith.constant 0 : index
    %c0_114 = arith.constant 0 : index
    %198 = vector.load %arg29[%c0_111, %c0_112, %c0_113, %c0_114] : memref<2x4x8x32xf32, #tpu.memory_space<vmem>>, vector<1x1x8x32xf32>
    %199 = vector.shape_cast %198 : vector<1x1x8x32xf32> to vector<8x32xf32>
    %cst_115 = arith.constant dense<0.000000e+00> : vector<32x32xf32>
    %200 = tpu.matmul %197, %199, %cst_115 {dimension_numbers = #tpu.dot_dimension_numbers<[1], [0], [0], [1], [0, 0, 1, 1], [], []>} : vector<32x8xf32>, vector<8x32xf32>, vector<32x32xf32> -> vector<32x32xf32>
    %201 = arith.addf %182, %200 : vector<32x32xf32>
    %202 = vector.extract_strided_slice %178 {offsets = [0, 8], sizes = [32, 8], strides = [1, 1]} : vector<32x32xf32> to vector<32x8xf32>
    %203 = vector.extract_strided_slice %179 {offsets = [0, 8], sizes = [32, 8], strides = [1, 1]} : vector<32x32xf32> to vector<32x8xf32>
    %204 = vector.extract_strided_slice %181 {offsets = [0, 8], sizes = [32, 8], strides = [1, 1]} : vector<32x32xf32> to vector<32x8xf32>
    %cst_116 = arith.constant dense<0.000000e+00> : vector<32x32xf32>
    %205 = tpu.matmul %202, %203, %cst_116 {dimension_numbers = #tpu.dot_dimension_numbers<[1], [1], [0], [0], [0, 0, 1, 0], [], []>} : vector<32x8xf32>, vector<32x8xf32>, vector<32x32xf32> -> vector<32x32xf32>
    %206 = arith.addf %205, %129 : vector<32x32xf32>
    %cst_117 = arith.constant dense<0xFF800000> : vector<32xf32>
    %207 = vector.multi_reduction <maximumf>, %206, %cst_117 [1] : vector<32x32xf32> to vector<32xf32>
    %208 = vector.shape_cast %207 : vector<32xf32> to vector<32x1xf32>
    %209 = vector.broadcast %208 : vector<32x1xf32> to vector<32x32xf32>
    %210 = arith.subf %206, %209 : vector<32x32xf32>
    %211 = math.exp %210 : vector<32x32xf32>
    %cst_118 = arith.constant dense<0.000000e+00> : vector<32xf32>
    %212 = vector.multi_reduction <add>, %211, %cst_118 [1] : vector<32x32xf32> to vector<32xf32>
    %213 = vector.shape_cast %212 : vector<32xf32> to vector<32x1xf32>
    %214 = vector.broadcast %213 : vector<32x1xf32> to vector<32x32xf32>
    %215 = arith.divf %211, %214 : vector<32x32xf32>
    %cst_119 = arith.constant dense<0.000000e+00> : vector<32x8xf32>
    %216 = tpu.matmul %215, %204, %cst_119 {dimension_numbers = #tpu.dot_dimension_numbers<[1], [0], [0], [1], [0, 0, 1, 1], [], []>} : vector<32x32xf32>, vector<32x8xf32>, vector<32x8xf32> -> vector<32x8xf32>
    %c0_120 = arith.constant 0 : index
    %c1_121 = arith.constant 1 : index
    %c0_122 = arith.constant 0 : index
    %c0_123 = arith.constant 0 : index
    %217 = vector.load %arg29[%c0_120, %c1_121, %c0_122, %c0_123] : memref<2x4x8x32xf32, #tpu.memory_space<vmem>>, vector<1x1x8x32xf32>
    %218 = vector.shape_cast %217 : vector<1x1x8x32xf32> to vector<8x32xf32>
    %cst_124 = arith.constant dense<0.000000e+00> : vector<32x32xf32>
    %219 = tpu.matmul %216, %218, %cst_124 {dimension_numbers = #tpu.dot_dimension_numbers<[1], [0], [0], [1], [0, 0, 1, 1], [], []>} : vector<32x8xf32>, vector<8x32xf32>, vector<32x32xf32> -> vector<32x32xf32>
    %220 = arith.addf %201, %219 : vector<32x32xf32>
    %221 = vector.extract_strided_slice %178 {offsets = [0, 16], sizes = [32, 8], strides = [1, 1]} : vector<32x32xf32> to vector<32x8xf32>
    %222 = vector.extract_strided_slice %179 {offsets = [0, 16], sizes = [32, 8], strides = [1, 1]} : vector<32x32xf32> to vector<32x8xf32>
    %223 = vector.extract_strided_slice %181 {offsets = [0, 16], sizes = [32, 8], strides = [1, 1]} : vector<32x32xf32> to vector<32x8xf32>
    %cst_125 = arith.constant dense<0.000000e+00> : vector<32x32xf32>
    %224 = tpu.matmul %221, %222, %cst_125 {dimension_numbers = #tpu.dot_dimension_numbers<[1], [1], [0], [0], [0, 0, 1, 0], [], []>} : vector<32x8xf32>, vector<32x8xf32>, vector<32x32xf32> -> vector<32x32xf32>
    %225 = arith.addf %224, %129 : vector<32x32xf32>
    %cst_126 = arith.constant dense<0xFF800000> : vector<32xf32>
    %226 = vector.multi_reduction <maximumf>, %225, %cst_126 [1] : vector<32x32xf32> to vector<32xf32>
    %227 = vector.shape_cast %226 : vector<32xf32> to vector<32x1xf32>
    %228 = vector.broadcast %227 : vector<32x1xf32> to vector<32x32xf32>
    %229 = arith.subf %225, %228 : vector<32x32xf32>
    %230 = math.exp %229 : vector<32x32xf32>
    %cst_127 = arith.constant dense<0.000000e+00> : vector<32xf32>
    %231 = vector.multi_reduction <add>, %230, %cst_127 [1] : vector<32x32xf32> to vector<32xf32>
    %232 = vector.shape_cast %231 : vector<32xf32> to vector<32x1xf32>
    %233 = vector.broadcast %232 : vector<32x1xf32> to vector<32x32xf32>
    %234 = arith.divf %230, %233 : vector<32x32xf32>
    %cst_128 = arith.constant dense<0.000000e+00> : vector<32x8xf32>
    %235 = tpu.matmul %234, %223, %cst_128 {dimension_numbers = #tpu.dot_dimension_numbers<[1], [0], [0], [1], [0, 0, 1, 1], [], []>} : vector<32x32xf32>, vector<32x8xf32>, vector<32x8xf32> -> vector<32x8xf32>
    %c0_129 = arith.constant 0 : index
    %c2 = arith.constant 2 : index
    %c0_130 = arith.constant 0 : index
    %c0_131 = arith.constant 0 : index
    %236 = vector.load %arg29[%c0_129, %c2, %c0_130, %c0_131] : memref<2x4x8x32xf32, #tpu.memory_space<vmem>>, vector<1x1x8x32xf32>
    %237 = vector.shape_cast %236 : vector<1x1x8x32xf32> to vector<8x32xf32>
    %cst_132 = arith.constant dense<0.000000e+00> : vector<32x32xf32>
    %238 = tpu.matmul %235, %237, %cst_132 {dimension_numbers = #tpu.dot_dimension_numbers<[1], [0], [0], [1], [0, 0, 1, 1], [], []>} : vector<32x8xf32>, vector<8x32xf32>, vector<32x32xf32> -> vector<32x32xf32>
    %239 = arith.addf %220, %238 : vector<32x32xf32>
    %240 = vector.extract_strided_slice %178 {offsets = [0, 24], sizes = [32, 8], strides = [1, 1]} : vector<32x32xf32> to vector<32x8xf32>
    %241 = vector.extract_strided_slice %179 {offsets = [0, 24], sizes = [32, 8], strides = [1, 1]} : vector<32x32xf32> to vector<32x8xf32>
    %242 = vector.extract_strided_slice %181 {offsets = [0, 24], sizes = [32, 8], strides = [1, 1]} : vector<32x32xf32> to vector<32x8xf32>
    %cst_133 = arith.constant dense<0.000000e+00> : vector<32x32xf32>
    %243 = tpu.matmul %240, %241, %cst_133 {dimension_numbers = #tpu.dot_dimension_numbers<[1], [1], [0], [0], [0, 0, 1, 0], [], []>} : vector<32x8xf32>, vector<32x8xf32>, vector<32x32xf32> -> vector<32x32xf32>
    %244 = arith.addf %243, %129 : vector<32x32xf32>
    %cst_134 = arith.constant dense<0xFF800000> : vector<32xf32>
    %245 = vector.multi_reduction <maximumf>, %244, %cst_134 [1] : vector<32x32xf32> to vector<32xf32>
    %246 = vector.shape_cast %245 : vector<32xf32> to vector<32x1xf32>
    %247 = vector.broadcast %246 : vector<32x1xf32> to vector<32x32xf32>
    %248 = arith.subf %244, %247 : vector<32x32xf32>
    %249 = math.exp %248 : vector<32x32xf32>
    %cst_135 = arith.constant dense<0.000000e+00> : vector<32xf32>
    %250 = vector.multi_reduction <add>, %249, %cst_135 [1] : vector<32x32xf32> to vector<32xf32>
    %251 = vector.shape_cast %250 : vector<32xf32> to vector<32x1xf32>
    %252 = vector.broadcast %251 : vector<32x1xf32> to vector<32x32xf32>
    %253 = arith.divf %249, %252 : vector<32x32xf32>
    %cst_136 = arith.constant dense<0.000000e+00> : vector<32x8xf32>
    %254 = tpu.matmul %253, %242, %cst_136 {dimension_numbers = #tpu.dot_dimension_numbers<[1], [0], [0], [1], [0, 0, 1, 1], [], []>} : vector<32x32xf32>, vector<32x8xf32>, vector<32x8xf32> -> vector<32x8xf32>
    %c0_137 = arith.constant 0 : index
    %c3 = arith.constant 3 : index
    %c0_138 = arith.constant 0 : index
    %c0_139 = arith.constant 0 : index
    %255 = vector.load %arg29[%c0_137, %c3, %c0_138, %c0_139] : memref<2x4x8x32xf32, #tpu.memory_space<vmem>>, vector<1x1x8x32xf32>
    %256 = vector.shape_cast %255 : vector<1x1x8x32xf32> to vector<8x32xf32>
    %cst_140 = arith.constant dense<0.000000e+00> : vector<32x32xf32>
    %257 = tpu.matmul %254, %256, %cst_140 {dimension_numbers = #tpu.dot_dimension_numbers<[1], [0], [0], [1], [0, 0, 1, 1], [], []>} : vector<32x8xf32>, vector<8x32xf32>, vector<32x32xf32> -> vector<32x32xf32>
    %258 = arith.addf %239, %257 : vector<32x32xf32>
    %259 = arith.addf %128, %258 : vector<32x32xf32>
    %c0_141 = arith.constant 0 : index
    %c0_142 = arith.constant 0 : index
    %c0_143 = arith.constant 0 : index
    %260 = vector.load %arg30[%c0_141, %c0_142, %c0_143] : memref<2x1x32xf32, #tpu.memory_space<vmem>>, vector<1x1x32xf32>
    %261 = vector.shape_cast %260 : vector<1x1x32xf32> to vector<1x32xf32>
    %262 = vector.broadcast %261 : vector<1x32xf32> to vector<32x32xf32>
    %263 = arith.addf %259, %262 : vector<32x32xf32>
    %c0_144 = arith.constant 0 : index
    %c0_145 = arith.constant 0 : index
    %c0_146 = arith.constant 0 : index
    %264 = vector.load %arg31[%c0_144, %c0_145, %c0_146] : memref<2x1x32xf32, #tpu.memory_space<vmem>>, vector<1x1x32xf32>
    %265 = vector.shape_cast %264 : vector<1x1x32xf32> to vector<1x32xf32>
    %c0_147 = arith.constant 0 : index
    %c0_148 = arith.constant 0 : index
    %c0_149 = arith.constant 0 : index
    %266 = vector.load %arg32[%c0_147, %c0_148, %c0_149] : memref<2x1x32xf32, #tpu.memory_space<vmem>>, vector<1x1x32xf32>
    %267 = vector.shape_cast %266 : vector<1x1x32xf32> to vector<1x32xf32>
    %cst_150 = arith.constant dense<0.000000e+00> : vector<32xf32>
    %268 = vector.multi_reduction <add>, %263, %cst_150 [1] : vector<32x32xf32> to vector<32xf32>
    %269 = vector.shape_cast %268 : vector<32xf32> to vector<32x1xf32>
    %cst_151 = arith.constant 3.200000e+01 : f32
    %270 = vector.broadcast %cst_151 : f32 to vector<32x1xf32>
    %271 = arith.divf %269, %270 : vector<32x1xf32>
    %272 = vector.broadcast %271 : vector<32x1xf32> to vector<32x32xf32>
    %273 = arith.subf %263, %272 : vector<32x32xf32>
    %274 = arith.mulf %273, %273 : vector<32x32xf32>
    %cst_152 = arith.constant dense<0.000000e+00> : vector<32xf32>
    %275 = vector.multi_reduction <add>, %274, %cst_152 [1] : vector<32x32xf32> to vector<32xf32>
    %276 = vector.shape_cast %275 : vector<32xf32> to vector<32x1xf32>
    %cst_153 = arith.constant 3.200000e+01 : f32
    %277 = vector.broadcast %cst_153 : f32 to vector<32x1xf32>
    %278 = arith.divf %276, %277 : vector<32x1xf32>
    %279 = vector.broadcast %271 : vector<32x1xf32> to vector<32x32xf32>
    %280 = arith.subf %263, %279 : vector<32x32xf32>
    %cst_154 = arith.constant 9.99999974E-6 : f32
    %281 = vector.broadcast %cst_154 : f32 to vector<32x1xf32>
    %282 = arith.addf %278, %281 : vector<32x1xf32>
    %283 = math.rsqrt %282 : vector<32x1xf32>
    %284 = vector.broadcast %283 : vector<32x1xf32> to vector<32x32xf32>
    %285 = arith.mulf %280, %284 : vector<32x32xf32>
    %286 = vector.broadcast %265 : vector<1x32xf32> to vector<32x32xf32>
    %287 = arith.mulf %285, %286 : vector<32x32xf32>
    %288 = vector.broadcast %267 : vector<1x32xf32> to vector<32x32xf32>
    %289 = arith.addf %287, %288 : vector<32x32xf32>
    %c0_155 = arith.constant 0 : index
    %c0_156 = arith.constant 0 : index
    %c0_157 = arith.constant 0 : index
    %290 = vector.load %arg33[%c0_155, %c0_156, %c0_157] : memref<2x32x128xf32, #tpu.memory_space<vmem>>, vector<1x32x128xf32>
    %291 = vector.shape_cast %290 : vector<1x32x128xf32> to vector<32x128xf32>
    %cst_158 = arith.constant dense<0.000000e+00> : vector<32x128xf32>
    %292 = tpu.matmul %289, %291, %cst_158 {dimension_numbers = #tpu.dot_dimension_numbers<[1], [0], [0], [1], [0, 0, 1, 1], [], []>} : vector<32x32xf32>, vector<32x128xf32>, vector<32x128xf32> -> vector<32x128xf32>
    %c0_159 = arith.constant 0 : index
    %c0_160 = arith.constant 0 : index
    %c0_161 = arith.constant 0 : index
    %293 = vector.load %arg34[%c0_159, %c0_160, %c0_161] : memref<2x1x128xf32, #tpu.memory_space<vmem>>, vector<1x1x128xf32>
    %294 = vector.shape_cast %293 : vector<1x1x128xf32> to vector<1x128xf32>
    %295 = vector.broadcast %294 : vector<1x128xf32> to vector<32x128xf32>
    %296 = arith.addf %292, %295 : vector<32x128xf32>
    %c0_162 = arith.constant 0 : index
    %c0_163 = arith.constant 0 : index
    %c0_164 = arith.constant 0 : index
    %c0_165 = arith.constant 0 : index
    %297 = vector.load %arg11[%c0_162, %c0_163, %c0_164, %c0_165] : memref<1x2x32x4xf32, #tpu.memory_space<vmem>>, vector<1x1x32x4xf32>
    %298 = vector.shape_cast %297 : vector<1x1x32x4xf32> to vector<32x4xf32>
    %cst_166 = arith.constant dense<0.000000e+00> : vector<32x4xf32>
    %299 = tpu.matmul %289, %298, %cst_166 {dimension_numbers = #tpu.dot_dimension_numbers<[1], [0], [0], [1], [0, 0, 1, 1], [], []>} : vector<32x32xf32>, vector<32x4xf32>, vector<32x4xf32> -> vector<32x4xf32>
    %c0_167 = arith.constant 0 : index
    %c0_168 = arith.constant 0 : index
    %c0_169 = arith.constant 0 : index
    %c0_170 = arith.constant 0 : index
    %300 = vector.load %arg12[%c0_167, %c0_168, %c0_169, %c0_170] : memref<1x2x4x128xf32, #tpu.memory_space<vmem>>, vector<1x1x4x128xf32>
    %301 = vector.shape_cast %300 : vector<1x1x4x128xf32> to vector<4x128xf32>
    %cst_171 = arith.constant dense<0.000000e+00> : vector<32x128xf32>
    %302 = tpu.matmul %299, %301, %cst_171 {dimension_numbers = #tpu.dot_dimension_numbers<[1], [0], [0], [1], [0, 0, 1, 1], [], []>} : vector<32x4xf32>, vector<4x128xf32>, vector<32x128xf32> -> vector<32x128xf32>
    %303 = arith.addf %296, %302 : vector<32x128xf32>
    %cst_172 = arith.constant 0.707106769 : f32
    %304 = vector.broadcast %cst_172 : f32 to vector<32x128xf32>
    %305 = arith.mulf %303, %304 : vector<32x128xf32>
    %306 = math.absf %305 : vector<32x128xf32>
    %cst_173 = arith.constant 0.327591091 : f32
    %307 = vector.broadcast %cst_173 : f32 to vector<32x128xf32>
    %308 = arith.mulf %307, %306 : vector<32x128xf32>
    %cst_174 = arith.constant 1.000000e+00 : f32
    %309 = vector.broadcast %cst_174 : f32 to vector<32x128xf32>
    %310 = arith.addf %309, %308 : vector<32x128xf32>
    %cst_175 = arith.constant 1.000000e+00 : f32
    %311 = vector.broadcast %cst_175 : f32 to vector<32x128xf32>
    %312 = arith.divf %311, %310 : vector<32x128xf32>
    %cst_176 = arith.constant 1.06140542 : f32
    %313 = vector.broadcast %cst_176 : f32 to vector<32x128xf32>
    %314 = arith.mulf %313, %312 : vector<32x128xf32>
    %cst_177 = arith.constant 1.45315206 : f32
    %315 = vector.broadcast %cst_177 : f32 to vector<32x128xf32>
    %316 = arith.subf %314, %315 : vector<32x128xf32>
    %317 = arith.mulf %316, %312 : vector<32x128xf32>
    %cst_178 = arith.constant 1.42141378 : f32
    %318 = vector.broadcast %cst_178 : f32 to vector<32x128xf32>
    %319 = arith.addf %317, %318 : vector<32x128xf32>
    %320 = arith.mulf %319, %312 : vector<32x128xf32>
    %cst_179 = arith.constant 0.284496725 : f32
    %321 = vector.broadcast %cst_179 : f32 to vector<32x128xf32>
    %322 = arith.subf %320, %321 : vector<32x128xf32>
    %323 = arith.mulf %322, %312 : vector<32x128xf32>
    %cst_180 = arith.constant 0.254829586 : f32
    %324 = vector.broadcast %cst_180 : f32 to vector<32x128xf32>
    %325 = arith.addf %323, %324 : vector<32x128xf32>
    %326 = arith.mulf %325, %312 : vector<32x128xf32>
    %cst_181 = arith.constant 0.000000e+00 : f32
    %327 = vector.broadcast %cst_181 : f32 to vector<32x128xf32>
    %328 = arith.subf %327, %306 : vector<32x128xf32>
    %329 = arith.mulf %328, %306 : vector<32x128xf32>
    %330 = math.exp %329 : vector<32x128xf32>
    %331 = arith.mulf %326, %330 : vector<32x128xf32>
    %cst_182 = arith.constant 1.000000e+00 : f32
    %332 = vector.broadcast %cst_182 : f32 to vector<32x128xf32>
    %333 = arith.subf %332, %331 : vector<32x128xf32>
    %cst_183 = arith.constant 0.000000e+00 : f32
    %334 = vector.broadcast %cst_183 : f32 to vector<32x128xf32>
    %335 = arith.cmpf oge, %305, %334 : vector<32x128xf32>
    %cst_184 = arith.constant 0.000000e+00 : f32
    %336 = vector.broadcast %cst_184 : f32 to vector<32x128xf32>
    %337 = arith.subf %336, %333 : vector<32x128xf32>
    %338 = arith.select %335, %333, %337 : vector<32x128xi1>, vector<32x128xf32>
    %cst_185 = arith.constant 5.000000e-01 : f32
    %339 = vector.broadcast %cst_185 : f32 to vector<32x128xf32>
    %340 = arith.mulf %339, %303 : vector<32x128xf32>
    %cst_186 = arith.constant 1.000000e+00 : f32
    %341 = vector.broadcast %cst_186 : f32 to vector<32x128xf32>
    %342 = arith.addf %341, %338 : vector<32x128xf32>
    %343 = arith.mulf %340, %342 : vector<32x128xf32>
    %c0_187 = arith.constant 0 : index
    %c0_188 = arith.constant 0 : index
    %c0_189 = arith.constant 0 : index
    %344 = vector.load %arg35[%c0_187, %c0_188, %c0_189] : memref<2x128x32xf32, #tpu.memory_space<vmem>>, vector<1x128x32xf32>
    %345 = vector.shape_cast %344 : vector<1x128x32xf32> to vector<128x32xf32>
    %cst_190 = arith.constant dense<0.000000e+00> : vector<32x32xf32>
    %346 = tpu.matmul %343, %345, %cst_190 {dimension_numbers = #tpu.dot_dimension_numbers<[1], [0], [0], [1], [0, 0, 1, 1], [], []>} : vector<32x128xf32>, vector<128x32xf32>, vector<32x32xf32> -> vector<32x32xf32>
    %c0_191 = arith.constant 0 : index
    %c0_192 = arith.constant 0 : index
    %c0_193 = arith.constant 0 : index
    %347 = vector.load %arg36[%c0_191, %c0_192, %c0_193] : memref<2x1x32xf32, #tpu.memory_space<vmem>>, vector<1x1x32xf32>
    %348 = vector.shape_cast %347 : vector<1x1x32xf32> to vector<1x32xf32>
    %349 = vector.broadcast %348 : vector<1x32xf32> to vector<32x32xf32>
    %350 = arith.addf %346, %349 : vector<32x32xf32>
    %c0_194 = arith.constant 0 : index
    %c0_195 = arith.constant 0 : index
    %c0_196 = arith.constant 0 : index
    %c0_197 = arith.constant 0 : index
    %351 = vector.load %arg13[%c0_194, %c0_195, %c0_196, %c0_197] : memref<1x2x128x4xf32, #tpu.memory_space<vmem>>, vector<1x1x128x4xf32>
    %352 = vector.shape_cast %351 : vector<1x1x128x4xf32> to vector<128x4xf32>
    %cst_198 = arith.constant dense<0.000000e+00> : vector<32x4xf32>
    %353 = tpu.matmul %343, %352, %cst_198 {dimension_numbers = #tpu.dot_dimension_numbers<[1], [0], [0], [1], [0, 0, 1, 1], [], []>} : vector<32x128xf32>, vector<128x4xf32>, vector<32x4xf32> -> vector<32x4xf32>
    %c0_199 = arith.constant 0 : index
    %c0_200 = arith.constant 0 : index
    %c0_201 = arith.constant 0 : index
    %c0_202 = arith.constant 0 : index
    %354 = vector.load %arg14[%c0_199, %c0_200, %c0_201, %c0_202] : memref<1x2x4x32xf32, #tpu.memory_space<vmem>>, vector<1x1x4x32xf32>
    %355 = vector.shape_cast %354 : vector<1x1x4x32xf32> to vector<4x32xf32>
    %cst_203 = arith.constant dense<0.000000e+00> : vector<32x32xf32>
    %356 = tpu.matmul %353, %355, %cst_203 {dimension_numbers = #tpu.dot_dimension_numbers<[1], [0], [0], [1], [0, 0, 1, 1], [], []>} : vector<32x4xf32>, vector<4x32xf32>, vector<32x32xf32> -> vector<32x32xf32>
    %357 = arith.addf %350, %356 : vector<32x32xf32>
    %358 = arith.addf %263, %357 : vector<32x32xf32>
    %c1_204 = arith.constant 1 : index
    %c0_205 = arith.constant 0 : index
    %c0_206 = arith.constant 0 : index
    %359 = vector.load %arg25[%c1_204, %c0_205, %c0_206] : memref<2x1x32xf32, #tpu.memory_space<vmem>>, vector<1x1x32xf32>
    %360 = vector.shape_cast %359 : vector<1x1x32xf32> to vector<1x32xf32>
    %c1_207 = arith.constant 1 : index
    %c0_208 = arith.constant 0 : index
    %c0_209 = arith.constant 0 : index
    %361 = vector.load %arg26[%c1_207, %c0_208, %c0_209] : memref<2x1x32xf32, #tpu.memory_space<vmem>>, vector<1x1x32xf32>
    %362 = vector.shape_cast %361 : vector<1x1x32xf32> to vector<1x32xf32>
    %cst_210 = arith.constant dense<0.000000e+00> : vector<32xf32>
    %363 = vector.multi_reduction <add>, %358, %cst_210 [1] : vector<32x32xf32> to vector<32xf32>
    %364 = vector.shape_cast %363 : vector<32xf32> to vector<32x1xf32>
    %cst_211 = arith.constant 3.200000e+01 : f32
    %365 = vector.broadcast %cst_211 : f32 to vector<32x1xf32>
    %366 = arith.divf %364, %365 : vector<32x1xf32>
    %367 = vector.broadcast %366 : vector<32x1xf32> to vector<32x32xf32>
    %368 = arith.subf %358, %367 : vector<32x32xf32>
    %369 = arith.mulf %368, %368 : vector<32x32xf32>
    %cst_212 = arith.constant dense<0.000000e+00> : vector<32xf32>
    %370 = vector.multi_reduction <add>, %369, %cst_212 [1] : vector<32x32xf32> to vector<32xf32>
    %371 = vector.shape_cast %370 : vector<32xf32> to vector<32x1xf32>
    %cst_213 = arith.constant 3.200000e+01 : f32
    %372 = vector.broadcast %cst_213 : f32 to vector<32x1xf32>
    %373 = arith.divf %371, %372 : vector<32x1xf32>
    %374 = vector.broadcast %366 : vector<32x1xf32> to vector<32x32xf32>
    %375 = arith.subf %358, %374 : vector<32x32xf32>
    %cst_214 = arith.constant 9.99999974E-6 : f32
    %376 = vector.broadcast %cst_214 : f32 to vector<32x1xf32>
    %377 = arith.addf %373, %376 : vector<32x1xf32>
    %378 = math.rsqrt %377 : vector<32x1xf32>
    %379 = vector.broadcast %378 : vector<32x1xf32> to vector<32x32xf32>
    %380 = arith.mulf %375, %379 : vector<32x32xf32>
    %381 = vector.broadcast %360 : vector<1x32xf32> to vector<32x32xf32>
    %382 = arith.mulf %380, %381 : vector<32x32xf32>
    %383 = vector.broadcast %362 : vector<1x32xf32> to vector<32x32xf32>
    %384 = arith.addf %382, %383 : vector<32x32xf32>
    %c1_215 = arith.constant 1 : index
    %c0_216 = arith.constant 0 : index
    %c0_217 = arith.constant 0 : index
    %385 = vector.load %arg27[%c1_215, %c0_216, %c0_217] : memref<2x32x96xf32, #tpu.memory_space<vmem>>, vector<1x32x96xf32>
    %386 = vector.shape_cast %385 : vector<1x32x96xf32> to vector<32x96xf32>
    %cst_218 = arith.constant dense<0.000000e+00> : vector<32x96xf32>
    %387 = tpu.matmul %384, %386, %cst_218 {dimension_numbers = #tpu.dot_dimension_numbers<[1], [0], [0], [1], [0, 0, 1, 1], [], []>} : vector<32x32xf32>, vector<32x96xf32>, vector<32x96xf32> -> vector<32x96xf32>
    %c1_219 = arith.constant 1 : index
    %c0_220 = arith.constant 0 : index
    %c0_221 = arith.constant 0 : index
    %388 = vector.load %arg28[%c1_219, %c0_220, %c0_221] : memref<2x1x96xf32, #tpu.memory_space<vmem>>, vector<1x1x96xf32>
    %389 = vector.shape_cast %388 : vector<1x1x96xf32> to vector<1x96xf32>
    %390 = vector.broadcast %389 : vector<1x96xf32> to vector<32x96xf32>
    %391 = arith.addf %387, %390 : vector<32x96xf32>
    %c0_222 = arith.constant 0 : index
    %c1_223 = arith.constant 1 : index
    %c0_224 = arith.constant 0 : index
    %c0_225 = arith.constant 0 : index
    %392 = vector.load %arg7[%c0_222, %c1_223, %c0_224, %c0_225] : memref<1x2x32x4xf32, #tpu.memory_space<vmem>>, vector<1x1x32x4xf32>
    %393 = vector.shape_cast %392 : vector<1x1x32x4xf32> to vector<32x4xf32>
    %cst_226 = arith.constant dense<0.000000e+00> : vector<32x4xf32>
    %394 = tpu.matmul %384, %393, %cst_226 {dimension_numbers = #tpu.dot_dimension_numbers<[1], [0], [0], [1], [0, 0, 1, 1], [], []>} : vector<32x32xf32>, vector<32x4xf32>, vector<32x4xf32> -> vector<32x4xf32>
    %c0_227 = arith.constant 0 : index
    %c1_228 = arith.constant 1 : index
    %c0_229 = arith.constant 0 : index
    %c0_230 = arith.constant 0 : index
    %395 = vector.load %arg8[%c0_227, %c1_228, %c0_229, %c0_230] : memref<1x2x4x32xf32, #tpu.memory_space<vmem>>, vector<1x1x4x32xf32>
    %396 = vector.shape_cast %395 : vector<1x1x4x32xf32> to vector<4x32xf32>
    %cst_231 = arith.constant dense<0.000000e+00> : vector<32x32xf32>
    %397 = tpu.matmul %394, %396, %cst_231 {dimension_numbers = #tpu.dot_dimension_numbers<[1], [0], [0], [1], [0, 0, 1, 1], [], []>} : vector<32x4xf32>, vector<4x32xf32>, vector<32x32xf32> -> vector<32x32xf32>
    %c0_232 = arith.constant 0 : index
    %c1_233 = arith.constant 1 : index
    %c0_234 = arith.constant 0 : index
    %c0_235 = arith.constant 0 : index
    %398 = vector.load %arg9[%c0_232, %c1_233, %c0_234, %c0_235] : memref<1x2x32x4xf32, #tpu.memory_space<vmem>>, vector<1x1x32x4xf32>
    %399 = vector.shape_cast %398 : vector<1x1x32x4xf32> to vector<32x4xf32>
    %cst_236 = arith.constant dense<0.000000e+00> : vector<32x4xf32>
    %400 = tpu.matmul %384, %399, %cst_236 {dimension_numbers = #tpu.dot_dimension_numbers<[1], [0], [0], [1], [0, 0, 1, 1], [], []>} : vector<32x32xf32>, vector<32x4xf32>, vector<32x4xf32> -> vector<32x4xf32>
    %c0_237 = arith.constant 0 : index
    %c1_238 = arith.constant 1 : index
    %c0_239 = arith.constant 0 : index
    %c0_240 = arith.constant 0 : index
    %401 = vector.load %arg10[%c0_237, %c1_238, %c0_239, %c0_240] : memref<1x2x4x32xf32, #tpu.memory_space<vmem>>, vector<1x1x4x32xf32>
    %402 = vector.shape_cast %401 : vector<1x1x4x32xf32> to vector<4x32xf32>
    %cst_241 = arith.constant dense<0.000000e+00> : vector<32x32xf32>
    %403 = tpu.matmul %400, %402, %cst_241 {dimension_numbers = #tpu.dot_dimension_numbers<[1], [0], [0], [1], [0, 0, 1, 1], [], []>} : vector<32x4xf32>, vector<4x32xf32>, vector<32x32xf32> -> vector<32x32xf32>
    %404 = vector.extract_strided_slice %391 {offsets = [0, 0], sizes = [32, 32], strides = [1, 1]} : vector<32x96xf32> to vector<32x32xf32>
    %405 = arith.addf %404, %397 : vector<32x32xf32>
    %cst_242 = arith.constant 0.353553385 : f32
    %406 = vector.broadcast %cst_242 : f32 to vector<32x32xf32>
    %407 = arith.mulf %405, %406 : vector<32x32xf32>
    %408 = vector.extract_strided_slice %391 {offsets = [0, 32], sizes = [32, 32], strides = [1, 1]} : vector<32x96xf32> to vector<32x32xf32>
    %409 = vector.extract_strided_slice %391 {offsets = [0, 64], sizes = [32, 32], strides = [1, 1]} : vector<32x96xf32> to vector<32x32xf32>
    %410 = arith.addf %409, %403 : vector<32x32xf32>
    %cst_243 = arith.constant 0.000000e+00 : f32
    %411 = vector.broadcast %cst_243 : f32 to vector<32x32xf32>
    %412 = vector.extract_strided_slice %407 {offsets = [0, 0], sizes = [32, 8], strides = [1, 1]} : vector<32x32xf32> to vector<32x8xf32>
    %413 = vector.extract_strided_slice %408 {offsets = [0, 0], sizes = [32, 8], strides = [1, 1]} : vector<32x32xf32> to vector<32x8xf32>
    %414 = vector.extract_strided_slice %410 {offsets = [0, 0], sizes = [32, 8], strides = [1, 1]} : vector<32x32xf32> to vector<32x8xf32>
    %cst_244 = arith.constant dense<0.000000e+00> : vector<32x32xf32>
    %415 = tpu.matmul %412, %413, %cst_244 {dimension_numbers = #tpu.dot_dimension_numbers<[1], [1], [0], [0], [0, 0, 1, 0], [], []>} : vector<32x8xf32>, vector<32x8xf32>, vector<32x32xf32> -> vector<32x32xf32>
    %416 = arith.addf %415, %129 : vector<32x32xf32>
    %cst_245 = arith.constant dense<0xFF800000> : vector<32xf32>
    %417 = vector.multi_reduction <maximumf>, %416, %cst_245 [1] : vector<32x32xf32> to vector<32xf32>
    %418 = vector.shape_cast %417 : vector<32xf32> to vector<32x1xf32>
    %419 = vector.broadcast %418 : vector<32x1xf32> to vector<32x32xf32>
    %420 = arith.subf %416, %419 : vector<32x32xf32>
    %421 = math.exp %420 : vector<32x32xf32>
    %cst_246 = arith.constant dense<0.000000e+00> : vector<32xf32>
    %422 = vector.multi_reduction <add>, %421, %cst_246 [1] : vector<32x32xf32> to vector<32xf32>
    %423 = vector.shape_cast %422 : vector<32xf32> to vector<32x1xf32>
    %424 = vector.broadcast %423 : vector<32x1xf32> to vector<32x32xf32>
    %425 = arith.divf %421, %424 : vector<32x32xf32>
    %cst_247 = arith.constant dense<0.000000e+00> : vector<32x8xf32>
    %426 = tpu.matmul %425, %414, %cst_247 {dimension_numbers = #tpu.dot_dimension_numbers<[1], [0], [0], [1], [0, 0, 1, 1], [], []>} : vector<32x32xf32>, vector<32x8xf32>, vector<32x8xf32> -> vector<32x8xf32>
    %c1_248 = arith.constant 1 : index
    %c0_249 = arith.constant 0 : index
    %c0_250 = arith.constant 0 : index
    %c0_251 = arith.constant 0 : index
    %427 = vector.load %arg29[%c1_248, %c0_249, %c0_250, %c0_251] : memref<2x4x8x32xf32, #tpu.memory_space<vmem>>, vector<1x1x8x32xf32>
    %428 = vector.shape_cast %427 : vector<1x1x8x32xf32> to vector<8x32xf32>
    %cst_252 = arith.constant dense<0.000000e+00> : vector<32x32xf32>
    %429 = tpu.matmul %426, %428, %cst_252 {dimension_numbers = #tpu.dot_dimension_numbers<[1], [0], [0], [1], [0, 0, 1, 1], [], []>} : vector<32x8xf32>, vector<8x32xf32>, vector<32x32xf32> -> vector<32x32xf32>
    %430 = arith.addf %411, %429 : vector<32x32xf32>
    %431 = vector.extract_strided_slice %407 {offsets = [0, 8], sizes = [32, 8], strides = [1, 1]} : vector<32x32xf32> to vector<32x8xf32>
    %432 = vector.extract_strided_slice %408 {offsets = [0, 8], sizes = [32, 8], strides = [1, 1]} : vector<32x32xf32> to vector<32x8xf32>
    %433 = vector.extract_strided_slice %410 {offsets = [0, 8], sizes = [32, 8], strides = [1, 1]} : vector<32x32xf32> to vector<32x8xf32>
    %cst_253 = arith.constant dense<0.000000e+00> : vector<32x32xf32>
    %434 = tpu.matmul %431, %432, %cst_253 {dimension_numbers = #tpu.dot_dimension_numbers<[1], [1], [0], [0], [0, 0, 1, 0], [], []>} : vector<32x8xf32>, vector<32x8xf32>, vector<32x32xf32> -> vector<32x32xf32>
    %435 = arith.addf %434, %129 : vector<32x32xf32>
    %cst_254 = arith.constant dense<0xFF800000> : vector<32xf32>
    %436 = vector.multi_reduction <maximumf>, %435, %cst_254 [1] : vector<32x32xf32> to vector<32xf32>
    %437 = vector.shape_cast %436 : vector<32xf32> to vector<32x1xf32>
    %438 = vector.broadcast %437 : vector<32x1xf32> to vector<32x32xf32>
    %439 = arith.subf %435, %438 : vector<32x32xf32>
    %440 = math.exp %439 : vector<32x32xf32>
    %cst_255 = arith.constant dense<0.000000e+00> : vector<32xf32>
    %441 = vector.multi_reduction <add>, %440, %cst_255 [1] : vector<32x32xf32> to vector<32xf32>
    %442 = vector.shape_cast %441 : vector<32xf32> to vector<32x1xf32>
    %443 = vector.broadcast %442 : vector<32x1xf32> to vector<32x32xf32>
    %444 = arith.divf %440, %443 : vector<32x32xf32>
    %cst_256 = arith.constant dense<0.000000e+00> : vector<32x8xf32>
    %445 = tpu.matmul %444, %433, %cst_256 {dimension_numbers = #tpu.dot_dimension_numbers<[1], [0], [0], [1], [0, 0, 1, 1], [], []>} : vector<32x32xf32>, vector<32x8xf32>, vector<32x8xf32> -> vector<32x8xf32>
    %c1_257 = arith.constant 1 : index
    %c1_258 = arith.constant 1 : index
    %c0_259 = arith.constant 0 : index
    %c0_260 = arith.constant 0 : index
    %446 = vector.load %arg29[%c1_257, %c1_258, %c0_259, %c0_260] : memref<2x4x8x32xf32, #tpu.memory_space<vmem>>, vector<1x1x8x32xf32>
    %447 = vector.shape_cast %446 : vector<1x1x8x32xf32> to vector<8x32xf32>
    %cst_261 = arith.constant dense<0.000000e+00> : vector<32x32xf32>
    %448 = tpu.matmul %445, %447, %cst_261 {dimension_numbers = #tpu.dot_dimension_numbers<[1], [0], [0], [1], [0, 0, 1, 1], [], []>} : vector<32x8xf32>, vector<8x32xf32>, vector<32x32xf32> -> vector<32x32xf32>
    %449 = arith.addf %430, %448 : vector<32x32xf32>
    %450 = vector.extract_strided_slice %407 {offsets = [0, 16], sizes = [32, 8], strides = [1, 1]} : vector<32x32xf32> to vector<32x8xf32>
    %451 = vector.extract_strided_slice %408 {offsets = [0, 16], sizes = [32, 8], strides = [1, 1]} : vector<32x32xf32> to vector<32x8xf32>
    %452 = vector.extract_strided_slice %410 {offsets = [0, 16], sizes = [32, 8], strides = [1, 1]} : vector<32x32xf32> to vector<32x8xf32>
    %cst_262 = arith.constant dense<0.000000e+00> : vector<32x32xf32>
    %453 = tpu.matmul %450, %451, %cst_262 {dimension_numbers = #tpu.dot_dimension_numbers<[1], [1], [0], [0], [0, 0, 1, 0], [], []>} : vector<32x8xf32>, vector<32x8xf32>, vector<32x32xf32> -> vector<32x32xf32>
    %454 = arith.addf %453, %129 : vector<32x32xf32>
    %cst_263 = arith.constant dense<0xFF800000> : vector<32xf32>
    %455 = vector.multi_reduction <maximumf>, %454, %cst_263 [1] : vector<32x32xf32> to vector<32xf32>
    %456 = vector.shape_cast %455 : vector<32xf32> to vector<32x1xf32>
    %457 = vector.broadcast %456 : vector<32x1xf32> to vector<32x32xf32>
    %458 = arith.subf %454, %457 : vector<32x32xf32>
    %459 = math.exp %458 : vector<32x32xf32>
    %cst_264 = arith.constant dense<0.000000e+00> : vector<32xf32>
    %460 = vector.multi_reduction <add>, %459, %cst_264 [1] : vector<32x32xf32> to vector<32xf32>
    %461 = vector.shape_cast %460 : vector<32xf32> to vector<32x1xf32>
    %462 = vector.broadcast %461 : vector<32x1xf32> to vector<32x32xf32>
    %463 = arith.divf %459, %462 : vector<32x32xf32>
    %cst_265 = arith.constant dense<0.000000e+00> : vector<32x8xf32>
    %464 = tpu.matmul %463, %452, %cst_265 {dimension_numbers = #tpu.dot_dimension_numbers<[1], [0], [0], [1], [0, 0, 1, 1], [], []>} : vector<32x32xf32>, vector<32x8xf32>, vector<32x8xf32> -> vector<32x8xf32>
    %c1_266 = arith.constant 1 : index
    %c2_267 = arith.constant 2 : index
    %c0_268 = arith.constant 0 : index
    %c0_269 = arith.constant 0 : index
    %465 = vector.load %arg29[%c1_266, %c2_267, %c0_268, %c0_269] : memref<2x4x8x32xf32, #tpu.memory_space<vmem>>, vector<1x1x8x32xf32>
    %466 = vector.shape_cast %465 : vector<1x1x8x32xf32> to vector<8x32xf32>
    %cst_270 = arith.constant dense<0.000000e+00> : vector<32x32xf32>
    %467 = tpu.matmul %464, %466, %cst_270 {dimension_numbers = #tpu.dot_dimension_numbers<[1], [0], [0], [1], [0, 0, 1, 1], [], []>} : vector<32x8xf32>, vector<8x32xf32>, vector<32x32xf32> -> vector<32x32xf32>
    %468 = arith.addf %449, %467 : vector<32x32xf32>
    %469 = vector.extract_strided_slice %407 {offsets = [0, 24], sizes = [32, 8], strides = [1, 1]} : vector<32x32xf32> to vector<32x8xf32>
    %470 = vector.extract_strided_slice %408 {offsets = [0, 24], sizes = [32, 8], strides = [1, 1]} : vector<32x32xf32> to vector<32x8xf32>
    %471 = vector.extract_strided_slice %410 {offsets = [0, 24], sizes = [32, 8], strides = [1, 1]} : vector<32x32xf32> to vector<32x8xf32>
    %cst_271 = arith.constant dense<0.000000e+00> : vector<32x32xf32>
    %472 = tpu.matmul %469, %470, %cst_271 {dimension_numbers = #tpu.dot_dimension_numbers<[1], [1], [0], [0], [0, 0, 1, 0], [], []>} : vector<32x8xf32>, vector<32x8xf32>, vector<32x32xf32> -> vector<32x32xf32>
    %473 = arith.addf %472, %129 : vector<32x32xf32>
    %cst_272 = arith.constant dense<0xFF800000> : vector<32xf32>
    %474 = vector.multi_reduction <maximumf>, %473, %cst_272 [1] : vector<32x32xf32> to vector<32xf32>
    %475 = vector.shape_cast %474 : vector<32xf32> to vector<32x1xf32>
    %476 = vector.broadcast %475 : vector<32x1xf32> to vector<32x32xf32>
    %477 = arith.subf %473, %476 : vector<32x32xf32>
    %478 = math.exp %477 : vector<32x32xf32>
    %cst_273 = arith.constant dense<0.000000e+00> : vector<32xf32>
    %479 = vector.multi_reduction <add>, %478, %cst_273 [1] : vector<32x32xf32> to vector<32xf32>
    %480 = vector.shape_cast %479 : vector<32xf32> to vector<32x1xf32>
    %481 = vector.broadcast %480 : vector<32x1xf32> to vector<32x32xf32>
    %482 = arith.divf %478, %481 : vector<32x32xf32>
    %cst_274 = arith.constant dense<0.000000e+00> : vector<32x8xf32>
    %483 = tpu.matmul %482, %471, %cst_274 {dimension_numbers = #tpu.dot_dimension_numbers<[1], [0], [0], [1], [0, 0, 1, 1], [], []>} : vector<32x32xf32>, vector<32x8xf32>, vector<32x8xf32> -> vector<32x8xf32>
    %c1_275 = arith.constant 1 : index
    %c3_276 = arith.constant 3 : index
    %c0_277 = arith.constant 0 : index
    %c0_278 = arith.constant 0 : index
    %484 = vector.load %arg29[%c1_275, %c3_276, %c0_277, %c0_278] : memref<2x4x8x32xf32, #tpu.memory_space<vmem>>, vector<1x1x8x32xf32>
    %485 = vector.shape_cast %484 : vector<1x1x8x32xf32> to vector<8x32xf32>
    %cst_279 = arith.constant dense<0.000000e+00> : vector<32x32xf32>
    %486 = tpu.matmul %483, %485, %cst_279 {dimension_numbers = #tpu.dot_dimension_numbers<[1], [0], [0], [1], [0, 0, 1, 1], [], []>} : vector<32x8xf32>, vector<8x32xf32>, vector<32x32xf32> -> vector<32x32xf32>
    %487 = arith.addf %468, %486 : vector<32x32xf32>
    %488 = arith.addf %358, %487 : vector<32x32xf32>
    %c1_280 = arith.constant 1 : index
    %c0_281 = arith.constant 0 : index
    %c0_282 = arith.constant 0 : index
    %489 = vector.load %arg30[%c1_280, %c0_281, %c0_282] : memref<2x1x32xf32, #tpu.memory_space<vmem>>, vector<1x1x32xf32>
    %490 = vector.shape_cast %489 : vector<1x1x32xf32> to vector<1x32xf32>
    %491 = vector.broadcast %490 : vector<1x32xf32> to vector<32x32xf32>
    %492 = arith.addf %488, %491 : vector<32x32xf32>
    %c1_283 = arith.constant 1 : index
    %c0_284 = arith.constant 0 : index
    %c0_285 = arith.constant 0 : index
    %493 = vector.load %arg31[%c1_283, %c0_284, %c0_285] : memref<2x1x32xf32, #tpu.memory_space<vmem>>, vector<1x1x32xf32>
    %494 = vector.shape_cast %493 : vector<1x1x32xf32> to vector<1x32xf32>
    %c1_286 = arith.constant 1 : index
    %c0_287 = arith.constant 0 : index
    %c0_288 = arith.constant 0 : index
    %495 = vector.load %arg32[%c1_286, %c0_287, %c0_288] : memref<2x1x32xf32, #tpu.memory_space<vmem>>, vector<1x1x32xf32>
    %496 = vector.shape_cast %495 : vector<1x1x32xf32> to vector<1x32xf32>
    %cst_289 = arith.constant dense<0.000000e+00> : vector<32xf32>
    %497 = vector.multi_reduction <add>, %492, %cst_289 [1] : vector<32x32xf32> to vector<32xf32>
    %498 = vector.shape_cast %497 : vector<32xf32> to vector<32x1xf32>
    %cst_290 = arith.constant 3.200000e+01 : f32
    %499 = vector.broadcast %cst_290 : f32 to vector<32x1xf32>
    %500 = arith.divf %498, %499 : vector<32x1xf32>
    %501 = vector.broadcast %500 : vector<32x1xf32> to vector<32x32xf32>
    %502 = arith.subf %492, %501 : vector<32x32xf32>
    %503 = arith.mulf %502, %502 : vector<32x32xf32>
    %cst_291 = arith.constant dense<0.000000e+00> : vector<32xf32>
    %504 = vector.multi_reduction <add>, %503, %cst_291 [1] : vector<32x32xf32> to vector<32xf32>
    %505 = vector.shape_cast %504 : vector<32xf32> to vector<32x1xf32>
    %cst_292 = arith.constant 3.200000e+01 : f32
    %506 = vector.broadcast %cst_292 : f32 to vector<32x1xf32>
    %507 = arith.divf %505, %506 : vector<32x1xf32>
    %508 = vector.broadcast %500 : vector<32x1xf32> to vector<32x32xf32>
    %509 = arith.subf %492, %508 : vector<32x32xf32>
    %cst_293 = arith.constant 9.99999974E-6 : f32
    %510 = vector.broadcast %cst_293 : f32 to vector<32x1xf32>
    %511 = arith.addf %507, %510 : vector<32x1xf32>
    %512 = math.rsqrt %511 : vector<32x1xf32>
    %513 = vector.broadcast %512 : vector<32x1xf32> to vector<32x32xf32>
    %514 = arith.mulf %509, %513 : vector<32x32xf32>
    %515 = vector.broadcast %494 : vector<1x32xf32> to vector<32x32xf32>
    %516 = arith.mulf %514, %515 : vector<32x32xf32>
    %517 = vector.broadcast %496 : vector<1x32xf32> to vector<32x32xf32>
    %518 = arith.addf %516, %517 : vector<32x32xf32>
    %c1_294 = arith.constant 1 : index
    %c0_295 = arith.constant 0 : index
    %c0_296 = arith.constant 0 : index
    %519 = vector.load %arg33[%c1_294, %c0_295, %c0_296] : memref<2x32x128xf32, #tpu.memory_space<vmem>>, vector<1x32x128xf32>
    %520 = vector.shape_cast %519 : vector<1x32x128xf32> to vector<32x128xf32>
    %cst_297 = arith.constant dense<0.000000e+00> : vector<32x128xf32>
    %521 = tpu.matmul %518, %520, %cst_297 {dimension_numbers = #tpu.dot_dimension_numbers<[1], [0], [0], [1], [0, 0, 1, 1], [], []>} : vector<32x32xf32>, vector<32x128xf32>, vector<32x128xf32> -> vector<32x128xf32>
    %c1_298 = arith.constant 1 : index
    %c0_299 = arith.constant 0 : index
    %c0_300 = arith.constant 0 : index
    %522 = vector.load %arg34[%c1_298, %c0_299, %c0_300] : memref<2x1x128xf32, #tpu.memory_space<vmem>>, vector<1x1x128xf32>
    %523 = vector.shape_cast %522 : vector<1x1x128xf32> to vector<1x128xf32>
    %524 = vector.broadcast %523 : vector<1x128xf32> to vector<32x128xf32>
    %525 = arith.addf %521, %524 : vector<32x128xf32>
    %c0_301 = arith.constant 0 : index
    %c1_302 = arith.constant 1 : index
    %c0_303 = arith.constant 0 : index
    %c0_304 = arith.constant 0 : index
    %526 = vector.load %arg11[%c0_301, %c1_302, %c0_303, %c0_304] : memref<1x2x32x4xf32, #tpu.memory_space<vmem>>, vector<1x1x32x4xf32>
    %527 = vector.shape_cast %526 : vector<1x1x32x4xf32> to vector<32x4xf32>
    %cst_305 = arith.constant dense<0.000000e+00> : vector<32x4xf32>
    %528 = tpu.matmul %518, %527, %cst_305 {dimension_numbers = #tpu.dot_dimension_numbers<[1], [0], [0], [1], [0, 0, 1, 1], [], []>} : vector<32x32xf32>, vector<32x4xf32>, vector<32x4xf32> -> vector<32x4xf32>
    %c0_306 = arith.constant 0 : index
    %c1_307 = arith.constant 1 : index
    %c0_308 = arith.constant 0 : index
    %c0_309 = arith.constant 0 : index
    %529 = vector.load %arg12[%c0_306, %c1_307, %c0_308, %c0_309] : memref<1x2x4x128xf32, #tpu.memory_space<vmem>>, vector<1x1x4x128xf32>
    %530 = vector.shape_cast %529 : vector<1x1x4x128xf32> to vector<4x128xf32>
    %cst_310 = arith.constant dense<0.000000e+00> : vector<32x128xf32>
    %531 = tpu.matmul %528, %530, %cst_310 {dimension_numbers = #tpu.dot_dimension_numbers<[1], [0], [0], [1], [0, 0, 1, 1], [], []>} : vector<32x4xf32>, vector<4x128xf32>, vector<32x128xf32> -> vector<32x128xf32>
    %532 = arith.addf %525, %531 : vector<32x128xf32>
    %cst_311 = arith.constant 0.707106769 : f32
    %533 = vector.broadcast %cst_311 : f32 to vector<32x128xf32>
    %534 = arith.mulf %532, %533 : vector<32x128xf32>
    %535 = math.absf %534 : vector<32x128xf32>
    %cst_312 = arith.constant 0.327591091 : f32
    %536 = vector.broadcast %cst_312 : f32 to vector<32x128xf32>
    %537 = arith.mulf %536, %535 : vector<32x128xf32>
    %cst_313 = arith.constant 1.000000e+00 : f32
    %538 = vector.broadcast %cst_313 : f32 to vector<32x128xf32>
    %539 = arith.addf %538, %537 : vector<32x128xf32>
    %cst_314 = arith.constant 1.000000e+00 : f32
    %540 = vector.broadcast %cst_314 : f32 to vector<32x128xf32>
    %541 = arith.divf %540, %539 : vector<32x128xf32>
    %cst_315 = arith.constant 1.06140542 : f32
    %542 = vector.broadcast %cst_315 : f32 to vector<32x128xf32>
    %543 = arith.mulf %542, %541 : vector<32x128xf32>
    %cst_316 = arith.constant 1.45315206 : f32
    %544 = vector.broadcast %cst_316 : f32 to vector<32x128xf32>
    %545 = arith.subf %543, %544 : vector<32x128xf32>
    %546 = arith.mulf %545, %541 : vector<32x128xf32>
    %cst_317 = arith.constant 1.42141378 : f32
    %547 = vector.broadcast %cst_317 : f32 to vector<32x128xf32>
    %548 = arith.addf %546, %547 : vector<32x128xf32>
    %549 = arith.mulf %548, %541 : vector<32x128xf32>
    %cst_318 = arith.constant 0.284496725 : f32
    %550 = vector.broadcast %cst_318 : f32 to vector<32x128xf32>
    %551 = arith.subf %549, %550 : vector<32x128xf32>
    %552 = arith.mulf %551, %541 : vector<32x128xf32>
    %cst_319 = arith.constant 0.254829586 : f32
    %553 = vector.broadcast %cst_319 : f32 to vector<32x128xf32>
    %554 = arith.addf %552, %553 : vector<32x128xf32>
    %555 = arith.mulf %554, %541 : vector<32x128xf32>
    %cst_320 = arith.constant 0.000000e+00 : f32
    %556 = vector.broadcast %cst_320 : f32 to vector<32x128xf32>
    %557 = arith.subf %556, %535 : vector<32x128xf32>
    %558 = arith.mulf %557, %535 : vector<32x128xf32>
    %559 = math.exp %558 : vector<32x128xf32>
    %560 = arith.mulf %555, %559 : vector<32x128xf32>
    %cst_321 = arith.constant 1.000000e+00 : f32
    %561 = vector.broadcast %cst_321 : f32 to vector<32x128xf32>
    %562 = arith.subf %561, %560 : vector<32x128xf32>
    %cst_322 = arith.constant 0.000000e+00 : f32
    %563 = vector.broadcast %cst_322 : f32 to vector<32x128xf32>
    %564 = arith.cmpf oge, %534, %563 : vector<32x128xf32>
    %cst_323 = arith.constant 0.000000e+00 : f32
    %565 = vector.broadcast %cst_323 : f32 to vector<32x128xf32>
    %566 = arith.subf %565, %562 : vector<32x128xf32>
    %567 = arith.select %564, %562, %566 : vector<32x128xi1>, vector<32x128xf32>
    %cst_324 = arith.constant 5.000000e-01 : f32
    %568 = vector.broadcast %cst_324 : f32 to vector<32x128xf32>
    %569 = arith.mulf %568, %532 : vector<32x128xf32>
    %cst_325 = arith.constant 1.000000e+00 : f32
    %570 = vector.broadcast %cst_325 : f32 to vector<32x128xf32>
    %571 = arith.addf %570, %567 : vector<32x128xf32>
    %572 = arith.mulf %569, %571 : vector<32x128xf32>
    %c1_326 = arith.constant 1 : index
    %c0_327 = arith.constant 0 : index
    %c0_328 = arith.constant 0 : index
    %573 = vector.load %arg35[%c1_326, %c0_327, %c0_328] : memref<2x128x32xf32, #tpu.memory_space<vmem>>, vector<1x128x32xf32>
    %574 = vector.shape_cast %573 : vector<1x128x32xf32> to vector<128x32xf32>
    %cst_329 = arith.constant dense<0.000000e+00> : vector<32x32xf32>
    %575 = tpu.matmul %572, %574, %cst_329 {dimension_numbers = #tpu.dot_dimension_numbers<[1], [0], [0], [1], [0, 0, 1, 1], [], []>} : vector<32x128xf32>, vector<128x32xf32>, vector<32x32xf32> -> vector<32x32xf32>
    %c1_330 = arith.constant 1 : index
    %c0_331 = arith.constant 0 : index
    %c0_332 = arith.constant 0 : index
    %576 = vector.load %arg36[%c1_330, %c0_331, %c0_332] : memref<2x1x32xf32, #tpu.memory_space<vmem>>, vector<1x1x32xf32>
    %577 = vector.shape_cast %576 : vector<1x1x32xf32> to vector<1x32xf32>
    %578 = vector.broadcast %577 : vector<1x32xf32> to vector<32x32xf32>
    %579 = arith.addf %575, %578 : vector<32x32xf32>
    %c0_333 = arith.constant 0 : index
    %c1_334 = arith.constant 1 : index
    %c0_335 = arith.constant 0 : index
    %c0_336 = arith.constant 0 : index
    %580 = vector.load %arg13[%c0_333, %c1_334, %c0_335, %c0_336] : memref<1x2x128x4xf32, #tpu.memory_space<vmem>>, vector<1x1x128x4xf32>
    %581 = vector.shape_cast %580 : vector<1x1x128x4xf32> to vector<128x4xf32>
    %cst_337 = arith.constant dense<0.000000e+00> : vector<32x4xf32>
    %582 = tpu.matmul %572, %581, %cst_337 {dimension_numbers = #tpu.dot_dimension_numbers<[1], [0], [0], [1], [0, 0, 1, 1], [], []>} : vector<32x128xf32>, vector<128x4xf32>, vector<32x4xf32> -> vector<32x4xf32>
    %c0_338 = arith.constant 0 : index
    %c1_339 = arith.constant 1 : index
    %c0_340 = arith.constant 0 : index
    %c0_341 = arith.constant 0 : index
    %583 = vector.load %arg14[%c0_338, %c1_339, %c0_340, %c0_341] : memref<1x2x4x32xf32, #tpu.memory_space<vmem>>, vector<1x1x4x32xf32>
    %584 = vector.shape_cast %583 : vector<1x1x4x32xf32> to vector<4x32xf32>
    %cst_342 = arith.constant dense<0.000000e+00> : vector<32x32xf32>
    %585 = tpu.matmul %582, %584, %cst_342 {dimension_numbers = #tpu.dot_dimension_numbers<[1], [0], [0], [1], [0, 0, 1, 1], [], []>} : vector<32x4xf32>, vector<4x32xf32>, vector<32x32xf32> -> vector<32x32xf32>
    %586 = arith.addf %579, %585 : vector<32x32xf32>
    %587 = arith.addf %492, %586 : vector<32x32xf32>
    %c0_343 = arith.constant 0 : index
    %c0_344 = arith.constant 0 : index
    %588 = vector.load %arg38[%c0_343, %c0_344] : memref<32x128xf32, #tpu.memory_space<vmem>>, vector<32x128xf32>
    %cst_345 = arith.constant dense<0.000000e+00> : vector<32x128xf32>
    %589 = tpu.matmul %587, %588, %cst_345 {dimension_numbers = #tpu.dot_dimension_numbers<[1], [0], [0], [1], [0, 0, 1, 1], [], []>} : vector<32x32xf32>, vector<32x128xf32>, vector<32x128xf32> -> vector<32x128xf32>
    %c0_346 = arith.constant 0 : index
    %c0_347 = arith.constant 0 : index
    %590 = vector.load %arg39[%c0_346, %c0_347] : memref<1x128xf32, #tpu.memory_space<vmem>>, vector<1x128xf32>
    %591 = vector.broadcast %590 : vector<1x128xf32> to vector<32x128xf32>
    %592 = arith.addf %589, %591 : vector<32x128xf32>
    %593 = tpu.iota {dimensions = array<i32: 1>} : vector<32x128xi32>
    %c4_i32 = arith.constant 4 : i32
    %594 = vector.broadcast %c4_i32 : i32 to vector<32x128xi32>
    %595 = arith.cmpi slt, %593, %594 : vector<32x128xi32>
    %596 = math.tanh %592 : vector<32x128xf32>
    %c4_i32_348 = arith.constant 4 : i32
    %597 = vector.broadcast %c4_i32_348 : i32 to vector<32x128xi32>
    %598 = arith.cmpi eq, %593, %597 : vector<32x128xi32>
    %599 = arith.negf %592 : vector<32x128xf32>
    %600 = math.exp %599 : vector<32x128xf32>
    %cst_349 = arith.constant 1.000000e+00 : f32
    %601 = vector.broadcast %cst_349 : f32 to vector<32x128xf32>
    %602 = arith.addf %601, %600 : vector<32x128xf32>
    %603 = arith.divf %601, %602 : vector<32x128xf32>
    %604 = arith.select %598, %603, %592 : vector<32x128xi1>, vector<32x128xf32>
    %605 = arith.select %595, %596, %604 : vector<32x128xi1>, vector<32x128xf32>
    %c0_350 = arith.constant 0 : index
    %c0_351 = arith.constant 0 : index
    %c0_352 = arith.constant 0 : index
    %606 = vector.load %arg40[%c0_350, %c0_351, %c0_352] : memref<1x32x128xf32, #tpu.memory_space<vmem>>, vector<1x32x128xf32>
    %607 = vector.shape_cast %606 : vector<1x32x128xf32> to vector<32x128xf32>
    %608 = vector.shape_cast %605 : vector<32x128xf32> to vector<1x32x128xf32>
    tpu.vector_store %arg40[%c0_350, %c0_351, %c0_352], %608 {strides = array<i32>} : memref<1x32x128xf32, #tpu.memory_space<vmem>>, vector<1x32x128xf32>,
    return
  }
  func.func @transform_0(%arg0: i32, %arg1: memref<2xi32, #tpu.memory_space<smem>>) -> (i32, i32, i32) {
    %c0_i32 = arith.constant 0 : i32
    %c0_i32_0 = arith.constant 0 : i32
    %c0_i32_1 = arith.constant 0 : i32
    return %arg0, %c0_i32, %c0_i32_0 : i32, i32, i32
  }
  func.func @transform_1(%arg0: i32, %arg1: memref<2xi32, #tpu.memory_space<smem>>) -> (i32, i32, i32) {
    %c0_i32 = arith.constant 0 : i32
    %c0_i32_0 = arith.constant 0 : i32
    %c0_i32_1 = arith.constant 0 : i32
    return %arg0, %c0_i32, %c0_i32_0 : i32, i32, i32
  }
  func.func @transform_2(%arg0: i32, %arg1: memref<2xi32, #tpu.memory_space<smem>>) -> (i32, i32, i32) {
    %c0_i32 = arith.constant 0 : i32
    %c0_i32_0 = arith.constant 0 : i32
    %c0_i32_1 = arith.constant 0 : i32
    return %arg0, %c0_i32, %c0_i32_0 : i32, i32, i32
  }
  func.func @transform_3(%arg0: i32, %arg1: memref<2xi32, #tpu.memory_space<smem>>) -> (i32, i32, i32) {
    %c0_i32 = arith.constant 0 : i32
    %c0_i32_0 = arith.constant 0 : i32
    %c0_i32_1 = arith.constant 0 : i32
    return %arg0, %c0_i32, %c0_i32_0 : i32, i32, i32
  }
  func.func @transform_4(%arg0: i32, %arg1: memref<2xi32, #tpu.memory_space<smem>>) -> (i32, i32, i32) {
    %c0_i32 = arith.constant 0 : i32
    %c0_i32_0 = arith.constant 0 : i32
    %c0_i32_1 = arith.constant 0 : i32
    return %arg0, %c0_i32, %c0_i32_0 : i32, i32, i32
  }
  func.func @transform_5(%arg0: i32, %arg1: memref<2xi32, #tpu.memory_space<smem>>) -> (i32, i32, i32, i32) {
    %0 = arith.index_cast %arg0 : i32 to index
    %1 = memref.load %arg1[%0] : memref<2xi32, #tpu.memory_space<smem>>
    %c0_i32 = arith.constant 0 : i32
    %c0_i32_0 = arith.constant 0 : i32
    %c0_i32_1 = arith.constant 0 : i32
    %c0_i32_2 = arith.constant 0 : i32
    return %1, %c0_i32, %c0_i32_0, %c0_i32_1 : i32, i32, i32, i32
  }
  func.func @transform_6(%arg0: i32, %arg1: memref<2xi32, #tpu.memory_space<smem>>) -> (i32, i32, i32, i32) {
    %0 = arith.index_cast %arg0 : i32 to index
    %1 = memref.load %arg1[%0] : memref<2xi32, #tpu.memory_space<smem>>
    %c0_i32 = arith.constant 0 : i32
    %c0_i32_0 = arith.constant 0 : i32
    %c0_i32_1 = arith.constant 0 : i32
    %c0_i32_2 = arith.constant 0 : i32
    return %1, %c0_i32, %c0_i32_0, %c0_i32_1 : i32, i32, i32, i32
  }
  func.func @transform_7(%arg0: i32, %arg1: memref<2xi32, #tpu.memory_space<smem>>) -> (i32, i32, i32, i32) {
    %0 = arith.index_cast %arg0 : i32 to index
    %1 = memref.load %arg1[%0] : memref<2xi32, #tpu.memory_space<smem>>
    %c0_i32 = arith.constant 0 : i32
    %c0_i32_0 = arith.constant 0 : i32
    %c0_i32_1 = arith.constant 0 : i32
    %c0_i32_2 = arith.constant 0 : i32
    return %1, %c0_i32, %c0_i32_0, %c0_i32_1 : i32, i32, i32, i32
  }
  func.func @transform_8(%arg0: i32, %arg1: memref<2xi32, #tpu.memory_space<smem>>) -> (i32, i32, i32, i32) {
    %0 = arith.index_cast %arg0 : i32 to index
    %1 = memref.load %arg1[%0] : memref<2xi32, #tpu.memory_space<smem>>
    %c0_i32 = arith.constant 0 : i32
    %c0_i32_0 = arith.constant 0 : i32
    %c0_i32_1 = arith.constant 0 : i32
    %c0_i32_2 = arith.constant 0 : i32
    return %1, %c0_i32, %c0_i32_0, %c0_i32_1 : i32, i32, i32, i32
  }
  func.func @transform_9(%arg0: i32, %arg1: memref<2xi32, #tpu.memory_space<smem>>) -> (i32, i32, i32, i32) {
    %0 = arith.index_cast %arg0 : i32 to index
    %1 = memref.load %arg1[%0] : memref<2xi32, #tpu.memory_space<smem>>
    %c0_i32 = arith.constant 0 : i32
    %c0_i32_0 = arith.constant 0 : i32
    %c0_i32_1 = arith.constant 0 : i32
    %c0_i32_2 = arith.constant 0 : i32
    return %1, %c0_i32, %c0_i32_0, %c0_i32_1 : i32, i32, i32, i32
  }
  func.func @transform_10(%arg0: i32, %arg1: memref<2xi32, #tpu.memory_space<smem>>) -> (i32, i32, i32, i32) {
    %0 = arith.index_cast %arg0 : i32 to index
    %1 = memref.load %arg1[%0] : memref<2xi32, #tpu.memory_space<smem>>
    %c0_i32 = arith.constant 0 : i32
    %c0_i32_0 = arith.constant 0 : i32
    %c0_i32_1 = arith.constant 0 : i32
    %c0_i32_2 = arith.constant 0 : i32
    return %1, %c0_i32, %c0_i32_0, %c0_i32_1 : i32, i32, i32, i32
  }
  func.func @transform_11(%arg0: i32, %arg1: memref<2xi32, #tpu.memory_space<smem>>) -> (i32, i32, i32, i32) {
    %0 = arith.index_cast %arg0 : i32 to index
    %1 = memref.load %arg1[%0] : memref<2xi32, #tpu.memory_space<smem>>
    %c0_i32 = arith.constant 0 : i32
    %c0_i32_0 = arith.constant 0 : i32
    %c0_i32_1 = arith.constant 0 : i32
    %c0_i32_2 = arith.constant 0 : i32
    return %1, %c0_i32, %c0_i32_0, %c0_i32_1 : i32, i32, i32, i32
  }
  func.func @transform_12(%arg0: i32, %arg1: memref<2xi32, #tpu.memory_space<smem>>) -> (i32, i32, i32, i32) {
    %0 = arith.index_cast %arg0 : i32 to index
    %1 = memref.load %arg1[%0] : memref<2xi32, #tpu.memory_space<smem>>
    %c0_i32 = arith.constant 0 : i32
    %c0_i32_0 = arith.constant 0 : i32
    %c0_i32_1 = arith.constant 0 : i32
    %c0_i32_2 = arith.constant 0 : i32
    return %1, %c0_i32, %c0_i32_0, %c0_i32_1 : i32, i32, i32, i32
  }
  func.func @transform_13(%arg0: i32, %arg1: memref<2xi32, #tpu.memory_space<smem>>) -> (i32, i32) {
    %c0_i32 = arith.constant 0 : i32
    %c0_i32_0 = arith.constant 0 : i32
    %c0_i32_1 = arith.constant 0 : i32
    return %c0_i32, %c0_i32_0 : i32, i32
  }
  func.func @transform_14(%arg0: i32, %arg1: memref<2xi32, #tpu.memory_space<smem>>) -> (i32, i32) {
    %c0_i32 = arith.constant 0 : i32
    %c0_i32_0 = arith.constant 0 : i32
    %c0_i32_1 = arith.constant 0 : i32
    return %c0_i32, %c0_i32_0 : i32, i32
  }
  func.func @transform_15(%arg0: i32, %arg1: memref<2xi32, #tpu.memory_space<smem>>) -> (i32, i32) {
    %c0_i32 = arith.constant 0 : i32
    %c0_i32_0 = arith.constant 0 : i32
    %c0_i32_1 = arith.constant 0 : i32
    return %c0_i32, %c0_i32_0 : i32, i32
  }
  func.func @transform_16(%arg0: i32, %arg1: memref<2xi32, #tpu.memory_space<smem>>) -> (i32, i32) {
    %c0_i32 = arith.constant 0 : i32
    %c0_i32_0 = arith.constant 0 : i32
    %c0_i32_1 = arith.constant 0 : i32
    return %c0_i32, %c0_i32_0 : i32, i32
  }
  func.func @transform_17(%arg0: i32, %arg1: memref<2xi32, #tpu.memory_space<smem>>) -> (i32, i32) {
    %c0_i32 = arith.constant 0 : i32
    %c0_i32_0 = arith.constant 0 : i32
    %c0_i32_1 = arith.constant 0 : i32
    return %c0_i32, %c0_i32_0 : i32, i32
  }
  func.func @transform_18(%arg0: i32, %arg1: memref<2xi32, #tpu.memory_space<smem>>) -> (i32, i32) {
    %c0_i32 = arith.constant 0 : i32
    %c0_i32_0 = arith.constant 0 : i32
    %c0_i32_1 = arith.constant 0 : i32
    return %c0_i32, %c0_i32_0 : i32, i32
  }
  func.func @transform_19(%arg0: i32, %arg1: memref<2xi32, #tpu.memory_space<smem>>) -> (i32, i32) {
    %c0_i32 = arith.constant 0 : i32
    %c0_i32_0 = arith.constant 0 : i32
    %c0_i32_1 = arith.constant 0 : i32
    return %c0_i32, %c0_i32_0 : i32, i32
  }
  func.func @transform_20(%arg0: i32, %arg1: memref<2xi32, #tpu.memory_space<smem>>) -> (i32, i32) {
    %c0_i32 = arith.constant 0 : i32
    %c0_i32_0 = arith.constant 0 : i32
    %c0_i32_1 = arith.constant 0 : i32
    return %c0_i32, %c0_i32_0 : i32, i32
  }
  func.func @transform_21(%arg0: i32, %arg1: memref<2xi32, #tpu.memory_space<smem>>) -> (i32, i32) {
    %c0_i32 = arith.constant 0 : i32
    %c0_i32_0 = arith.constant 0 : i32
    %c0_i32_1 = arith.constant 0 : i32
    return %c0_i32, %c0_i32_0 : i32, i32
  }
  func.func @transform_22(%arg0: i32, %arg1: memref<2xi32, #tpu.memory_space<smem>>) -> (i32, i32) {
    %c0_i32 = arith.constant 0 : i32
    %c0_i32_0 = arith.constant 0 : i32
    %c0_i32_1 = arith.constant 0 : i32
    return %c0_i32, %c0_i32_0 : i32, i32
  }
  func.func @transform_23(%arg0: i32, %arg1: memref<2xi32, #tpu.memory_space<smem>>) -> (i32, i32, i32) {
    %c0_i32 = arith.constant 0 : i32
    %c0_i32_0 = arith.constant 0 : i32
    %c0_i32_1 = arith.constant 0 : i32
    %c0_i32_2 = arith.constant 0 : i32
    return %c0_i32, %c0_i32_0, %c0_i32_1 : i32, i32, i32
  }
  func.func @transform_24(%arg0: i32, %arg1: memref<2xi32, #tpu.memory_space<smem>>) -> (i32, i32, i32) {
    %c0_i32 = arith.constant 0 : i32
    %c0_i32_0 = arith.constant 0 : i32
    %c0_i32_1 = arith.constant 0 : i32
    %c0_i32_2 = arith.constant 0 : i32
    return %c0_i32, %c0_i32_0, %c0_i32_1 : i32, i32, i32
  }
  func.func @transform_25(%arg0: i32, %arg1: memref<2xi32, #tpu.memory_space<smem>>) -> (i32, i32, i32) {
    %c0_i32 = arith.constant 0 : i32
    %c0_i32_0 = arith.constant 0 : i32
    %c0_i32_1 = arith.constant 0 : i32
    %c0_i32_2 = arith.constant 0 : i32
    return %c0_i32, %c0_i32_0, %c0_i32_1 : i32, i32, i32
  }
  func.func @transform_26(%arg0: i32, %arg1: memref<2xi32, #tpu.memory_space<smem>>) -> (i32, i32, i32) {
    %c0_i32 = arith.constant 0 : i32
    %c0_i32_0 = arith.constant 0 : i32
    %c0_i32_1 = arith.constant 0 : i32
    %c0_i32_2 = arith.constant 0 : i32
    return %c0_i32, %c0_i32_0, %c0_i32_1 : i32, i32, i32
  }
  func.func @transform_27(%arg0: i32, %arg1: memref<2xi32, #tpu.memory_space<smem>>) -> (i32, i32, i32, i32) {
    %c0_i32 = arith.constant 0 : i32
    %c0_i32_0 = arith.constant 0 : i32
    %c0_i32_1 = arith.constant 0 : i32
    %c0_i32_2 = arith.constant 0 : i32
    %c0_i32_3 = arith.constant 0 : i32
    return %c0_i32, %c0_i32_0, %c0_i32_1, %c0_i32_2 : i32, i32, i32, i32
  }
  func.func @transform_28(%arg0: i32, %arg1: memref<2xi32, #tpu.memory_space<smem>>) -> (i32, i32, i32) {
    %c0_i32 = arith.constant 0 : i32
    %c0_i32_0 = arith.constant 0 : i32
    %c0_i32_1 = arith.constant 0 : i32
    %c0_i32_2 = arith.constant 0 : i32
    return %c0_i32, %c0_i32_0, %c0_i32_1 : i32, i32, i32
  }
  func.func @transform_29(%arg0: i32, %arg1: memref<2xi32, #tpu.memory_space<smem>>) -> (i32, i32, i32) {
    %c0_i32 = arith.constant 0 : i32
    %c0_i32_0 = arith.constant 0 : i32
    %c0_i32_1 = arith.constant 0 : i32
    %c0_i32_2 = arith.constant 0 : i32
    return %c0_i32, %c0_i32_0, %c0_i32_1 : i32, i32, i32
  }
  func.func @transform_30(%arg0: i32, %arg1: memref<2xi32, #tpu.memory_space<smem>>) -> (i32, i32, i32) {
    %c0_i32 = arith.constant 0 : i32
    %c0_i32_0 = arith.constant 0 : i32
    %c0_i32_1 = arith.constant 0 : i32
    %c0_i32_2 = arith.constant 0 : i32
    return %c0_i32, %c0_i32_0, %c0_i32_1 : i32, i32, i32
  }
  func.func @transform_31(%arg0: i32, %arg1: memref<2xi32, #tpu.memory_space<smem>>) -> (i32, i32, i32) {
    %c0_i32 = arith.constant 0 : i32
    %c0_i32_0 = arith.constant 0 : i32
    %c0_i32_1 = arith.constant 0 : i32
    %c0_i32_2 = arith.constant 0 : i32
    return %c0_i32, %c0_i32_0, %c0_i32_1 : i32, i32, i32
  }
  func.func @transform_32(%arg0: i32, %arg1: memref<2xi32, #tpu.memory_space<smem>>) -> (i32, i32, i32) {
    %c0_i32 = arith.constant 0 : i32
    %c0_i32_0 = arith.constant 0 : i32
    %c0_i32_1 = arith.constant 0 : i32
    %c0_i32_2 = arith.constant 0 : i32
    return %c0_i32, %c0_i32_0, %c0_i32_1 : i32, i32, i32
  }
  func.func @transform_33(%arg0: i32, %arg1: memref<2xi32, #tpu.memory_space<smem>>) -> (i32, i32, i32) {
    %c0_i32 = arith.constant 0 : i32
    %c0_i32_0 = arith.constant 0 : i32
    %c0_i32_1 = arith.constant 0 : i32
    %c0_i32_2 = arith.constant 0 : i32
    return %c0_i32, %c0_i32_0, %c0_i32_1 : i32, i32, i32
  }
  func.func @transform_34(%arg0: i32, %arg1: memref<2xi32, #tpu.memory_space<smem>>) -> (i32, i32, i32) {
    %c0_i32 = arith.constant 0 : i32
    %c0_i32_0 = arith.constant 0 : i32
    %c0_i32_1 = arith.constant 0 : i32
    %c0_i32_2 = arith.constant 0 : i32
    return %c0_i32, %c0_i32_0, %c0_i32_1 : i32, i32, i32
  }
  func.func @transform_35(%arg0: i32, %arg1: memref<2xi32, #tpu.memory_space<smem>>) -> (i32, i32) {
    %c0_i32 = arith.constant 0 : i32
    %c0_i32_0 = arith.constant 0 : i32
    %c0_i32_1 = arith.constant 0 : i32
    return %c0_i32, %c0_i32_0 : i32, i32
  }
  func.func @transform_36(%arg0: i32, %arg1: memref<2xi32, #tpu.memory_space<smem>>) -> (i32, i32) {
    %c0_i32 = arith.constant 0 : i32
    %c0_i32_0 = arith.constant 0 : i32
    %c0_i32_1 = arith.constant 0 : i32
    return %c0_i32, %c0_i32_0 : i32, i32
  }
  func.func @transform_37(%arg0: i32, %arg1: memref<2xi32, #tpu.memory_space<smem>>) -> (i32, i32) {
    %c0_i32 = arith.constant 0 : i32
    %c0_i32_0 = arith.constant 0 : i32
    %c0_i32_1 = arith.constant 0 : i32
    return %c0_i32, %c0_i32_0 : i32, i32
  }
  func.func @transform_38(%arg0: i32, %arg1: memref<2xi32, #tpu.memory_space<smem>>) -> (i32, i32, i32) {
    %c0_i32 = arith.constant 0 : i32
    %c0_i32_0 = arith.constant 0 : i32
    %c0_i32_1 = arith.constant 0 : i32
    return %arg0, %c0_i32, %c0_i32_0 : i32, i32, i32
  }
}

</mosaic_0001>

<llo_original>
// kernel: _lambda_.1
$region0: #{_lambda_.1}
  #allocation0 [shape = 'u32[]', space=smem, size = 0x4, offset = 0x4, fixed_abs, tag = 'smem constant byte address 0x4 - core index']
  #allocation1 [shape = 'u32[144,128]{1,0:T(1,128)}', space=vmem, size = 0x12000, scoped, tag = 'internal scratch']
  #allocation2 [shape = 'f32[32,32]{1,0:T(8,128)}', space=vmem, size = 0x4000, scoped, tag = 'scratch operand']
  #allocation3 [shape = 's32[1]{0}', space=sflag, size = 0x4, scoped, tag = 'scoped memory for _lambda_.1']
  #allocation4 [shape = 'u8[512]{0}', space=smem, size = 0x200, scoped, tag = 'prefetched SMEM operand 0']
  %s0 = inlined_call_operand.smem [shape: u32[40], index: -1, kind: input, shape index: {}]
  %s1 = sld [smem:[%s0]]
  %s2 = scalar_lea.smem %s0, 1
  %s3 = sld [smem:[%s2]]
  %s4 = scalar_lea.smem %s0, 2
  %s5 = sld [smem:[%s4]]
  %s6 = scalar_lea.smem %s0, 3
  %s7 = sld [smem:[%s6]]
  %s8 = scalar_lea.smem %s0, 4
  %s9 = sld [smem:[%s8]]
  %s10 = scalar_lea.smem %s0, 5
  %s11 = sld [smem:[%s10]]
  %s12 = scalar_lea.smem %s0, 6
  %s13 = sld [smem:[%s12]]
  %s14 = scalar_lea.smem %s0, 7
  %s15 = sld [smem:[%s14]]
  %s16 = scalar_lea.smem %s0, 8
  %s17 = sld [smem:[%s16]]
  %s18 = scalar_lea.smem %s0, 9
  %s19 = sld [smem:[%s18]]
  %s20 = scalar_lea.smem %s0, 10
  %s21 = sld [smem:[%s20]]
  %s22 = scalar_lea.smem %s0, 11
  %s23 = sld [smem:[%s22]]
  %s24 = scalar_lea.smem %s0, 12
  %s25 = sld [smem:[%s24]]
  %s26 = scalar_lea.smem %s0, 13
  %s27 = sld [smem:[%s26]]
  %s28 = scalar_lea.smem %s0, 14
  %s29 = sld [smem:[%s28]]
  %s30 = scalar_lea.smem %s0, 15
  %s31 = sld [smem:[%s30]]
  %s32 = scalar_lea.smem %s0, 16
  %s33 = sld [smem:[%s32]]
  %s34 = scalar_lea.smem %s0, 17
  %s35 = sld [smem:[%s34]]
  %s36 = scalar_lea.smem %s0, 18
  %s37 = sld [smem:[%s36]]
  %s38 = scalar_lea.smem %s0, 19
  %s39 = sld [smem:[%s38]]
  %s40 = scalar_lea.smem %s0, 20
  %s41 = sld [smem:[%s40]]
  %s42 = scalar_lea.smem %s0, 21
  %s43 = sld [smem:[%s42]]
  %s44 = scalar_lea.smem %s0, 22
  %s45 = sld [smem:[%s44]]
  %s46 = scalar_lea.smem %s0, 23
  %s47 = sld [smem:[%s46]]
  %s48 = scalar_lea.smem %s0, 24
  %s49 = sld [smem:[%s48]]
  %s50 = scalar_lea.smem %s0, 25
  %s51 = sld [smem:[%s50]]
  %s52 = scalar_lea.smem %s0, 26
  %s53 = sld [smem:[%s52]]
  %s54 = scalar_lea.smem %s0, 27
  %s55 = sld [smem:[%s54]]
  %s56 = scalar_lea.smem %s0, 28
  %s57 = sld [smem:[%s56]]
  %s58 = scalar_lea.smem %s0, 29
  %s59 = sld [smem:[%s58]]
  %s60 = scalar_lea.smem %s0, 30
  %s61 = sld [smem:[%s60]]
  %s62 = scalar_lea.smem %s0, 31
  %s63 = sld [smem:[%s62]]
  %s64 = scalar_lea.smem %s0, 32
  %s65 = sld [smem:[%s64]]
  %s66 = scalar_lea.smem %s0, 33
  %s67 = sld [smem:[%s66]]
  %s68 = scalar_lea.smem %s0, 34
  %s69 = sld [smem:[%s68]]
  %s70 = scalar_lea.smem %s0, 35
  %s71 = sld [smem:[%s70]]
  %s72 = scalar_lea.smem %s0, 36
  %s73 = sld [smem:[%s72]]
  %s74 = scalar_lea.smem %s0, 37
  %s75 = sld [smem:[%s74]]
  %s76 = scalar_lea.smem %s0, 38
  %s77 = sld [smem:[%s76]]
  %s78 = scalar_lea.smem %s0, 39
  %s79 = sld [smem:[%s78]]
  %s80 = sld [smem:[#allocation0]]
  $region185: #{_lambda_.1} parent=0
    _
  %s82 = ssub.s32 1, %s80
  %s83 = scalar_select 0, %s82, %s80
  %s84 = sshll.u32 %s1, 4
  %s85 = int_to_ptr.vmem [resolvable:$true] %s84
  %87 = dma.vmem_to_smem %s85, 16, [#allocation4], [#allocation3]
  %88 = dma.done [#allocation3], 16
  %89 = sfence
  loop: start=0, step=1, limit=4
  $region2: #{_lambda_.1} parent=0 // loop_pre_header
    _
  $region3: #{_lambda_.1} parent=0 // loop_header
    %s91 = sphi 0, %s95
    %p92 = scmp.ge.s32.totalorder %s91, 4
    %s101 = sphi 0, %s103
    %s104 = sphi 0, %s101
    %s105 = sphi 0, %s104
    %s121 = sphi 0, %s105
    %s127 = sphi 0, %s129
    %s130 = sphi 0, %s127
    %s131 = sphi 0, %s130
    %s147 = sphi 0, %s131
    %s153 = sphi 0, %s155
    %s156 = sphi 0, %s153
    %s157 = sphi 0, %s156
    %s173 = sphi 0, %s157
    %s179 = sphi 0, %s181
    %s182 = sphi 0, %s179
    %s183 = sphi 0, %s182
    %s199 = sphi 0, %s183
    %s205 = sphi 0, %s207
    %s208 = sphi 0, %s205
    %s209 = sphi 0, %s208
    %s225 = sphi 0, %s209
    %s233 = sphi 0, %s235
    %s236 = sphi 0, %s233
    %s237 = sphi 0, %s236
    %s253 = sphi 0, %s237
    %s261 = sphi 0, %s263
    %s264 = sphi 0, %s261
    %s265 = sphi 0, %s264
    %s281 = sphi 0, %s265
    %s289 = sphi 0, %s291
    %s292 = sphi 0, %s289
    %s293 = sphi 0, %s292
    %s309 = sphi 0, %s293
    %s317 = sphi 0, %s319
    %s320 = sphi 0, %s317
    %s321 = sphi 0, %s320
    %s337 = sphi 0, %s321
    %s345 = sphi 0, %s347
    %s348 = sphi 0, %s345
    %s349 = sphi 0, %s348
    %s365 = sphi 0, %s349
    %s373 = sphi 0, %s375
    %s376 = sphi 0, %s373
    %s377 = sphi 0, %s376
    %s393 = sphi 0, %s377
    %s401 = sphi 0, %s403
    %s404 = sphi 0, %s401
    %s405 = sphi 0, %s404
    %s421 = sphi 0, %s405
    %s429 = sphi 0, %s431
    %s432 = sphi 0, %s429
    %s433 = sphi 0, %s432
    %s449 = sphi 0, %s433
    %s453 = sphi 0, %s453
    %s455 = sphi 0, %s453
    %s456 = sphi 0, %s455
    %s470 = sphi 0, %s456
    %s474 = sphi 0, %s474
    %s476 = sphi 0, %s474
    %s477 = sphi 0, %s476
    %s491 = sphi 0, %s477
    %s495 = sphi 0, %s495
    %s497 = sphi 0, %s495
    %s498 = sphi 0, %s497
    %s512 = sphi 0, %s498
    %s516 = sphi 0, %s516
    %s518 = sphi 0, %s516
    %s519 = sphi 0, %s518
    %s533 = sphi 0, %s519
    %s537 = sphi 0, %s537
    %s539 = sphi 0, %s537
    %s540 = sphi 0, %s539
    %s554 = sphi 0, %s540
    %s558 = sphi 0, %s558
    %s560 = sphi 0, %s558
    %s561 = sphi 0, %s560
    %s575 = sphi 0, %s561
    %s579 = sphi 0, %s579
    %s581 = sphi 0, %s579
    %s582 = sphi 0, %s581
    %s596 = sphi 0, %s582
    %s600 = sphi 0, %s600
    %s602 = sphi 0, %s600
    %s603 = sphi 0, %s602
    %s617 = sphi 0, %s603
    %s621 = sphi 0, %s621
    %s623 = sphi 0, %s621
    %s624 = sphi 0, %s623
    %s638 = sphi 0, %s624
    %s642 = sphi 0, %s642
    %s644 = sphi 0, %s642
    %s645 = sphi 0, %s644
    %s659 = sphi 0, %s645
    %s663 = sphi 0, %s663
    %s665 = sphi 0, %s663
    %s666 = sphi 0, %s665
    %s680 = sphi 0, %s666
    %s684 = sphi 0, %s684
    %s686 = sphi 0, %s684
    %s687 = sphi 0, %s686
    %s701 = sphi 0, %s687
    %s705 = sphi 0, %s705
    %s707 = sphi 0, %s705
    %s708 = sphi 0, %s707
    %s722 = sphi 0, %s708
    %s726 = sphi 0, %s726
    %s728 = sphi 0, %s726
    %s729 = sphi 0, %s728
    %s743 = sphi 0, %s729
    %s747 = sphi 0, %s747
    %s749 = sphi 0, %s747
    %s750 = sphi 0, %s749
    %s764 = sphi 0, %s750
    %s768 = sphi 0, %s768
    %s770 = sphi 0, %s768
    %s771 = sphi 0, %s770
    %s785 = sphi 0, %s771
    %s789 = sphi 0, %s789
    %s791 = sphi 0, %s789
    %s792 = sphi 0, %s791
    %s806 = sphi 0, %s792
    %s810 = sphi 0, %s810
    %s812 = sphi 0, %s810
    %s813 = sphi 0, %s812
    %s827 = sphi 0, %s813
    %s831 = sphi 0, %s831
    %s833 = sphi 0, %s831
    %s834 = sphi 0, %s833
    %s848 = sphi 0, %s834
    %s852 = sphi 0, %s852
    %s854 = sphi 0, %s852
    %s855 = sphi 0, %s854
    %s869 = sphi 0, %s855
    %s873 = sphi 0, %s873
    %s875 = sphi 0, %s873
    %s876 = sphi 0, %s875
    %s890 = sphi 0, %s876
    %s894 = sphi 0, %s894
    %s896 = sphi 0, %s894
    %s897 = sphi 0, %s896
    %s911 = sphi 0, %s897
    %s915 = sphi 0, %s915
    %s917 = sphi 0, %s915
    %s918 = sphi 0, %s917
    %s932 = sphi 0, %s918
    %s936 = sphi 0, %s936
    %s938 = sphi 0, %s936
    %s939 = sphi 0, %s938
    %s953 = sphi 0, %s939
    %s957 = sphi 0, %s957
    %s959 = sphi 0, %s957
    %s960 = sphi 0, %s959
    %s974 = sphi 0, %s960
    %s980 = sphi 0, %s982
    %s983 = sphi 0, %s980
    %s984 = sphi 0, %s983
    %s1000 = sphi 0, %s984
  $region4: #{_lambda_.1} parent=0 // loop_header_branch
    %94 = sbr.rel (%p92) target = $region8
  $region5: #{_lambda_.1} parent=0 // loop_body
    %s96 = ssub.s32 %s91, 1
    %s97 = ssub.s32 %s91, 2
    %s98 = sadd.s32 %s91, 1
    %s99 = ssub.s32 %s91, %s98
    %p100 = scmp.eq.s32.totalorder %s99, 0
    %s102 = sadd.s32 %s101, 1
    %s103 = scalar_select %p100, %s101, %s102
    %p106 = pneg %p100
    %p107 = scmp.eq.s32.totalorder %s91, 1
    %p108 = por %p106, %p107
    %p109 = scmp.ne.s32.totalorder %s101, %s104
    %p110 = scmp.eq.s32.totalorder %s91, 0
    %p111 = por %p109, %p110
    %p112 = scmp.ne.s32.totalorder %s101, %s104
    %p113 = scmp.eq.s32.totalorder %s96, 1
    %p114 = por %p112, %p113
    %p115 = scmp.ne.s32.totalorder %s104, %s105
    %p116 = scmp.eq.s32.totalorder %s96, 0
    %p117 = por %p115, %p116
    %p118 = scmp.ne.s32.totalorder %s104, %s105
    %p119 = scmp.eq.s32.totalorder %s97, 1
    %p120 = por %p118, %p119
    %p122 = scmp.ne.s32.totalorder %s105, %s121
    %p123 = scmp.eq.s32.totalorder %s97, 0
    %p124 = por %p122, %p123
    %s125 = ssub.s32 %s91, %s98
    %p126 = scmp.eq.s32.totalorder %s125, 0
    %s128 = sadd.s32 %s127, 1
    %s129 = scalar_select %p126, %s127, %s128
    %p132 = pneg %p126
    %p133 = scmp.eq.s32.totalorder %s91, 1
    %p134 = por %p132, %p133
    %p135 = scmp.ne.s32.totalorder %s127, %s130
    %p136 = scmp.eq.s32.totalorder %s91, 0
    %p137 = por %p135, %p136
    %p138 = scmp.ne.s32.totalorder %s127, %s130
    %p139 = scmp.eq.s32.totalorder %s96, 1
    %p140 = por %p138, %p139
    %p141 = scmp.ne.s32.totalorder %s130, %s131
    %p142 = scmp.eq.s32.totalorder %s96, 0
    %p143 = por %p141, %p142
    %p144 = scmp.ne.s32.totalorder %s130, %s131
    %p145 = scmp.eq.s32.totalorder %s97, 1
    %p146 = por %p144, %p145
    %p148 = scmp.ne.s32.totalorder %s131, %s147
    %p149 = scmp.eq.s32.totalorder %s97, 0
    %p150 = por %p148, %p149
    %s151 = ssub.s32 %s91, %s98
    %p152 = scmp.eq.s32.totalorder %s151, 0
    %s154 = sadd.s32 %s153, 1
    %s155 = scalar_select %p152, %s153, %s154
    %p158 = pneg %p152
    %p159 = scmp.eq.s32.totalorder %s91, 1
    %p160 = por %p158, %p159
    %p161 = scmp.ne.s32.totalorder %s153, %s156
    %p162 = scmp.eq.s32.totalorder %s91, 0
    %p163 = por %p161, %p162
    %p164 = scmp.ne.s32.totalorder %s153, %s156
    %p165 = scmp.eq.s32.totalorder %s96, 1
    %p166 = por %p164, %p165
    %p167 = scmp.ne.s32.totalorder %s156, %s157
    %p168 = scmp.eq.s32.totalorder %s96, 0
    %p169 = por %p167, %p168
    %p170 = scmp.ne.s32.totalorder %s156, %s157
    %p171 = scmp.eq.s32.totalorder %s97, 1
    %p172 = por %p170, %p171
    %p174 = scmp.ne.s32.totalorder %s157, %s173
    %p175 = scmp.eq.s32.totalorder %s97, 0
    %p176 = por %p174, %p175
    %s177 = ssub.s32 %s91, %s98
    %p178 = scmp.eq.s32.totalorder %s177, 0
    %s180 = sadd.s32 %s179, 1
    %s181 = scalar_select %p178, %s179, %s180
    %p184 = pneg %p178
    %p185 = scmp.eq.s32.totalorder %s91, 1
    %p186 = por %p184, %p185
    %p187 = scmp.ne.s32.totalorder %s179, %s182
    %p188 = scmp.eq.s32.totalorder %s91, 0
    %p189 = por %p187, %p188
    %p190 = scmp.ne.s32.totalorder %s179, %s182
    %p191 = scmp.eq.s32.totalorder %s96, 1
    %p192 = por %p190, %p191
    %p193 = scmp.ne.s32.totalorder %s182, %s183
    %p194 = scmp.eq.s32.totalorder %s96, 0
    %p195 = por %p193, %p194
    %p196 = scmp.ne.s32.totalorder %s182, %s183
    %p197 = scmp.eq.s32.totalorder %s97, 1
    %p198 = por %p196, %p197
    %p200 = scmp.ne.s32.totalorder %s183, %s199
    %p201 = scmp.eq.s32.totalorder %s97, 0
    %p202 = por %p200, %p201
    %s203 = ssub.s32 %s91, %s98
    %p204 = scmp.eq.s32.totalorder %s203, 0
    %s206 = sadd.s32 %s205, 1
    %s207 = scalar_select %p204, %s205, %s206
    %p210 = pneg %p204
    %p211 = scmp.eq.s32.totalorder %s91, 1
    %p212 = por %p210, %p211
    %p213 = scmp.ne.s32.totalorder %s205, %s208
    %p214 = scmp.eq.s32.totalorder %s91, 0
    %p215 = por %p213, %p214
    %p216 = scmp.ne.s32.totalorder %s205, %s208
    %p217 = scmp.eq.s32.totalorder %s96, 1
    %p218 = por %p216, %p217
    %p219 = scmp.ne.s32.totalorder %s208, %s209
    %p220 = scmp.eq.s32.totalorder %s96, 0
    %p221 = por %p219, %p220
    %p222 = scmp.ne.s32.totalorder %s208, %s209
    %p223 = scmp.eq.s32.totalorder %s97, 1
    %p224 = por %p222, %p223
    %p226 = scmp.ne.s32.totalorder %s209, %s225
    %p227 = scmp.eq.s32.totalorder %s97, 0
    %p228 = por %p226, %p227
    %s229 = sld [smem:[#allocation4 + %s91]]
    %s230 = sld [smem:[#allocation4 + %s98]]
    %s231 = ssub.s32 %s229, %s230
    %p232 = scmp.eq.s32.totalorder %s231, 0
    %s234 = sadd.s32 %s233, 1
    %s235 = scalar_select %p232, %s233, %s234
    %p238 = pneg %p232
    %p239 = scmp.eq.s32.totalorder %s91, 1
    %p240 = por %p238, %p239
    %p241 = scmp.ne.s32.totalorder %s233, %s236
    %p242 = scmp.eq.s32.totalorder %s91, 0
    %p243 = por %p241, %p242
    %p244 = scmp.ne.s32.totalorder %s233, %s236
    %p245 = scmp.eq.s32.totalorder %s96, 1
    %p246 = por %p244, %p245
    %p247 = scmp.ne.s32.totalorder %s236, %s237
    %p248 = scmp.eq.s32.totalorder %s96, 0
    %p249 = por %p247, %p248
    %p250 = scmp.ne.s32.totalorder %s236, %s237
    %p251 = scmp.eq.s32.totalorder %s97, 1
    %p252 = por %p250, %p251
    %p254 = scmp.ne.s32.totalorder %s237, %s253
    %p255 = scmp.eq.s32.totalorder %s97, 0
    %p256 = por %p254, %p255
    %s257 = sld [smem:[#allocation4 + %s91]]
    %s258 = sld [smem:[#allocation4 + %s98]]
    %s259 = ssub.s32 %s257, %s258
    %p260 = scmp.eq.s32.totalorder %s259, 0
    %s262 = sadd.s32 %s261, 1
    %s263 = scalar_select %p260, %s261, %s262
    %p266 = pneg %p260
    %p267 = scmp.eq.s32.totalorder %s91, 1
    %p268 = por %p266, %p267
    %p269 = scmp.ne.s32.totalorder %s261, %s264
    %p270 = scmp.eq.s32.totalorder %s91, 0
    %p271 = por %p269, %p270
    %p272 = scmp.ne.s32.totalorder %s261, %s264
    %p273 = scmp.eq.s32.totalorder %s96, 1
    %p274 = por %p272, %p273
    %p275 = scmp.ne.s32.totalorder %s264, %s265
    %p276 = scmp.eq.s32.totalorder %s96, 0
    %p277 = por %p275, %p276
    %p278 = scmp.ne.s32.totalorder %s264, %s265
    %p279 = scmp.eq.s32.totalorder %s97, 1
    %p280 = por %p278, %p279
    %p282 = scmp.ne.s32.totalorder %s265, %s281
    %p283 = scmp.eq.s32.totalorder %s97, 0
    %p284 = por %p282, %p283
    %s285 = sld [smem:[#allocation4 + %s91]]
    %s286 = sld [smem:[#allocation4 + %s98]]
    %s287 = ssub.s32 %s285, %s286
    %p288 = scmp.eq.s32.totalorder %s287, 0
    %s290 = sadd.s32 %s289, 1
    %s291 = scalar_select %p288, %s289, %s290
    %p294 = pneg %p288
    %p295 = scmp.eq.s32.totalorder %s91, 1
    %p296 = por %p294, %p295
    %p297 = scmp.ne.s32.totalorder %s289, %s292
    %p298 = scmp.eq.s32.totalorder %s91, 0
    %p299 = por %p297, %p298
    %p300 = scmp.ne.s32.totalorder %s289, %s292
    %p301 = scmp.eq.s32.totalorder %s96, 1
    %p302 = por %p300, %p301
    %p303 = scmp.ne.s32.totalorder %s292, %s293
    %p304 = scmp.eq.s32.totalorder %s96, 0
    %p305 = por %p303, %p304
    %p306 = scmp.ne.s32.totalorder %s292, %s293
    %p307 = scmp.eq.s32.totalorder %s97, 1
    %p308 = por %p306, %p307
    %p310 = scmp.ne.s32.totalorder %s293, %s309
    %p311 = scmp.eq.s32.totalorder %s97, 0
    %p312 = por %p310, %p311
    %s313 = sld [smem:[#allocation4 + %s91]]
    %s314 = sld [smem:[#allocation4 + %s98]]
    %s315 = ssub.s32 %s313, %s314
    %p316 = scmp.eq.s32.totalorder %s315, 0
    %s318 = sadd.s32 %s317, 1
    %s319 = scalar_select %p316, %s317, %s318
    %p322 = pneg %p316
    %p323 = scmp.eq.s32.totalorder %s91, 1
    %p324 = por %p322, %p323
    %p325 = scmp.ne.s32.totalorder %s317, %s320
    %p326 = scmp.eq.s32.totalorder %s91, 0
    %p327 = por %p325, %p326
    %p328 = scmp.ne.s32.totalorder %s317, %s320
    %p329 = scmp.eq.s32.totalorder %s96, 1
    %p330 = por %p328, %p329
    %p331 = scmp.ne.s32.totalorder %s320, %s321
    %p332 = scmp.eq.s32.totalorder %s96, 0
    %p333 = por %p331, %p332
    %p334 = scmp.ne.s32.totalorder %s320, %s321
    %p335 = scmp.eq.s32.totalorder %s97, 1
    %p336 = por %p334, %p335
    %p338 = scmp.ne.s32.totalorder %s321, %s337
    %p339 = scmp.eq.s32.totalorder %s97, 0
    %p340 = por %p338, %p339
    %s341 = sld [smem:[#allocation4 + %s91]]
    %s342 = sld [smem:[#allocation4 + %s98]]
    %s343 = ssub.s32 %s341, %s342
    %p344 = scmp.eq.s32.totalorder %s343, 0
    %s346 = sadd.s32 %s345, 1
    %s347 = scalar_select %p344, %s345, %s346
    %p350 = pneg %p344
    %p351 = scmp.eq.s32.totalorder %s91, 1
    %p352 = por %p350, %p351
    %p353 = scmp.ne.s32.totalorder %s345, %s348
    %p354 = scmp.eq.s32.totalorder %s91, 0
    %p355 = por %p353, %p354
    %p356 = scmp.ne.s32.totalorder %s345, %s348
    %p357 = scmp.eq.s32.totalorder %s96, 1
    %p358 = por %p356, %p357
    %p359 = scmp.ne.s32.totalorder %s348, %s349
    %p360 = scmp.eq.s32.totalorder %s96, 0
    %p361 = por %p359, %p360
    %p362 = scmp.ne.s32.totalorder %s348, %s349
    %p363 = scmp.eq.s32.totalorder %s97, 1
    %p364 = por %p362, %p363
    %p366 = scmp.ne.s32.totalorder %s349, %s365
    %p367 = scmp.eq.s32.totalorder %s97, 0
    %p368 = por %p366, %p367
    %s369 = sld [smem:[#allocation4 + %s91]]
    %s370 = sld [smem:[#allocation4 + %s98]]
    %s371 = ssub.s32 %s369, %s370
    %p372 = scmp.eq.s32.totalorder %s371, 0
    %s374 = sadd.s32 %s373, 1
    %s375 = scalar_select %p372, %s373, %s374
    %p378 = pneg %p372
    %p379 = scmp.eq.s32.totalorder %s91, 1
    %p380 = por %p378, %p379
    %p381 = scmp.ne.s32.totalorder %s373, %s376
    %p382 = scmp.eq.s32.totalorder %s91, 0
    %p383 = por %p381, %p382
    %p384 = scmp.ne.s32.totalorder %s373, %s376
    %p385 = scmp.eq.s32.totalorder %s96, 1
    %p386 = por %p384, %p385
    %p387 = scmp.ne.s32.totalorder %s376, %s377
    %p388 = scmp.eq.s32.totalorder %s96, 0
    %p389 = por %p387, %p388
    %p390 = scmp.ne.s32.totalorder %s376, %s377
    %p391 = scmp.eq.s32.totalorder %s97, 1
    %p392 = por %p390, %p391
    %p394 = scmp.ne.s32.totalorder %s377, %s393
    %p395 = scmp.eq.s32.totalorder %s97, 0
    %p396 = por %p394, %p395
    %s397 = sld [smem:[#allocation4 + %s91]]
    %s398 = sld [smem:[#allocation4 + %s98]]
    %s399 = ssub.s32 %s397, %s398
    %p400 = scmp.eq.s32.totalorder %s399, 0
    %s402 = sadd.s32 %s401, 1
    %s403 = scalar_select %p400, %s401, %s402
    %p406 = pneg %p400
    %p407 = scmp.eq.s32.totalorder %s91, 1
    %p408 = por %p406, %p407
    %p409 = scmp.ne.s32.totalorder %s401, %s404
    %p410 = scmp.eq.s32.totalorder %s91, 0
    %p411 = por %p409, %p410
    %p412 = scmp.ne.s32.totalorder %s401, %s404
    %p413 = scmp.eq.s32.totalorder %s96, 1
    %p414 = por %p412, %p413
    %p415 = scmp.ne.s32.totalorder %s404, %s405
    %p416 = scmp.eq.s32.totalorder %s96, 0
    %p417 = por %p415, %p416
    %p418 = scmp.ne.s32.totalorder %s404, %s405
    %p419 = scmp.eq.s32.totalorder %s97, 1
    %p420 = por %p418, %p419
    %p422 = scmp.ne.s32.totalorder %s405, %s421
    %p423 = scmp.eq.s32.totalorder %s97, 0
    %p424 = por %p422, %p423
    %s425 = sld [smem:[#allocation4 + %s91]]
    %s426 = sld [smem:[#allocation4 + %s98]]
    %s427 = ssub.s32 %s425, %s426
    %p428 = scmp.eq.s32.totalorder %s427, 0
    %s430 = sadd.s32 %s429, 1
    %s431 = scalar_select %p428, %s429, %s430
    %p434 = pneg %p428
    %p435 = scmp.eq.s32.totalorder %s91, 1
    %p436 = por %p434, %p435
    %p437 = scmp.ne.s32.totalorder %s429, %s432
    %p438 = scmp.eq.s32.totalorder %s91, 0
    %p439 = por %p437, %p438
    %p440 = scmp.ne.s32.totalorder %s429, %s432
    %p441 = scmp.eq.s32.totalorder %s96, 1
    %p442 = por %p440, %p441
    %p443 = scmp.ne.s32.totalorder %s432, %s433
    %p444 = scmp.eq.s32.totalorder %s96, 0
    %p445 = por %p443, %p444
    %p446 = scmp.ne.s32.totalorder %s432, %s433
    %p447 = scmp.eq.s32.totalorder %s97, 1
    %p448 = por %p446, %p447
    %p450 = scmp.ne.s32.totalorder %s433, %s449
    %p451 = scmp.eq.s32.totalorder %s97, 0
    %p452 = por %p450, %p451
    %s454 = sadd.s32 %s453, 1
    %p457 = scmp.eq.s32.totalorder %s91, 1
    %p458 = scmp.ne.s32.totalorder %s453, %s455
    %p459 = scmp.eq.s32.totalorder %s91, 0
    %p460 = por %p458, %p459
    %p461 = scmp.ne.s32.totalorder %s453, %s455
    %p462 = scmp.eq.s32.totalorder %s96, 1
    %p463 = por %p461, %p462
    %p464 = scmp.ne.s32.totalorder %s455, %s456
    %p465 = scmp.eq.s32.totalorder %s96, 0
    %p466 = por %p464, %p465
    %p467 = scmp.ne.s32.totalorder %s455, %s456
    %p468 = scmp.eq.s32.totalorder %s97, 1
    %p469 = por %p467, %p468
    %p471 = scmp.ne.s32.totalorder %s456, %s470
    %p472 = scmp.eq.s32.totalorder %s97, 0
    %p473 = por %p471, %p472
    %s475 = sadd.s32 %s474, 1
    %p478 = scmp.eq.s32.totalorder %s91, 1
    %p479 = scmp.ne.s32.totalorder %s474, %s476
    %p480 = scmp.eq.s32.totalorder %s91, 0
    %p481 = por %p479, %p480
    %p482 = scmp.ne.s32.totalorder %s474, %s476
    %p483 = scmp.eq.s32.totalorder %s96, 1
    %p484 = por %p482, %p483
    %p485 = scmp.ne.s32.totalorder %s476, %s477
    %p486 = scmp.eq.s32.totalorder %s96, 0
    %p487 = por %p485, %p486
    %p488 = scmp.ne.s32.totalorder %s476, %s477
    %p489 = scmp.eq.s32.totalorder %s97, 1
    %p490 = por %p488, %p489
    %p492 = scmp.ne.s32.totalorder %s477, %s491
    %p493 = scmp.eq.s32.totalorder %s97, 0
    %p494 = por %p492, %p493
    %s496 = sadd.s32 %s495, 1
    %p499 = scmp.eq.s32.totalorder %s91, 1
    %p500 = scmp.ne.s32.totalorder %s495, %s497
    %p501 = scmp.eq.s32.totalorder %s91, 0
    %p502 = por %p500, %p501
    %p503 = scmp.ne.s32.totalorder %s495, %s497
    %p504 = scmp.eq.s32.totalorder %s96, 1
    %p505 = por %p503, %p504
    %p506 = scmp.ne.s32.totalorder %s497, %s498
    %p507 = scmp.eq.s32.totalorder %s96, 0
    %p508 = por %p506, %p507
    %p509 = scmp.ne.s32.totalorder %s497, %s498
    %p510 = scmp.eq.s32.totalorder %s97, 1
    %p511 = por %p509, %p510
    %p513 = scmp.ne.s32.totalorder %s498, %s512
    %p514 = scmp.eq.s32.totalorder %s97, 0
    %p515 = por %p513, %p514
    %s517 = sadd.s32 %s516, 1
    %p520 = scmp.eq.s32.totalorder %s91, 1
    %p521 = scmp.ne.s32.totalorder %s516, %s518
    %p522 = scmp.eq.s32.totalorder %s91, 0
    %p523 = por %p521, %p522
    %p524 = scmp.ne.s32.totalorder %s516, %s518
    %p525 = scmp.eq.s32.totalorder %s96, 1
    %p526 = por %p524, %p525
    %p527 = scmp.ne.s32.totalorder %s518, %s519
    %p528 = scmp.eq.s32.totalorder %s96, 0
    %p529 = por %p527, %p528
    %p530 = scmp.ne.s32.totalorder %s518, %s519
    %p531 = scmp.eq.s32.totalorder %s97, 1
    %p532 = por %p530, %p531
    %p534 = scmp.ne.s32.totalorder %s519, %s533
    %p535 = scmp.eq.s32.totalorder %s97, 0
    %p536 = por %p534, %p535
    %s538 = sadd.s32 %s537, 1
    %p541 = scmp.eq.s32.totalorder %s91, 1
    %p542 = scmp.ne.s32.totalorder %s537, %s539
    %p543 = scmp.eq.s32.totalorder %s91, 0
    %p544 = por %p542, %p543
    %p545 = scmp.ne.s32.totalorder %s537, %s539
    %p546 = scmp.eq.s32.totalorder %s96, 1
    %p547 = por %p545, %p546
    %p548 = scmp.ne.s32.totalorder %s539, %s540
    %p549 = scmp.eq.s32.totalorder %s96, 0
    %p550 = por %p548, %p549
    %p551 = scmp.ne.s32.totalorder %s539, %s540
    %p552 = scmp.eq.s32.totalorder %s97, 1
    %p553 = por %p551, %p552
    %p555 = scmp.ne.s32.totalorder %s540, %s554
    %p556 = scmp.eq.s32.totalorder %s97, 0
    %p557 = por %p555, %p556
    %s559 = sadd.s32 %s558, 1
    %p562 = scmp.eq.s32.totalorder %s91, 1
    %p563 = scmp.ne.s32.totalorder %s558, %s560
    %p564 = scmp.eq.s32.totalorder %s91, 0
    %p565 = por %p563, %p564
    %p566 = scmp.ne.s32.totalorder %s558, %s560
    %p567 = scmp.eq.s32.totalorder %s96, 1
    %p568 = por %p566, %p567
    %p569 = scmp.ne.s32.totalorder %s560, %s561
    %p570 = scmp.eq.s32.totalorder %s96, 0
    %p571 = por %p569, %p570
    %p572 = scmp.ne.s32.totalorder %s560, %s561
    %p573 = scmp.eq.s32.totalorder %s97, 1
    %p574 = por %p572, %p573
    %p576 = scmp.ne.s32.totalorder %s561, %s575
    %p577 = scmp.eq.s32.totalorder %s97, 0
    %p578 = por %p576, %p577
    %s580 = sadd.s32 %s579, 1
    %p583 = scmp.eq.s32.totalorder %s91, 1
    %p584 = scmp.ne.s32.totalorder %s579, %s581
    %p585 = scmp.eq.s32.totalorder %s91, 0
    %p586 = por %p584, %p585
    %p587 = scmp.ne.s32.totalorder %s579, %s581
    %p588 = scmp.eq.s32.totalorder %s96, 1
    %p589 = por %p587, %p588
    %p590 = scmp.ne.s32.totalorder %s581, %s582
    %p591 = scmp.eq.s32.totalorder %s96, 0
    %p592 = por %p590, %p591
    %p593 = scmp.ne.s32.totalorder %s581, %s582
    %p594 = scmp.eq.s32.totalorder %s97, 1
    %p595 = por %p593, %p594
    %p597 = scmp.ne.s32.totalorder %s582, %s596
    %p598 = scmp.eq.s32.totalorder %s97, 0
    %p599 = por %p597, %p598
    %s601 = sadd.s32 %s600, 1
    %p604 = scmp.eq.s32.totalorder %s91, 1
    %p605 = scmp.ne.s32.totalorder %s600, %s602
    %p606 = scmp.eq.s32.totalorder %s91, 0
    %p607 = por %p605, %p606
    %p608 = scmp.ne.s32.totalorder %s600, %s602
    %p609 = scmp.eq.s32.totalorder %s96, 1
    %p610 = por %p608, %p609
    %p611 = scmp.ne.s32.totalorder %s602, %s603
    %p612 = scmp.eq.s32.totalorder %s96, 0
    %p613 = por %p611, %p612
    %p614 = scmp.ne.s32.totalorder %s602, %s603
    %p615 = scmp.eq.s32.totalorder %s97, 1
    %p616 = por %p614, %p615
    %p618 = scmp.ne.s32.totalorder %s603, %s617
    %p619 = scmp.eq.s32.totalorder %s97, 0
    %p620 = por %p618, %p619
    %s622 = sadd.s32 %s621, 1
    %p625 = scmp.eq.s32.totalorder %s91, 1
    %p626 = scmp.ne.s32.totalorder %s621, %s623
    %p627 = scmp.eq.s32.totalorder %s91, 0
    %p628 = por %p626, %p627
    %p629 = scmp.ne.s32.totalorder %s621, %s623
    %p630 = scmp.eq.s32.totalorder %s96, 1
    %p631 = por %p629, %p630
    %p632 = scmp.ne.s32.totalorder %s623, %s624
    %p633 = scmp.eq.s32.totalorder %s96, 0
    %p634 = por %p632, %p633
    %p635 = scmp.ne.s32.totalorder %s623, %s624
    %p636 = scmp.eq.s32.totalorder %s97, 1
    %p637 = por %p635, %p636
    %p639 = scmp.ne.s32.totalorder %s624, %s638
    %p640 = scmp.eq.s32.totalorder %s97, 0
    %p641 = por %p639, %p640
    %s643 = sadd.s32 %s642, 1
    %p646 = scmp.eq.s32.totalorder %s91, 1
    %p647 = scmp.ne.s32.totalorder %s642, %s644
    %p648 = scmp.eq.s32.totalorder %s91, 0
    %p649 = por %p647, %p648
    %p650 = scmp.ne.s32.totalorder %s642, %s644
    %p651 = scmp.eq.s32.totalorder %s96, 1
    %p652 = por %p650, %p651
    %p653 = scmp.ne.s32.totalorder %s644, %s645
    %p654 = scmp.eq.s32.totalorder %s96, 0
    %p655 = por %p653, %p654
    %p656 = scmp.ne.s32.totalorder %s644, %s645
    %p657 = scmp.eq.s32.totalorder %s97, 1
    %p658 = por %p656, %p657
    %p660 = scmp.ne.s32.totalorder %s645, %s659
    %p661 = scmp.eq.s32.totalorder %s97, 0
    %p662 = por %p660, %p661
    %s664 = sadd.s32 %s663, 1
    %p667 = scmp.eq.s32.totalorder %s91, 1
    %p668 = scmp.ne.s32.totalorder %s663, %s665
    %p669 = scmp.eq.s32.totalorder %s91, 0
    %p670 = por %p668, %p669
    %p671 = scmp.ne.s32.totalorder %s663, %s665
    %p672 = scmp.eq.s32.totalorder %s96, 1
    %p673 = por %p671, %p672
    %p674 = scmp.ne.s32.totalorder %s665, %s666
    %p675 = scmp.eq.s32.totalorder %s96, 0
    %p676 = por %p674, %p675
    %p677 = scmp.ne.s32.totalorder %s665, %s666
    %p678 = scmp.eq.s32.totalorder %s97, 1
    %p679 = por %p677, %p678
    %p681 = scmp.ne.s32.totalorder %s666, %s680
    %p682 = scmp.eq.s32.totalorder %s97, 0
    %p683 = por %p681, %p682
    %s685 = sadd.s32 %s684, 1
    %p688 = scmp.eq.s32.totalorder %s91, 1
    %p689 = scmp.ne.s32.totalorder %s684, %s686
    %p690 = scmp.eq.s32.totalorder %s91, 0
    %p691 = por %p689, %p690
    %p692 = scmp.ne.s32.totalorder %s684, %s686
    %p693 = scmp.eq.s32.totalorder %s96, 1
    %p694 = por %p692, %p693
    %p695 = scmp.ne.s32.totalorder %s686, %s687
    %p696 = scmp.eq.s32.totalorder %s96, 0
    %p697 = por %p695, %p696
    %p698 = scmp.ne.s32.totalorder %s686, %s687
    %p699 = scmp.eq.s32.totalorder %s97, 1
    %p700 = por %p698, %p699
    %p702 = scmp.ne.s32.totalorder %s687, %s701
    %p703 = scmp.eq.s32.totalorder %s97, 0
    %p704 = por %p702, %p703
    %s706 = sadd.s32 %s705, 1
    %p709 = scmp.eq.s32.totalorder %s91, 1
    %p710 = scmp.ne.s32.totalorder %s705, %s707
    %p711 = scmp.eq.s32.totalorder %s91, 0
    %p712 = por %p710, %p711
    %p713 = scmp.ne.s32.totalorder %s705, %s707
    %p714 = scmp.eq.s32.totalorder %s96, 1
    %p715 = por %p713, %p714
    %p716 = scmp.ne.s32.totalorder %s707, %s708
    %p717 = scmp.eq.s32.totalorder %s96, 0
    %p718 = por %p716, %p717
    %p719 = scmp.ne.s32.totalorder %s707, %s708
    %p720 = scmp.eq.s32.totalorder %s97, 1
    %p721 = por %p719, %p720
    %p723 = scmp.ne.s32.totalorder %s708, %s722
    %p724 = scmp.eq.s32.totalorder %s97, 0
    %p725 = por %p723, %p724
    %s727 = sadd.s32 %s726, 1
    %p730 = scmp.eq.s32.totalorder %s91, 1
    %p731 = scmp.ne.s32.totalorder %s726, %s728
    %p732 = scmp.eq.s32.totalorder %s91, 0
    %p733 = por %p731, %p732
    %p734 = scmp.ne.s32.totalorder %s726, %s728
    %p735 = scmp.eq.s32.totalorder %s96, 1
    %p736 = por %p734, %p735
    %p737 = scmp.ne.s32.totalorder %s728, %s729
    %p738 = scmp.eq.s32.totalorder %s96, 0
    %p739 = por %p737, %p738
    %p740 = scmp.ne.s32.totalorder %s728, %s729
    %p741 = scmp.eq.s32.totalorder %s97, 1
    %p742 = por %p740, %p741
    %p744 = scmp.ne.s32.totalorder %s729, %s743
    %p745 = scmp.eq.s32.totalorder %s97, 0
    %p746 = por %p744, %p745
    %s748 = sadd.s32 %s747, 1
    %p751 = scmp.eq.s32.totalorder %s91, 1
    %p752 = scmp.ne.s32.totalorder %s747, %s749
    %p753 = scmp.eq.s32.totalorder %s91, 0
    %p754 = por %p752, %p753
    %p755 = scmp.ne.s32.totalorder %s747, %s749
    %p756 = scmp.eq.s32.totalorder %s96, 1
    %p757 = por %p755, %p756
    %p758 = scmp.ne.s32.totalorder %s749, %s750
    %p759 = scmp.eq.s32.totalorder %s96, 0
    %p760 = por %p758, %p759
    %p761 = scmp.ne.s32.totalorder %s749, %s750
    %p762 = scmp.eq.s32.totalorder %s97, 1
    %p763 = por %p761, %p762
    %p765 = scmp.ne.s32.totalorder %s750, %s764
    %p766 = scmp.eq.s32.totalorder %s97, 0
    %p767 = por %p765, %p766
    %s769 = sadd.s32 %s768, 1
    %p772 = scmp.eq.s32.totalorder %s91, 1
    %p773 = scmp.ne.s32.totalorder %s768, %s770
    %p774 = scmp.eq.s32.totalorder %s91, 0
    %p775 = por %p773, %p774
    %p776 = scmp.ne.s32.totalorder %s768, %s770
    %p777 = scmp.eq.s32.totalorder %s96, 1
    %p778 = por %p776, %p777
    %p779 = scmp.ne.s32.totalorder %s770, %s771
    %p780 = scmp.eq.s32.totalorder %s96, 0
    %p781 = por %p779, %p780
    %p782 = scmp.ne.s32.totalorder %s770, %s771
    %p783 = scmp.eq.s32.totalorder %s97, 1
    %p784 = por %p782, %p783
    %p786 = scmp.ne.s32.totalorder %s771, %s785
    %p787 = scmp.eq.s32.totalorder %s97, 0
    %p788 = por %p786, %p787
    %s790 = sadd.s32 %s789, 1
    %p793 = scmp.eq.s32.totalorder %s91, 1
    %p794 = scmp.ne.s32.totalorder %s789, %s791
    %p795 = scmp.eq.s32.totalorder %s91, 0
    %p796 = por %p794, %p795
    %p797 = scmp.ne.s32.totalorder %s789, %s791
    %p798 = scmp.eq.s32.totalorder %s96, 1
    %p799 = por %p797, %p798
    %p800 = scmp.ne.s32.totalorder %s791, %s792
    %p801 = scmp.eq.s32.totalorder %s96, 0
    %p802 = por %p800, %p801
    %p803 = scmp.ne.s32.totalorder %s791, %s792
    %p804 = scmp.eq.s32.totalorder %s97, 1
    %p805 = por %p803, %p804
    %p807 = scmp.ne.s32.totalorder %s792, %s806
    %p808 = scmp.eq.s32.totalorder %s97, 0
    %p809 = por %p807, %p808
    %s811 = sadd.s32 %s810, 1
    %p814 = scmp.eq.s32.totalorder %s91, 1
    %p815 = scmp.ne.s32.totalorder %s810, %s812
    %p816 = scmp.eq.s32.totalorder %s91, 0
    %p817 = por %p815, %p816
    %p818 = scmp.ne.s32.totalorder %s810, %s812
    %p819 = scmp.eq.s32.totalorder %s96, 1
    %p820 = por %p818, %p819
    %p821 = scmp.ne.s32.totalorder %s812, %s813
    %p822 = scmp.eq.s32.totalorder %s96, 0
    %p823 = por %p821, %p822
    %p824 = scmp.ne.s32.totalorder %s812, %s813
    %p825 = scmp.eq.s32.totalorder %s97, 1
    %p826 = por %p824, %p825
    %p828 = scmp.ne.s32.totalorder %s813, %s827
    %p829 = scmp.eq.s32.totalorder %s97, 0
    %p830 = por %p828, %p829
    %s832 = sadd.s32 %s831, 1
    %p835 = scmp.eq.s32.totalorder %s91, 1
    %p836 = scmp.ne.s32.totalorder %s831, %s833
    %p837 = scmp.eq.s32.totalorder %s91, 0
    %p838 = por %p836, %p837
    %p839 = scmp.ne.s32.totalorder %s831, %s833
    %p840 = scmp.eq.s32.totalorder %s96, 1
    %p841 = por %p839, %p840
    %p842 = scmp.ne.s32.totalorder %s833, %s834
    %p843 = scmp.eq.s32.totalorder %s96, 0
    %p844 = por %p842, %p843
    %p845 = scmp.ne.s32.totalorder %s833, %s834
    %p846 = scmp.eq.s32.totalorder %s97, 1
    %p847 = por %p845, %p846
    %p849 = scmp.ne.s32.totalorder %s834, %s848
    %p850 = scmp.eq.s32.totalorder %s97, 0
    %p851 = por %p849, %p850
    %s853 = sadd.s32 %s852, 1
    %p856 = scmp.eq.s32.totalorder %s91, 1
    %p857 = scmp.ne.s32.totalorder %s852, %s854
    %p858 = scmp.eq.s32.totalorder %s91, 0
    %p859 = por %p857, %p858
    %p860 = scmp.ne.s32.totalorder %s852, %s854
    %p861 = scmp.eq.s32.totalorder %s96, 1
    %p862 = por %p860, %p861
    %p863 = scmp.ne.s32.totalorder %s854, %s855
    %p864 = scmp.eq.s32.totalorder %s96, 0
    %p865 = por %p863, %p864
    %p866 = scmp.ne.s32.totalorder %s854, %s855
    %p867 = scmp.eq.s32.totalorder %s97, 1
    %p868 = por %p866, %p867
    %p870 = scmp.ne.s32.totalorder %s855, %s869
    %p871 = scmp.eq.s32.totalorder %s97, 0
    %p872 = por %p870, %p871
    %s874 = sadd.s32 %s873, 1
    %p877 = scmp.eq.s32.totalorder %s91, 1
    %p878 = scmp.ne.s32.totalorder %s873, %s875
    %p879 = scmp.eq.s32.totalorder %s91, 0
    %p880 = por %p878, %p879
    %p881 = scmp.ne.s32.totalorder %s873, %s875
    %p882 = scmp.eq.s32.totalorder %s96, 1
    %p883 = por %p881, %p882
    %p884 = scmp.ne.s32.totalorder %s875, %s876
    %p885 = scmp.eq.s32.totalorder %s96, 0
    %p886 = por %p884, %p885
    %p887 = scmp.ne.s32.totalorder %s875, %s876
    %p888 = scmp.eq.s32.totalorder %s97, 1
    %p889 = por %p887, %p888
    %p891 = scmp.ne.s32.totalorder %s876, %s890
    %p892 = scmp.eq.s32.totalorder %s97, 0
    %p893 = por %p891, %p892
    %s895 = sadd.s32 %s894, 1
    %p898 = scmp.eq.s32.totalorder %s91, 1
    %p899 = scmp.ne.s32.totalorder %s894, %s896
    %p900 = scmp.eq.s32.totalorder %s91, 0
    %p901 = por %p899, %p900
    %p902 = scmp.ne.s32.totalorder %s894, %s896
    %p903 = scmp.eq.s32.totalorder %s96, 1
    %p904 = por %p902, %p903
    %p905 = scmp.ne.s32.totalorder %s896, %s897
    %p906 = scmp.eq.s32.totalorder %s96, 0
    %p907 = por %p905, %p906
    %p908 = scmp.ne.s32.totalorder %s896, %s897
    %p909 = scmp.eq.s32.totalorder %s97, 1
    %p910 = por %p908, %p909
    %p912 = scmp.ne.s32.totalorder %s897, %s911
    %p913 = scmp.eq.s32.totalorder %s97, 0
    %p914 = por %p912, %p913
    %s916 = sadd.s32 %s915, 1
    %p919 = scmp.eq.s32.totalorder %s91, 1
    %p920 = scmp.ne.s32.totalorder %s915, %s917
    %p921 = scmp.eq.s32.totalorder %s91, 0
    %p922 = por %p920, %p921
    %p923 = scmp.ne.s32.totalorder %s915, %s917
    %p924 = scmp.eq.s32.totalorder %s96, 1
    %p925 = por %p923, %p924
    %p926 = scmp.ne.s32.totalorder %s917, %s918
    %p927 = scmp.eq.s32.totalorder %s96, 0
    %p928 = por %p926, %p927
    %p929 = scmp.ne.s32.totalorder %s917, %s918
    %p930 = scmp.eq.s32.totalorder %s97, 1
    %p931 = por %p929, %p930
    %p933 = scmp.ne.s32.totalorder %s918, %s932
    %p934 = scmp.eq.s32.totalorder %s97, 0
    %p935 = por %p933, %p934
    %s937 = sadd.s32 %s936, 1
    %p940 = scmp.eq.s32.totalorder %s91, 1
    %p941 = scmp.ne.s32.totalorder %s936, %s938
    %p942 = scmp.eq.s32.totalorder %s91, 0
    %p943 = por %p941, %p942
    %p944 = scmp.ne.s32.totalorder %s936, %s938
    %p945 = scmp.eq.s32.totalorder %s96, 1
    %p946 = por %p944, %p945
    %p947 = scmp.ne.s32.totalorder %s938, %s939
    %p948 = scmp.eq.s32.totalorder %s96, 0
    %p949 = por %p947, %p948
    %p950 = scmp.ne.s32.totalorder %s938, %s939
    %p951 = scmp.eq.s32.totalorder %s97, 1
    %p952 = por %p950, %p951
    %p954 = scmp.ne.s32.totalorder %s939, %s953
    %p955 = scmp.eq.s32.totalorder %s97, 0
    %p956 = por %p954, %p955
    %s958 = sadd.s32 %s957, 1
    %p961 = scmp.eq.s32.totalorder %s91, 1
    %p962 = scmp.ne.s32.totalorder %s957, %s959
    %p963 = scmp.eq.s32.totalorder %s91, 0
    %p964 = por %p962, %p963
    %p965 = scmp.ne.s32.totalorder %s957, %s959
    %p966 = scmp.eq.s32.totalorder %s96, 1
    %p967 = por %p965, %p966
    %p968 = scmp.ne.s32.totalorder %s959, %s960
    %p969 = scmp.eq.s32.totalorder %s96, 0
    %p970 = por %p968, %p969
    %p971 = scmp.ne.s32.totalorder %s959, %s960
    %p972 = scmp.eq.s32.totalorder %s97, 1
    %p973 = por %p971, %p972
    %p975 = scmp.ne.s32.totalorder %s960, %s974
    %p976 = scmp.eq.s32.totalorder %s97, 0
    %p977 = por %p975, %p976
    %s978 = ssub.s32 %s91, %s98
    %p979 = scmp.eq.s32.totalorder %s978, 0
    %s981 = sadd.s32 %s980, 1
    %s982 = scalar_select %p979, %s980, %s981
    %p985 = pneg %p979
    %p986 = scmp.eq.s32.totalorder %s91, 1
    %p987 = por %p985, %p986
    %p988 = scmp.ne.s32.totalorder %s980, %s983
    %p989 = scmp.eq.s32.totalorder %s91, 0
    %p990 = por %p988, %p989
    %p991 = scmp.ne.s32.totalorder %s980, %s983
    %p992 = scmp.eq.s32.totalorder %s96, 1
    %p993 = por %p991, %p992
    %p994 = scmp.ne.s32.totalorder %s983, %s984
    %p995 = scmp.eq.s32.totalorder %s96, 0
    %p996 = por %p994, %p995
    %p997 = scmp.ne.s32.totalorder %s983, %s984
    %p998 = scmp.eq.s32.totalorder %s97, 1
    %p999 = por %p997, %p998
    %p1001 = scmp.ne.s32.totalorder %s984, %s1000
    %p1002 = scmp.eq.s32.totalorder %s97, 0
    %p1003 = por %p1001, %p1002
    %p1004 = scmp.le.s32.totalorder 1, %s91
    %p1005 = scmp.lt.s32.totalorder %s91, 3
    %p1006 = pnand %p1004, %p1005
    %p1007 = pneg %p1006
    // Predicated region
    $region9: #{_lambda_.1} parent=5 // pred_check
      _
    $region10: #{_lambda_.1} parent=5 // pred_check_branch
      %1009 = sbr.rel (%p1006) target = $region12
    $region11: #{_lambda_.1} parent=5 // pred_region
      %s1010 = ssub.s32 %s91, 1
      // Predicated region
      $region13: #{_lambda_.1} parent=11 // pred_check
        %p1011 = pneg %p466
      $region14: #{_lambda_.1} parent=11 // pred_check_branch
        %1013 = sbr.rel (%p1011) target = $region16
      $region15: #{_lambda_.1} parent=11 // pred_region
        _
      $region16: #{_lambda_.1} parent=11 // pred_fallthru
        _
      // Predicated region
      $region17: #{_lambda_.1} parent=11 // pred_check
        %p1014 = pneg %p487
      $region18: #{_lambda_.1} parent=11 // pred_check_branch
        %1016 = sbr.rel (%p1014) target = $region20
      $region19: #{_lambda_.1} parent=11 // pred_region
        _
      $region20: #{_lambda_.1} parent=11 // pred_fallthru
        _
      // Predicated region
      $region21: #{_lambda_.1} parent=11 // pred_check
        %p1017 = pneg %p508
      $region22: #{_lambda_.1} parent=11 // pred_check_branch
        %1019 = sbr.rel (%p1017) target = $region24
      $region23: #{_lambda_.1} parent=11 // pred_region
        _
      $region24: #{_lambda_.1} parent=11 // pred_fallthru
        _
      // Predicated region
      $region25: #{_lambda_.1} parent=11 // pred_check
        %p1020 = pneg %p529
      $region26: #{_lambda_.1} parent=11 // pred_check_branch
        %1022 = sbr.rel (%p1020) target = $region28
      $region27: #{_lambda_.1} parent=11 // pred_region
        _
      $region28: #{_lambda_.1} parent=11 // pred_fallthru
        _
      // Predicated region
      $region29: #{_lambda_.1} parent=11 // pred_check
        %p1023 = pneg %p550
      $region30: #{_lambda_.1} parent=11 // pred_check_branch
        %1025 = sbr.rel (%p1023) target = $region32
      $region31: #{_lambda_.1} parent=11 // pred_region
        _
      $region32: #{_lambda_.1} parent=11 // pred_fallthru
        _
      // Predicated region
      $region33: #{_lambda_.1} parent=11 // pred_check
        %p1026 = pneg %p571
      $region34: #{_lambda_.1} parent=11 // pred_check_branch
        %1028 = sbr.rel (%p1026) target = $region36
      $region35: #{_lambda_.1} parent=11 // pred_region
        _
      $region36: #{_lambda_.1} parent=11 // pred_fallthru
        _
      // Predicated region
      $region37: #{_lambda_.1} parent=11 // pred_check
        %p1029 = pneg %p592
      $region38: #{_lambda_.1} parent=11 // pred_check_branch
        %1031 = sbr.rel (%p1029) target = $region40
      $region39: #{_lambda_.1} parent=11 // pred_region
        _
      $region40: #{_lambda_.1} parent=11 // pred_fallthru
        _
      // Predicated region
      $region41: #{_lambda_.1} parent=11 // pred_check
        %p1032 = pneg %p613
      $region42: #{_lambda_.1} parent=11 // pred_check_branch
        %1034 = sbr.rel (%p1032) target = $region44
      $region43: #{_lambda_.1} parent=11 // pred_region
        _
      $region44: #{_lambda_.1} parent=11 // pred_fallthru
        _
      // Predicated region
      $region45: #{_lambda_.1} parent=11 // pred_check
        %p1035 = pneg %p634
      $region46: #{_lambda_.1} parent=11 // pred_check_branch
        %1037 = sbr.rel (%p1035) target = $region48
      $region47: #{_lambda_.1} parent=11 // pred_region
        _
      $region48: #{_lambda_.1} parent=11 // pred_fallthru
        _
      // Predicated region
      $region49: #{_lambda_.1} parent=11 // pred_check
        %p1038 = pneg %p655
      $region50: #{_lambda_.1} parent=11 // pred_check_branch
        %1040 = sbr.rel (%p1038) target = $region52
      $region51: #{_lambda_.1} parent=11 // pred_region
        _
      $region52: #{_lambda_.1} parent=11 // pred_fallthru
        _
      // Predicated region
      $region53: #{_lambda_.1} parent=11 // pred_check
        %p1041 = pneg %p676
      $region54: #{_lambda_.1} parent=11 // pred_check_branch
        %1043 = sbr.rel (%p1041) target = $region56
      $region55: #{_lambda_.1} parent=11 // pred_region
        _
      $region56: #{_lambda_.1} parent=11 // pred_fallthru
        _
      // Predicated region
      $region57: #{_lambda_.1} parent=11 // pred_check
        %p1044 = pneg %p697
      $region58: #{_lambda_.1} parent=11 // pred_check_branch
        %1046 = sbr.rel (%p1044) target = $region60
      $region59: #{_lambda_.1} parent=11 // pred_region
        _
      $region60: #{_lambda_.1} parent=11 // pred_fallthru
        _
      // Predicated region
      $region61: #{_lambda_.1} parent=11 // pred_check
        %p1047 = pneg %p718
      $region62: #{_lambda_.1} parent=11 // pred_check_branch
        %1049 = sbr.rel (%p1047) target = $region64
      $region63: #{_lambda_.1} parent=11 // pred_region
        _
      $region64: #{_lambda_.1} parent=11 // pred_fallthru
        _
      // Predicated region
      $region65: #{_lambda_.1} parent=11 // pred_check
        %p1050 = pneg %p739
      $region66: #{_lambda_.1} parent=11 // pred_check_branch
        %1052 = sbr.rel (%p1050) target = $region68
      $region67: #{_lambda_.1} parent=11 // pred_region
        _
      $region68: #{_lambda_.1} parent=11 // pred_fallthru
        _
      // Predicated region
      $region69: #{_lambda_.1} parent=11 // pred_check
        %p1053 = pneg %p760
      $region70: #{_lambda_.1} parent=11 // pred_check_branch
        %1055 = sbr.rel (%p1053) target = $region72
      $region71: #{_lambda_.1} parent=11 // pred_region
        _
      $region72: #{_lambda_.1} parent=11 // pred_fallthru
        _
      // Predicated region
      $region73: #{_lambda_.1} parent=11 // pred_check
        %p1056 = pneg %p781
      $region74: #{_lambda_.1} parent=11 // pred_check_branch
        %1058 = sbr.rel (%p1056) target = $region76
      $region75: #{_lambda_.1} parent=11 // pred_region
        _
      $region76: #{_lambda_.1} parent=11 // pred_fallthru
        _
      // Predicated region
      $region77: #{_lambda_.1} parent=11 // pred_check
        %p1059 = pneg %p802
      $region78: #{_lambda_.1} parent=11 // pred_check_branch
        %1061 = sbr.rel (%p1059) target = $region80
      $region79: #{_lambda_.1} parent=11 // pred_region
        _
      $region80: #{_lambda_.1} parent=11 // pred_fallthru
        _
      // Predicated region
      $region81: #{_lambda_.1} parent=11 // pred_check
        %p1062 = pneg %p823
      $region82: #{_lambda_.1} parent=11 // pred_check_branch
        %1064 = sbr.rel (%p1062) target = $region84
      $region83: #{_lambda_.1} parent=11 // pred_region
        _
      $region84: #{_lambda_.1} parent=11 // pred_fallthru
        _
      // Predicated region
      $region85: #{_lambda_.1} parent=11 // pred_check
        %p1065 = pneg %p844
      $region86: #{_lambda_.1} parent=11 // pred_check_branch
        %1067 = sbr.rel (%p1065) target = $region88
      $region87: #{_lambda_.1} parent=11 // pred_region
        _
      $region88: #{_lambda_.1} parent=11 // pred_fallthru
        _
      // Predicated region
      $region89: #{_lambda_.1} parent=11 // pred_check
        %p1068 = pneg %p865
      $region90: #{_lambda_.1} parent=11 // pred_check_branch
        %1070 = sbr.rel (%p1068) target = $region92
      $region91: #{_lambda_.1} parent=11 // pred_region
        _
      $region92: #{_lambda_.1} parent=11 // pred_fallthru
        _
      // Predicated region
      $region93: #{_lambda_.1} parent=11 // pred_check
        %p1071 = pneg %p886
      $region94: #{_lambda_.1} parent=11 // pred_check_branch
        %1073 = sbr.rel (%p1071) target = $region96
      $region95: #{_lambda_.1} parent=11 // pred_region
        _
      $region96: #{_lambda_.1} parent=11 // pred_fallthru
        _
      // Predicated region
      $region97: #{_lambda_.1} parent=11 // pred_check
        %p1074 = pneg %p907
      $region98: #{_lambda_.1} parent=11 // pred_check_branch
        %1076 = sbr.rel (%p1074) target = $region100
      $region99: #{_lambda_.1} parent=11 // pred_region
        _
      $region100: #{_lambda_.1} parent=11 // pred_fallthru
        _
      // Predicated region
      $region101: #{_lambda_.1} parent=11 // pred_check
        %p1077 = pneg %p928
      $region102: #{_lambda_.1} parent=11 // pred_check_branch
        %1079 = sbr.rel (%p1077) target = $region104
      $region103: #{_lambda_.1} parent=11 // pred_region
        _
      $region104: #{_lambda_.1} parent=11 // pred_fallthru
        _
      // Predicated region
      $region105: #{_lambda_.1} parent=11 // pred_check
        %p1080 = pneg %p949
      $region106: #{_lambda_.1} parent=11 // pred_check_branch
        %1082 = sbr.rel (%p1080) target = $region108
      $region107: #{_lambda_.1} parent=11 // pred_region
        _
      $region108: #{_lambda_.1} parent=11 // pred_fallthru
        _
      // Predicated region
      $region109: #{_lambda_.1} parent=11 // pred_check
        %p1083 = pneg %p970
      $region110: #{_lambda_.1} parent=11 // pred_check_branch
        %1085 = sbr.rel (%p1083) target = $region112
      $region111: #{_lambda_.1} parent=11 // pred_region
        _
      $region112: #{_lambda_.1} parent=11 // pred_fallthru
        _
    $region12: #{_lambda_.1} parent=5 // pred_fallthru
      _
    %p1086 = scmp.lt.s32.totalorder %s91, 2
    // Predicated region
    $region113: #{_lambda_.1} parent=5 // pred_check
      %p1087 = pneg %p1086
    $region114: #{_lambda_.1} parent=5 // pred_check_branch
      %1089 = sbr.rel (%p1087) target = $region116
    $region115: #{_lambda_.1} parent=5 // pred_region
      // Predicated region
      $region117: #{_lambda_.1} parent=115 // pred_check
        %p1090 = pneg %p111
      $region118: #{_lambda_.1} parent=115 // pred_check_branch
        %1092 = sbr.rel (%p1090) target = $region120
      $region119: #{_lambda_.1} parent=115 // pred_region
        %p1093 = scmp.lt.s32.totalorder %s91, 1
        %s1094 = scalar_select %p1093, %s91, 1
        %s1095 = smul.addr %s1094, 8
        %s1096 = scalar_lea.vmem %s3, %s1095
      $region120: #{_lambda_.1} parent=115 // pred_fallthru
        _
      // Predicated region
      $region121: #{_lambda_.1} parent=115 // pred_check
        %p1097 = pneg %p137
      $region122: #{_lambda_.1} parent=115 // pred_check_branch
        %1099 = sbr.rel (%p1097) target = $region124
      $region123: #{_lambda_.1} parent=115 // pred_region
        %p1100 = scmp.lt.s32.totalorder %s91, 1
        %s1101 = scalar_select %p1100, %s91, 1
        %s1102 = smul.addr %s1101, 8
        %s1103 = scalar_lea.vmem %s5, %s1102
      $region124: #{_lambda_.1} parent=115 // pred_fallthru
        _
      // Predicated region
      $region125: #{_lambda_.1} parent=115 // pred_check
        %p1104 = pneg %p163
      $region126: #{_lambda_.1} parent=115 // pred_check_branch
        %1106 = sbr.rel (%p1104) target = $region128
      $region127: #{_lambda_.1} parent=115 // pred_region
        %p1107 = scmp.lt.s32.totalorder %s91, 1
        %s1108 = scalar_select %p1107, %s91, 1
        %s1109 = smul.addr %s1108, 8
        %s1110 = scalar_lea.vmem %s7, %s1109
      $region128: #{_lambda_.1} parent=115 // pred_fallthru
        _
      // Predicated region
      $region129: #{_lambda_.1} parent=115 // pred_check
        %p1111 = pneg %p189
      $region130: #{_lambda_.1} parent=115 // pred_check_branch
        %1113 = sbr.rel (%p1111) target = $region132
      $region131: #{_lambda_.1} parent=115 // pred_region
        %p1114 = scmp.lt.s32.totalorder %s91, 1
        %s1115 = scalar_select %p1114, %s91, 1
        %s1116 = scalar_lea.vmem %s9, %s1115
      $region132: #{_lambda_.1} parent=115 // pred_fallthru
        _
      // Predicated region
      $region133: #{_lambda_.1} parent=115 // pred_check
        %p1117 = pneg %p215
      $region134: #{_lambda_.1} parent=115 // pred_check_branch
        %1119 = sbr.rel (%p1117) target = $region136
      $region135: #{_lambda_.1} parent=115 // pred_region
        %p1120 = scmp.lt.s32.totalorder %s91, 1
        %s1121 = scalar_select %p1120, %s91, 1
        %s1122 = smul.addr %s1121, 8
        %s1123 = scalar_lea.vmem %s11, %s1122
      $region136: #{_lambda_.1} parent=115 // pred_fallthru
        _
      // Predicated region
      $region137: #{_lambda_.1} parent=115 // pred_check
        %p1124 = pneg %p243
      $region138: #{_lambda_.1} parent=115 // pred_check_branch
        %1126 = sbr.rel (%p1124) target = $region140
      $region139: #{_lambda_.1} parent=115 // pred_region
        %s1127 = sld [smem:[#allocation4 + %s91]]
        %p1128 = scmp.lt.s32.totalorder %s1127, 3
        %s1129 = scalar_select %p1128, %s1127, 3
        %s1130 = smul.addr %s1129, 8
        %s1131 = smul.addr %s1130, 8
        %s1132 = scalar_lea.vmem %s13, %s1131
        %s1133 = sld [smem:[#allocation4 + %s91]]
      $region140: #{_lambda_.1} parent=115 // pred_fallthru
        _
      // Predicated region
      $region141: #{_lambda_.1} parent=115 // pred_check
        %p1134 = pneg %p271
      $region142: #{_lambda_.1} parent=115 // pred_check_branch
        %1136 = sbr.rel (%p1134) target = $region144
      $region143: #{_lambda_.1} parent=115 // pred_region
        %s1137 = sld [smem:[#allocation4 + %s91]]
        %p1138 = scmp.lt.s32.totalorder %s1137, 3
        %s1139 = scalar_select %p1138, %s1137, 3
        %s1140 = smul.addr %s1139, 2
        %s1141 = smul.addr %s1140, 4
        %s1142 = scalar_lea.vmem %s15, %s1141
        %s1143 = sld [smem:[#allocation4 + %s91]]
      $region144: #{_lambda_.1} parent=115 // pred_fallthru
        _
      // Predicated region
      $region145: #{_lambda_.1} parent=115 // pred_check
        %p1144 = pneg %p299
      $region146: #{_lambda_.1} parent=115 // pred_check_branch
        %1146 = sbr.rel (%p1144) target = $region148
      $region147: #{_lambda_.1} parent=115 // pred_region
        %s1147 = sld [smem:[#allocation4 + %s91]]
        %p1148 = scmp.lt.s32.totalorder %s1147, 3
        %s1149 = scalar_select %p1148, %s1147, 3
        %s1150 = smul.addr %s1149, 8
        %s1151 = smul.addr %s1150, 8
        %s1152 = scalar_lea.vmem %s17, %s1151
        %s1153 = sld [smem:[#allocation4 + %s91]]
      $region148: #{_lambda_.1} parent=115 // pred_fallthru
        _
      // Predicated region
      $region149: #{_lambda_.1} parent=115 // pred_check
        %p1154 = pneg %p327
      $region150: #{_lambda_.1} parent=115 // pred_check_branch
        %1156 = sbr.rel (%p1154) target = $region152
      $region151: #{_lambda_.1} parent=115 // pred_region
        %s1157 = sld [smem:[#allocation4 + %s91]]
        %p1158 = scmp.lt.s32.totalorder %s1157, 3
        %s1159 = scalar_select %p1158, %s1157, 3
        %s1160 = smul.addr %s1159, 2
        %s1161 = smul.addr %s1160, 4
        %s1162 = scalar_lea.vmem %s19, %s1161
        %s1163 = sld [smem:[#allocation4 + %s91]]
      $region152: #{_lambda_.1} parent=115 // pred_fallthru
        _
      // Predicated region
      $region153: #{_lambda_.1} parent=115 // pred_check
        %p1164 = pneg %p355
      $region154: #{_lambda_.1} parent=115 // pred_check_branch
        %1166 = sbr.rel (%p1164) target = $region156
      $region155: #{_lambda_.1} parent=115 // pred_region
        %s1167 = sld [smem:[#allocation4 + %s91]]
        %p1168 = scmp.lt.s32.totalorder %s1167, 3
        %s1169 = scalar_select %p1168, %s1167, 3
        %s1170 = smul.addr %s1169, 8
        %s1171 = smul.addr %s1170, 8
        %s1172 = scalar_lea.vmem %s21, %s1171
        %s1173 = sld [smem:[#allocation4 + %s91]]
      $region156: #{_lambda_.1} parent=115 // pred_fallthru
        _
      // Predicated region
      $region157: #{_lambda_.1} parent=115 // pred_check
        %p1174 = pneg %p383
      $region158: #{_lambda_.1} parent=115 // pred_check_branch
        %1176 = sbr.rel (%p1174) target = $region160
      $region159: #{_lambda_.1} parent=115 // pred_region
        %s1177 = sld [smem:[#allocation4 + %s91]]
        %p1178 = scmp.lt.s32.totalorder %s1177, 3
        %s1179 = scalar_select %p1178, %s1177, 3
        %s1180 = smul.addr %s1179, 2
        %s1181 = smul.addr %s1180, 4
        %s1182 = scalar_lea.vmem %s23, %s1181
        %s1183 = sld [smem:[#allocation4 + %s91]]
      $region160: #{_lambda_.1} parent=115 // pred_fallthru
        _
      // Predicated region
      $region161: #{_lambda_.1} parent=115 // pred_check
        %p1184 = pneg %p411
      $region162: #{_lambda_.1} parent=115 // pred_check_branch
        %1186 = sbr.rel (%p1184) target = $region164
      $region163: #{_lambda_.1} parent=115 // pred_region
        %s1187 = sld [smem:[#allocation4 + %s91]]
        %p1188 = scmp.lt.s32.totalorder %s1187, 3
        %s1189 = scalar_select %p1188, %s1187, 3
        %s1190 = smul.addr %s1189, 32
        %s1191 = smul.addr %s1190, 8
        %s1192 = scalar_lea.vmem %s25, %s1191
        %s1193 = sld [smem:[#allocation4 + %s91]]
      $region164: #{_lambda_.1} parent=115 // pred_fallthru
        _
      // Predicated region
      $region165: #{_lambda_.1} parent=115 // pred_check
        %p1194 = pneg %p439
      $region166: #{_lambda_.1} parent=115 // pred_check_branch
        %1196 = sbr.rel (%p1194) target = $region168
      $region167: #{_lambda_.1} parent=115 // pred_region
        %s1197 = sld [smem:[#allocation4 + %s91]]
        %p1198 = scmp.lt.s32.totalorder %s1197, 3
        %s1199 = scalar_select %p1198, %s1197, 3
        %s1200 = smul.addr %s1199, 2
        %s1201 = smul.addr %s1200, 4
        %s1202 = scalar_lea.vmem %s27, %s1201
        %s1203 = sld [smem:[#allocation4 + %s91]]
      $region168: #{_lambda_.1} parent=115 // pred_fallthru
        _
    $region116: #{_lambda_.1} parent=5 // pred_fallthru
      _
    %p1204 = scmp.le.s32.totalorder 1, %s91
    %p1205 = scmp.lt.s32.totalorder %s91, 3
    %p1206 = pnand %p1204, %p1205
    %p1207 = pneg %p1206
    // Predicated region
    $region169: #{_lambda_.1} parent=5 // pred_check
      _
    $region170: #{_lambda_.1} parent=5 // pred_check_branch
      %1209 = sbr.rel (%p1206) target = $region172
    $region171: #{_lambda_.1} parent=5 // pred_region
      %s1210 = ssub.s32 %s91, 1
      %p1211 = scmp.lt.s32.totalorder %s96, 1
      %s1212 = scalar_select %p1211, %s96, 1
      %s1213 = smul.addr %s1212, 8
      %s1214 = scalar_lea.vmem %s3, %s1213
      %p1215 = pneg %p117
      %p1216 = pneg %p114
      %p1217 = scmp.lt.s32.totalorder %s96, 1
      %s1218 = scalar_select %p1217, %s96, 1
      %s1219 = smul.addr %s1218, 8
      %s1220 = scalar_lea.vmem %s5, %s1219
      %p1221 = pneg %p143
      %p1222 = pneg %p140
      %p1223 = scmp.lt.s32.totalorder %s96, 1
      %s1224 = scalar_select %p1223, %s96, 1
      %s1225 = smul.addr %s1224, 8
      %s1226 = scalar_lea.vmem %s7, %s1225
      %p1227 = pneg %p169
      %p1228 = pneg %p166
      %p1229 = scmp.lt.s32.totalorder %s96, 1
      %s1230 = scalar_select %p1229, %s96, 1
      %s1231 = scalar_lea.vmem %s9, %s1230
      %p1232 = pneg %p195
      %p1233 = pneg %p192
      %p1234 = scmp.lt.s32.totalorder %s96, 1
      %s1235 = scalar_select %p1234, %s96, 1
      %s1236 = smul.addr %s1235, 8
      %s1237 = scalar_lea.vmem %s11, %s1236
      %p1238 = pneg %p221
      %p1239 = pneg %p218
      %s1240 = sld [smem:[#allocation4 + %s96]]
      %p1241 = scmp.lt.s32.totalorder %s1240, 3
      %s1242 = scalar_select %p1241, %s1240, 3
      %s1243 = smul.addr %s1242, 8
      %s1244 = smul.addr %s1243, 8
      %s1245 = scalar_lea.vmem %s13, %s1244
      %p1246 = pneg %p249
      %p1247 = pneg %p246
      %s1248 = sld [smem:[#allocation4 + %s96]]
      %p1249 = scmp.lt.s32.totalorder %s1248, 3
      %s1250 = scalar_select %p1249, %s1248, 3
      %s1251 = smul.addr %s1250, 2
      %s1252 = smul.addr %s1251, 4
      %s1253 = scalar_lea.vmem %s15, %s1252
      %p1254 = pneg %p277
      %p1255 = pneg %p274
      %s1256 = sld [smem:[#allocation4 + %s96]]
      %p1257 = scmp.lt.s32.totalorder %s1256, 3
      %s1258 = scalar_select %p1257, %s1256, 3
      %s1259 = smul.addr %s1258, 8
      %s1260 = smul.addr %s1259, 8
      %s1261 = scalar_lea.vmem %s17, %s1260
      %p1262 = pneg %p305
      %p1263 = pneg %p302
      %s1264 = sld [smem:[#allocation4 + %s96]]
      %p1265 = scmp.lt.s32.totalorder %s1264, 3
      %s1266 = scalar_select %p1265, %s1264, 3
      %s1267 = smul.addr %s1266, 2
      %s1268 = smul.addr %s1267, 4
      %s1269 = scalar_lea.vmem %s19, %s1268
      %p1270 = pneg %p333
      %p1271 = pneg %p330
      %s1272 = sld [smem:[#allocation4 + %s96]]
      %p1273 = scmp.lt.s32.totalorder %s1272, 3
      %s1274 = scalar_select %p1273, %s1272, 3
      %s1275 = smul.addr %s1274, 8
      %s1276 = smul.addr %s1275, 8
      %s1277 = scalar_lea.vmem %s21, %s1276
      %p1278 = pneg %p361
      %p1279 = pneg %p358
      %s1280 = sld [smem:[#allocation4 + %s96]]
      %p1281 = scmp.lt.s32.totalorder %s1280, 3
      %s1282 = scalar_select %p1281, %s1280, 3
      %s1283 = smul.addr %s1282, 2
      %s1284 = smul.addr %s1283, 4
      %s1285 = scalar_lea.vmem %s23, %s1284
      %p1286 = pneg %p389
      %p1287 = pneg %p386
      %s1288 = sld [smem:[#allocation4 + %s96]]
      %p1289 = scmp.lt.s32.totalorder %s1288, 3
      %s1290 = scalar_select %p1289, %s1288, 3
      %s1291 = smul.addr %s1290, 32
      %s1292 = smul.addr %s1291, 8
      %s1293 = scalar_lea.vmem %s25, %s1292
      %p1294 = pneg %p417
      %p1295 = pneg %p414
      %s1296 = sld [smem:[#allocation4 + %s96]]
      %p1297 = scmp.lt.s32.totalorder %s1296, 3
      %s1298 = scalar_select %p1297, %s1296, 3
      %s1299 = smul.addr %s1298, 2
      %s1300 = smul.addr %s1299, 4
      %s1301 = scalar_lea.vmem %s27, %s1300
      %p1302 = pneg %p445
      %p1303 = pneg %p442
      %p1304 = pneg %p466
      %p1305 = pneg %p463
      %p1306 = pneg %p487
      %p1307 = pneg %p484
      %p1308 = pneg %p508
      %p1309 = pneg %p505
      %p1310 = pneg %p529
      %p1311 = pneg %p526
      %p1312 = pneg %p550
      %p1313 = pneg %p547
      %p1314 = pneg %p571
      %p1315 = pneg %p568
      %p1316 = pneg %p592
      %p1317 = pneg %p589
      %p1318 = pneg %p613
      %p1319 = pneg %p610
      %p1320 = pneg %p634
      %p1321 = pneg %p631
      %p1322 = pneg %p655
      %p1323 = pneg %p652
      %p1324 = pneg %p676
      %p1325 = pneg %p673
      %p1326 = pneg %p697
      %p1327 = pneg %p694
      %p1328 = pneg %p718
      %p1329 = pneg %p715
      %p1330 = pneg %p739
      %p1331 = pneg %p736
      %p1332 = pneg %p760
      %p1333 = pneg %p757
      %p1334 = pneg %p781
      %p1335 = pneg %p778
      %p1336 = pneg %p802
      %p1337 = pneg %p799
      %p1338 = pneg %p823
      %p1339 = pneg %p820
      %p1340 = pneg %p844
      %p1341 = pneg %p841
      %p1342 = pneg %p865
      %p1343 = pneg %p862
      %p1344 = pneg %p886
      %p1345 = pneg %p883
      %p1346 = pneg %p907
      %p1347 = pneg %p904
      %p1348 = pneg %p928
      %p1349 = pneg %p925
      %p1350 = pneg %p949
      %p1351 = pneg %p946
      %p1352 = pneg %p970
      %p1353 = pneg %p967
      %p1354 = pneg %p996
      %p1355 = pneg %p993
      %p1356 = scmp.lt.s32.totalorder %s96, 1
      %s1357 = scalar_select %p1356, %s96, 1
      %s1358 = smul.addr %s1357, 4
      %s1359 = smul.addr %s1358, 8
      %s1360 = scalar_lea.vmem %s79, %s1359
      %p1361 = scmp.lt.s32.totalorder %s96, 1
      %s1362 = scalar_select %p1361, %s96, 1
      %s1363 = smul.addr %s1362, 8
      %s1364 = scalar_lea.vmem %s3, %s1363
      %p1365 = scmp.lt.s32.totalorder %s96, 1
      %s1366 = scalar_select %p1365, %s96, 1
      %s1367 = smul.addr %s1366, 8
      %s1368 = scalar_lea.vmem %s5, %s1367
      %p1369 = scmp.lt.s32.totalorder %s96, 1
      %s1370 = scalar_select %p1369, %s96, 1
      %s1371 = smul.addr %s1370, 8
      %s1372 = scalar_lea.vmem %s7, %s1371
      %p1373 = scmp.lt.s32.totalorder %s96, 1
      %s1374 = scalar_select %p1373, %s96, 1
      %s1375 = scalar_lea.vmem %s9, %s1374
      %p1376 = scmp.lt.s32.totalorder %s96, 1
      %s1377 = scalar_select %p1376, %s96, 1
      %s1378 = smul.addr %s1377, 8
      %s1379 = scalar_lea.vmem %s11, %s1378
      %s1380 = sld [smem:[#allocation4 + %s96]]
      %p1381 = scmp.lt.s32.totalorder %s1380, 3
      %s1382 = scalar_select %p1381, %s1380, 3
      %s1383 = smul.addr %s1382, 8
      %s1384 = smul.addr %s1383, 8
      %s1385 = scalar_lea.vmem %s13, %s1384
      %s1386 = sld [smem:[#allocation4 + %s96]]
      %s1387 = sld [smem:[#allocation4 + %s96]]
      %p1388 = scmp.lt.s32.totalorder %s1387, 3
      %s1389 = scalar_select %p1388, %s1387, 3
      %s1390 = smul.addr %s1389, 2
      %s1391 = smul.addr %s1390, 4
      %s1392 = scalar_lea.vmem %s15, %s1391
      %s1393 = sld [smem:[#allocation4 + %s96]]
      %s1394 = sld [smem:[#allocation4 + %s96]]
      %p1395 = scmp.lt.s32.totalorder %s1394, 3
      %s1396 = scalar_select %p1395, %s1394, 3
      %s1397 = smul.addr %s1396, 8
      %s1398 = smul.addr %s1397, 8
      %s1399 = scalar_lea.vmem %s17, %s1398
      %s1400 = sld [smem:[#allocation4 + %s96]]
      %s1401 = sld [smem:[#allocation4 + %s96]]
      %p1402 = scmp.lt.s32.totalorder %s1401, 3
      %s1403 = scalar_select %p1402, %s1401, 3
      %s1404 = smul.addr %s1403, 2
      %s1405 = smul.addr %s1404, 4
      %s1406 = scalar_lea.vmem %s19, %s1405
      %s1407 = sld [smem:[#allocation4 + %s96]]
      %s1408 = sld [smem:[#allocation4 + %s96]]
      %p1409 = scmp.lt.s32.totalorder %s1408, 3
      %s1410 = scalar_select %p1409, %s1408, 3
      %s1411 = smul.addr %s1410, 8
      %s1412 = smul.addr %s1411, 8
      %s1413 = scalar_lea.vmem %s21, %s1412
      %s1414 = sld [smem:[#allocation4 + %s96]]
      %s1415 = sld [smem:[#allocation4 + %s96]]
      %p1416 = scmp.lt.s32.totalorder %s1415, 3
      %s1417 = scalar_select %p1416, %s1415, 3
      %s1418 = smul.addr %s1417, 2
      %s1419 = smul.addr %s1418, 4
      %s1420 = scalar_lea.vmem %s23, %s1419
      %s1421 = sld [smem:[#allocation4 + %s96]]
      %s1422 = sld [smem:[#allocation4 + %s96]]
      %p1423 = scmp.lt.s32.totalorder %s1422, 3
      %s1424 = scalar_select %p1423, %s1422, 3
      %s1425 = smul.addr %s1424, 32
      %s1426 = smul.addr %s1425, 8
      %s1427 = scalar_lea.vmem %s25, %s1426
      %s1428 = sld [smem:[#allocation4 + %s96]]
      %s1429 = sld [smem:[#allocation4 + %s96]]
      %p1430 = scmp.lt.s32.totalorder %s1429, 3
      %s1431 = scalar_select %p1430, %s1429, 3
      %s1432 = smul.addr %s1431, 2
      %s1433 = smul.addr %s1432, 4
      %s1434 = scalar_lea.vmem %s27, %s1433
      %s1435 = sld [smem:[#allocation4 + %s96]]
      %p1436 = scmp.lt.s32.totalorder %s96, 1
      %s1437 = scalar_select %p1436, %s96, 1
      %s1438 = smul.addr %s1437, 4
      %s1439 = smul.addr %s1438, 8
      %s1440 = scalar_lea.vmem %s79, %s1439
      %v1441 = vld [vmem:[%s45] sm:$0x1]
      %v1442 = vld [vmem:[%s47] sm:$0x1]
      %v1443 = vld [vmem:[%s1379] sm:$0xff]
      %v1444 = vld [vmem:[%s1375] sm:$0x1]
      %v1445 = vld [vmem:[%s41] sm:$0xff]
      %v1446 = vld [vmem:[%s41 + $0x8] sm:$0x3]
      %v1447 = vld [vmem:[%s43] sm:$0x1]
      %vm1448 = vcmask 80896
      %v1450 = vsel %vm1448, %v1444, 0
      %vm1452 = vcmask 1041408
      %v1454 = vsel %vm1452, %v1446, 0
      %1456 = vmatprep.subr.mxu0 0.0
      %1457 = vmatpush1.msra.mxu0 %v1445
      %1458 = vmatprep.subr.mxu0 0.0
      %1459 = vmatpush1.msra.mxu0 %v1454
      %1460 = vmatprep.subr.mxu0 0.0
      %1461 = vmatpush1.msra.mxu0 0.0
      %1462 = vmatprep.subr.mxu0 0.0
      %1463 = vmatpush1.msra.mxu0 0.0
      %1464 = vmatprep.subr.mxu0 0.0
      %1465 = vmatpush1.msra.mxu0 0.0
      %1466 = vmatprep.subr.mxu0 0.0
      %1467 = vmatpush1.msra.mxu0 0.0
      %1468 = vmatprep.subr.mxu0 0.0
      %1469 = vmatpush1.msra.mxu0 0.0
      %1470 = vmatprep.subr.mxu0 0.0
      %1471 = vmatpush1.msra.mxu0 0.0
      %1472 = vmatprep.subr.mxu0 0.0
      %1473 = vmatpush1.msra.mxu0 0.0
      %1474 = vmatprep.subr.mxu0 0.0
      %1475 = vmatpush1.msra.mxu0 0.0
      %1476 = vmatprep.subr.mxu0 0.0
      %1477 = vmatpush1.msra.mxu0 0.0
      %1478 = vmatprep.subr.mxu0 0.0
      %1479 = vmatpush1.msra.mxu0 0.0
      %1480 = vmatprep.subr.mxu0 0.0
      %1481 = vmatpush1.msra.mxu0 0.0
      %1482 = vmatprep.subr.mxu0 0.0
      %1483 = vmatpush1.msra.mxu0 0.0
      %1484 = vmatprep.subr.mxu0 0.0
      %1485 = vmatpush1.msra.mxu0 0.0
      %1486 = vmatprep.subr.mxu0 0.0
      %1487 = vmatpush1.msra.mxu0 0.0
      %1488 = vmatprep.subr.mxu0 0.0
      %1489 = vmatpush1.msra.mxu0 0.0
      %1490 = vmatprep.subr.mxu0 0.0
      %1491 = vmatpush1.msra.mxu0 0.0
      %1492 = vmatprep.subr.mxu0 0.0
      %1493 = vmatpush1.msra.mxu0 0.0
      %1494 = vmatprep.subr.mxu0 0.0
      %1495 = vmatpush1.msra.mxu0 0.0
      %1496 = vmatprep.subr.mxu0 0.0
      %1497 = vmatpush1.msra.mxu0 0.0
      %1498 = vmatprep.subr.mxu0 0.0
      %1499 = vmatpush1.msra.mxu0 0.0
      %1500 = vmatprep.subr.mxu0 0.0
      %1501 = vmatpush1.msra.mxu0 0.0
      %1502 = vmatprep.subr.mxu0 0.0
      %1503 = vmatpush1.msra.mxu0 0.0
      %1504 = vmatprep.subr.mxu0 0.0
      %1505 = vmatpush1.msra.mxu0 0.0
      %1506 = vmatprep.subr.mxu0 0.0
      %1507 = vmatpush1.msra.mxu0 0.0
      %1508 = vmatprep.subr.mxu0 0.0
      %1509 = vmatpush1.msra.mxu0 0.0
      %1510 = vmatprep.subr.mxu0 0.0
      %1511 = vmatpush1.msra.mxu0 0.0
      %1512 = vmatprep.subr.mxu0 0.0
      %1513 = vmatpush1.msra.mxu0 0.0
      %1514 = vmatprep.subr.mxu0 0.0
      %1515 = vmatpush1.msra.mxu0 0.0
      %1516 = vmatprep.subr.mxu0 0.0
      %1517 = vmatpush1.msra.mxu0 0.0
      %1518 = vmatprep.subr.mxu0 0.0
      %1519 = vmatpush1.msra.mxu0 0.0
      %1520 = vmatprep.mubr.f32.mxu0 0.0
      %1521 = vmatmul.mubr.f32.gmra.mrb[0].mxu0 %v1450
      %v1522 = vpop.f32.mrb[0].mxu0
      %v1523 = vadd.f32 %v1447, %v1522
      %v1524 = vpop.f32.mrb[0].mxu0
      %1525 = vdwg.mxu0
      %v1526 = vld [vmem:[%s1364] sm:$0xff]
      %v1527 = vld [vmem:[%s29] sm:$0x1]
      %1529 = vset.pattern.permute.xlu0 0
      %1530 = vperm.xlu0 %1529, %v1526
      %v1531 = vpop.permute.xlu0 %1530
      %v1534 = vlaneseq
      %v1535 = vshrl.u32 %v1534, 7
      %v1536 = vsub.s32 0, %v1535
      %v1537 = vrot.slane %v1527, %v1536
      %v1539 = vmul.f32 %v1531, %v1537
      %v1540 = vld [vmem:[%s31] sm:$0x1]
      %v1542 = vlaneseq
      %v1543 = vshrl.u32 %v1542, 7
      %v1544 = vsub.s32 0, %v1543
      %v1545 = vrot.slane %v1540, %v1544
      %v1547 = vadd.f32 %v1539, %v1545
      %v1548 = vadd.f32 %v1547, %v1443
      %v1549 = vld [vmem:[%s1368] sm:$0xff]
      %v1550 = vld [vmem:[%s33] sm:$0xff]
      %v1551 = vld [vmem:[%s33 + $0x8] sm:$0xff]
      %v1552 = vld [vmem:[%s35] sm:$0x1]
      %v1554 = vlaneseq
      %v1555 = vshrl.u32 %v1554, 7
      %v1556 = vsub.s32 0, %v1555
      %v1557 = vrot.slane %v1552, %v1556
      %vm1559 = vcmask 130048
      %v1561 = vsel %vm1559, %v1549, 0
      %1563 = vmatprep.subr.mxu0 0.0
      %1564 = vmatpush1.msra.mxu0 %v1550
      %1565 = vmatprep.subr.mxu0 0.0
      %1566 = vmatpush1.msra.mxu0 %v1551
      %1567 = vmatprep.subr.mxu0 0.0
      %1568 = vmatpush1.msra.mxu0 0.0
      %1569 = vmatprep.subr.mxu0 0.0
      %1570 = vmatpush1.msra.mxu0 0.0
      %1571 = vmatprep.subr.mxu0 0.0
      %1572 = vmatpush1.msra.mxu0 0.0
      %1573 = vmatprep.subr.mxu0 0.0
      %1574 = vmatpush1.msra.mxu0 0.0
      %1575 = vmatprep.subr.mxu0 0.0
      %1576 = vmatpush1.msra.mxu0 0.0
      %1577 = vmatprep.subr.mxu0 0.0
      %1578 = vmatpush1.msra.mxu0 0.0
      %1579 = vmatprep.subr.mxu0 0.0
      %1580 = vmatpush1.msra.mxu0 0.0
      %1581 = vmatprep.subr.mxu0 0.0
      %1582 = vmatpush1.msra.mxu0 0.0
      %1583 = vmatprep.subr.mxu0 0.0
      %1584 = vmatpush1.msra.mxu0 0.0
      %1585 = vmatprep.subr.mxu0 0.0
      %1586 = vmatpush1.msra.mxu0 0.0
      %1587 = vmatprep.subr.mxu0 0.0
      %1588 = vmatpush1.msra.mxu0 0.0
      %1589 = vmatprep.subr.mxu0 0.0
      %1590 = vmatpush1.msra.mxu0 0.0
      %1591 = vmatprep.subr.mxu0 0.0
      %1592 = vmatpush1.msra.mxu0 0.0
      %1593 = vmatprep.subr.mxu0 0.0
      %1594 = vmatpush1.msra.mxu0 0.0
      %1595 = vmatprep.subr.mxu0 0.0
      %1596 = vmatpush1.msra.mxu0 0.0
      %1597 = vmatprep.subr.mxu0 0.0
      %1598 = vmatpush1.msra.mxu0 0.0
      %1599 = vmatprep.subr.mxu0 0.0
      %1600 = vmatpush1.msra.mxu0 0.0
      %1601 = vmatprep.subr.mxu0 0.0
      %1602 = vmatpush1.msra.mxu0 0.0
      %1603 = vmatprep.subr.mxu0 0.0
      %1604 = vmatpush1.msra.mxu0 0.0
      %1605 = vmatprep.subr.mxu0 0.0
      %1606 = vmatpush1.msra.mxu0 0.0
      %1607 = vmatprep.subr.mxu0 0.0
      %1608 = vmatpush1.msra.mxu0 0.0
      %1609 = vmatprep.subr.mxu0 0.0
      %1610 = vmatpush1.msra.mxu0 0.0
      %1611 = vmatprep.subr.mxu0 0.0
      %1612 = vmatpush1.msra.mxu0 0.0
      %1613 = vmatprep.subr.mxu0 0.0
      %1614 = vmatpush1.msra.mxu0 0.0
      %1615 = vmatprep.subr.mxu0 0.0
      %1616 = vmatpush1.msra.mxu0 0.0
      %1617 = vmatprep.subr.mxu0 0.0
      %1618 = vmatpush1.msra.mxu0 0.0
      %1619 = vmatprep.subr.mxu0 0.0
      %1620 = vmatpush1.msra.mxu0 0.0
      %1621 = vmatprep.subr.mxu0 0.0
      %1622 = vmatpush1.msra.mxu0 0.0
      %1623 = vmatprep.subr.mxu0 0.0
      %1624 = vmatpush1.msra.mxu0 0.0
      %1625 = vmatprep.subr.mxu0 0.0
      %1626 = vmatpush1.msra.mxu0 0.0
      %1627 = vmatprep.mubr.f32.mxu0 0.0
      %1628 = vmatmul.mubr.f32.gmra.mrb[0].mxu0 %v1561
      %v1629 = vpop.f32.mrb[0].mxu0
      %v1630 = vadd.f32 %v1557, %v1629
      %v1631 = vpop.f32.mrb[0].mxu0
      %1632 = vdwg.mxu0
      %v1633 = vadd.f32 %v1630, %v1443
      %v1634 = vld [vmem:[%s1372] sm:$0xff]
      %v1635 = vld [vmem:[%s37] sm:$0xf]
      %v1636 = vld [vmem:[%s39] sm:$0x1]
      %v1638 = vlaneseq
      %v1639 = vshrl.u32 %v1638, 7
      %v1640 = vsub.s32 0, %v1639
      %v1641 = vrot.slane %v1636, %v1640
      %vm1643 = vcmask 31744
      %v1645 = vsel %vm1643, %v1634, 0
      %vm1647 = vcmask 1043456
      %v1649 = vsel %vm1647, %v1635, 0
      %1651 = vmatprep.subr.mxu0 0.0
      %1652 = vmatpush1.msra.mxu0 %v1649
      %1653 = vmatprep.subr.mxu0 0.0
      %1654 = vmatpush1.msra.mxu0 0.0
      %1655 = vmatprep.subr.mxu0 0.0
      %1656 = vmatpush1.msra.mxu0 0.0
      %1657 = vmatprep.subr.mxu0 0.0
      %1658 = vmatpush1.msra.mxu0 0.0
      %1659 = vmatprep.subr.mxu0 0.0
      %1660 = vmatpush1.msra.mxu0 0.0
      %1661 = vmatprep.subr.mxu0 0.0
      %1662 = vmatpush1.msra.mxu0 0.0
      %1663 = vmatprep.subr.mxu0 0.0
      %1664 = vmatpush1.msra.mxu0 0.0
      %1665 = vmatprep.subr.mxu0 0.0
      %1666 = vmatpush1.msra.mxu0 0.0
      %1667 = vmatprep.subr.mxu0 0.0
      %1668 = vmatpush1.msra.mxu0 0.0
      %1669 = vmatprep.subr.mxu0 0.0
      %1670 = vmatpush1.msra.mxu0 0.0
      %1671 = vmatprep.subr.mxu0 0.0
      %1672 = vmatpush1.msra.mxu0 0.0
      %1673 = vmatprep.subr.mxu0 0.0
      %1674 = vmatpush1.msra.mxu0 0.0
      %1675 = vmatprep.subr.mxu0 0.0
      %1676 = vmatpush1.msra.mxu0 0.0
      %1677 = vmatprep.subr.mxu0 0.0
      %1678 = vmatpush1.msra.mxu0 0.0
      %1679 = vmatprep.subr.mxu0 0.0
      %1680 = vmatpush1.msra.mxu0 0.0
      %1681 = vmatprep.subr.mxu0 0.0
      %1682 = vmatpush1.msra.mxu0 0.0
      %1683 = vmatprep.subr.mxu0 0.0
      %1684 = vmatpush1.msra.mxu0 0.0
      %1685 = vmatprep.subr.mxu0 0.0
      %1686 = vmatpush1.msra.mxu0 0.0
      %1687 = vmatprep.subr.mxu0 0.0
      %1688 = vmatpush1.msra.mxu0 0.0
      %1689 = vmatprep.subr.mxu0 0.0
      %1690 = vmatpush1.msra.mxu0 0.0
      %1691 = vmatprep.subr.mxu0 0.0
      %1692 = vmatpush1.msra.mxu0 0.0
      %1693 = vmatprep.subr.mxu0 0.0
      %1694 = vmatpush1.msra.mxu0 0.0
      %1695 = vmatprep.subr.mxu0 0.0
      %1696 = vmatpush1.msra.mxu0 0.0
      %1697 = vmatprep.subr.mxu0 0.0
      %1698 = vmatpush1.msra.mxu0 0.0
      %1699 = vmatprep.subr.mxu0 0.0
      %1700 = vmatpush1.msra.mxu0 0.0
      %1701 = vmatprep.subr.mxu0 0.0
      %1702 = vmatpush1.msra.mxu0 0.0
      %1703 = vmatprep.subr.mxu0 0.0
      %1704 = vmatpush1.msra.mxu0 0.0
      %1705 = vmatprep.subr.mxu0 0.0
      %1706 = vmatpush1.msra.mxu0 0.0
      %1707 = vmatprep.subr.mxu0 0.0
      %1708 = vmatpush1.msra.mxu0 0.0
      %1709 = vmatprep.subr.mxu0 0.0
      %1710 = vmatpush1.msra.mxu0 0.0
      %1711 = vmatprep.subr.mxu0 0.0
      %1712 = vmatpush1.msra.mxu0 0.0
      %1713 = vmatprep.subr.mxu0 0.0
      %1714 = vmatpush1.msra.mxu0 0.0
      %1715 = vmatprep.mubr.f32.mxu0 0.0
      %1716 = vmatmul.mubr.f32.gmra.mrb[0].mxu0 %v1645
      %v1717 = vpop.f32.mrb[0].mxu0
      %v1718 = vadd.f32 %v1641, %v1717
      %v1719 = vpop.f32.mrb[0].mxu0
      %1720 = vdwg.mxu0
      %v1721 = vadd.f32 %v1718, %v1443
      %vm1722 = vcmask 253952
      %v1723 = vsel %vm1722, %v1523, 0.0
      %1724 = vadd.xlane.f32.xlu0 %v1723
      %v1725 = vpop.xlane.xlu0 %1724
      %v1726 = vrcp.pop 32.0
      %v1727 = vmul.f32 %v1725, %v1726
      %v1728 = vsub.f32 %v1523, %v1727
      %v1729 = vmul.f32 %v1728, %v1728
      %v1730 = vsel %vm1722, %v1729, 0.0
      %1731 = vadd.xlane.f32.xlu0 %v1730
      %v1732 = vpop.xlane.xlu0 %1731
      %v1733 = vmul.f32 %v1732, %v1726
      %v1734 = vadd.f32 %v1733, 1e-05
      %v1735 = vrsqrt.pop %v1734
      %v1736 = vmul.f32 %v1728, %v1735
      %v1737 = vmul.f32 %v1736, %v1441
      %v1738 = vadd.f32 %v1737, %v1442
      %1739 = vst.msk [vmem:[#allocation2] sm:$0x1] %vm1722, %v1738
      %vm1740 = vcmask 261120
      %v1741 = vsel %vm1740, %v1548, 0.0
      %1742 = vadd.xlane.f32.xlu0 %v1741
      %v1743 = vpop.xlane.xlu0 %1742
      %v1744 = vmul.f32 %v1743, %v1726
      %v1745 = vsub.f32 %v1548, %v1744
      %v1746 = vmul.f32 %v1745, %v1745
      %v1747 = vsel %vm1740, %v1746, 0.0
      %1748 = vadd.xlane.f32.xlu0 %v1747
      %v1749 = vpop.xlane.xlu0 %1748
      %v1750 = vmul.f32 %v1749, %v1726
      %v1751 = vadd.f32 %v1750, 1e-05
      %v1752 = vrsqrt.pop %v1751
      %v1753 = vmul.f32 %v1745, %v1752
      %v1755 = vlaneseq
      %v1756 = vshrl.u32 %v1755, 7
      %v1757 = vsub.s32 0, %v1756
      %v1758 = vrot.slane %v1441, %v1757
      %v1760 = vmul.f32 %v1753, %v1758
      %v1762 = vlaneseq
      %v1763 = vshrl.u32 %v1762, 7
      %v1764 = vsub.s32 0, %v1763
      %v1765 = vrot.slane %v1442, %v1764
      %v1767 = vadd.f32 %v1760, %v1765
      %1768 = vst.msk [vmem:[#allocation2 + $0x1] sm:$0xff] %vm1740, %v1767
      %v1769 = vsel %vm1740, %v1633, 0.0
      %1770 = vadd.xlane.f32.xlu0 %v1769
      %v1771 = vpop.xlane.xlu0 %1770
      %v1772 = vmul.f32 %v1771, %v1726
      %v1773 = vsub.f32 %v1633, %v1772
      %v1774 = vmul.f32 %v1773, %v1773
      %v1775 = vsel %vm1740, %v1774, 0.0
      %1776 = vadd.xlane.f32.xlu0 %v1775
      %v1777 = vpop.xlane.xlu0 %1776
      %v1778 = vmul.f32 %v1777, %v1726
      %v1779 = vadd.f32 %v1778, 1e-05
      %v1780 = vrsqrt.pop %v1779
      %v1781 = vmul.f32 %v1773, %v1780
      %v1782 = vmul.f32 %v1781, %v1758
      %v1783 = vadd.f32 %v1782, %v1765
      %1784 = vst.msk [vmem:[#allocation2 + $0x9] sm:$0xff] %vm1740, %v1783
      %v1785 = vsel %vm1740, %v1721, 0.0
      %1786 = vadd.xlane.f32.xlu0 %v1785
      %v1787 = vpop.xlane.xlu0 %1786
      %v1788 = vmul.f32 %v1787, %v1726
      %v1789 = vsub.f32 %v1721, %v1788
      %v1790 = vmul.f32 %v1789, %v1789
      %v1791 = vsel %vm1740, %v1790, 0.0
      %1792 = vadd.xlane.f32.xlu0 %v1791
      %v1793 = vpop.xlane.xlu0 %1792
      %v1794 = vmul.f32 %v1793, %v1726
      %v1795 = vadd.f32 %v1794, 1e-05
      %v1796 = vrsqrt.pop %v1795
      %v1797 = vmul.f32 %v1789, %v1796
      %v1798 = vmul.f32 %v1797, %v1758
      %v1799 = vadd.f32 %v1798, %v1765
      %1800 = vst.msk [vmem:[#allocation2 + $0x11] sm:$0xff] %vm1740, %v1799
      %vm1801 = vcmask 260096
      %1802 = vst.msk [vmem:[#allocation2 + $0x19] sm:$0x7f] %vm1801, 0.0
      %v1803 = vld [vmem:[#allocation2] sm:$0xff]
      %v1804 = vld [vmem:[#allocation2 + $0x8] sm:$0xff]
      %v1805 = vld [vmem:[#allocation2 + $0x10] sm:$0xff]
      %v1806 = vld [vmem:[#allocation2 + $0x18] sm:$0xff]
      %v1807 = vld [vmem:[%s73] sm:$0xff]
      %v1808 = vld [vmem:[%s73 + $0x8] sm:$0xff]
      %v1809 = vld [vmem:[%s73 + $0x10] sm:$0xff]
      %v1810 = vld [vmem:[%s73 + $0x18] sm:$0xff]
      %v1811 = vld [vmem:[%s49] sm:$0x1]
      %v1812 = vld [vmem:[%s51] sm:$0x1]
      %v1813 = vsel %vm1740, %v1803, 0.0
      %1814 = vadd.xlane.f32.xlu0 %v1813
      %v1815 = vpop.xlane.xlu0 %1814
      %v1816 = vsel %vm1740, %v1804, 0.0
      %1817 = vadd.xlane.f32.xlu0 %v1816
      %v1818 = vpop.xlane.xlu0 %1817
      %v1819 = vsel %vm1740, %v1805, 0.0
      %1820 = vadd.xlane.f32.xlu0 %v1819
      %v1821 = vpop.xlane.xlu0 %1820
      %v1822 = vsel %vm1740, %v1806, 0.0
      %1823 = vadd.xlane.f32.xlu0 %v1822
      %v1824 = vpop.xlane.xlu0 %1823
      %v1825 = vmul.f32 %v1815, %v1726
      %v1826 = vmul.f32 %v1818, %v1726
      %v1827 = vmul.f32 %v1821, %v1726
      %v1828 = vmul.f32 %v1824, %v1726
      %v1829 = vsub.f32 %v1803, %v1825
      %v1830 = vsub.f32 %v1804, %v1826
      %v1831 = vsub.f32 %v1805, %v1827
      %v1832 = vsub.f32 %v1806, %v1828
      %v1833 = vmul.f32 %v1829, %v1829
      %v1834 = vmul.f32 %v1830, %v1830
      %v1835 = vmul.f32 %v1831, %v1831
      %v1836 = vmul.f32 %v1832, %v1832
      %v1837 = vsel %vm1740, %v1833, 0.0
      %1838 = vadd.xlane.f32.xlu0 %v1837
      %v1839 = vpop.xlane.xlu0 %1838
      %v1840 = vsel %vm1740, %v1834, 0.0
      %1841 = vadd.xlane.f32.xlu0 %v1840
      %v1842 = vpop.xlane.xlu0 %1841
      %v1843 = vsel %vm1740, %v1835, 0.0
      %1844 = vadd.xlane.f32.xlu0 %v1843
      %v1845 = vpop.xlane.xlu0 %1844
      %v1846 = vsel %vm1740, %v1836, 0.0
      %1847 = vadd.xlane.f32.xlu0 %v1846
      %v1848 = vpop.xlane.xlu0 %1847
      %v1849 = vmul.f32 %v1839, %v1726
      %v1850 = vmul.f32 %v1842, %v1726
      %v1851 = vmul.f32 %v1845, %v1726
      %v1852 = vmul.f32 %v1848, %v1726
      %v1853 = vadd.f32 %v1849, 1e-05
      %v1854 = vadd.f32 %v1850, 1e-05
      %v1855 = vadd.f32 %v1851, 1e-05
      %v1856 = vadd.f32 %v1852, 1e-05
      %v1857 = vrsqrt.pop %v1853
      %v1858 = vrsqrt.pop %v1854
      %v1859 = vrsqrt.pop %v1855
      %v1860 = vrsqrt.pop %v1856
      %v1861 = vmul.f32 %v1829, %v1857
      %v1862 = vmul.f32 %v1830, %v1858
      %v1863 = vmul.f32 %v1831, %v1859
      %v1864 = vmul.f32 %v1832, %v1860
      %v1866 = vlaneseq
      %v1867 = vshrl.u32 %v1866, 7
      %v1868 = vsub.s32 0, %v1867
      %v1869 = vrot.slane %v1811, %v1868
      %v1871 = vmul.f32 %v1861, %v1869
      %v1872 = vmul.f32 %v1862, %v1869
      %v1873 = vmul.f32 %v1863, %v1869
      %v1874 = vmul.f32 %v1864, %v1869
      %v1876 = vlaneseq
      %v1877 = vshrl.u32 %v1876, 7
      %v1878 = vsub.s32 0, %v1877
      %v1879 = vrot.slane %v1812, %v1878
      %v1881 = vadd.f32 %v1871, %v1879
      %v1882 = vadd.f32 %v1872, %v1879
      %v1883 = vadd.f32 %v1873, %v1879
      %v1884 = vadd.f32 %v1874, %v1879
      %v1885 = vld [vmem:[%s53] sm:$0xff]
      %v1886 = vld [vmem:[%s53 + $0x8] sm:$0xff]
      %v1887 = vld [vmem:[%s53 + $0x10] sm:$0xff]
      %v1888 = vld [vmem:[%s53 + $0x18] sm:$0xff]
      %v1889 = vld [vmem:[%s55] sm:$0x1]
      %v1891 = vlaneseq
      %v1892 = vshrl.u32 %v1891, 7
      %v1893 = vsub.s32 0, %v1892
      %v1894 = vrot.slane %v1889, %v1893
      %v1897 = vsel %vm1740, %v1881, 0
      %v1900 = vsel %vm1740, %v1882, 0
      %v1903 = vsel %vm1740, %v1883, 0
      %v1906 = vsel %vm1740, %v1884, 0
      %1908 = vmatprep.subr.mxu0 0.0
      %1909 = vmatpush1.msra.mxu0 %v1885
      %1910 = vmatprep.subr.mxu0 0.0
      %1911 = vmatpush1.msra.mxu0 %v1886
      %1912 = vmatprep.subr.mxu0 0.0
      %1913 = vmatpush1.msra.mxu0 %v1887
      %1914 = vmatprep.subr.mxu0 0.0
      %1915 = vmatpush1.msra.mxu0 %v1888
      %1916 = vmatprep.subr.mxu0 0.0
      %1917 = vmatpush1.msra.mxu0 0.0
      %1918 = vmatprep.subr.mxu0 0.0
      %1919 = vmatpush1.msra.mxu0 0.0
      %1920 = vmatprep.subr.mxu0 0.0
      %1921 = vmatpush1.msra.mxu0 0.0
      %1922 = vmatprep.subr.mxu0 0.0
      %1923 = vmatpush1.msra.mxu0 0.0
      %1924 = vmatprep.subr.mxu0 0.0
      %1925 = vmatpush1.msra.mxu0 0.0
      %1926 = vmatprep.subr.mxu0 0.0
      %1927 = vmatpush1.msra.mxu0 0.0
      %1928 = vmatprep.subr.mxu0 0.0
      %1929 = vmatpush1.msra.mxu0 0.0
      %1930 = vmatprep.subr.mxu0 0.0
      %1931 = vmatpush1.msra.mxu0 0.0
      %1932 = vmatprep.subr.mxu0 0.0
      %1933 = vmatpush1.msra.mxu0 0.0
      %1934 = vmatprep.subr.mxu0 0.0
      %1935 = vmatpush1.msra.mxu0 0.0
      %1936 = vmatprep.subr.mxu0 0.0
      %1937 = vmatpush1.msra.mxu0 0.0
      %1938 = vmatprep.subr.mxu0 0.0
      %1939 = vmatpush1.msra.mxu0 0.0
      %1940 = vmatprep.subr.mxu0 0.0
      %1941 = vmatpush1.msra.mxu0 0.0
      %1942 = vmatprep.subr.mxu0 0.0
      %1943 = vmatpush1.msra.mxu0 0.0
      %1944 = vmatprep.subr.mxu0 0.0
      %1945 = vmatpush1.msra.mxu0 0.0
      %1946 = vmatprep.subr.mxu0 0.0
      %1947 = vmatpush1.msra.mxu0 0.0
      %1948 = vmatprep.subr.mxu0 0.0
      %1949 = vmatpush1.msra.mxu0 0.0
      %1950 = vmatprep.subr.mxu0 0.0
      %1951 = vmatpush1.msra.mxu0 0.0
      %1952 = vmatprep.subr.mxu0 0.0
      %1953 = vmatpush1.msra.mxu0 0.0
      %1954 = vmatprep.subr.mxu0 0.0
      %1955 = vmatpush1.msra.mxu0 0.0
      %1956 = vmatprep.subr.mxu0 0.0
      %1957 = vmatpush1.msra.mxu0 0.0
      %1958 = vmatprep.subr.mxu0 0.0
      %1959 = vmatpush1.msra.mxu0 0.0
      %1960 = vmatprep.subr.mxu0 0.0
      %1961 = vmatpush1.msra.mxu0 0.0
      %1962 = vmatprep.subr.mxu0 0.0
      %1963 = vmatpush1.msra.mxu0 0.0
      %1964 = vmatprep.subr.mxu0 0.0
      %1965 = vmatpush1.msra.mxu0 0.0
      %1966 = vmatprep.subr.mxu0 0.0
      %1967 = vmatpush1.msra.mxu0 0.0
      %1968 = vmatprep.subr.mxu0 0.0
      %1969 = vmatpush1.msra.mxu0 0.0
      %1970 = vmatprep.subr.mxu0 0.0
      %1971 = vmatpush1.msra.mxu0 0.0
      %1972 = vmatprep.mubr.f32.mxu0 0.0
      %1973 = vmatmul.mubr.f32.gmra.mrb[0].mxu0 %v1897
      %v1974 = vpop.f32.mrb[0].mxu0
      %v1975 = vadd.f32 %v1894, %v1974
      %v1976 = vpop.f32.mrb[0].mxu0
      %1977 = vmatprep.mubr.f32.mxu0 0.0
      %1978 = vmatmul.mubr.f32.gmra.mrb[0].mxu0 %v1900
      %v1979 = vpop.f32.mrb[0].mxu0
      %v1980 = vadd.f32 %v1894, %v1979
      %v1981 = vpop.f32.mrb[0].mxu0
      %1982 = vmatprep.mubr.f32.mxu0 0.0
      %1983 = vmatmul.mubr.f32.gmra.mrb[0].mxu0 %v1903
      %v1984 = vpop.f32.mrb[0].mxu0
      %v1985 = vadd.f32 %v1894, %v1984
      %v1986 = vpop.f32.mrb[0].mxu0
      %1987 = vmatprep.mubr.f32.mxu0 0.0
      %1988 = vmatmul.mubr.f32.gmra.mrb[0].mxu0 %v1906
      %v1989 = vpop.f32.mrb[0].mxu0
      %v1990 = vadd.f32 %v1894, %v1989
      %v1991 = vpop.f32.mrb[0].mxu0
      %1992 = vdwg.mxu0
      %v1993 = vld [vmem:[%s1385] sm:$0xff]
      %v1994 = vld [vmem:[%s1385 + $0x8] sm:$0xff]
      %v1995 = vld [vmem:[%s1385 + $0x10] sm:$0xff]
      %v1996 = vld [vmem:[%s1385 + $0x18] sm:$0xff]
      %1997 = vmatprep.subr.mxu0 0.0
      %1998 = vmatpush1.msra.mxu0 %v1993
      %1999 = vmatprep.subr.mxu0 0.0
      %2000 = vmatpush1.msra.mxu0 %v1994
      %2001 = vmatprep.subr.mxu0 0.0
      %2002 = vmatpush1.msra.mxu0 %v1995
      %2003 = vmatprep.subr.mxu0 0.0
      %2004 = vmatpush1.msra.mxu0 %v1996
      %2005 = vmatprep.subr.mxu0 0.0
      %2006 = vmatpush1.msra.mxu0 0.0
      %2007 = vmatprep.subr.mxu0 0.0
      %2008 = vmatpush1.msra.mxu0 0.0
      %2009 = vmatprep.subr.mxu0 0.0
      %2010 = vmatpush1.msra.mxu0 0.0
      %2011 = vmatprep.subr.mxu0 0.0
      %2012 = vmatpush1.msra.mxu0 0.0
      %2013 = vmatprep.subr.mxu0 0.0
      %2014 = vmatpush1.msra.mxu0 0.0
      %2015 = vmatprep.subr.mxu0 0.0
      %2016 = vmatpush1.msra.mxu0 0.0
      %2017 = vmatprep.subr.mxu0 0.0
      %2018 = vmatpush1.msra.mxu0 0.0
      %2019 = vmatprep.subr.mxu0 0.0
      %2020 = vmatpush1.msra.mxu0 0.0
      %2021 = vmatprep.subr.mxu0 0.0
      %2022 = vmatpush1.msra.mxu0 0.0
      %2023 = vmatprep.subr.mxu0 0.0
      %2024 = vmatpush1.msra.mxu0 0.0
      %2025 = vmatprep.subr.mxu0 0.0
      %2026 = vmatpush1.msra.mxu0 0.0
      %2027 = vmatprep.subr.mxu0 0.0
      %2028 = vmatpush1.msra.mxu0 0.0
      %2029 = vmatprep.subr.mxu0 0.0
      %2030 = vmatpush1.msra.mxu0 0.0
      %2031 = vmatprep.subr.mxu0 0.0
      %2032 = vmatpush1.msra.mxu0 0.0
      %2033 = vmatprep.subr.mxu0 0.0
      %2034 = vmatpush1.msra.mxu0 0.0
      %2035 = vmatprep.subr.mxu0 0.0
      %2036 = vmatpush1.msra.mxu0 0.0
      %2037 = vmatprep.subr.mxu0 0.0
      %2038 = vmatpush1.msra.mxu0 0.0
      %2039 = vmatprep.subr.mxu0 0.0
      %2040 = vmatpush1.msra.mxu0 0.0
      %2041 = vmatprep.subr.mxu0 0.0
      %2042 = vmatpush1.msra.mxu0 0.0
      %2043 = vmatprep.subr.mxu0 0.0
      %2044 = vmatpush1.msra.mxu0 0.0
      %2045 = vmatprep.subr.mxu0 0.0
      %2046 = vmatpush1.msra.mxu0 0.0
      %2047 = vmatprep.subr.mxu0 0.0
      %2048 = vmatpush1.msra.mxu0 0.0
      %2049 = vmatprep.subr.mxu0 0.0
      %2050 = vmatpush1.msra.mxu0 0.0
      %2051 = vmatprep.subr.mxu0 0.0
      %2052 = vmatpush1.msra.mxu0 0.0
      %2053 = vmatprep.subr.mxu0 0.0
      %2054 = vmatpush1.msra.mxu0 0.0
      %2055 = vmatprep.subr.mxu0 0.0
      %2056 = vmatpush1.msra.mxu0 0.0
      %2057 = vmatprep.subr.mxu0 0.0
      %2058 = vmatpush1.msra.mxu0 0.0
      %2059 = vmatprep.subr.mxu0 0.0
      %2060 = vmatpush1.msra.mxu0 0.0
      %2061 = vmatprep.mubr.f32.mxu0 0.0
      %2062 = vmatmul.mubr.f32.gmra.mrb[0].mxu0 %v1897
      %v2063 = vpop.f32.mrb[0].mxu0
      %v2064 = vadd.f32 0.0, %v2063
      %v2065 = vpop.f32.mrb[0].mxu0
      %2066 = vmatprep.mubr.f32.mxu0 0.0
      %2067 = vmatmul.mubr.f32.gmra.mrb[0].mxu0 %v1900
      %v2068 = vpop.f32.mrb[0].mxu0
      %v2069 = vadd.f32 0.0, %v2068
      %v2070 = vpop.f32.mrb[0].mxu0
      %2071 = vmatprep.mubr.f32.mxu0 0.0
      %2072 = vmatmul.mubr.f32.gmra.mrb[0].mxu0 %v1903
      %v2073 = vpop.f32.mrb[0].mxu0
      %v2074 = vadd.f32 0.0, %v2073
      %v2075 = vpop.f32.mrb[0].mxu0
      %2076 = vmatprep.mubr.f32.mxu0 0.0
      %2077 = vmatmul.mubr.f32.gmra.mrb[0].mxu0 %v1906
      %v2078 = vpop.f32.mrb[0].mxu0
      %v2079 = vadd.f32 0.0, %v2078
      %v2080 = vpop.f32.mrb[0].mxu0
      %2081 = vdwg.mxu0
      %v2082 = vld [vmem:[%s1392] sm:$0xf]
      %v2084 = vsel %vm1643, %v2064, 0
      %v2087 = vsel %vm1643, %v2069, 0
      %v2090 = vsel %vm1643, %v2074, 0
      %v2093 = vsel %vm1643, %v2079, 0
      %v2096 = vsel %vm1647, %v2082, 0
      %2098 = vmatprep.subr.mxu0 0.0
      %2099 = vmatpush1.msra.mxu0 %v2096
      %2100 = vmatprep.subr.mxu0 0.0
      %2101 = vmatpush1.msra.mxu0 0.0
      %2102 = vmatprep.subr.mxu0 0.0
      %2103 = vmatpush1.msra.mxu0 0.0
      %2104 = vmatprep.subr.mxu0 0.0
      %2105 = vmatpush1.msra.mxu0 0.0
      %2106 = vmatprep.subr.mxu0 0.0
      %2107 = vmatpush1.msra.mxu0 0.0
      %2108 = vmatprep.subr.mxu0 0.0
      %2109 = vmatpush1.msra.mxu0 0.0
      %2110 = vmatprep.subr.mxu0 0.0
      %2111 = vmatpush1.msra.mxu0 0.0
      %2112 = vmatprep.subr.mxu0 0.0
      %2113 = vmatpush1.msra.mxu0 0.0
      %2114 = vmatprep.subr.mxu0 0.0
      %2115 = vmatpush1.msra.mxu0 0.0
      %2116 = vmatprep.subr.mxu0 0.0
      %2117 = vmatpush1.msra.mxu0 0.0
      %2118 = vmatprep.subr.mxu0 0.0
      %2119 = vmatpush1.msra.mxu0 0.0
      %2120 = vmatprep.subr.mxu0 0.0
      %2121 = vmatpush1.msra.mxu0 0.0
      %2122 = vmatprep.subr.mxu0 0.0
      %2123 = vmatpush1.msra.mxu0 0.0
      %2124 = vmatprep.subr.mxu0 0.0
      %2125 = vmatpush1.msra.mxu0 0.0
      %2126 = vmatprep.subr.mxu0 0.0
      %2127 = vmatpush1.msra.mxu0 0.0
      %2128 = vmatprep.subr.mxu0 0.0
      %2129 = vmatpush1.msra.mxu0 0.0
      %2130 = vmatprep.subr.mxu0 0.0
      %2131 = vmatpush1.msra.mxu0 0.0
      %2132 = vmatprep.subr.mxu0 0.0
      %2133 = vmatpush1.msra.mxu0 0.0
      %2134 = vmatprep.subr.mxu0 0.0
      %2135 = vmatpush1.msra.mxu0 0.0
      %2136 = vmatprep.subr.mxu0 0.0
      %2137 = vmatpush1.msra.mxu0 0.0
      %2138 = vmatprep.subr.mxu0 0.0
      %2139 = vmatpush1.msra.mxu0 0.0
      %2140 = vmatprep.subr.mxu0 0.0
      %2141 = vmatpush1.msra.mxu0 0.0
      %2142 = vmatprep.subr.mxu0 0.0
      %2143 = vmatpush1.msra.mxu0 0.0
      %2144 = vmatprep.subr.mxu0 0.0
      %2145 = vmatpush1.msra.mxu0 0.0
      %2146 = vmatprep.subr.mxu0 0.0
      %2147 = vmatpush1.msra.mxu0 0.0
      %2148 = vmatprep.subr.mxu0 0.0
      %2149 = vmatpush1.msra.mxu0 0.0
      %2150 = vmatprep.subr.mxu0 0.0
      %2151 = vmatpush1.msra.mxu0 0.0
      %2152 = vmatprep.subr.mxu0 0.0
      %2153 = vmatpush1.msra.mxu0 0.0
      %2154 = vmatprep.subr.mxu0 0.0
      %2155 = vmatpush1.msra.mxu0 0.0
      %2156 = vmatprep.subr.mxu0 0.0
      %2157 = vmatpush1.msra.mxu0 0.0
      %2158 = vmatprep.subr.mxu0 0.0
      %2159 = vmatpush1.msra.mxu0 0.0
      %2160 = vmatprep.subr.mxu0 0.0
      %2161 = vmatpush1.msra.mxu0 0.0
      %2162 = vmatprep.mubr.f32.mxu0 0.0
      %2163 = vmatmul.mubr.f32.gmra.mrb[0].mxu0 %v2084
      %v2164 = vpop.f32.mrb[0].mxu0
      %v2165 = vadd.f32 0.0, %v2164
      %v2166 = vpop.f32.mrb[0].mxu0
      %2167 = vmatprep.mubr.f32.mxu0 0.0
      %2168 = vmatmul.mubr.f32.gmra.mrb[0].mxu0 %v2087
      %v2169 = vpop.f32.mrb[0].mxu0
      %v2170 = vadd.f32 0.0, %v2169
      %v2171 = vpop.f32.mrb[0].mxu0
      %2172 = vmatprep.mubr.f32.mxu0 0.0
      %2173 = vmatmul.mubr.f32.gmra.mrb[0].mxu0 %v2090
      %v2174 = vpop.f32.mrb[0].mxu0
      %v2175 = vadd.f32 0.0, %v2174
      %v2176 = vpop.f32.mrb[0].mxu0
      %2177 = vmatprep.mubr.f32.mxu0 0.0
      %2178 = vmatmul.mubr.f32.gmra.mrb[0].mxu0 %v2093
      %v2179 = vpop.f32.mrb[0].mxu0
      %v2180 = vadd.f32 0.0, %v2179
      %v2181 = vpop.f32.mrb[0].mxu0
      %2182 = vdwg.mxu0
      %v2183 = vld [vmem:[%s1399] sm:$0xff]
      %v2184 = vld [vmem:[%s1399 + $0x8] sm:$0xff]
      %v2185 = vld [vmem:[%s1399 + $0x10] sm:$0xff]
      %v2186 = vld [vmem:[%s1399 + $0x18] sm:$0xff]
      %2187 = vmatprep.subr.mxu0 0.0
      %2188 = vmatpush1.msra.mxu0 %v2183
      %2189 = vmatprep.subr.mxu0 0.0
      %2190 = vmatpush1.msra.mxu0 %v2184
      %2191 = vmatprep.subr.mxu0 0.0
      %2192 = vmatpush1.msra.mxu0 %v2185
      %2193 = vmatprep.subr.mxu0 0.0
      %2194 = vmatpush1.msra.mxu0 %v2186
      %2195 = vmatprep.subr.mxu0 0.0
      %2196 = vmatpush1.msra.mxu0 0.0
      %2197 = vmatprep.subr.mxu0 0.0
      %2198 = vmatpush1.msra.mxu0 0.0
      %2199 = vmatprep.subr.mxu0 0.0
      %2200 = vmatpush1.msra.mxu0 0.0
      %2201 = vmatprep.subr.mxu0 0.0
      %2202 = vmatpush1.msra.mxu0 0.0
      %2203 = vmatprep.subr.mxu0 0.0
      %2204 = vmatpush1.msra.mxu0 0.0
      %2205 = vmatprep.subr.mxu0 0.0
      %2206 = vmatpush1.msra.mxu0 0.0
      %2207 = vmatprep.subr.mxu0 0.0
      %2208 = vmatpush1.msra.mxu0 0.0
      %2209 = vmatprep.subr.mxu0 0.0
      %2210 = vmatpush1.msra.mxu0 0.0
      %2211 = vmatprep.subr.mxu0 0.0
      %2212 = vmatpush1.msra.mxu0 0.0
      %2213 = vmatprep.subr.mxu0 0.0
      %2214 = vmatpush1.msra.mxu0 0.0
      %2215 = vmatprep.subr.mxu0 0.0
      %2216 = vmatpush1.msra.mxu0 0.0
      %2217 = vmatprep.subr.mxu0 0.0
      %2218 = vmatpush1.msra.mxu0 0.0
      %2219 = vmatprep.subr.mxu0 0.0
      %2220 = vmatpush1.msra.mxu0 0.0
      %2221 = vmatprep.subr.mxu0 0.0
      %2222 = vmatpush1.msra.mxu0 0.0
      %2223 = vmatprep.subr.mxu0 0.0
      %2224 = vmatpush1.msra.mxu0 0.0
      %2225 = vmatprep.subr.mxu0 0.0
      %2226 = vmatpush1.msra.mxu0 0.0
      %2227 = vmatprep.subr.mxu0 0.0
      %2228 = vmatpush1.msra.mxu0 0.0
      %2229 = vmatprep.subr.mxu0 0.0
      %2230 = vmatpush1.msra.mxu0 0.0
      %2231 = vmatprep.subr.mxu0 0.0
      %2232 = vmatpush1.msra.mxu0 0.0
      %2233 = vmatprep.subr.mxu0 0.0
      %2234 = vmatpush1.msra.mxu0 0.0
      %2235 = vmatprep.subr.mxu0 0.0
      %2236 = vmatpush1.msra.mxu0 0.0
      %2237 = vmatprep.subr.mxu0 0.0
      %2238 = vmatpush1.msra.mxu0 0.0
      %2239 = vmatprep.subr.mxu0 0.0
      %2240 = vmatpush1.msra.mxu0 0.0
      %2241 = vmatprep.subr.mxu0 0.0
      %2242 = vmatpush1.msra.mxu0 0.0
      %2243 = vmatprep.subr.mxu0 0.0
      %2244 = vmatpush1.msra.mxu0 0.0
      %2245 = vmatprep.subr.mxu0 0.0
      %2246 = vmatpush1.msra.mxu0 0.0
      %2247 = vmatprep.subr.mxu0 0.0
      %2248 = vmatpush1.msra.mxu0 0.0
      %2249 = vmatprep.subr.mxu0 0.0
      %2250 = vmatpush1.msra.mxu0 0.0
      %2251 = vmatprep.mubr.f32.mxu0 0.0
      %2252 = vmatmul.mubr.f32.gmra.mrb[0].mxu0 %v1897
      %v2253 = vpop.f32.mrb[0].mxu0
      %v2254 = vadd.f32 0.0, %v2253
      %v2255 = vpop.f32.mrb[0].mxu0
      %2256 = vmatprep.mubr.f32.mxu0 0.0
      %2257 = vmatmul.mubr.f32.gmra.mrb[0].mxu0 %v1900
      %v2258 = vpop.f32.mrb[0].mxu0
      %v2259 = vadd.f32 0.0, %v2258
      %v2260 = vpop.f32.mrb[0].mxu0
      %2261 = vmatprep.mubr.f32.mxu0 0.0
      %2262 = vmatmul.mubr.f32.gmra.mrb[0].mxu0 %v1903
      %v2263 = vpop.f32.mrb[0].mxu0
      %v2264 = vadd.f32 0.0, %v2263
      %v2265 = vpop.f32.mrb[0].mxu0
      %2266 = vmatprep.mubr.f32.mxu0 0.0
      %2267 = vmatmul.mubr.f32.gmra.mrb[0].mxu0 %v1906
      %v2268 = vpop.f32.mrb[0].mxu0
      %v2269 = vadd.f32 0.0, %v2268
      %v2270 = vpop.f32.mrb[0].mxu0
      %2271 = vdwg.mxu0
      %v2272 = vld [vmem:[%s1406] sm:$0xf]
      %v2274 = vsel %vm1643, %v2254, 0
      %v2277 = vsel %vm1643, %v2259, 0
      %v2280 = vsel %vm1643, %v2264, 0
      %v2283 = vsel %vm1643, %v2269, 0
      %v2286 = vsel %vm1647, %v2272, 0
      %2288 = vmatprep.subr.mxu0 0.0
      %2289 = vmatpush1.msra.mxu0 %v2286
      %2290 = vmatprep.subr.mxu0 0.0
      %2291 = vmatpush1.msra.mxu0 0.0
      %2292 = vmatprep.subr.mxu0 0.0
      %2293 = vmatpush1.msra.mxu0 0.0
      %2294 = vmatprep.subr.mxu0 0.0
      %2295 = vmatpush1.msra.mxu0 0.0
      %2296 = vmatprep.subr.mxu0 0.0
      %2297 = vmatpush1.msra.mxu0 0.0
      %2298 = vmatprep.subr.mxu0 0.0
      %2299 = vmatpush1.msra.mxu0 0.0
      %2300 = vmatprep.subr.mxu0 0.0
      %2301 = vmatpush1.msra.mxu0 0.0
      %2302 = vmatprep.subr.mxu0 0.0
      %2303 = vmatpush1.msra.mxu0 0.0
      %2304 = vmatprep.subr.mxu0 0.0
      %2305 = vmatpush1.msra.mxu0 0.0
      %2306 = vmatprep.subr.mxu0 0.0
      %2307 = vmatpush1.msra.mxu0 0.0
      %2308 = vmatprep.subr.mxu0 0.0
      %2309 = vmatpush1.msra.mxu0 0.0
      %2310 = vmatprep.subr.mxu0 0.0
      %2311 = vmatpush1.msra.mxu0 0.0
      %2312 = vmatprep.subr.mxu0 0.0
      %2313 = vmatpush1.msra.mxu0 0.0
      %2314 = vmatprep.subr.mxu0 0.0
      %2315 = vmatpush1.msra.mxu0 0.0
      %2316 = vmatprep.subr.mxu0 0.0
      %2317 = vmatpush1.msra.mxu0 0.0
      %2318 = vmatprep.subr.mxu0 0.0
      %2319 = vmatpush1.msra.mxu0 0.0
      %2320 = vmatprep.subr.mxu0 0.0
      %2321 = vmatpush1.msra.mxu0 0.0
      %2322 = vmatprep.subr.mxu0 0.0
      %2323 = vmatpush1.msra.mxu0 0.0
      %2324 = vmatprep.subr.mxu0 0.0
      %2325 = vmatpush1.msra.mxu0 0.0
      %2326 = vmatprep.subr.mxu0 0.0
      %2327 = vmatpush1.msra.mxu0 0.0
      %2328 = vmatprep.subr.mxu0 0.0
      %2329 = vmatpush1.msra.mxu0 0.0
      %2330 = vmatprep.subr.mxu0 0.0
      %2331 = vmatpush1.msra.mxu0 0.0
      %2332 = vmatprep.subr.mxu0 0.0
      %2333 = vmatpush1.msra.mxu0 0.0
      %2334 = vmatprep.subr.mxu0 0.0
      %2335 = vmatpush1.msra.mxu0 0.0
      %2336 = vmatprep.subr.mxu0 0.0
      %2337 = vmatpush1.msra.mxu0 0.0
      %2338 = vmatprep.subr.mxu0 0.0
      %2339 = vmatpush1.msra.mxu0 0.0
      %2340 = vmatprep.subr.mxu0 0.0
      %2341 = vmatpush1.msra.mxu0 0.0
      %2342 = vmatprep.subr.mxu0 0.0
      %2343 = vmatpush1.msra.mxu0 0.0
      %2344 = vmatprep.subr.mxu0 0.0
      %2345 = vmatpush1.msra.mxu0 0.0
      %2346 = vmatprep.subr.mxu0 0.0
      %2347 = vmatpush1.msra.mxu0 0.0
      %2348 = vmatprep.subr.mxu0 0.0
      %2349 = vmatpush1.msra.mxu0 0.0
      %2350 = vmatprep.subr.mxu0 0.0
      %2351 = vmatpush1.msra.mxu0 0.0
      %2352 = vmatprep.mubr.f32.mxu0 0.0
      %2353 = vmatmul.mubr.f32.gmra.mrb[0].mxu0 %v2274
      %v2354 = vpop.f32.mrb[0].mxu0
      %v2355 = vadd.f32 0.0, %v2354
      %v2356 = vpop.f32.mrb[0].mxu0
      %2357 = vmatprep.mubr.f32.mxu0 0.0
      %2358 = vmatmul.mubr.f32.gmra.mrb[0].mxu0 %v2277
      %v2359 = vpop.f32.mrb[0].mxu0
      %v2360 = vadd.f32 0.0, %v2359
      %v2361 = vpop.f32.mrb[0].mxu0
      %2362 = vmatprep.mubr.f32.mxu0 0.0
      %2363 = vmatmul.mubr.f32.gmra.mrb[0].mxu0 %v2280
      %v2364 = vpop.f32.mrb[0].mxu0
      %v2365 = vadd.f32 0.0, %v2364
      %v2366 = vpop.f32.mrb[0].mxu0
      %2367 = vmatprep.mubr.f32.mxu0 0.0
      %2368 = vmatmul.mubr.f32.gmra.mrb[0].mxu0 %v2283
      %v2369 = vpop.f32.mrb[0].mxu0
      %v2370 = vadd.f32 0.0, %v2369
      %v2371 = vpop.f32.mrb[0].mxu0
      %2372 = vdwg.mxu0
      %v2373 = vadd.f32 %v1975, %v2165
      %v2374 = vadd.f32 %v1980, %v2170
      %v2375 = vadd.f32 %v1985, %v2175
      %v2376 = vadd.f32 %v1990, %v2180
      %v2377 = vmul.f32 %v2373, 0.35355338
      %v2378 = vmul.f32 %v2374, 0.35355338
      %v2379 = vmul.f32 %v2375, 0.35355338
      %v2380 = vmul.f32 %v2376, 0.35355338
      %2385 = vrot.lane.b32.xlu0 %v2355, 64
      %v2386 = vpop.permute.xlu0 %2385
      %2387 = vrot.lane.b32.xlu0 %v2360, 64
      %v2388 = vpop.permute.xlu0 %2387
      %2389 = vrot.lane.b32.xlu0 %v2365, 64
      %v2390 = vpop.permute.xlu0 %2389
      %2391 = vrot.lane.b32.xlu0 %v2370, 64
      %v2392 = vpop.permute.xlu0 %2391
      %v2397 = vadd.f32 %v1975, %v2386
      %v2398 = vadd.f32 %v1980, %v2388
      %v2399 = vadd.f32 %v1985, %v2390
      %v2400 = vadd.f32 %v1990, %v2392
      %2405 = vrot.lane.b32.xlu0 %v1975, 96
      %v2406 = vpop.permute.xlu0 %2405
      %2407 = vrot.lane.b32.xlu0 %v1980, 96
      %v2408 = vpop.permute.xlu0 %2407
      %2409 = vrot.lane.b32.xlu0 %v1985, 96
      %v2410 = vpop.permute.xlu0 %2409
      %2411 = vrot.lane.b32.xlu0 %v1990, 96
      %v2412 = vpop.permute.xlu0 %2411
      %vm2413 = vcmask 64512
      %v2415 = vsel %vm2413, %v2377, 0
      %v2418 = vsel %vm2413, %v2378, 0
      %v2421 = vsel %vm2413, %v2379, 0
      %v2424 = vsel %vm2413, %v2380, 0
      %v2426 = vsel %vm2413, %v2406, 0
      %v2428 = vsel %vm2413, %v2408, 0
      %v2430 = vsel %vm2413, %v2410, 0
      %v2432 = vsel %vm2413, %v2412, 0
      %2434 = vmatprep.subr.mxu0 0.0
      %2435 = vmatpush1.xpose.msra.mxu0 %v2426
      %2436 = vmatprep.subr.mxu0 0.0
      %2437 = vmatpush1.xpose.msra.mxu0 %v2428
      %2438 = vmatprep.subr.mxu0 0.0
      %2439 = vmatpush1.xpose.msra.mxu0 %v2430
      %2440 = vmatprep.subr.mxu0 0.0
      %2441 = vmatpush1.xpose.msra.mxu0 %v2432
      %2442 = vmatprep.subr.mxu0 0.0
      %2443 = vmatpush1.xpose.msra.mxu0 0.0
      %2444 = vmatprep.subr.mxu0 0.0
      %2445 = vmatpush1.xpose.msra.mxu0 0.0
      %2446 = vmatprep.subr.mxu0 0.0
      %2447 = vmatpush1.xpose.msra.mxu0 0.0
      %2448 = vmatprep.subr.mxu0 0.0
      %2449 = vmatpush1.xpose.msra.mxu0 0.0
      %2450 = vmatprep.subr.mxu0 0.0
      %2451 = vmatpush1.xpose.msra.mxu0 0.0
      %2452 = vmatprep.subr.mxu0 0.0
      %2453 = vmatpush1.xpose.msra.mxu0 0.0
      %2454 = vmatprep.subr.mxu0 0.0
      %2455 = vmatpush1.xpose.msra.mxu0 0.0
      %2456 = vmatprep.subr.mxu0 0.0
      %2457 = vmatpush1.xpose.msra.mxu0 0.0
      %2458 = vmatprep.subr.mxu0 0.0
      %2459 = vmatpush1.xpose.msra.mxu0 0.0
      %2460 = vmatprep.subr.mxu0 0.0
      %2461 = vmatpush1.xpose.msra.mxu0 0.0
      %2462 = vmatprep.subr.mxu0 0.0
      %2463 = vmatpush1.xpose.msra.mxu0 0.0
      %2464 = vmatprep.subr.mxu0 0.0
      %2465 = vmatpush1.xpose.msra.mxu0 0.0
      %2466 = vmatprep.subr.mxu0 0.0
      %2467 = vmatpush1.xpose.msra.mxu0 0.0
      %2468 = vmatprep.subr.mxu0 0.0
      %2469 = vmatpush1.xpose.msra.mxu0 0.0
      %2470 = vmatprep.subr.mxu0 0.0
      %2471 = vmatpush1.xpose.msra.mxu0 0.0
      %2472 = vmatprep.subr.mxu0 0.0
      %2473 = vmatpush1.xpose.msra.mxu0 0.0
      %2474 = vmatprep.subr.mxu0 0.0
      %2475 = vmatpush1.xpose.msra.mxu0 0.0
      %2476 = vmatprep.subr.mxu0 0.0
      %2477 = vmatpush1.xpose.msra.mxu0 0.0
      %2478 = vmatprep.subr.mxu0 0.0
      %2479 = vmatpush1.xpose.msra.mxu0 0.0
      %2480 = vmatprep.subr.mxu0 0.0
      %2481 = vmatpush1.xpose.msra.mxu0 0.0
      %2482 = vmatprep.subr.mxu0 0.0
      %2483 = vmatpush1.xpose.msra.mxu0 0.0
      %2484 = vmatprep.subr.mxu0 0.0
      %2485 = vmatpush1.xpose.msra.mxu0 0.0
      %2486 = vmatprep.subr.mxu0 0.0
      %2487 = vmatpush1.xpose.msra.mxu0 0.0
      %2488 = vmatprep.subr.mxu0 0.0
      %2489 = vmatpush1.xpose.msra.mxu0 0.0
      %2490 = vmatprep.subr.mxu0 0.0
      %2491 = vmatpush1.xpose.msra.mxu0 0.0
      %2492 = vmatprep.subr.mxu0 0.0
      %2493 = vmatpush1.xpose.msra.mxu0 0.0
      %2494 = vmatprep.subr.mxu0 0.0
      %2495 = vmatpush1.xpose.msra.mxu0 0.0
      %2496 = vmatprep.subr.mxu0 0.0
      %2497 = vmatpush1.xpose.msra.mxu0 0.0
      %2498 = vmatprep.mubr.f32.mxu0 0.0
      %2499 = vmatmul.mubr.f32.gmra.mrb[0].mxu0 %v2415
      %v2500 = vpop.f32.mrb[0].mxu0
      %v2501 = vadd.f32 %v1807, %v2500
      %v2502 = vpop.f32.mrb[0].mxu0
      %2503 = vmatprep.mubr.f32.mxu0 0.0
      %2504 = vmatmul.mubr.f32.gmra.mrb[0].mxu0 %v2418
      %v2505 = vpop.f32.mrb[0].mxu0
      %v2506 = vadd.f32 %v1808, %v2505
      %v2507 = vpop.f32.mrb[0].mxu0
      %2508 = vmatprep.mubr.f32.mxu0 0.0
      %2509 = vmatmul.mubr.f32.gmra.mrb[0].mxu0 %v2421
      %v2510 = vpop.f32.mrb[0].mxu0
      %v2511 = vadd.f32 %v1809, %v2510
      %v2512 = vpop.f32.mrb[0].mxu0
      %2513 = vmatprep.mubr.f32.mxu0 0.0
      %2514 = vmatmul.mubr.f32.gmra.mrb[0].mxu0 %v2424
      %v2515 = vpop.f32.mrb[0].mxu0
      %v2516 = vadd.f32 %v1810, %v2515
      %v2517 = vpop.f32.mrb[0].mxu0
      %2518 = vdwg.mxu0
      %v2519 = vsel %vm1740, %v2501, -inf
      %2520 = vmax.xlane.f32.xlu0 %v2519
      %v2521 = vpop.xlane.xlu0 %2520
      %v2522 = vsel %vm1740, %v2506, -inf
      %2523 = vmax.xlane.f32.xlu0 %v2522
      %v2524 = vpop.xlane.xlu0 %2523
      %v2525 = vsel %vm1740, %v2511, -inf
      %2526 = vmax.xlane.f32.xlu0 %v2525
      %v2527 = vpop.xlane.xlu0 %2526
      %v2528 = vsel %vm1740, %v2516, -inf
      %2529 = vmax.xlane.f32.xlu0 %v2528
      %v2530 = vpop.xlane.xlu0 %2529
      %v2531 = vsub.f32 %v2501, %v2521
      %v2532 = vsub.f32 %v2506, %v2524
      %v2533 = vsub.f32 %v2511, %v2527
      %v2534 = vsub.f32 %v2516, %v2530
      %v2535 = vmul.f32 %v2531, 1.442695
      %v2536 = vpow.pop %v2535
      %v2537 = vmul.f32 %v2532, 1.442695
      %v2538 = vpow.pop %v2537
      %v2539 = vmul.f32 %v2533, 1.442695
      %v2540 = vpow.pop %v2539
      %v2541 = vmul.f32 %v2534, 1.442695
      %v2542 = vpow.pop %v2541
      %v2543 = vsel %vm1740, %v2536, 0.0
      %2544 = vadd.xlane.f32.xlu0 %v2543
      %v2545 = vpop.xlane.xlu0 %2544
      %v2546 = vsel %vm1740, %v2538, 0.0
      %2547 = vadd.xlane.f32.xlu0 %v2546
      %v2548 = vpop.xlane.xlu0 %2547
      %v2549 = vsel %vm1740, %v2540, 0.0
      %2550 = vadd.xlane.f32.xlu0 %v2549
      %v2551 = vpop.xlane.xlu0 %2550
      %v2552 = vsel %vm1740, %v2542, 0.0
      %2553 = vadd.xlane.f32.xlu0 %v2552
      %v2554 = vpop.xlane.xlu0 %2553
      %v2555 = vrcp.pop %v2545
      %v2556 = vmul.f32 %v2536, %v2555
      %v2557 = vrcp.pop %v2548
      %v2558 = vmul.f32 %v2538, %v2557
      %v2559 = vrcp.pop %v2551
      %v2560 = vmul.f32 %v2540, %v2559
      %v2561 = vrcp.pop %v2554
      %v2562 = vmul.f32 %v2542, %v2561
      %2567 = vrot.lane.b32.xlu0 %v2397, 64
      %v2568 = vpop.permute.xlu0 %2567
      %2569 = vrot.lane.b32.xlu0 %v2398, 64
      %v2570 = vpop.permute.xlu0 %2569
      %2571 = vrot.lane.b32.xlu0 %v2399, 64
      %v2572 = vpop.permute.xlu0 %2571
      %2573 = vrot.lane.b32.xlu0 %v2400, 64
      %v2574 = vpop.permute.xlu0 %2573
      %v2580 = vsel %vm1740, %v2556, 0
      %v2583 = vsel %vm1740, %v2558, 0
      %v2586 = vsel %vm1740, %v2560, 0
      %v2589 = vsel %vm1740, %v2562, 0
      %2591 = vmatprep.subr.mxu0 0.0
      %2592 = vmatpush1.msra.mxu0 %v2568
      %2593 = vmatprep.subr.mxu0 0.0
      %2594 = vmatpush1.msra.mxu0 %v2570
      %2595 = vmatprep.subr.mxu0 0.0
      %2596 = vmatpush1.msra.mxu0 %v2572
      %2597 = vmatprep.subr.mxu0 0.0
      %2598 = vmatpush1.msra.mxu0 %v2574
      %2599 = vmatprep.subr.mxu0 0.0
      %2600 = vmatpush1.msra.mxu0 0.0
      %2601 = vmatprep.subr.mxu0 0.0
      %2602 = vmatpush1.msra.mxu0 0.0
      %2603 = vmatprep.subr.mxu0 0.0
      %2604 = vmatpush1.msra.mxu0 0.0
      %2605 = vmatprep.subr.mxu0 0.0
      %2606 = vmatpush1.msra.mxu0 0.0
      %2607 = vmatprep.subr.mxu0 0.0
      %2608 = vmatpush1.msra.mxu0 0.0
      %2609 = vmatprep.subr.mxu0 0.0
      %2610 = vmatpush1.msra.mxu0 0.0
      %2611 = vmatprep.subr.mxu0 0.0
      %2612 = vmatpush1.msra.mxu0 0.0
      %2613 = vmatprep.subr.mxu0 0.0
      %2614 = vmatpush1.msra.mxu0 0.0
      %2615 = vmatprep.subr.mxu0 0.0
      %2616 = vmatpush1.msra.mxu0 0.0
      %2617 = vmatprep.subr.mxu0 0.0
      %2618 = vmatpush1.msra.mxu0 0.0
      %2619 = vmatprep.subr.mxu0 0.0
      %2620 = vmatpush1.msra.mxu0 0.0
      %2621 = vmatprep.subr.mxu0 0.0
      %2622 = vmatpush1.msra.mxu0 0.0
      %2623 = vmatprep.subr.mxu0 0.0
      %2624 = vmatpush1.msra.mxu0 0.0
      %2625 = vmatprep.subr.mxu0 0.0
      %2626 = vmatpush1.msra.mxu0 0.0
      %2627 = vmatprep.subr.mxu0 0.0
      %2628 = vmatpush1.msra.mxu0 0.0
      %2629 = vmatprep.subr.mxu0 0.0
      %2630 = vmatpush1.msra.mxu0 0.0
      %2631 = vmatprep.subr.mxu0 0.0
      %2632 = vmatpush1.msra.mxu0 0.0
      %2633 = vmatprep.subr.mxu0 0.0
      %2634 = vmatpush1.msra.mxu0 0.0
      %2635 = vmatprep.subr.mxu0 0.0
      %2636 = vmatpush1.msra.mxu0 0.0
      %2637 = vmatprep.subr.mxu0 0.0
      %2638 = vmatpush1.msra.mxu0 0.0
      %2639 = vmatprep.subr.mxu0 0.0
      %2640 = vmatpush1.msra.mxu0 0.0
      %2641 = vmatprep.subr.mxu0 0.0
      %2642 = vmatpush1.msra.mxu0 0.0
      %2643 = vmatprep.subr.mxu0 0.0
      %2644 = vmatpush1.msra.mxu0 0.0
      %2645 = vmatprep.subr.mxu0 0.0
      %2646 = vmatpush1.msra.mxu0 0.0
      %2647 = vmatprep.subr.mxu0 0.0
      %2648 = vmatpush1.msra.mxu0 0.0
      %2649 = vmatprep.subr.mxu0 0.0
      %2650 = vmatpush1.msra.mxu0 0.0
      %2651 = vmatprep.subr.mxu0 0.0
      %2652 = vmatpush1.msra.mxu0 0.0
      %2653 = vmatprep.subr.mxu0 0.0
      %2654 = vmatpush1.msra.mxu0 0.0
      %2655 = vmatprep.mubr.f32.mxu0 0.0
      %2656 = vmatmul.mubr.f32.gmra.mrb[0].mxu0 %v2580
      %v2657 = vpop.f32.mrb[0].mxu0
      %v2658 = vadd.f32 0.0, %v2657
      %v2659 = vpop.f32.mrb[0].mxu0
      %2660 = vmatprep.mubr.f32.mxu0 0.0
      %2661 = vmatmul.mubr.f32.gmra.mrb[0].mxu0 %v2583
      %v2662 = vpop.f32.mrb[0].mxu0
      %v2663 = vadd.f32 0.0, %v2662
      %v2664 = vpop.f32.mrb[0].mxu0
      %2665 = vmatprep.mubr.f32.mxu0 0.0
      %2666 = vmatmul.mubr.f32.gmra.mrb[0].mxu0 %v2586
      %v2667 = vpop.f32.mrb[0].mxu0
      %v2668 = vadd.f32 0.0, %v2667
      %v2669 = vpop.f32.mrb[0].mxu0
      %2670 = vmatprep.mubr.f32.mxu0 0.0
      %2671 = vmatmul.mubr.f32.gmra.mrb[0].mxu0 %v2589
      %v2672 = vpop.f32.mrb[0].mxu0
      %v2673 = vadd.f32 0.0, %v2672
      %v2674 = vpop.f32.mrb[0].mxu0
      %2675 = vdwg.mxu0
      %v2676 = vld [vmem:[%s57] sm:$0xff]
      %2677 = vrot.lane.b32.xlu0 %v2377, 120
      %v2678 = vpop.permute.xlu0 %2677
      %2679 = vrot.lane.b32.xlu0 %v2378, 120
      %v2680 = vpop.permute.xlu0 %2679
      %2681 = vrot.lane.b32.xlu0 %v2379, 120
      %v2682 = vpop.permute.xlu0 %2681
      %2683 = vrot.lane.b32.xlu0 %v2380, 120
      %v2684 = vpop.permute.xlu0 %2683
      %2685 = vrot.lane.b32.xlu0 %v1975, 88
      %v2686 = vpop.permute.xlu0 %2685
      %2687 = vrot.lane.b32.xlu0 %v1980, 88
      %v2688 = vpop.permute.xlu0 %2687
      %2689 = vrot.lane.b32.xlu0 %v1985, 88
      %v2690 = vpop.permute.xlu0 %2689
      %2691 = vrot.lane.b32.xlu0 %v1990, 88
      %v2692 = vpop.permute.xlu0 %2691
      %v2693 = vsel %vm2413, %v2678, 0
      %v2695 = vsel %vm2413, %v2680, 0
      %v2697 = vsel %vm2413, %v2682, 0
      %v2699 = vsel %vm2413, %v2684, 0
      %v2701 = vsel %vm2413, %v2686, 0
      %v2703 = vsel %vm2413, %v2688, 0
      %v2705 = vsel %vm2413, %v2690, 0
      %v2707 = vsel %vm2413, %v2692, 0
      %2709 = vmatprep.subr.mxu0 0.0
      %2710 = vmatpush1.xpose.msra.mxu0 %v2701
      %2711 = vmatprep.subr.mxu0 0.0
      %2712 = vmatpush1.xpose.msra.mxu0 %v2703
      %2713 = vmatprep.subr.mxu0 0.0
      %2714 = vmatpush1.xpose.msra.mxu0 %v2705
      %2715 = vmatprep.subr.mxu0 0.0
      %2716 = vmatpush1.xpose.msra.mxu0 %v2707
      %2717 = vmatprep.subr.mxu0 0.0
      %2718 = vmatpush1.xpose.msra.mxu0 0.0
      %2719 = vmatprep.subr.mxu0 0.0
      %2720 = vmatpush1.xpose.msra.mxu0 0.0
      %2721 = vmatprep.subr.mxu0 0.0
      %2722 = vmatpush1.xpose.msra.mxu0 0.0
      %2723 = vmatprep.subr.mxu0 0.0
      %2724 = vmatpush1.xpose.msra.mxu0 0.0
      %2725 = vmatprep.subr.mxu0 0.0
      %2726 = vmatpush1.xpose.msra.mxu0 0.0
      %2727 = vmatprep.subr.mxu0 0.0
      %2728 = vmatpush1.xpose.msra.mxu0 0.0
      %2729 = vmatprep.subr.mxu0 0.0
      %2730 = vmatpush1.xpose.msra.mxu0 0.0
      %2731 = vmatprep.subr.mxu0 0.0
      %2732 = vmatpush1.xpose.msra.mxu0 0.0
      %2733 = vmatprep.subr.mxu0 0.0
      %2734 = vmatpush1.xpose.msra.mxu0 0.0
      %2735 = vmatprep.subr.mxu0 0.0
      %2736 = vmatpush1.xpose.msra.mxu0 0.0
      %2737 = vmatprep.subr.mxu0 0.0
      %2738 = vmatpush1.xpose.msra.mxu0 0.0
      %2739 = vmatprep.subr.mxu0 0.0
      %2740 = vmatpush1.xpose.msra.mxu0 0.0
      %2741 = vmatprep.subr.mxu0 0.0
      %2742 = vmatpush1.xpose.msra.mxu0 0.0
      %2743 = vmatprep.subr.mxu0 0.0
      %2744 = vmatpush1.xpose.msra.mxu0 0.0
      %2745 = vmatprep.subr.mxu0 0.0
      %2746 = vmatpush1.xpose.msra.mxu0 0.0
      %2747 = vmatprep.subr.mxu0 0.0
      %2748 = vmatpush1.xpose.msra.mxu0 0.0
      %2749 = vmatprep.subr.mxu0 0.0
      %2750 = vmatpush1.xpose.msra.mxu0 0.0
      %2751 = vmatprep.subr.mxu0 0.0
      %2752 = vmatpush1.xpose.msra.mxu0 0.0
      %2753 = vmatprep.subr.mxu0 0.0
      %2754 = vmatpush1.xpose.msra.mxu0 0.0
      %2755 = vmatprep.subr.mxu0 0.0
      %2756 = vmatpush1.xpose.msra.mxu0 0.0
      %2757 = vmatprep.subr.mxu0 0.0
      %2758 = vmatpush1.xpose.msra.mxu0 0.0
      %2759 = vmatprep.subr.mxu0 0.0
      %2760 = vmatpush1.xpose.msra.mxu0 0.0
      %2761 = vmatprep.subr.mxu0 0.0
      %2762 = vmatpush1.xpose.msra.mxu0 0.0
      %2763 = vmatprep.subr.mxu0 0.0
      %2764 = vmatpush1.xpose.msra.mxu0 0.0
      %2765 = vmatprep.subr.mxu0 0.0
      %2766 = vmatpush1.xpose.msra.mxu0 0.0
      %2767 = vmatprep.subr.mxu0 0.0
      %2768 = vmatpush1.xpose.msra.mxu0 0.0
      %2769 = vmatprep.subr.mxu0 0.0
      %2770 = vmatpush1.xpose.msra.mxu0 0.0
      %2771 = vmatprep.subr.mxu0 0.0
      %2772 = vmatpush1.xpose.msra.mxu0 0.0
      %2773 = vmatprep.mubr.f32.mxu0 0.0
      %2774 = vmatmul.mubr.f32.gmra.mrb[0].mxu0 %v2693
      %v2775 = vpop.f32.mrb[0].mxu0
      %v2776 = vadd.f32 %v1807, %v2775
      %v2777 = vpop.f32.mrb[0].mxu0
      %2778 = vmatprep.mubr.f32.mxu0 0.0
      %2779 = vmatmul.mubr.f32.gmra.mrb[0].mxu0 %v2695
      %v2780 = vpop.f32.mrb[0].mxu0
      %v2781 = vadd.f32 %v1808, %v2780
      %v2782 = vpop.f32.mrb[0].mxu0
      %2783 = vmatprep.mubr.f32.mxu0 0.0
      %2784 = vmatmul.mubr.f32.gmra.mrb[0].mxu0 %v2697
      %v2785 = vpop.f32.mrb[0].mxu0
      %v2786 = vadd.f32 %v1809, %v2785
      %v2787 = vpop.f32.mrb[0].mxu0
      %2788 = vmatprep.mubr.f32.mxu0 0.0
      %2789 = vmatmul.mubr.f32.gmra.mrb[0].mxu0 %v2699
      %v2790 = vpop.f32.mrb[0].mxu0
      %v2791 = vadd.f32 %v1810, %v2790
      %v2792 = vpop.f32.mrb[0].mxu0
      %2793 = vdwg.mxu0
      %v2794 = vsel %vm1740, %v2776, -inf
      %2795 = vmax.xlane.f32.xlu0 %v2794
      %v2796 = vpop.xlane.xlu0 %2795
      %v2797 = vsel %vm1740, %v2781, -inf
      %2798 = vmax.xlane.f32.xlu0 %v2797
      %v2799 = vpop.xlane.xlu0 %2798
      %v2800 = vsel %vm1740, %v2786, -inf
      %2801 = vmax.xlane.f32.xlu0 %v2800
      %v2802 = vpop.xlane.xlu0 %2801
      %v2803 = vsel %vm1740, %v2791, -inf
      %2804 = vmax.xlane.f32.xlu0 %v2803
      %v2805 = vpop.xlane.xlu0 %2804
      %v2806 = vsub.f32 %v2776, %v2796
      %v2807 = vsub.f32 %v2781, %v2799
      %v2808 = vsub.f32 %v2786, %v2802
      %v2809 = vsub.f32 %v2791, %v2805
      %v2810 = vmul.f32 %v2806, 1.442695
      %v2811 = vpow.pop %v2810
      %v2812 = vmul.f32 %v2807, 1.442695
      %v2813 = vpow.pop %v2812
      %v2814 = vmul.f32 %v2808, 1.442695
      %v2815 = vpow.pop %v2814
      %v2816 = vmul.f32 %v2809, 1.442695
      %v2817 = vpow.pop %v2816
      %v2818 = vsel %vm1740, %v2811, 0.0
      %2819 = vadd.xlane.f32.xlu0 %v2818
      %v2820 = vpop.xlane.xlu0 %2819
      %v2821 = vsel %vm1740, %v2813, 0.0
      %2822 = vadd.xlane.f32.xlu0 %v2821
      %v2823 = vpop.xlane.xlu0 %2822
      %v2824 = vsel %vm1740, %v2815, 0.0
      %2825 = vadd.xlane.f32.xlu0 %v2824
      %v2826 = vpop.xlane.xlu0 %2825
      %v2827 = vsel %vm1740, %v2817, 0.0
      %2828 = vadd.xlane.f32.xlu0 %v2827
      %v2829 = vpop.xlane.xlu0 %2828
      %v2830 = vrcp.pop %v2820
      %v2831 = vmul.f32 %v2811, %v2830
      %v2832 = vrcp.pop %v2823
      %v2833 = vmul.f32 %v2813, %v2832
      %v2834 = vrcp.pop %v2826
      %v2835 = vmul.f32 %v2815, %v2834
      %v2836 = vrcp.pop %v2829
      %v2837 = vmul.f32 %v2817, %v2836
      %2838 = vrot.lane.b32.xlu0 %v2397, 56
      %v2839 = vpop.permute.xlu0 %2838
      %2840 = vrot.lane.b32.xlu0 %v2398, 56
      %v2841 = vpop.permute.xlu0 %2840
      %2842 = vrot.lane.b32.xlu0 %v2399, 56
      %v2843 = vpop.permute.xlu0 %2842
      %2844 = vrot.lane.b32.xlu0 %v2400, 56
      %v2845 = vpop.permute.xlu0 %2844
      %v2851 = vsel %vm1740, %v2831, 0
      %v2854 = vsel %vm1740, %v2833, 0
      %v2857 = vsel %vm1740, %v2835, 0
      %v2860 = vsel %vm1740, %v2837, 0
      %2862 = vmatprep.subr.mxu0 0.0
      %2863 = vmatpush1.msra.mxu0 %v2839
      %2864 = vmatprep.subr.mxu0 0.0
      %2865 = vmatpush1.msra.mxu0 %v2841
      %2866 = vmatprep.subr.mxu0 0.0
      %2867 = vmatpush1.msra.mxu0 %v2843
      %2868 = vmatprep.subr.mxu0 0.0
      %2869 = vmatpush1.msra.mxu0 %v2845
      %2870 = vmatprep.subr.mxu0 0.0
      %2871 = vmatpush1.msra.mxu0 0.0
      %2872 = vmatprep.subr.mxu0 0.0
      %2873 = vmatpush1.msra.mxu0 0.0
      %2874 = vmatprep.subr.mxu0 0.0
      %2875 = vmatpush1.msra.mxu0 0.0
      %2876 = vmatprep.subr.mxu0 0.0
      %2877 = vmatpush1.msra.mxu0 0.0
      %2878 = vmatprep.subr.mxu0 0.0
      %2879 = vmatpush1.msra.mxu0 0.0
      %2880 = vmatprep.subr.mxu0 0.0
      %2881 = vmatpush1.msra.mxu0 0.0
      %2882 = vmatprep.subr.mxu0 0.0
      %2883 = vmatpush1.msra.mxu0 0.0
      %2884 = vmatprep.subr.mxu0 0.0
      %2885 = vmatpush1.msra.mxu0 0.0
      %2886 = vmatprep.subr.mxu0 0.0
      %2887 = vmatpush1.msra.mxu0 0.0
      %2888 = vmatprep.subr.mxu0 0.0
      %2889 = vmatpush1.msra.mxu0 0.0
      %2890 = vmatprep.subr.mxu0 0.0
      %2891 = vmatpush1.msra.mxu0 0.0
      %2892 = vmatprep.subr.mxu0 0.0
      %2893 = vmatpush1.msra.mxu0 0.0
      %2894 = vmatprep.subr.mxu0 0.0
      %2895 = vmatpush1.msra.mxu0 0.0
      %2896 = vmatprep.subr.mxu0 0.0
      %2897 = vmatpush1.msra.mxu0 0.0
      %2898 = vmatprep.subr.mxu0 0.0
      %2899 = vmatpush1.msra.mxu0 0.0
      %2900 = vmatprep.subr.mxu0 0.0
      %2901 = vmatpush1.msra.mxu0 0.0
      %2902 = vmatprep.subr.mxu0 0.0
      %2903 = vmatpush1.msra.mxu0 0.0
      %2904 = vmatprep.subr.mxu0 0.0
      %2905 = vmatpush1.msra.mxu0 0.0
      %2906 = vmatprep.subr.mxu0 0.0
      %2907 = vmatpush1.msra.mxu0 0.0
      %2908 = vmatprep.subr.mxu0 0.0
      %2909 = vmatpush1.msra.mxu0 0.0
      %2910 = vmatprep.subr.mxu0 0.0
      %2911 = vmatpush1.msra.mxu0 0.0
      %2912 = vmatprep.subr.mxu0 0.0
      %2913 = vmatpush1.msra.mxu0 0.0
      %2914 = vmatprep.subr.mxu0 0.0
      %2915 = vmatpush1.msra.mxu0 0.0
      %2916 = vmatprep.subr.mxu0 0.0
      %2917 = vmatpush1.msra.mxu0 0.0
      %2918 = vmatprep.subr.mxu0 0.0
      %2919 = vmatpush1.msra.mxu0 0.0
      %2920 = vmatprep.subr.mxu0 0.0
      %2921 = vmatpush1.msra.mxu0 0.0
      %2922 = vmatprep.subr.mxu0 0.0
      %2923 = vmatpush1.msra.mxu0 0.0
      %2924 = vmatprep.subr.mxu0 0.0
      %2925 = vmatpush1.msra.mxu0 0.0
      %2926 = vmatprep.mubr.f32.mxu0 0.0
      %2927 = vmatmul.mubr.f32.gmra.mrb[0].mxu0 %v2851
      %v2928 = vpop.f32.mrb[0].mxu0
      %v2929 = vadd.f32 0.0, %v2928
      %v2930 = vpop.f32.mrb[0].mxu0
      %2931 = vmatprep.mubr.f32.mxu0 0.0
      %2932 = vmatmul.mubr.f32.gmra.mrb[0].mxu0 %v2854
      %v2933 = vpop.f32.mrb[0].mxu0
      %v2934 = vadd.f32 0.0, %v2933
      %v2935 = vpop.f32.mrb[0].mxu0
      %2936 = vmatprep.mubr.f32.mxu0 0.0
      %2937 = vmatmul.mubr.f32.gmra.mrb[0].mxu0 %v2857
      %v2938 = vpop.f32.mrb[0].mxu0
      %v2939 = vadd.f32 0.0, %v2938
      %v2940 = vpop.f32.mrb[0].mxu0
      %2941 = vmatprep.mubr.f32.mxu0 0.0
      %2942 = vmatmul.mubr.f32.gmra.mrb[0].mxu0 %v2860
      %v2943 = vpop.f32.mrb[0].mxu0
      %v2944 = vadd.f32 0.0, %v2943
      %v2945 = vpop.f32.mrb[0].mxu0
      %2946 = vdwg.mxu0
      %s2947 = scalar_lea.vmem %s57, 8
      %v2948 = vld [vmem:[%s2947] sm:$0xff]
      %v2950 = vsel %vm2413, %v2929, 0
      %v2953 = vsel %vm2413, %v2934, 0
      %v2956 = vsel %vm2413, %v2939, 0
      %v2959 = vsel %vm2413, %v2944, 0
      %2961 = vmatprep.subr.mxu0 0.0
      %2962 = vmatpush1.msra.mxu0 %v2948
      %2963 = vmatprep.subr.mxu0 0.0
      %2964 = vmatpush1.msra.mxu0 0.0
      %2965 = vmatprep.subr.mxu0 0.0
      %2966 = vmatpush1.msra.mxu0 0.0
      %2967 = vmatprep.subr.mxu0 0.0
      %2968 = vmatpush1.msra.mxu0 0.0
      %2969 = vmatprep.subr.mxu0 0.0
      %2970 = vmatpush1.msra.mxu0 0.0
      %2971 = vmatprep.subr.mxu0 0.0
      %2972 = vmatpush1.msra.mxu0 0.0
      %2973 = vmatprep.subr.mxu0 0.0
      %2974 = vmatpush1.msra.mxu0 0.0
      %2975 = vmatprep.subr.mxu0 0.0
      %2976 = vmatpush1.msra.mxu0 0.0
      %2977 = vmatprep.subr.mxu0 0.0
      %2978 = vmatpush1.msra.mxu0 0.0
      %2979 = vmatprep.subr.mxu0 0.0
      %2980 = vmatpush1.msra.mxu0 0.0
      %2981 = vmatprep.subr.mxu0 0.0
      %2982 = vmatpush1.msra.mxu0 0.0
      %2983 = vmatprep.subr.mxu0 0.0
      %2984 = vmatpush1.msra.mxu0 0.0
      %2985 = vmatprep.subr.mxu0 0.0
      %2986 = vmatpush1.msra.mxu0 0.0
      %2987 = vmatprep.subr.mxu0 0.0
      %2988 = vmatpush1.msra.mxu0 0.0
      %2989 = vmatprep.subr.mxu0 0.0
      %2990 = vmatpush1.msra.mxu0 0.0
      %2991 = vmatprep.subr.mxu0 0.0
      %2992 = vmatpush1.msra.mxu0 0.0
      %2993 = vmatprep.subr.mxu0 0.0
      %2994 = vmatpush1.msra.mxu0 0.0
      %2995 = vmatprep.subr.mxu0 0.0
      %2996 = vmatpush1.msra.mxu0 0.0
      %2997 = vmatprep.subr.mxu0 0.0
      %2998 = vmatpush1.msra.mxu0 0.0
      %2999 = vmatprep.subr.mxu0 0.0
      %3000 = vmatpush1.msra.mxu0 0.0
      %3001 = vmatprep.subr.mxu0 0.0
      %3002 = vmatpush1.msra.mxu0 0.0
      %3003 = vmatprep.subr.mxu0 0.0
      %3004 = vmatpush1.msra.mxu0 0.0
      %3005 = vmatprep.subr.mxu0 0.0
      %3006 = vmatpush1.msra.mxu0 0.0
      %3007 = vmatprep.subr.mxu0 0.0
      %3008 = vmatpush1.msra.mxu0 0.0
      %3009 = vmatprep.subr.mxu0 0.0
      %3010 = vmatpush1.msra.mxu0 0.0
      %3011 = vmatprep.subr.mxu0 0.0
      %3012 = vmatpush1.msra.mxu0 0.0
      %3013 = vmatprep.subr.mxu0 0.0
      %3014 = vmatpush1.msra.mxu0 0.0
      %3015 = vmatprep.subr.mxu0 0.0
      %3016 = vmatpush1.msra.mxu0 0.0
      %3017 = vmatprep.subr.mxu0 0.0
      %3018 = vmatpush1.msra.mxu0 0.0
      %3019 = vmatprep.subr.mxu0 0.0
      %3020 = vmatpush1.msra.mxu0 0.0
      %3021 = vmatprep.subr.mxu0 0.0
      %3022 = vmatpush1.msra.mxu0 0.0
      %3023 = vmatprep.subr.mxu0 0.0
      %3024 = vmatpush1.msra.mxu0 0.0
      %3025 = vmatprep.mubr.f32.mxu0 0.0
      %3026 = vmatmul.mubr.f32.gmra.mrb[0].mxu0 %v2950
      %v3027 = vpop.f32.mrb[0].mxu0
      %v3028 = vadd.f32 0.0, %v3027
      %v3029 = vpop.f32.mrb[0].mxu0
      %3030 = vmatprep.mubr.f32.mxu0 0.0
      %3031 = vmatmul.mubr.f32.gmra.mrb[0].mxu0 %v2953
      %v3032 = vpop.f32.mrb[0].mxu0
      %v3033 = vadd.f32 0.0, %v3032
      %v3034 = vpop.f32.mrb[0].mxu0
      %3035 = vmatprep.mubr.f32.mxu0 0.0
      %3036 = vmatmul.mubr.f32.gmra.mrb[0].mxu0 %v2956
      %v3037 = vpop.f32.mrb[0].mxu0
      %v3038 = vadd.f32 0.0, %v3037
      %v3039 = vpop.f32.mrb[0].mxu0
      %3040 = vmatprep.mubr.f32.mxu0 0.0
      %3041 = vmatmul.mubr.f32.gmra.mrb[0].mxu0 %v2959
      %v3042 = vpop.f32.mrb[0].mxu0
      %v3043 = vadd.f32 0.0, %v3042
      %v3044 = vpop.f32.mrb[0].mxu0
      %3045 = vdwg.mxu0
      %v3047 = vsel %vm2413, %v2658, 0
      %v3050 = vsel %vm2413, %v2663, 0
      %v3053 = vsel %vm2413, %v2668, 0
      %v3056 = vsel %vm2413, %v2673, 0
      %3058 = vmatprep.subr.mxu0 0.0
      %3059 = vmatpush1.msra.mxu0 %v2676
      %3060 = vmatprep.subr.mxu0 0.0
      %3061 = vmatpush1.msra.mxu0 0.0
      %3062 = vmatprep.subr.mxu0 0.0
      %3063 = vmatpush1.msra.mxu0 0.0
      %3064 = vmatprep.subr.mxu0 0.0
      %3065 = vmatpush1.msra.mxu0 0.0
      %3066 = vmatprep.subr.mxu0 0.0
      %3067 = vmatpush1.msra.mxu0 0.0
      %3068 = vmatprep.subr.mxu0 0.0
      %3069 = vmatpush1.msra.mxu0 0.0
      %3070 = vmatprep.subr.mxu0 0.0
      %3071 = vmatpush1.msra.mxu0 0.0
      %3072 = vmatprep.subr.mxu0 0.0
      %3073 = vmatpush1.msra.mxu0 0.0
      %3074 = vmatprep.subr.mxu0 0.0
      %3075 = vmatpush1.msra.mxu0 0.0
      %3076 = vmatprep.subr.mxu0 0.0
      %3077 = vmatpush1.msra.mxu0 0.0
      %3078 = vmatprep.subr.mxu0 0.0
      %3079 = vmatpush1.msra.mxu0 0.0
      %3080 = vmatprep.subr.mxu0 0.0
      %3081 = vmatpush1.msra.mxu0 0.0
      %3082 = vmatprep.subr.mxu0 0.0
      %3083 = vmatpush1.msra.mxu0 0.0
      %3084 = vmatprep.subr.mxu0 0.0
      %3085 = vmatpush1.msra.mxu0 0.0
      %3086 = vmatprep.subr.mxu0 0.0
      %3087 = vmatpush1.msra.mxu0 0.0
      %3088 = vmatprep.subr.mxu0 0.0
      %3089 = vmatpush1.msra.mxu0 0.0
      %3090 = vmatprep.subr.mxu0 0.0
      %3091 = vmatpush1.msra.mxu0 0.0
      %3092 = vmatprep.subr.mxu0 0.0
      %3093 = vmatpush1.msra.mxu0 0.0
      %3094 = vmatprep.subr.mxu0 0.0
      %3095 = vmatpush1.msra.mxu0 0.0
      %3096 = vmatprep.subr.mxu0 0.0
      %3097 = vmatpush1.msra.mxu0 0.0
      %3098 = vmatprep.subr.mxu0 0.0
      %3099 = vmatpush1.msra.mxu0 0.0
      %3100 = vmatprep.subr.mxu0 0.0
      %3101 = vmatpush1.msra.mxu0 0.0
      %3102 = vmatprep.subr.mxu0 0.0
      %3103 = vmatpush1.msra.mxu0 0.0
      %3104 = vmatprep.subr.mxu0 0.0
      %3105 = vmatpush1.msra.mxu0 0.0
      %3106 = vmatprep.subr.mxu0 0.0
      %3107 = vmatpush1.msra.mxu0 0.0
      %3108 = vmatprep.subr.mxu0 0.0
      %3109 = vmatpush1.msra.mxu0 0.0
      %3110 = vmatprep.subr.mxu0 0.0
      %3111 = vmatpush1.msra.mxu0 0.0
      %3112 = vmatprep.subr.mxu0 0.0
      %3113 = vmatpush1.msra.mxu0 0.0
      %3114 = vmatprep.subr.mxu0 0.0
      %3115 = vmatpush1.msra.mxu0 0.0
      %3116 = vmatprep.subr.mxu0 0.0
      %3117 = vmatpush1.msra.mxu0 0.0
      %3118 = vmatprep.subr.mxu0 0.0
      %3119 = vmatpush1.msra.mxu0 0.0
      %3120 = vmatprep.subr.mxu0 0.0
      %3121 = vmatpush1.msra.mxu0 0.0
      %3122 = vmatprep.mubr.f32.mxu0 0.0
      %3123 = vmatmul.mubr.f32.gmra.mrb[0].mxu0 %v3047
      %v3124 = vpop.f32.mrb[0].mxu0
      %v3125 = vadd.f32 %v3028, %v3124
      %v3126 = vpop.f32.mrb[0].mxu0
      %3127 = vmatprep.mubr.f32.mxu0 0.0
      %3128 = vmatmul.mubr.f32.gmra.mrb[0].mxu0 %v3050
      %v3129 = vpop.f32.mrb[0].mxu0
      %v3130 = vadd.f32 %v3033, %v3129
      %v3131 = vpop.f32.mrb[0].mxu0
      %3132 = vmatprep.mubr.f32.mxu0 0.0
      %3133 = vmatmul.mubr.f32.gmra.mrb[0].mxu0 %v3053
      %v3134 = vpop.f32.mrb[0].mxu0
      %v3135 = vadd.f32 %v3038, %v3134
      %v3136 = vpop.f32.mrb[0].mxu0
      %3137 = vmatprep.mubr.f32.mxu0 0.0
      %3138 = vmatmul.mubr.f32.gmra.mrb[0].mxu0 %v3056
      %v3139 = vpop.f32.mrb[0].mxu0
      %v3140 = vadd.f32 %v3043, %v3139
      %v3141 = vpop.f32.mrb[0].mxu0
      %3142 = vdwg.mxu0
      %3143 = vrot.lane.b32.xlu0 %v2377, 112
      %v3144 = vpop.permute.xlu0 %3143
      %3145 = vrot.lane.b32.xlu0 %v2378, 112
      %v3146 = vpop.permute.xlu0 %3145
      %3147 = vrot.lane.b32.xlu0 %v2379, 112
      %v3148 = vpop.permute.xlu0 %3147
      %3149 = vrot.lane.b32.xlu0 %v2380, 112
      %v3150 = vpop.permute.xlu0 %3149
      %3151 = vrot.lane.b32.xlu0 %v1975, 80
      %v3152 = vpop.permute.xlu0 %3151
      %3153 = vrot.lane.b32.xlu0 %v1980, 80
      %v3154 = vpop.permute.xlu0 %3153
      %3155 = vrot.lane.b32.xlu0 %v1985, 80
      %v3156 = vpop.permute.xlu0 %3155
      %3157 = vrot.lane.b32.xlu0 %v1990, 80
      %v3158 = vpop.permute.xlu0 %3157
      %v3159 = vsel %vm2413, %v3144, 0
      %v3161 = vsel %vm2413, %v3146, 0
      %v3163 = vsel %vm2413, %v3148, 0
      %v3165 = vsel %vm2413, %v3150, 0
      %v3167 = vsel %vm2413, %v3152, 0
      %v3169 = vsel %vm2413, %v3154, 0
      %v3171 = vsel %vm2413, %v3156, 0
      %v3173 = vsel %vm2413, %v3158, 0
      %3175 = vmatprep.subr.mxu0 0.0
      %3176 = vmatpush1.xpose.msra.mxu0 %v3167
      %3177 = vmatprep.subr.mxu0 0.0
      %3178 = vmatpush1.xpose.msra.mxu0 %v3169
      %3179 = vmatprep.subr.mxu0 0.0
      %3180 = vmatpush1.xpose.msra.mxu0 %v3171
      %3181 = vmatprep.subr.mxu0 0.0
      %3182 = vmatpush1.xpose.msra.mxu0 %v3173
      %3183 = vmatprep.subr.mxu0 0.0
      %3184 = vmatpush1.xpose.msra.mxu0 0.0
      %3185 = vmatprep.subr.mxu0 0.0
      %3186 = vmatpush1.xpose.msra.mxu0 0.0
      %3187 = vmatprep.subr.mxu0 0.0
      %3188 = vmatpush1.xpose.msra.mxu0 0.0
      %3189 = vmatprep.subr.mxu0 0.0
      %3190 = vmatpush1.xpose.msra.mxu0 0.0
      %3191 = vmatprep.subr.mxu0 0.0
      %3192 = vmatpush1.xpose.msra.mxu0 0.0
      %3193 = vmatprep.subr.mxu0 0.0
      %3194 = vmatpush1.xpose.msra.mxu0 0.0
      %3195 = vmatprep.subr.mxu0 0.0
      %3196 = vmatpush1.xpose.msra.mxu0 0.0
      %3197 = vmatprep.subr.mxu0 0.0
      %3198 = vmatpush1.xpose.msra.mxu0 0.0
      %3199 = vmatprep.subr.mxu0 0.0
      %3200 = vmatpush1.xpose.msra.mxu0 0.0
      %3201 = vmatprep.subr.mxu0 0.0
      %3202 = vmatpush1.xpose.msra.mxu0 0.0
      %3203 = vmatprep.subr.mxu0 0.0
      %3204 = vmatpush1.xpose.msra.mxu0 0.0
      %3205 = vmatprep.subr.mxu0 0.0
      %3206 = vmatpush1.xpose.msra.mxu0 0.0
      %3207 = vmatprep.subr.mxu0 0.0
      %3208 = vmatpush1.xpose.msra.mxu0 0.0
      %3209 = vmatprep.subr.mxu0 0.0
      %3210 = vmatpush1.xpose.msra.mxu0 0.0
      %3211 = vmatprep.subr.mxu0 0.0
      %3212 = vmatpush1.xpose.msra.mxu0 0.0
      %3213 = vmatprep.subr.mxu0 0.0
      %3214 = vmatpush1.xpose.msra.mxu0 0.0
      %3215 = vmatprep.subr.mxu0 0.0
      %3216 = vmatpush1.xpose.msra.mxu0 0.0
      %3217 = vmatprep.subr.mxu0 0.0
      %3218 = vmatpush1.xpose.msra.mxu0 0.0
      %3219 = vmatprep.subr.mxu0 0.0
      %3220 = vmatpush1.xpose.msra.mxu0 0.0
      %3221 = vmatprep.subr.mxu0 0.0
      %3222 = vmatpush1.xpose.msra.mxu0 0.0
      %3223 = vmatprep.subr.mxu0 0.0
      %3224 = vmatpush1.xpose.msra.mxu0 0.0
      %3225 = vmatprep.subr.mxu0 0.0
      %3226 = vmatpush1.xpose.msra.mxu0 0.0
      %3227 = vmatprep.subr.mxu0 0.0
      %3228 = vmatpush1.xpose.msra.mxu0 0.0
      %3229 = vmatprep.subr.mxu0 0.0
      %3230 = vmatpush1.xpose.msra.mxu0 0.0
      %3231 = vmatprep.subr.mxu0 0.0
      %3232 = vmatpush1.xpose.msra.mxu0 0.0
      %3233 = vmatprep.subr.mxu0 0.0
      %3234 = vmatpush1.xpose.msra.mxu0 0.0
      %3235 = vmatprep.subr.mxu0 0.0
      %3236 = vmatpush1.xpose.msra.mxu0 0.0
      %3237 = vmatprep.subr.mxu0 0.0
      %3238 = vmatpush1.xpose.msra.mxu0 0.0
      %3239 = vmatprep.mubr.f32.mxu0 0.0
      %3240 = vmatmul.mubr.f32.gmra.mrb[0].mxu0 %v3159
      %v3241 = vpop.f32.mrb[0].mxu0
      %v3242 = vadd.f32 %v1807, %v3241
      %v3243 = vpop.f32.mrb[0].mxu0
      %3244 = vmatprep.mubr.f32.mxu0 0.0
      %3245 = vmatmul.mubr.f32.gmra.mrb[0].mxu0 %v3161
      %v3246 = vpop.f32.mrb[0].mxu0
      %v3247 = vadd.f32 %v1808, %v3246
      %v3248 = vpop.f32.mrb[0].mxu0
      %3249 = vmatprep.mubr.f32.mxu0 0.0
      %3250 = vmatmul.mubr.f32.gmra.mrb[0].mxu0 %v3163
      %v3251 = vpop.f32.mrb[0].mxu0
      %v3252 = vadd.f32 %v1809, %v3251
      %v3253 = vpop.f32.mrb[0].mxu0
      %3254 = vmatprep.mubr.f32.mxu0 0.0
      %3255 = vmatmul.mubr.f32.gmra.mrb[0].mxu0 %v3165
      %v3256 = vpop.f32.mrb[0].mxu0
      %v3257 = vadd.f32 %v1810, %v3256
      %v3258 = vpop.f32.mrb[0].mxu0
      %3259 = vdwg.mxu0
      %v3260 = vsel %vm1740, %v3242, -inf
      %3261 = vmax.xlane.f32.xlu0 %v3260
      %v3262 = vpop.xlane.xlu0 %3261
      %v3263 = vsel %vm1740, %v3247, -inf
      %3264 = vmax.xlane.f32.xlu0 %v3263
      %v3265 = vpop.xlane.xlu0 %3264
      %v3266 = vsel %vm1740, %v3252, -inf
      %3267 = vmax.xlane.f32.xlu0 %v3266
      %v3268 = vpop.xlane.xlu0 %3267
      %v3269 = vsel %vm1740, %v3257, -inf
      %3270 = vmax.xlane.f32.xlu0 %v3269
      %v3271 = vpop.xlane.xlu0 %3270
      %v3272 = vsub.f32 %v3242, %v3262
      %v3273 = vsub.f32 %v3247, %v3265
      %v3274 = vsub.f32 %v3252, %v3268
      %v3275 = vsub.f32 %v3257, %v3271
      %v3276 = vmul.f32 %v3272, 1.442695
      %v3277 = vpow.pop %v3276
      %v3278 = vmul.f32 %v3273, 1.442695
      %v3279 = vpow.pop %v3278
      %v3280 = vmul.f32 %v3274, 1.442695
      %v3281 = vpow.pop %v3280
      %v3282 = vmul.f32 %v3275, 1.442695
      %v3283 = vpow.pop %v3282
      %v3284 = vsel %vm1740, %v3277, 0.0
      %3285 = vadd.xlane.f32.xlu0 %v3284
      %v3286 = vpop.xlane.xlu0 %3285
      %v3287 = vsel %vm1740, %v3279, 0.0
      %3288 = vadd.xlane.f32.xlu0 %v3287
      %v3289 = vpop.xlane.xlu0 %3288
      %v3290 = vsel %vm1740, %v3281, 0.0
      %3291 = vadd.xlane.f32.xlu0 %v3290
      %v3292 = vpop.xlane.xlu0 %3291
      %v3293 = vsel %vm1740, %v3283, 0.0
      %3294 = vadd.xlane.f32.xlu0 %v3293
      %v3295 = vpop.xlane.xlu0 %3294
      %v3296 = vrcp.pop %v3286
      %v3297 = vmul.f32 %v3277, %v3296
      %v3298 = vrcp.pop %v3289
      %v3299 = vmul.f32 %v3279, %v3298
      %v3300 = vrcp.pop %v3292
      %v3301 = vmul.f32 %v3281, %v3300
      %v3302 = vrcp.pop %v3295
      %v3303 = vmul.f32 %v3283, %v3302
      %3304 = vrot.lane.b32.xlu0 %v2397, 48
      %v3305 = vpop.permute.xlu0 %3304
      %3306 = vrot.lane.b32.xlu0 %v2398, 48
      %v3307 = vpop.permute.xlu0 %3306
      %3308 = vrot.lane.b32.xlu0 %v2399, 48
      %v3309 = vpop.permute.xlu0 %3308
      %3310 = vrot.lane.b32.xlu0 %v2400, 48
      %v3311 = vpop.permute.xlu0 %3310
      %v3317 = vsel %vm1740, %v3297, 0
      %v3320 = vsel %vm1740, %v3299, 0
      %v3323 = vsel %vm1740, %v3301, 0
      %v3326 = vsel %vm1740, %v3303, 0
      %3328 = vmatprep.subr.mxu0 0.0
      %3329 = vmatpush1.msra.mxu0 %v3305
      %3330 = vmatprep.subr.mxu0 0.0
      %3331 = vmatpush1.msra.mxu0 %v3307
      %3332 = vmatprep.subr.mxu0 0.0
      %3333 = vmatpush1.msra.mxu0 %v3309
      %3334 = vmatprep.subr.mxu0 0.0
      %3335 = vmatpush1.msra.mxu0 %v3311
      %3336 = vmatprep.subr.mxu0 0.0
      %3337 = vmatpush1.msra.mxu0 0.0
      %3338 = vmatprep.subr.mxu0 0.0
      %3339 = vmatpush1.msra.mxu0 0.0
      %3340 = vmatprep.subr.mxu0 0.0
      %3341 = vmatpush1.msra.mxu0 0.0
      %3342 = vmatprep.subr.mxu0 0.0
      %3343 = vmatpush1.msra.mxu0 0.0
      %3344 = vmatprep.subr.mxu0 0.0
      %3345 = vmatpush1.msra.mxu0 0.0
      %3346 = vmatprep.subr.mxu0 0.0
      %3347 = vmatpush1.msra.mxu0 0.0
      %3348 = vmatprep.subr.mxu0 0.0
      %3349 = vmatpush1.msra.mxu0 0.0
      %3350 = vmatprep.subr.mxu0 0.0
      %3351 = vmatpush1.msra.mxu0 0.0
      %3352 = vmatprep.subr.mxu0 0.0
      %3353 = vmatpush1.msra.mxu0 0.0
      %3354 = vmatprep.subr.mxu0 0.0
      %3355 = vmatpush1.msra.mxu0 0.0
      %3356 = vmatprep.subr.mxu0 0.0
      %3357 = vmatpush1.msra.mxu0 0.0
      %3358 = vmatprep.subr.mxu0 0.0
      %3359 = vmatpush1.msra.mxu0 0.0
      %3360 = vmatprep.subr.mxu0 0.0
      %3361 = vmatpush1.msra.mxu0 0.0
      %3362 = vmatprep.subr.mxu0 0.0
      %3363 = vmatpush1.msra.mxu0 0.0
      %3364 = vmatprep.subr.mxu0 0.0
      %3365 = vmatpush1.msra.mxu0 0.0
      %3366 = vmatprep.subr.mxu0 0.0
      %3367 = vmatpush1.msra.mxu0 0.0
      %3368 = vmatprep.subr.mxu0 0.0
      %3369 = vmatpush1.msra.mxu0 0.0
      %3370 = vmatprep.subr.mxu0 0.0
      %3371 = vmatpush1.msra.mxu0 0.0
      %3372 = vmatprep.subr.mxu0 0.0
      %3373 = vmatpush1.msra.mxu0 0.0
      %3374 = vmatprep.subr.mxu0 0.0
      %3375 = vmatpush1.msra.mxu0 0.0
      %3376 = vmatprep.subr.mxu0 0.0
      %3377 = vmatpush1.msra.mxu0 0.0
      %3378 = vmatprep.subr.mxu0 0.0
      %3379 = vmatpush1.msra.mxu0 0.0
      %3380 = vmatprep.subr.mxu0 0.0
      %3381 = vmatpush1.msra.mxu0 0.0
      %3382 = vmatprep.subr.mxu0 0.0
      %3383 = vmatpush1.msra.mxu0 0.0
      %3384 = vmatprep.subr.mxu0 0.0
      %3385 = vmatpush1.msra.mxu0 0.0
      %3386 = vmatprep.subr.mxu0 0.0
      %3387 = vmatpush1.msra.mxu0 0.0
      %3388 = vmatprep.subr.mxu0 0.0
      %3389 = vmatpush1.msra.mxu0 0.0
      %3390 = vmatprep.subr.mxu0 0.0
      %3391 = vmatpush1.msra.mxu0 0.0
      %3392 = vmatprep.mubr.f32.mxu0 0.0
      %3393 = vmatmul.mubr.f32.gmra.mrb[0].mxu0 %v3317
      %v3394 = vpop.f32.mrb[0].mxu0
      %v3395 = vadd.f32 0.0, %v3394
      %v3396 = vpop.f32.mrb[0].mxu0
      %3397 = vmatprep.mubr.f32.mxu0 0.0
      %3398 = vmatmul.mubr.f32.gmra.mrb[0].mxu0 %v3320
      %v3399 = vpop.f32.mrb[0].mxu0
      %v3400 = vadd.f32 0.0, %v3399
      %v3401 = vpop.f32.mrb[0].mxu0
      %3402 = vmatprep.mubr.f32.mxu0 0.0
      %3403 = vmatmul.mubr.f32.gmra.mrb[0].mxu0 %v3323
      %v3404 = vpop.f32.mrb[0].mxu0
      %v3405 = vadd.f32 0.0, %v3404
      %v3406 = vpop.f32.mrb[0].mxu0
      %3407 = vmatprep.mubr.f32.mxu0 0.0
      %3408 = vmatmul.mubr.f32.gmra.mrb[0].mxu0 %v3326
      %v3409 = vpop.f32.mrb[0].mxu0
      %v3410 = vadd.f32 0.0, %v3409
      %v3411 = vpop.f32.mrb[0].mxu0
      %3412 = vdwg.mxu0
      %s3413 = scalar_lea.vmem %s57, 16
      %v3414 = vld [vmem:[%s3413] sm:$0xff]
      %v3416 = vsel %vm2413, %v3395, 0
      %v3419 = vsel %vm2413, %v3400, 0
      %v3422 = vsel %vm2413, %v3405, 0
      %v3425 = vsel %vm2413, %v3410, 0
      %3427 = vmatprep.subr.mxu0 0.0
      %3428 = vmatpush1.msra.mxu0 %v3414
      %3429 = vmatprep.subr.mxu0 0.0
      %3430 = vmatpush1.msra.mxu0 0.0
      %3431 = vmatprep.subr.mxu0 0.0
      %3432 = vmatpush1.msra.mxu0 0.0
      %3433 = vmatprep.subr.mxu0 0.0
      %3434 = vmatpush1.msra.mxu0 0.0
      %3435 = vmatprep.subr.mxu0 0.0
      %3436 = vmatpush1.msra.mxu0 0.0
      %3437 = vmatprep.subr.mxu0 0.0
      %3438 = vmatpush1.msra.mxu0 0.0
      %3439 = vmatprep.subr.mxu0 0.0
      %3440 = vmatpush1.msra.mxu0 0.0
      %3441 = vmatprep.subr.mxu0 0.0
      %3442 = vmatpush1.msra.mxu0 0.0
      %3443 = vmatprep.subr.mxu0 0.0
      %3444 = vmatpush1.msra.mxu0 0.0
      %3445 = vmatprep.subr.mxu0 0.0
      %3446 = vmatpush1.msra.mxu0 0.0
      %3447 = vmatprep.subr.mxu0 0.0
      %3448 = vmatpush1.msra.mxu0 0.0
      %3449 = vmatprep.subr.mxu0 0.0
      %3450 = vmatpush1.msra.mxu0 0.0
      %3451 = vmatprep.subr.mxu0 0.0
      %3452 = vmatpush1.msra.mxu0 0.0
      %3453 = vmatprep.subr.mxu0 0.0
      %3454 = vmatpush1.msra.mxu0 0.0
      %3455 = vmatprep.subr.mxu0 0.0
      %3456 = vmatpush1.msra.mxu0 0.0
      %3457 = vmatprep.subr.mxu0 0.0
      %3458 = vmatpush1.msra.mxu0 0.0
      %3459 = vmatprep.subr.mxu0 0.0
      %3460 = vmatpush1.msra.mxu0 0.0
      %3461 = vmatprep.subr.mxu0 0.0
      %3462 = vmatpush1.msra.mxu0 0.0
      %3463 = vmatprep.subr.mxu0 0.0
      %3464 = vmatpush1.msra.mxu0 0.0
      %3465 = vmatprep.subr.mxu0 0.0
      %3466 = vmatpush1.msra.mxu0 0.0
      %3467 = vmatprep.subr.mxu0 0.0
      %3468 = vmatpush1.msra.mxu0 0.0
      %3469 = vmatprep.subr.mxu0 0.0
      %3470 = vmatpush1.msra.mxu0 0.0
      %3471 = vmatprep.subr.mxu0 0.0
      %3472 = vmatpush1.msra.mxu0 0.0
      %3473 = vmatprep.subr.mxu0 0.0
      %3474 = vmatpush1.msra.mxu0 0.0
      %3475 = vmatprep.subr.mxu0 0.0
      %3476 = vmatpush1.msra.mxu0 0.0
      %3477 = vmatprep.subr.mxu0 0.0
      %3478 = vmatpush1.msra.mxu0 0.0
      %3479 = vmatprep.subr.mxu0 0.0
      %3480 = vmatpush1.msra.mxu0 0.0
      %3481 = vmatprep.subr.mxu0 0.0
      %3482 = vmatpush1.msra.mxu0 0.0
      %3483 = vmatprep.subr.mxu0 0.0
      %3484 = vmatpush1.msra.mxu0 0.0
      %3485 = vmatprep.subr.mxu0 0.0
      %3486 = vmatpush1.msra.mxu0 0.0
      %3487 = vmatprep.subr.mxu0 0.0
      %3488 = vmatpush1.msra.mxu0 0.0
      %3489 = vmatprep.subr.mxu0 0.0
      %3490 = vmatpush1.msra.mxu0 0.0
      %3491 = vmatprep.mubr.f32.mxu0 0.0
      %3492 = vmatmul.mubr.f32.gmra.mrb[0].mxu0 %v3416
      %v3493 = vpop.f32.mrb[0].mxu0
      %v3494 = vadd.f32 0.0, %v3493
      %v3495 = vpop.f32.mrb[0].mxu0
      %3496 = vmatprep.mubr.f32.mxu0 0.0
      %3497 = vmatmul.mubr.f32.gmra.mrb[0].mxu0 %v3419
      %v3498 = vpop.f32.mrb[0].mxu0
      %v3499 = vadd.f32 0.0, %v3498
      %v3500 = vpop.f32.mrb[0].mxu0
      %3501 = vmatprep.mubr.f32.mxu0 0.0
      %3502 = vmatmul.mubr.f32.gmra.mrb[0].mxu0 %v3422
      %v3503 = vpop.f32.mrb[0].mxu0
      %v3504 = vadd.f32 0.0, %v3503
      %v3505 = vpop.f32.mrb[0].mxu0
      %3506 = vmatprep.mubr.f32.mxu0 0.0
      %3507 = vmatmul.mubr.f32.gmra.mrb[0].mxu0 %v3425
      %v3508 = vpop.f32.mrb[0].mxu0
      %v3509 = vadd.f32 0.0, %v3508
      %v3510 = vpop.f32.mrb[0].mxu0
      %3511 = vdwg.mxu0
      %v3512 = vadd.f32 %v3125, %v3494
      %v3513 = vadd.f32 %v3130, %v3499
      %v3514 = vadd.f32 %v3135, %v3504
      %v3515 = vadd.f32 %v3140, %v3509
      %3516 = vrot.lane.b32.xlu0 %v2377, 104
      %v3517 = vpop.permute.xlu0 %3516
      %3518 = vrot.lane.b32.xlu0 %v2378, 104
      %v3519 = vpop.permute.xlu0 %3518
      %3520 = vrot.lane.b32.xlu0 %v2379, 104
      %v3521 = vpop.permute.xlu0 %3520
      %3522 = vrot.lane.b32.xlu0 %v2380, 104
      %v3523 = vpop.permute.xlu0 %3522
      %3524 = vrot.lane.b32.xlu0 %v1975, 72
      %v3525 = vpop.permute.xlu0 %3524
      %3526 = vrot.lane.b32.xlu0 %v1980, 72
      %v3527 = vpop.permute.xlu0 %3526
      %3528 = vrot.lane.b32.xlu0 %v1985, 72
      %v3529 = vpop.permute.xlu0 %3528
      %3530 = vrot.lane.b32.xlu0 %v1990, 72
      %v3531 = vpop.permute.xlu0 %3530
      %v3532 = vsel %vm2413, %v3517, 0
      %v3534 = vsel %vm2413, %v3519, 0
      %v3536 = vsel %vm2413, %v3521, 0
      %v3538 = vsel %vm2413, %v3523, 0
      %v3540 = vsel %vm2413, %v3525, 0
      %v3542 = vsel %vm2413, %v3527, 0
      %v3544 = vsel %vm2413, %v3529, 0
      %v3546 = vsel %vm2413, %v3531, 0
      %3548 = vmatprep.subr.mxu0 0.0
      %3549 = vmatpush1.xpose.msra.mxu0 %v3540
      %3550 = vmatprep.subr.mxu0 0.0
      %3551 = vmatpush1.xpose.msra.mxu0 %v3542
      %3552 = vmatprep.subr.mxu0 0.0
      %3553 = vmatpush1.xpose.msra.mxu0 %v3544
      %3554 = vmatprep.subr.mxu0 0.0
      %3555 = vmatpush1.xpose.msra.mxu0 %v3546
      %3556 = vmatprep.subr.mxu0 0.0
      %3557 = vmatpush1.xpose.msra.mxu0 0.0
      %3558 = vmatprep.subr.mxu0 0.0
      %3559 = vmatpush1.xpose.msra.mxu0 0.0
      %3560 = vmatprep.subr.mxu0 0.0
      %3561 = vmatpush1.xpose.msra.mxu0 0.0
      %3562 = vmatprep.subr.mxu0 0.0
      %3563 = vmatpush1.xpose.msra.mxu0 0.0
      %3564 = vmatprep.subr.mxu0 0.0
      %3565 = vmatpush1.xpose.msra.mxu0 0.0
      %3566 = vmatprep.subr.mxu0 0.0
      %3567 = vmatpush1.xpose.msra.mxu0 0.0
      %3568 = vmatprep.subr.mxu0 0.0
      %3569 = vmatpush1.xpose.msra.mxu0 0.0
      %3570 = vmatprep.subr.mxu0 0.0
      %3571 = vmatpush1.xpose.msra.mxu0 0.0
      %3572 = vmatprep.subr.mxu0 0.0
      %3573 = vmatpush1.xpose.msra.mxu0 0.0
      %3574 = vmatprep.subr.mxu0 0.0
      %3575 = vmatpush1.xpose.msra.mxu0 0.0
      %3576 = vmatprep.subr.mxu0 0.0
      %3577 = vmatpush1.xpose.msra.mxu0 0.0
      %3578 = vmatprep.subr.mxu0 0.0
      %3579 = vmatpush1.xpose.msra.mxu0 0.0
      %3580 = vmatprep.subr.mxu0 0.0
      %3581 = vmatpush1.xpose.msra.mxu0 0.0
      %3582 = vmatprep.subr.mxu0 0.0
      %3583 = vmatpush1.xpose.msra.mxu0 0.0
      %3584 = vmatprep.subr.mxu0 0.0
      %3585 = vmatpush1.xpose.msra.mxu0 0.0
      %3586 = vmatprep.subr.mxu0 0.0
      %3587 = vmatpush1.xpose.msra.mxu0 0.0
      %3588 = vmatprep.subr.mxu0 0.0
      %3589 = vmatpush1.xpose.msra.mxu0 0.0
      %3590 = vmatprep.subr.mxu0 0.0
      %3591 = vmatpush1.xpose.msra.mxu0 0.0
      %3592 = vmatprep.subr.mxu0 0.0
      %3593 = vmatpush1.xpose.msra.mxu0 0.0
      %3594 = vmatprep.subr.mxu0 0.0
      %3595 = vmatpush1.xpose.msra.mxu0 0.0
      %3596 = vmatprep.subr.mxu0 0.0
      %3597 = vmatpush1.xpose.msra.mxu0 0.0
      %3598 = vmatprep.subr.mxu0 0.0
      %3599 = vmatpush1.xpose.msra.mxu0 0.0
      %3600 = vmatprep.subr.mxu0 0.0
      %3601 = vmatpush1.xpose.msra.mxu0 0.0
      %3602 = vmatprep.subr.mxu0 0.0
      %3603 = vmatpush1.xpose.msra.mxu0 0.0
      %3604 = vmatprep.subr.mxu0 0.0
      %3605 = vmatpush1.xpose.msra.mxu0 0.0
      %3606 = vmatprep.subr.mxu0 0.0
      %3607 = vmatpush1.xpose.msra.mxu0 0.0
      %3608 = vmatprep.subr.mxu0 0.0
      %3609 = vmatpush1.xpose.msra.mxu0 0.0
      %3610 = vmatprep.subr.mxu0 0.0
      %3611 = vmatpush1.xpose.msra.mxu0 0.0
      %3612 = vmatprep.mubr.f32.mxu0 0.0
      %3613 = vmatmul.mubr.f32.gmra.mrb[0].mxu0 %v3532
      %v3614 = vpop.f32.mrb[0].mxu0
      %v3615 = vadd.f32 %v1807, %v3614
      %v3616 = vpop.f32.mrb[0].mxu0
      %3617 = vmatprep.mubr.f32.mxu0 0.0
      %3618 = vmatmul.mubr.f32.gmra.mrb[0].mxu0 %v3534
      %v3619 = vpop.f32.mrb[0].mxu0
      %v3620 = vadd.f32 %v1808, %v3619
      %v3621 = vpop.f32.mrb[0].mxu0
      %3622 = vmatprep.mubr.f32.mxu0 0.0
      %3623 = vmatmul.mubr.f32.gmra.mrb[0].mxu0 %v3536
      %v3624 = vpop.f32.mrb[0].mxu0
      %v3625 = vadd.f32 %v1809, %v3624
      %v3626 = vpop.f32.mrb[0].mxu0
      %3627 = vmatprep.mubr.f32.mxu0 0.0
      %3628 = vmatmul.mubr.f32.gmra.mrb[0].mxu0 %v3538
      %v3629 = vpop.f32.mrb[0].mxu0
      %v3630 = vadd.f32 %v1810, %v3629
      %v3631 = vpop.f32.mrb[0].mxu0
      %3632 = vdwg.mxu0
      %v3633 = vsel %vm1740, %v3615, -inf
      %3634 = vmax.xlane.f32.xlu0 %v3633
      %v3635 = vpop.xlane.xlu0 %3634
      %v3636 = vsel %vm1740, %v3620, -inf
      %3637 = vmax.xlane.f32.xlu0 %v3636
      %v3638 = vpop.xlane.xlu0 %3637
      %v3639 = vsel %vm1740, %v3625, -inf
      %3640 = vmax.xlane.f32.xlu0 %v3639
      %v3641 = vpop.xlane.xlu0 %3640
      %v3642 = vsel %vm1740, %v3630, -inf
      %3643 = vmax.xlane.f32.xlu0 %v3642
      %v3644 = vpop.xlane.xlu0 %3643
      %v3645 = vsub.f32 %v3615, %v3635
      %v3646 = vsub.f32 %v3620, %v3638
      %v3647 = vsub.f32 %v3625, %v3641
      %v3648 = vsub.f32 %v3630, %v3644
      %v3649 = vmul.f32 %v3645, 1.442695
      %v3650 = vpow.pop %v3649
      %v3651 = vmul.f32 %v3646, 1.442695
      %v3652 = vpow.pop %v3651
      %v3653 = vmul.f32 %v3647, 1.442695
      %v3654 = vpow.pop %v3653
      %v3655 = vmul.f32 %v3648, 1.442695
      %v3656 = vpow.pop %v3655
      %v3657 = vsel %vm1740, %v3650, 0.0
      %3658 = vadd.xlane.f32.xlu0 %v3657
      %v3659 = vpop.xlane.xlu0 %3658
      %v3660 = vsel %vm1740, %v3652, 0.0
      %3661 = vadd.xlane.f32.xlu0 %v3660
      %v3662 = vpop.xlane.xlu0 %3661
      %v3663 = vsel %vm1740, %v3654, 0.0
      %3664 = vadd.xlane.f32.xlu0 %v3663
      %v3665 = vpop.xlane.xlu0 %3664
      %v3666 = vsel %vm1740, %v3656, 0.0
      %3667 = vadd.xlane.f32.xlu0 %v3666
      %v3668 = vpop.xlane.xlu0 %3667
      %v3669 = vrcp.pop %v3659
      %v3670 = vmul.f32 %v3650, %v3669
      %v3671 = vrcp.pop %v3662
      %v3672 = vmul.f32 %v3652, %v3671
      %v3673 = vrcp.pop %v3665
      %v3674 = vmul.f32 %v3654, %v3673
      %v3675 = vrcp.pop %v3668
      %v3676 = vmul.f32 %v3656, %v3675
      %3677 = vrot.lane.b32.xlu0 %v2397, 40
      %v3678 = vpop.permute.xlu0 %3677
      %3679 = vrot.lane.b32.xlu0 %v2398, 40
      %v3680 = vpop.permute.xlu0 %3679
      %3681 = vrot.lane.b32.xlu0 %v2399, 40
      %v3682 = vpop.permute.xlu0 %3681
      %3683 = vrot.lane.b32.xlu0 %v2400, 40
      %v3684 = vpop.permute.xlu0 %3683
      %v3690 = vsel %vm1740, %v3670, 0
      %v3693 = vsel %vm1740, %v3672, 0
      %v3696 = vsel %vm1740, %v3674, 0
      %v3699 = vsel %vm1740, %v3676, 0
      %3701 = vmatprep.subr.mxu0 0.0
      %3702 = vmatpush1.msra.mxu0 %v3678
      %3703 = vmatprep.subr.mxu0 0.0
      %3704 = vmatpush1.msra.mxu0 %v3680
      %3705 = vmatprep.subr.mxu0 0.0
      %3706 = vmatpush1.msra.mxu0 %v3682
      %3707 = vmatprep.subr.mxu0 0.0
      %3708 = vmatpush1.msra.mxu0 %v3684
      %3709 = vmatprep.subr.mxu0 0.0
      %3710 = vmatpush1.msra.mxu0 0.0
      %3711 = vmatprep.subr.mxu0 0.0
      %3712 = vmatpush1.msra.mxu0 0.0
      %3713 = vmatprep.subr.mxu0 0.0
      %3714 = vmatpush1.msra.mxu0 0.0
      %3715 = vmatprep.subr.mxu0 0.0
      %3716 = vmatpush1.msra.mxu0 0.0
      %3717 = vmatprep.subr.mxu0 0.0
      %3718 = vmatpush1.msra.mxu0 0.0
      %3719 = vmatprep.subr.mxu0 0.0
      %3720 = vmatpush1.msra.mxu0 0.0
      %3721 = vmatprep.subr.mxu0 0.0
      %3722 = vmatpush1.msra.mxu0 0.0
      %3723 = vmatprep.subr.mxu0 0.0
      %3724 = vmatpush1.msra.mxu0 0.0
      %3725 = vmatprep.subr.mxu0 0.0
      %3726 = vmatpush1.msra.mxu0 0.0
      %3727 = vmatprep.subr.mxu0 0.0
      %3728 = vmatpush1.msra.mxu0 0.0
      %3729 = vmatprep.subr.mxu0 0.0
      %3730 = vmatpush1.msra.mxu0 0.0
      %3731 = vmatprep.subr.mxu0 0.0
      %3732 = vmatpush1.msra.mxu0 0.0
      %3733 = vmatprep.subr.mxu0 0.0
      %3734 = vmatpush1.msra.mxu0 0.0
      %3735 = vmatprep.subr.mxu0 0.0
      %3736 = vmatpush1.msra.mxu0 0.0
      %3737 = vmatprep.subr.mxu0 0.0
      %3738 = vmatpush1.msra.mxu0 0.0
      %3739 = vmatprep.subr.mxu0 0.0
      %3740 = vmatpush1.msra.mxu0 0.0
      %3741 = vmatprep.subr.mxu0 0.0
      %3742 = vmatpush1.msra.mxu0 0.0
      %3743 = vmatprep.subr.mxu0 0.0
      %3744 = vmatpush1.msra.mxu0 0.0
      %3745 = vmatprep.subr.mxu0 0.0
      %3746 = vmatpush1.msra.mxu0 0.0
      %3747 = vmatprep.subr.mxu0 0.0
      %3748 = vmatpush1.msra.mxu0 0.0
      %3749 = vmatprep.subr.mxu0 0.0
      %3750 = vmatpush1.msra.mxu0 0.0
      %3751 = vmatprep.subr.mxu0 0.0
      %3752 = vmatpush1.msra.mxu0 0.0
      %3753 = vmatprep.subr.mxu0 0.0
      %3754 = vmatpush1.msra.mxu0 0.0
      %3755 = vmatprep.subr.mxu0 0.0
      %3756 = vmatpush1.msra.mxu0 0.0
      %3757 = vmatprep.subr.mxu0 0.0
      %3758 = vmatpush1.msra.mxu0 0.0
      %3759 = vmatprep.subr.mxu0 0.0
      %3760 = vmatpush1.msra.mxu0 0.0
      %3761 = vmatprep.subr.mxu0 0.0
      %3762 = vmatpush1.msra.mxu0 0.0
      %3763 = vmatprep.subr.mxu0 0.0
      %3764 = vmatpush1.msra.mxu0 0.0
      %3765 = vmatprep.mubr.f32.mxu0 0.0
      %3766 = vmatmul.mubr.f32.gmra.mrb[0].mxu0 %v3690
      %v3767 = vpop.f32.mrb[0].mxu0
      %v3768 = vadd.f32 0.0, %v3767
      %v3769 = vpop.f32.mrb[0].mxu0
      %3770 = vmatprep.mubr.f32.mxu0 0.0
      %3771 = vmatmul.mubr.f32.gmra.mrb[0].mxu0 %v3693
      %v3772 = vpop.f32.mrb[0].mxu0
      %v3773 = vadd.f32 0.0, %v3772
      %v3774 = vpop.f32.mrb[0].mxu0
      %3775 = vmatprep.mubr.f32.mxu0 0.0
      %3776 = vmatmul.mubr.f32.gmra.mrb[0].mxu0 %v3696
      %v3777 = vpop.f32.mrb[0].mxu0
      %v3778 = vadd.f32 0.0, %v3777
      %v3779 = vpop.f32.mrb[0].mxu0
      %3780 = vmatprep.mubr.f32.mxu0 0.0
      %3781 = vmatmul.mubr.f32.gmra.mrb[0].mxu0 %v3699
      %v3782 = vpop.f32.mrb[0].mxu0
      %v3783 = vadd.f32 0.0, %v3782
      %v3784 = vpop.f32.mrb[0].mxu0
      %3785 = vdwg.mxu0
      %s3786 = scalar_lea.vmem %s57, 24
      %v3787 = vld [vmem:[%s3786] sm:$0xff]
      %v3789 = vsel %vm2413, %v3768, 0
      %v3792 = vsel %vm2413, %v3773, 0
      %v3795 = vsel %vm2413, %v3778, 0
      %v3798 = vsel %vm2413, %v3783, 0
      %3800 = vmatprep.subr.mxu0 0.0
      %3801 = vmatpush1.msra.mxu0 %v3787
      %3802 = vmatprep.subr.mxu0 0.0
      %3803 = vmatpush1.msra.mxu0 0.0
      %3804 = vmatprep.subr.mxu0 0.0
      %3805 = vmatpush1.msra.mxu0 0.0
      %3806 = vmatprep.subr.mxu0 0.0
      %3807 = vmatpush1.msra.mxu0 0.0
      %3808 = vmatprep.subr.mxu0 0.0
      %3809 = vmatpush1.msra.mxu0 0.0
      %3810 = vmatprep.subr.mxu0 0.0
      %3811 = vmatpush1.msra.mxu0 0.0
      %3812 = vmatprep.subr.mxu0 0.0
      %3813 = vmatpush1.msra.mxu0 0.0
      %3814 = vmatprep.subr.mxu0 0.0
      %3815 = vmatpush1.msra.mxu0 0.0
      %3816 = vmatprep.subr.mxu0 0.0
      %3817 = vmatpush1.msra.mxu0 0.0
      %3818 = vmatprep.subr.mxu0 0.0
      %3819 = vmatpush1.msra.mxu0 0.0
      %3820 = vmatprep.subr.mxu0 0.0
      %3821 = vmatpush1.msra.mxu0 0.0
      %3822 = vmatprep.subr.mxu0 0.0
      %3823 = vmatpush1.msra.mxu0 0.0
      %3824 = vmatprep.subr.mxu0 0.0
      %3825 = vmatpush1.msra.mxu0 0.0
      %3826 = vmatprep.subr.mxu0 0.0
      %3827 = vmatpush1.msra.mxu0 0.0
      %3828 = vmatprep.subr.mxu0 0.0
      %3829 = vmatpush1.msra.mxu0 0.0
      %3830 = vmatprep.subr.mxu0 0.0
      %3831 = vmatpush1.msra.mxu0 0.0
      %3832 = vmatprep.subr.mxu0 0.0
      %3833 = vmatpush1.msra.mxu0 0.0
      %3834 = vmatprep.subr.mxu0 0.0
      %3835 = vmatpush1.msra.mxu0 0.0
      %3836 = vmatprep.subr.mxu0 0.0
      %3837 = vmatpush1.msra.mxu0 0.0
      %3838 = vmatprep.subr.mxu0 0.0
      %3839 = vmatpush1.msra.mxu0 0.0
      %3840 = vmatprep.subr.mxu0 0.0
      %3841 = vmatpush1.msra.mxu0 0.0
      %3842 = vmatprep.subr.mxu0 0.0
      %3843 = vmatpush1.msra.mxu0 0.0
      %3844 = vmatprep.subr.mxu0 0.0
      %3845 = vmatpush1.msra.mxu0 0.0
      %3846 = vmatprep.subr.mxu0 0.0
      %3847 = vmatpush1.msra.mxu0 0.0
      %3848 = vmatprep.subr.mxu0 0.0
      %3849 = vmatpush1.msra.mxu0 0.0
      %3850 = vmatprep.subr.mxu0 0.0
      %3851 = vmatpush1.msra.mxu0 0.0
      %3852 = vmatprep.subr.mxu0 0.0
      %3853 = vmatpush1.msra.mxu0 0.0
      %3854 = vmatprep.subr.mxu0 0.0
      %3855 = vmatpush1.msra.mxu0 0.0
      %3856 = vmatprep.subr.mxu0 0.0
      %3857 = vmatpush1.msra.mxu0 0.0
      %3858 = vmatprep.subr.mxu0 0.0
      %3859 = vmatpush1.msra.mxu0 0.0
      %3860 = vmatprep.subr.mxu0 0.0
      %3861 = vmatpush1.msra.mxu0 0.0
      %3862 = vmatprep.subr.mxu0 0.0
      %3863 = vmatpush1.msra.mxu0 0.0
      %3864 = vmatprep.mubr.f32.mxu0 0.0
      %3865 = vmatmul.mubr.f32.gmra.mrb[0].mxu0 %v3789
      %v3866 = vpop.f32.mrb[0].mxu0
      %v3867 = vadd.f32 0.0, %v3866
      %v3868 = vpop.f32.mrb[0].mxu0
      %3869 = vmatprep.mubr.f32.mxu0 0.0
      %3870 = vmatmul.mubr.f32.gmra.mrb[0].mxu0 %v3792
      %v3871 = vpop.f32.mrb[0].mxu0
      %v3872 = vadd.f32 0.0, %v3871
      %v3873 = vpop.f32.mrb[0].mxu0
      %3874 = vmatprep.mubr.f32.mxu0 0.0
      %3875 = vmatmul.mubr.f32.gmra.mrb[0].mxu0 %v3795
      %v3876 = vpop.f32.mrb[0].mxu0
      %v3877 = vadd.f32 0.0, %v3876
      %v3878 = vpop.f32.mrb[0].mxu0
      %3879 = vmatprep.mubr.f32.mxu0 0.0
      %3880 = vmatmul.mubr.f32.gmra.mrb[0].mxu0 %v3798
      %v3881 = vpop.f32.mrb[0].mxu0
      %v3882 = vadd.f32 0.0, %v3881
      %v3883 = vpop.f32.mrb[0].mxu0
      %3884 = vdwg.mxu0
      %v3885 = vadd.f32 %v3512, %v3867
      %v3886 = vadd.f32 %v3513, %v3872
      %v3887 = vadd.f32 %v3514, %v3877
      %v3888 = vadd.f32 %v3515, %v3882
      %v3889 = vadd.f32 %v1803, %v3885
      %v3890 = vadd.f32 %v1804, %v3886
      %v3891 = vadd.f32 %v1805, %v3887
      %v3892 = vadd.f32 %v1806, %v3888
      %v3893 = vld [vmem:[%s59] sm:$0x1]
      %v3895 = vlaneseq
      %v3896 = vshrl.u32 %v3895, 7
      %v3897 = vsub.s32 0, %v3896
      %v3898 = vrot.slane %v3893, %v3897
      %v3900 = vadd.f32 %v3889, %v3898
      %v3901 = vadd.f32 %v3890, %v3898
      %v3902 = vadd.f32 %v3891, %v3898
      %v3903 = vadd.f32 %v3892, %v3898
      %v3904 = vld [vmem:[%s61] sm:$0x1]
      %v3905 = vld [vmem:[%s63] sm:$0x1]
      %v3906 = vsel %vm1740, %v3900, 0.0
      %3907 = vadd.xlane.f32.xlu0 %v3906
      %v3908 = vpop.xlane.xlu0 %3907
      %v3909 = vsel %vm1740, %v3901, 0.0
      %3910 = vadd.xlane.f32.xlu0 %v3909
      %v3911 = vpop.xlane.xlu0 %3910
      %v3912 = vsel %vm1740, %v3902, 0.0
      %3913 = vadd.xlane.f32.xlu0 %v3912
      %v3914 = vpop.xlane.xlu0 %3913
      %v3915 = vsel %vm1740, %v3903, 0.0
      %3916 = vadd.xlane.f32.xlu0 %v3915
      %v3917 = vpop.xlane.xlu0 %3916
      %v3918 = vmul.f32 %v3908, %v1726
      %v3919 = vmul.f32 %v3911, %v1726
      %v3920 = vmul.f32 %v3914, %v1726
      %v3921 = vmul.f32 %v3917, %v1726
      %v3922 = vsub.f32 %v3900, %v3918
      %v3923 = vsub.f32 %v3901, %v3919
      %v3924 = vsub.f32 %v3902, %v3920
      %v3925 = vsub.f32 %v3903, %v3921
      %v3926 = vmul.f32 %v3922, %v3922
      %v3927 = vmul.f32 %v3923, %v3923
      %v3928 = vmul.f32 %v3924, %v3924
      %v3929 = vmul.f32 %v3925, %v3925
      %v3930 = vsel %vm1740, %v3926, 0.0
      %3931 = vadd.xlane.f32.xlu0 %v3930
      %v3932 = vpop.xlane.xlu0 %3931
      %v3933 = vsel %vm1740, %v3927, 0.0
      %3934 = vadd.xlane.f32.xlu0 %v3933
      %v3935 = vpop.xlane.xlu0 %3934
      %v3936 = vsel %vm1740, %v3928, 0.0
      %3937 = vadd.xlane.f32.xlu0 %v3936
      %v3938 = vpop.xlane.xlu0 %3937
      %v3939 = vsel %vm1740, %v3929, 0.0
      %3940 = vadd.xlane.f32.xlu0 %v3939
      %v3941 = vpop.xlane.xlu0 %3940
      %v3942 = vmul.f32 %v3932, %v1726
      %v3943 = vmul.f32 %v3935, %v1726
      %v3944 = vmul.f32 %v3938, %v1726
      %v3945 = vmul.f32 %v3941, %v1726
      %v3946 = vadd.f32 %v3942, 1e-05
      %v3947 = vadd.f32 %v3943, 1e-05
      %v3948 = vadd.f32 %v3944, 1e-05
      %v3949 = vadd.f32 %v3945, 1e-05
      %v3950 = vrsqrt.pop %v3946
      %v3951 = vrsqrt.pop %v3947
      %v3952 = vrsqrt.pop %v3948
      %v3953 = vrsqrt.pop %v3949
      %v3954 = vmul.f32 %v3922, %v3950
      %v3955 = vmul.f32 %v3923, %v3951
      %v3956 = vmul.f32 %v3924, %v3952
      %v3957 = vmul.f32 %v3925, %v3953
      %v3959 = vlaneseq
      %v3960 = vshrl.u32 %v3959, 7
      %v3961 = vsub.s32 0, %v3960
      %v3962 = vrot.slane %v3904, %v3961
      %v3964 = vmul.f32 %v3954, %v3962
      %v3965 = vmul.f32 %v3955, %v3962
      %v3966 = vmul.f32 %v3956, %v3962
      %v3967 = vmul.f32 %v3957, %v3962
      %v3969 = vlaneseq
      %v3970 = vshrl.u32 %v3969, 7
      %v3971 = vsub.s32 0, %v3970
      %v3972 = vrot.slane %v3905, %v3971
      %v3974 = vadd.f32 %v3964, %v3972
      %v3975 = vadd.f32 %v3965, %v3972
      %v3976 = vadd.f32 %v3966, %v3972
      %v3977 = vadd.f32 %v3967, %v3972
      %v3978 = vld [vmem:[%s65] sm:$0xff]
      %v3979 = vld [vmem:[%s65 + $0x8] sm:$0xff]
      %v3980 = vld [vmem:[%s65 + $0x10] sm:$0xff]
      %v3981 = vld [vmem:[%s65 + $0x18] sm:$0xff]
      %v3982 = vld [vmem:[%s67] sm:$0x1]
      %v3984 = vlaneseq
      %v3985 = vshrl.u32 %v3984, 7
      %v3986 = vsub.s32 0, %v3985
      %v3987 = vrot.slane %v3982, %v3986
      %v3990 = vsel %vm1740, %v3974, 0
      %v3993 = vsel %vm1740, %v3975, 0
      %v3996 = vsel %vm1740, %v3976, 0
      %v3999 = vsel %vm1740, %v3977, 0
      %4001 = vmatprep.subr.mxu0 0.0
      %4002 = vmatpush1.msra.mxu0 %v3978
      %4003 = vmatprep.subr.mxu0 0.0
      %4004 = vmatpush1.msra.mxu0 %v3979
      %4005 = vmatprep.subr.mxu0 0.0
      %4006 = vmatpush1.msra.mxu0 %v3980
      %4007 = vmatprep.subr.mxu0 0.0
      %4008 = vmatpush1.msra.mxu0 %v3981
      %4009 = vmatprep.subr.mxu0 0.0
      %4010 = vmatpush1.msra.mxu0 0.0
      %4011 = vmatprep.subr.mxu0 0.0
      %4012 = vmatpush1.msra.mxu0 0.0
      %4013 = vmatprep.subr.mxu0 0.0
      %4014 = vmatpush1.msra.mxu0 0.0
      %4015 = vmatprep.subr.mxu0 0.0
      %4016 = vmatpush1.msra.mxu0 0.0
      %4017 = vmatprep.subr.mxu0 0.0
      %4018 = vmatpush1.msra.mxu0 0.0
      %4019 = vmatprep.subr.mxu0 0.0
      %4020 = vmatpush1.msra.mxu0 0.0
      %4021 = vmatprep.subr.mxu0 0.0
      %4022 = vmatpush1.msra.mxu0 0.0
      %4023 = vmatprep.subr.mxu0 0.0
      %4024 = vmatpush1.msra.mxu0 0.0
      %4025 = vmatprep.subr.mxu0 0.0
      %4026 = vmatpush1.msra.mxu0 0.0
      %4027 = vmatprep.subr.mxu0 0.0
      %4028 = vmatpush1.msra.mxu0 0.0
      %4029 = vmatprep.subr.mxu0 0.0
      %4030 = vmatpush1.msra.mxu0 0.0
      %4031 = vmatprep.subr.mxu0 0.0
      %4032 = vmatpush1.msra.mxu0 0.0
      %4033 = vmatprep.subr.mxu0 0.0
      %4034 = vmatpush1.msra.mxu0 0.0
      %4035 = vmatprep.subr.mxu0 0.0
      %4036 = vmatpush1.msra.mxu0 0.0
      %4037 = vmatprep.subr.mxu0 0.0
      %4038 = vmatpush1.msra.mxu0 0.0
      %4039 = vmatprep.subr.mxu0 0.0
      %4040 = vmatpush1.msra.mxu0 0.0
      %4041 = vmatprep.subr.mxu0 0.0
      %4042 = vmatpush1.msra.mxu0 0.0
      %4043 = vmatprep.subr.mxu0 0.0
      %4044 = vmatpush1.msra.mxu0 0.0
      %4045 = vmatprep.subr.mxu0 0.0
      %4046 = vmatpush1.msra.mxu0 0.0
      %4047 = vmatprep.subr.mxu0 0.0
      %4048 = vmatpush1.msra.mxu0 0.0
      %4049 = vmatprep.subr.mxu0 0.0
      %4050 = vmatpush1.msra.mxu0 0.0
      %4051 = vmatprep.subr.mxu0 0.0
      %4052 = vmatpush1.msra.mxu0 0.0
      %4053 = vmatprep.subr.mxu0 0.0
      %4054 = vmatpush1.msra.mxu0 0.0
      %4055 = vmatprep.subr.mxu0 0.0
      %4056 = vmatpush1.msra.mxu0 0.0
      %4057 = vmatprep.subr.mxu0 0.0
      %4058 = vmatpush1.msra.mxu0 0.0
      %4059 = vmatprep.subr.mxu0 0.0
      %4060 = vmatpush1.msra.mxu0 0.0
      %4061 = vmatprep.subr.mxu0 0.0
      %4062 = vmatpush1.msra.mxu0 0.0
      %4063 = vmatprep.subr.mxu0 0.0
      %4064 = vmatpush1.msra.mxu0 0.0
      %4065 = vmatprep.mubr.f32.mxu0 0.0
      %4066 = vmatmul.mubr.f32.gmra.mrb[0].mxu0 %v3990
      %v4067 = vpop.f32.mrb[0].mxu0
      %v4068 = vadd.f32 %v3987, %v4067
      %v4069 = vpop.f32.mrb[0].mxu0
      %4070 = vmatprep.mubr.f32.mxu0 0.0
      %4071 = vmatmul.mubr.f32.gmra.mrb[0].mxu0 %v3993
      %v4072 = vpop.f32.mrb[0].mxu0
      %v4073 = vadd.f32 %v3987, %v4072
      %v4074 = vpop.f32.mrb[0].mxu0
      %4075 = vmatprep.mubr.f32.mxu0 0.0
      %4076 = vmatmul.mubr.f32.gmra.mrb[0].mxu0 %v3996
      %v4077 = vpop.f32.mrb[0].mxu0
      %v4078 = vadd.f32 %v3987, %v4077
      %v4079 = vpop.f32.mrb[0].mxu0
      %4080 = vmatprep.mubr.f32.mxu0 0.0
      %4081 = vmatmul.mubr.f32.gmra.mrb[0].mxu0 %v3999
      %v4082 = vpop.f32.mrb[0].mxu0
      %v4083 = vadd.f32 %v3987, %v4082
      %v4084 = vpop.f32.mrb[0].mxu0
      %4085 = vdwg.mxu0
      %v4086 = vld [vmem:[%s1413] sm:$0xff]
      %v4087 = vld [vmem:[%s1413 + $0x8] sm:$0xff]
      %v4088 = vld [vmem:[%s1413 + $0x10] sm:$0xff]
      %v4089 = vld [vmem:[%s1413 + $0x18] sm:$0xff]
      %4090 = vmatprep.subr.mxu0 0.0
      %4091 = vmatpush1.msra.mxu0 %v4086
      %4092 = vmatprep.subr.mxu0 0.0
      %4093 = vmatpush1.msra.mxu0 %v4087
      %4094 = vmatprep.subr.mxu0 0.0
      %4095 = vmatpush1.msra.mxu0 %v4088
      %4096 = vmatprep.subr.mxu0 0.0
      %4097 = vmatpush1.msra.mxu0 %v4089
      %4098 = vmatprep.subr.mxu0 0.0
      %4099 = vmatpush1.msra.mxu0 0.0
      %4100 = vmatprep.subr.mxu0 0.0
      %4101 = vmatpush1.msra.mxu0 0.0
      %4102 = vmatprep.subr.mxu0 0.0
      %4103 = vmatpush1.msra.mxu0 0.0
      %4104 = vmatprep.subr.mxu0 0.0
      %4105 = vmatpush1.msra.mxu0 0.0
      %4106 = vmatprep.subr.mxu0 0.0
      %4107 = vmatpush1.msra.mxu0 0.0
      %4108 = vmatprep.subr.mxu0 0.0
      %4109 = vmatpush1.msra.mxu0 0.0
      %4110 = vmatprep.subr.mxu0 0.0
      %4111 = vmatpush1.msra.mxu0 0.0
      %4112 = vmatprep.subr.mxu0 0.0
      %4113 = vmatpush1.msra.mxu0 0.0
      %4114 = vmatprep.subr.mxu0 0.0
      %4115 = vmatpush1.msra.mxu0 0.0
      %4116 = vmatprep.subr.mxu0 0.0
      %4117 = vmatpush1.msra.mxu0 0.0
      %4118 = vmatprep.subr.mxu0 0.0
      %4119 = vmatpush1.msra.mxu0 0.0
      %4120 = vmatprep.subr.mxu0 0.0
      %4121 = vmatpush1.msra.mxu0 0.0
      %4122 = vmatprep.subr.mxu0 0.0
      %4123 = vmatpush1.msra.mxu0 0.0
      %4124 = vmatprep.subr.mxu0 0.0
      %4125 = vmatpush1.msra.mxu0 0.0
      %4126 = vmatprep.subr.mxu0 0.0
      %4127 = vmatpush1.msra.mxu0 0.0
      %4128 = vmatprep.subr.mxu0 0.0
      %4129 = vmatpush1.msra.mxu0 0.0
      %4130 = vmatprep.subr.mxu0 0.0
      %4131 = vmatpush1.msra.mxu0 0.0
      %4132 = vmatprep.subr.mxu0 0.0
      %4133 = vmatpush1.msra.mxu0 0.0
      %4134 = vmatprep.subr.mxu0 0.0
      %4135 = vmatpush1.msra.mxu0 0.0
      %4136 = vmatprep.subr.mxu0 0.0
      %4137 = vmatpush1.msra.mxu0 0.0
      %4138 = vmatprep.subr.mxu0 0.0
      %4139 = vmatpush1.msra.mxu0 0.0
      %4140 = vmatprep.subr.mxu0 0.0
      %4141 = vmatpush1.msra.mxu0 0.0
      %4142 = vmatprep.subr.mxu0 0.0
      %4143 = vmatpush1.msra.mxu0 0.0
      %4144 = vmatprep.subr.mxu0 0.0
      %4145 = vmatpush1.msra.mxu0 0.0
      %4146 = vmatprep.subr.mxu0 0.0
      %4147 = vmatpush1.msra.mxu0 0.0
      %4148 = vmatprep.subr.mxu0 0.0
      %4149 = vmatpush1.msra.mxu0 0.0
      %4150 = vmatprep.subr.mxu0 0.0
      %4151 = vmatpush1.msra.mxu0 0.0
      %4152 = vmatprep.subr.mxu0 0.0
      %4153 = vmatpush1.msra.mxu0 0.0
      %4154 = vmatprep.mubr.f32.mxu0 0.0
      %4155 = vmatmul.mubr.f32.gmra.mrb[0].mxu0 %v3990
      %v4156 = vpop.f32.mrb[0].mxu0
      %v4157 = vadd.f32 0.0, %v4156
      %v4158 = vpop.f32.mrb[0].mxu0
      %4159 = vmatprep.mubr.f32.mxu0 0.0
      %4160 = vmatmul.mubr.f32.gmra.mrb[0].mxu0 %v3993
      %v4161 = vpop.f32.mrb[0].mxu0
      %v4162 = vadd.f32 0.0, %v4161
      %v4163 = vpop.f32.mrb[0].mxu0
      %4164 = vmatprep.mubr.f32.mxu0 0.0
      %4165 = vmatmul.mubr.f32.gmra.mrb[0].mxu0 %v3996
      %v4166 = vpop.f32.mrb[0].mxu0
      %v4167 = vadd.f32 0.0, %v4166
      %v4168 = vpop.f32.mrb[0].mxu0
      %4169 = vmatprep.mubr.f32.mxu0 0.0
      %4170 = vmatmul.mubr.f32.gmra.mrb[0].mxu0 %v3999
      %v4171 = vpop.f32.mrb[0].mxu0
      %v4172 = vadd.f32 0.0, %v4171
      %v4173 = vpop.f32.mrb[0].mxu0
      %4174 = vdwg.mxu0
      %v4175 = vld [vmem:[%s1420] sm:$0xf]
      %v4177 = vsel %vm1643, %v4157, 0
      %v4180 = vsel %vm1643, %v4162, 0
      %v4183 = vsel %vm1643, %v4167, 0
      %v4186 = vsel %vm1643, %v4172, 0
      %v4189 = vsel %vm1647, %v4175, 0
      %4191 = vmatprep.subr.mxu0 0.0
      %4192 = vmatpush1.msra.mxu0 %v4189
      %4193 = vmatprep.subr.mxu0 0.0
      %4194 = vmatpush1.msra.mxu0 0.0
      %4195 = vmatprep.subr.mxu0 0.0
      %4196 = vmatpush1.msra.mxu0 0.0
      %4197 = vmatprep.subr.mxu0 0.0
      %4198 = vmatpush1.msra.mxu0 0.0
      %4199 = vmatprep.subr.mxu0 0.0
      %4200 = vmatpush1.msra.mxu0 0.0
      %4201 = vmatprep.subr.mxu0 0.0
      %4202 = vmatpush1.msra.mxu0 0.0
      %4203 = vmatprep.subr.mxu0 0.0
      %4204 = vmatpush1.msra.mxu0 0.0
      %4205 = vmatprep.subr.mxu0 0.0
      %4206 = vmatpush1.msra.mxu0 0.0
      %4207 = vmatprep.subr.mxu0 0.0
      %4208 = vmatpush1.msra.mxu0 0.0
      %4209 = vmatprep.subr.mxu0 0.0
      %4210 = vmatpush1.msra.mxu0 0.0
      %4211 = vmatprep.subr.mxu0 0.0
      %4212 = vmatpush1.msra.mxu0 0.0
      %4213 = vmatprep.subr.mxu0 0.0
      %4214 = vmatpush1.msra.mxu0 0.0
      %4215 = vmatprep.subr.mxu0 0.0
      %4216 = vmatpush1.msra.mxu0 0.0
      %4217 = vmatprep.subr.mxu0 0.0
      %4218 = vmatpush1.msra.mxu0 0.0
      %4219 = vmatprep.subr.mxu0 0.0
      %4220 = vmatpush1.msra.mxu0 0.0
      %4221 = vmatprep.subr.mxu0 0.0
      %4222 = vmatpush1.msra.mxu0 0.0
      %4223 = vmatprep.subr.mxu0 0.0
      %4224 = vmatpush1.msra.mxu0 0.0
      %4225 = vmatprep.subr.mxu0 0.0
      %4226 = vmatpush1.msra.mxu0 0.0
      %4227 = vmatprep.subr.mxu0 0.0
      %4228 = vmatpush1.msra.mxu0 0.0
      %4229 = vmatprep.subr.mxu0 0.0
      %4230 = vmatpush1.msra.mxu0 0.0
      %4231 = vmatprep.subr.mxu0 0.0
      %4232 = vmatpush1.msra.mxu0 0.0
      %4233 = vmatprep.subr.mxu0 0.0
      %4234 = vmatpush1.msra.mxu0 0.0
      %4235 = vmatprep.subr.mxu0 0.0
      %4236 = vmatpush1.msra.mxu0 0.0
      %4237 = vmatprep.subr.mxu0 0.0
      %4238 = vmatpush1.msra.mxu0 0.0
      %4239 = vmatprep.subr.mxu0 0.0
      %4240 = vmatpush1.msra.mxu0 0.0
      %4241 = vmatprep.subr.mxu0 0.0
      %4242 = vmatpush1.msra.mxu0 0.0
      %4243 = vmatprep.subr.mxu0 0.0
      %4244 = vmatpush1.msra.mxu0 0.0
      %4245 = vmatprep.subr.mxu0 0.0
      %4246 = vmatpush1.msra.mxu0 0.0
      %4247 = vmatprep.subr.mxu0 0.0
      %4248 = vmatpush1.msra.mxu0 0.0
      %4249 = vmatprep.subr.mxu0 0.0
      %4250 = vmatpush1.msra.mxu0 0.0
      %4251 = vmatprep.subr.mxu0 0.0
      %4252 = vmatpush1.msra.mxu0 0.0
      %4253 = vmatprep.subr.mxu0 0.0
      %4254 = vmatpush1.msra.mxu0 0.0
      %4255 = vmatprep.mubr.f32.mxu0 0.0
      %4256 = vmatmul.mubr.f32.gmra.mrb[0].mxu0 %v4177
      %v4257 = vpop.f32.mrb[0].mxu0
      %v4258 = vadd.f32 0.0, %v4257
      %v4259 = vpop.f32.mrb[0].mxu0
      %4260 = vmatprep.mubr.f32.mxu0 0.0
      %4261 = vmatmul.mubr.f32.gmra.mrb[0].mxu0 %v4180
      %v4262 = vpop.f32.mrb[0].mxu0
      %v4263 = vadd.f32 0.0, %v4262
      %v4264 = vpop.f32.mrb[0].mxu0
      %4265 = vmatprep.mubr.f32.mxu0 0.0
      %4266 = vmatmul.mubr.f32.gmra.mrb[0].mxu0 %v4183
      %v4267 = vpop.f32.mrb[0].mxu0
      %v4268 = vadd.f32 0.0, %v4267
      %v4269 = vpop.f32.mrb[0].mxu0
      %4270 = vmatprep.mubr.f32.mxu0 0.0
      %4271 = vmatmul.mubr.f32.gmra.mrb[0].mxu0 %v4186
      %v4272 = vpop.f32.mrb[0].mxu0
      %v4273 = vadd.f32 0.0, %v4272
      %v4274 = vpop.f32.mrb[0].mxu0
      %4275 = vdwg.mxu0
      %v4276 = vadd.f32 %v4068, %v4258
      %v4277 = vadd.f32 %v4073, %v4263
      %v4278 = vadd.f32 %v4078, %v4268
      %v4279 = vadd.f32 %v4083, %v4273
      %v4280 = vmul.f32 %v4276, 0.70710677
      %v4281 = vmul.f32 %v4277, 0.70710677
      %v4282 = vmul.f32 %v4278, 0.70710677
      %v4283 = vmul.f32 %v4279, 0.70710677
      %v4284 = vand.u32 2147483647, %v4280
      %v4285 = vand.u32 2147483647, %v4281
      %v4286 = vand.u32 2147483647, %v4282
      %v4287 = vand.u32 2147483647, %v4283
      %v4288 = vmul.f32 %v4284, 0.3275911
      %v4289 = vmul.f32 %v4285, 0.3275911
      %v4290 = vmul.f32 %v4286, 0.3275911
      %v4291 = vmul.f32 %v4287, 0.3275911
      %v4292 = vadd.f32 %v4288, 1.0
      %v4293 = vadd.f32 %v4289, 1.0
      %v4294 = vadd.f32 %v4290, 1.0
      %v4295 = vadd.f32 %v4291, 1.0
      %v4296 = vrcp.pop %v4292
      %v4297 = vmul.f32 1.0, %v4296
      %v4298 = vrcp.pop %v4293
      %v4299 = vmul.f32 1.0, %v4298
      %v4300 = vrcp.pop %v4294
      %v4301 = vmul.f32 1.0, %v4300
      %v4302 = vrcp.pop %v4295
      %v4303 = vmul.f32 1.0, %v4302
      %v4304 = vmul.f32 %v4297, 1.0614054
      %v4305 = vmul.f32 %v4299, 1.0614054
      %v4306 = vmul.f32 %v4301, 1.0614054
      %v4307 = vmul.f32 %v4303, 1.0614054
      %v4308 = vsub.f32 %v4304, 1.4531521
      %v4309 = vsub.f32 %v4305, 1.4531521
      %v4310 = vsub.f32 %v4306, 1.4531521
      %v4311 = vsub.f32 %v4307, 1.4531521
      %v4312 = vmul.f32 %v4308, %v4297
      %v4313 = vmul.f32 %v4309, %v4299
      %v4314 = vmul.f32 %v4310, %v4301
      %v4315 = vmul.f32 %v4311, %v4303
      %v4316 = vadd.f32 %v4312, 1.4214138
      %v4317 = vadd.f32 %v4313, 1.4214138
      %v4318 = vadd.f32 %v4314, 1.4214138
      %v4319 = vadd.f32 %v4315, 1.4214138
      %v4320 = vmul.f32 %v4316, %v4297
      %v4321 = vmul.f32 %v4317, %v4299
      %v4322 = vmul.f32 %v4318, %v4301
      %v4323 = vmul.f32 %v4319, %v4303
      %v4324 = vsub.f32 %v4320, 0.28449672
      %v4325 = vsub.f32 %v4321, 0.28449672
      %v4326 = vsub.f32 %v4322, 0.28449672
      %v4327 = vsub.f32 %v4323, 0.28449672
      %v4328 = vmul.f32 %v4324, %v4297
      %v4329 = vmul.f32 %v4325, %v4299
      %v4330 = vmul.f32 %v4326, %v4301
      %v4331 = vmul.f32 %v4327, %v4303
      %v4332 = vadd.f32 %v4328, 0.2548296
      %v4333 = vadd.f32 %v4329, 0.2548296
      %v4334 = vadd.f32 %v4330, 0.2548296
      %v4335 = vadd.f32 %v4331, 0.2548296
      %v4336 = vmul.f32 %v4332, %v4297
      %v4337 = vmul.f32 %v4333, %v4299
      %v4338 = vmul.f32 %v4334, %v4301
      %v4339 = vmul.f32 %v4335, %v4303
      %v4340 = vsub.f32 0.0, %v4284
      %v4341 = vsub.f32 0.0, %v4285
      %v4342 = vsub.f32 0.0, %v4286
      %v4343 = vsub.f32 0.0, %v4287
      %v4344 = vmul.f32 %v4340, %v4284
      %v4345 = vmul.f32 %v4341, %v4285
      %v4346 = vmul.f32 %v4342, %v4286
      %v4347 = vmul.f32 %v4343, %v4287
      %v4348 = vmul.f32 %v4344, 1.442695
      %v4349 = vpow.pop %v4348
      %v4350 = vmul.f32 %v4345, 1.442695
      %v4351 = vpow.pop %v4350
      %v4352 = vmul.f32 %v4346, 1.442695
      %v4353 = vpow.pop %v4352
      %v4354 = vmul.f32 %v4347, 1.442695
      %v4355 = vpow.pop %v4354
      %v4356 = vmul.f32 %v4336, %v4349
      %v4357 = vmul.f32 %v4337, %v4351
      %v4358 = vmul.f32 %v4338, %v4353
      %v4359 = vmul.f32 %v4339, %v4355
      %v4360 = vsub.f32 1.0, %v4356
      %v4361 = vsub.f32 1.0, %v4357
      %v4362 = vsub.f32 1.0, %v4358
      %v4363 = vsub.f32 1.0, %v4359
      %vm4364 = vcmp.ge.f32.partialorder %v4280, 0.0
      %vm4365 = vcmp.ge.f32.partialorder %v4281, 0.0
      %vm4366 = vcmp.ge.f32.partialorder %v4282, 0.0
      %vm4367 = vcmp.ge.f32.partialorder %v4283, 0.0
      %v4368 = vsub.f32 0.0, %v4360
      %v4369 = vsub.f32 0.0, %v4361
      %v4370 = vsub.f32 0.0, %v4362
      %v4371 = vsub.f32 0.0, %v4363
      %v4372 = vsel %vm4364, %v4360, %v4368
      %v4373 = vsel %vm4365, %v4361, %v4369
      %v4374 = vsel %vm4366, %v4362, %v4370
      %v4375 = vsel %vm4367, %v4363, %v4371
      %v4376 = vmul.f32 %v4276, 0.5
      %v4377 = vmul.f32 %v4277, 0.5
      %v4378 = vmul.f32 %v4278, 0.5
      %v4379 = vmul.f32 %v4279, 0.5
      %v4380 = vadd.f32 %v4372, 1.0
      %v4381 = vadd.f32 %v4373, 1.0
      %v4382 = vadd.f32 %v4374, 1.0
      %v4383 = vadd.f32 %v4375, 1.0
      %v4384 = vmul.f32 %v4376, %v4380
      %v4385 = vmul.f32 %v4377, %v4381
      %v4386 = vmul.f32 %v4378, %v4382
      %v4387 = vmul.f32 %v4379, %v4383
      %v4388 = vld [vmem:[%s69] sm:$0xff]
      %v4389 = vld [vmem:[%s69 + $0x8] sm:$0xff]
      %v4390 = vld [vmem:[%s69 + $0x10] sm:$0xff]
      %v4391 = vld [vmem:[%s69 + $0x18] sm:$0xff]
      %v4392 = vld [vmem:[%s69 + $0x20] sm:$0xff]
      %v4393 = vld [vmem:[%s69 + $0x28] sm:$0xff]
      %v4394 = vld [vmem:[%s69 + $0x30] sm:$0xff]
      %v4395 = vld [vmem:[%s69 + $0x38] sm:$0xff]
      %v4396 = vld [vmem:[%s69 + $0x40] sm:$0xff]
      %v4397 = vld [vmem:[%s69 + $0x48] sm:$0xff]
      %v4398 = vld [vmem:[%s69 + $0x50] sm:$0xff]
      %v4399 = vld [vmem:[%s69 + $0x58] sm:$0xff]
      %v4400 = vld [vmem:[%s69 + $0x60] sm:$0xff]
      %v4401 = vld [vmem:[%s69 + $0x68] sm:$0xff]
      %v4402 = vld [vmem:[%s69 + $0x70] sm:$0xff]
      %v4403 = vld [vmem:[%s69 + $0x78] sm:$0xff]
      %v4404 = vld [vmem:[%s71] sm:$0x1]
      %v4406 = vlaneseq
      %v4407 = vshrl.u32 %v4406, 7
      %v4408 = vsub.s32 0, %v4407
      %v4409 = vrot.slane %v4404, %v4408
      %4411 = vmatprep.subr.mxu0 0.0
      %4412 = vmatpush1.msra.mxu0 %v4388
      %4413 = vmatprep.subr.mxu0 0.0
      %4414 = vmatpush1.msra.mxu0 %v4389
      %4415 = vmatprep.subr.mxu0 0.0
      %4416 = vmatpush1.msra.mxu0 %v4390
      %4417 = vmatprep.subr.mxu0 0.0
      %4418 = vmatpush1.msra.mxu0 %v4391
      %4419 = vmatprep.subr.mxu0 0.0
      %4420 = vmatpush1.msra.mxu0 %v4392
      %4421 = vmatprep.subr.mxu0 0.0
      %4422 = vmatpush1.msra.mxu0 %v4393
      %4423 = vmatprep.subr.mxu0 0.0
      %4424 = vmatpush1.msra.mxu0 %v4394
      %4425 = vmatprep.subr.mxu0 0.0
      %4426 = vmatpush1.msra.mxu0 %v4395
      %4427 = vmatprep.subr.mxu0 0.0
      %4428 = vmatpush1.msra.mxu0 %v4396
      %4429 = vmatprep.subr.mxu0 0.0
      %4430 = vmatpush1.msra.mxu0 %v4397
      %4431 = vmatprep.subr.mxu0 0.0
      %4432 = vmatpush1.msra.mxu0 %v4398
      %4433 = vmatprep.subr.mxu0 0.0
      %4434 = vmatpush1.msra.mxu0 %v4399
      %4435 = vmatprep.subr.mxu0 0.0
      %4436 = vmatpush1.msra.mxu0 %v4400
      %4437 = vmatprep.subr.mxu0 0.0
      %4438 = vmatpush1.msra.mxu0 %v4401
      %4439 = vmatprep.subr.mxu0 0.0
      %4440 = vmatpush1.msra.mxu0 %v4402
      %4441 = vmatprep.subr.mxu0 0.0
      %4442 = vmatpush1.msra.mxu0 %v4403
      %4443 = vmatprep.subr.mxu0 0.0
      %4444 = vmatpush1.msra.mxu0 0.0
      %4445 = vmatprep.subr.mxu0 0.0
      %4446 = vmatpush1.msra.mxu0 0.0
      %4447 = vmatprep.subr.mxu0 0.0
      %4448 = vmatpush1.msra.mxu0 0.0
      %4449 = vmatprep.subr.mxu0 0.0
      %4450 = vmatpush1.msra.mxu0 0.0
      %4451 = vmatprep.subr.mxu0 0.0
      %4452 = vmatpush1.msra.mxu0 0.0
      %4453 = vmatprep.subr.mxu0 0.0
      %4454 = vmatpush1.msra.mxu0 0.0
      %4455 = vmatprep.subr.mxu0 0.0
      %4456 = vmatpush1.msra.mxu0 0.0
      %4457 = vmatprep.subr.mxu0 0.0
      %4458 = vmatpush1.msra.mxu0 0.0
      %4459 = vmatprep.subr.mxu0 0.0
      %4460 = vmatpush1.msra.mxu0 0.0
      %4461 = vmatprep.subr.mxu0 0.0
      %4462 = vmatpush1.msra.mxu0 0.0
      %4463 = vmatprep.subr.mxu0 0.0
      %4464 = vmatpush1.msra.mxu0 0.0
      %4465 = vmatprep.subr.mxu0 0.0
      %4466 = vmatpush1.msra.mxu0 0.0
      %4467 = vmatprep.subr.mxu0 0.0
      %4468 = vmatpush1.msra.mxu0 0.0
      %4469 = vmatprep.subr.mxu0 0.0
      %4470 = vmatpush1.msra.mxu0 0.0
      %4471 = vmatprep.subr.mxu0 0.0
      %4472 = vmatpush1.msra.mxu0 0.0
      %4473 = vmatprep.subr.mxu0 0.0
      %4474 = vmatpush1.msra.mxu0 0.0
      %4475 = vmatprep.mubr.f32.mxu0 0.0
      %4476 = vmatmul.mubr.f32.gmra.mrb[0].mxu0 %v4384
      %v4477 = vpop.f32.mrb[0].mxu0
      %v4478 = vadd.f32 %v4409, %v4477
      %v4479 = vpop.f32.mrb[0].mxu0
      %4480 = vmatprep.mubr.f32.mxu0 0.0
      %4481 = vmatmul.mubr.f32.gmra.mrb[0].mxu0 %v4385
      %v4482 = vpop.f32.mrb[0].mxu0
      %v4483 = vadd.f32 %v4409, %v4482
      %v4484 = vpop.f32.mrb[0].mxu0
      %4485 = vmatprep.mubr.f32.mxu0 0.0
      %4486 = vmatmul.mubr.f32.gmra.mrb[0].mxu0 %v4386
      %v4487 = vpop.f32.mrb[0].mxu0
      %v4488 = vadd.f32 %v4409, %v4487
      %v4489 = vpop.f32.mrb[0].mxu0
      %4490 = vmatprep.mubr.f32.mxu0 0.0
      %4491 = vmatmul.mubr.f32.gmra.mrb[0].mxu0 %v4387
      %v4492 = vpop.f32.mrb[0].mxu0
      %v4493 = vadd.f32 %v4409, %v4492
      %v4494 = vpop.f32.mrb[0].mxu0
      %4495 = vdwg.mxu0
      %v4496 = vld [vmem:[%s1427] sm:$0xff]
      %v4497 = vld [vmem:[%s1427 + $0x8] sm:$0xff]
      %v4498 = vld [vmem:[%s1427 + $0x10] sm:$0xff]
      %v4499 = vld [vmem:[%s1427 + $0x18] sm:$0xff]
      %v4500 = vld [vmem:[%s1427 + $0x20] sm:$0xff]
      %v4501 = vld [vmem:[%s1427 + $0x28] sm:$0xff]
      %v4502 = vld [vmem:[%s1427 + $0x30] sm:$0xff]
      %v4503 = vld [vmem:[%s1427 + $0x38] sm:$0xff]
      %v4504 = vld [vmem:[%s1427 + $0x40] sm:$0xff]
      %v4505 = vld [vmem:[%s1427 + $0x48] sm:$0xff]
      %v4506 = vld [vmem:[%s1427 + $0x50] sm:$0xff]
      %v4507 = vld [vmem:[%s1427 + $0x58] sm:$0xff]
      %v4508 = vld [vmem:[%s1427 + $0x60] sm:$0xff]
      %v4509 = vld [vmem:[%s1427 + $0x68] sm:$0xff]
      %v4510 = vld [vmem:[%s1427 + $0x70] sm:$0xff]
      %v4511 = vld [vmem:[%s1427 + $0x78] sm:$0xff]
      %4512 = vmatprep.subr.mxu0 0.0
      %4513 = vmatpush1.msra.mxu0 %v4496
      %4514 = vmatprep.subr.mxu0 0.0
      %4515 = vmatpush1.msra.mxu0 %v4497
      %4516 = vmatprep.subr.mxu0 0.0
      %4517 = vmatpush1.msra.mxu0 %v4498
      %4518 = vmatprep.subr.mxu0 0.0
      %4519 = vmatpush1.msra.mxu0 %v4499
      %4520 = vmatprep.subr.mxu0 0.0
      %4521 = vmatpush1.msra.mxu0 %v4500
      %4522 = vmatprep.subr.mxu0 0.0
      %4523 = vmatpush1.msra.mxu0 %v4501
      %4524 = vmatprep.subr.mxu0 0.0
      %4525 = vmatpush1.msra.mxu0 %v4502
      %4526 = vmatprep.subr.mxu0 0.0
      %4527 = vmatpush1.msra.mxu0 %v4503
      %4528 = vmatprep.subr.mxu0 0.0
      %4529 = vmatpush1.msra.mxu0 %v4504
      %4530 = vmatprep.subr.mxu0 0.0
      %4531 = vmatpush1.msra.mxu0 %v4505
      %4532 = vmatprep.subr.mxu0 0.0
      %4533 = vmatpush1.msra.mxu0 %v4506
      %4534 = vmatprep.subr.mxu0 0.0
      %4535 = vmatpush1.msra.mxu0 %v4507
      %4536 = vmatprep.subr.mxu0 0.0
      %4537 = vmatpush1.msra.mxu0 %v4508
      %4538 = vmatprep.subr.mxu0 0.0
      %4539 = vmatpush1.msra.mxu0 %v4509
      %4540 = vmatprep.subr.mxu0 0.0
      %4541 = vmatpush1.msra.mxu0 %v4510
      %4542 = vmatprep.subr.mxu0 0.0
      %4543 = vmatpush1.msra.mxu0 %v4511
      %4544 = vmatprep.subr.mxu0 0.0
      %4545 = vmatpush1.msra.mxu0 0.0
      %4546 = vmatprep.subr.mxu0 0.0
      %4547 = vmatpush1.msra.mxu0 0.0
      %4548 = vmatprep.subr.mxu0 0.0
      %4549 = vmatpush1.msra.mxu0 0.0
      %4550 = vmatprep.subr.mxu0 0.0
      %4551 = vmatpush1.msra.mxu0 0.0
      %4552 = vmatprep.subr.mxu0 0.0
      %4553 = vmatpush1.msra.mxu0 0.0
      %4554 = vmatprep.subr.mxu0 0.0
      %4555 = vmatpush1.msra.mxu0 0.0
      %4556 = vmatprep.subr.mxu0 0.0
      %4557 = vmatpush1.msra.mxu0 0.0
      %4558 = vmatprep.subr.mxu0 0.0
      %4559 = vmatpush1.msra.mxu0 0.0
      %4560 = vmatprep.subr.mxu0 0.0
      %4561 = vmatpush1.msra.mxu0 0.0
      %4562 = vmatprep.subr.mxu0 0.0
      %4563 = vmatpush1.msra.mxu0 0.0
      %4564 = vmatprep.subr.mxu0 0.0
      %4565 = vmatpush1.msra.mxu0 0.0
      %4566 = vmatprep.subr.mxu0 0.0
      %4567 = vmatpush1.msra.mxu0 0.0
      %4568 = vmatprep.subr.mxu0 0.0
      %4569 = vmatpush1.msra.mxu0 0.0
      %4570 = vmatprep.subr.mxu0 0.0
      %4571 = vmatpush1.msra.mxu0 0.0
      %4572 = vmatprep.subr.mxu0 0.0
      %4573 = vmatpush1.msra.mxu0 0.0
      %4574 = vmatprep.subr.mxu0 0.0
      %4575 = vmatpush1.msra.mxu0 0.0
      %4576 = vmatprep.mubr.f32.mxu0 0.0
      %4577 = vmatmul.mubr.f32.gmra.mrb[0].mxu0 %v4384
      %v4578 = vpop.f32.mrb[0].mxu0
      %v4579 = vadd.f32 0.0, %v4578
      %v4580 = vpop.f32.mrb[0].mxu0
      %4581 = vmatprep.mubr.f32.mxu0 0.0
      %4582 = vmatmul.mubr.f32.gmra.mrb[0].mxu0 %v4385
      %v4583 = vpop.f32.mrb[0].mxu0
      %v4584 = vadd.f32 0.0, %v4583
      %v4585 = vpop.f32.mrb[0].mxu0
      %4586 = vmatprep.mubr.f32.mxu0 0.0
      %4587 = vmatmul.mubr.f32.gmra.mrb[0].mxu0 %v4386
      %v4588 = vpop.f32.mrb[0].mxu0
      %v4589 = vadd.f32 0.0, %v4588
      %v4590 = vpop.f32.mrb[0].mxu0
      %4591 = vmatprep.mubr.f32.mxu0 0.0
      %4592 = vmatmul.mubr.f32.gmra.mrb[0].mxu0 %v4387
      %v4593 = vpop.f32.mrb[0].mxu0
      %v4594 = vadd.f32 0.0, %v4593
      %v4595 = vpop.f32.mrb[0].mxu0
      %4596 = vdwg.mxu0
      %v4597 = vld [vmem:[%s1434] sm:$0xf]
      %v4599 = vsel %vm1643, %v4579, 0
      %v4602 = vsel %vm1643, %v4584, 0
      %v4605 = vsel %vm1643, %v4589, 0
      %v4608 = vsel %vm1643, %v4594, 0
      %v4611 = vsel %vm1647, %v4597, 0
      %4613 = vmatprep.subr.mxu0 0.0
      %4614 = vmatpush1.msra.mxu0 %v4611
      %4615 = vmatprep.subr.mxu0 0.0
      %4616 = vmatpush1.msra.mxu0 0.0
      %4617 = vmatprep.subr.mxu0 0.0
      %4618 = vmatpush1.msra.mxu0 0.0
      %4619 = vmatprep.subr.mxu0 0.0
      %4620 = vmatpush1.msra.mxu0 0.0
      %4621 = vmatprep.subr.mxu0 0.0
      %4622 = vmatpush1.msra.mxu0 0.0
      %4623 = vmatprep.subr.mxu0 0.0
      %4624 = vmatpush1.msra.mxu0 0.0
      %4625 = vmatprep.subr.mxu0 0.0
      %4626 = vmatpush1.msra.mxu0 0.0
      %4627 = vmatprep.subr.mxu0 0.0
      %4628 = vmatpush1.msra.mxu0 0.0
      %4629 = vmatprep.subr.mxu0 0.0
      %4630 = vmatpush1.msra.mxu0 0.0
      %4631 = vmatprep.subr.mxu0 0.0
      %4632 = vmatpush1.msra.mxu0 0.0
      %4633 = vmatprep.subr.mxu0 0.0
      %4634 = vmatpush1.msra.mxu0 0.0
      %4635 = vmatprep.subr.mxu0 0.0
      %4636 = vmatpush1.msra.mxu0 0.0
      %4637 = vmatprep.subr.mxu0 0.0
      %4638 = vmatpush1.msra.mxu0 0.0
      %4639 = vmatprep.subr.mxu0 0.0
      %4640 = vmatpush1.msra.mxu0 0.0
      %4641 = vmatprep.subr.mxu0 0.0
      %4642 = vmatpush1.msra.mxu0 0.0
      %4643 = vmatprep.subr.mxu0 0.0
      %4644 = vmatpush1.msra.mxu0 0.0
      %4645 = vmatprep.subr.mxu0 0.0
      %4646 = vmatpush1.msra.mxu0 0.0
      %4647 = vmatprep.subr.mxu0 0.0
      %4648 = vmatpush1.msra.mxu0 0.0
      %4649 = vmatprep.subr.mxu0 0.0
      %4650 = vmatpush1.msra.mxu0 0.0
      %4651 = vmatprep.subr.mxu0 0.0
      %4652 = vmatpush1.msra.mxu0 0.0
      %4653 = vmatprep.subr.mxu0 0.0
      %4654 = vmatpush1.msra.mxu0 0.0
      %4655 = vmatprep.subr.mxu0 0.0
      %4656 = vmatpush1.msra.mxu0 0.0
      %4657 = vmatprep.subr.mxu0 0.0
      %4658 = vmatpush1.msra.mxu0 0.0
      %4659 = vmatprep.subr.mxu0 0.0
      %4660 = vmatpush1.msra.mxu0 0.0
      %4661 = vmatprep.subr.mxu0 0.0
      %4662 = vmatpush1.msra.mxu0 0.0
      %4663 = vmatprep.subr.mxu0 0.0
      %4664 = vmatpush1.msra.mxu0 0.0
      %4665 = vmatprep.subr.mxu0 0.0
      %4666 = vmatpush1.msra.mxu0 0.0
      %4667 = vmatprep.subr.mxu0 0.0
      %4668 = vmatpush1.msra.mxu0 0.0
      %4669 = vmatprep.subr.mxu0 0.0
      %4670 = vmatpush1.msra.mxu0 0.0
      %4671 = vmatprep.subr.mxu0 0.0
      %4672 = vmatpush1.msra.mxu0 0.0
      %4673 = vmatprep.subr.mxu0 0.0
      %4674 = vmatpush1.msra.mxu0 0.0
      %4675 = vmatprep.subr.mxu0 0.0
      %4676 = vmatpush1.msra.mxu0 0.0
      %4677 = vmatprep.mubr.f32.mxu0 0.0
      %4678 = vmatmul.mubr.f32.gmra.mrb[0].mxu0 %v4599
      %v4679 = vpop.f32.mrb[0].mxu0
      %v4680 = vadd.f32 0.0, %v4679
      %v4681 = vpop.f32.mrb[0].mxu0
      %4682 = vmatprep.mubr.f32.mxu0 0.0
      %4683 = vmatmul.mubr.f32.gmra.mrb[0].mxu0 %v4602
      %v4684 = vpop.f32.mrb[0].mxu0
      %v4685 = vadd.f32 0.0, %v4684
      %v4686 = vpop.f32.mrb[0].mxu0
      %4687 = vmatprep.mubr.f32.mxu0 0.0
      %4688 = vmatmul.mubr.f32.gmra.mrb[0].mxu0 %v4605
      %v4689 = vpop.f32.mrb[0].mxu0
      %v4690 = vadd.f32 0.0, %v4689
      %v4691 = vpop.f32.mrb[0].mxu0
      %4692 = vmatprep.mubr.f32.mxu0 0.0
      %4693 = vmatmul.mubr.f32.gmra.mrb[0].mxu0 %v4608
      %v4694 = vpop.f32.mrb[0].mxu0
      %v4695 = vadd.f32 0.0, %v4694
      %v4696 = vpop.f32.mrb[0].mxu0
      %4697 = vdwg.mxu0
      %v4698 = vadd.f32 %v4478, %v4680
      %v4699 = vadd.f32 %v4483, %v4685
      %v4700 = vadd.f32 %v4488, %v4690
      %v4701 = vadd.f32 %v4493, %v4695
      %v4702 = vadd.f32 %v3900, %v4698
      %v4703 = vadd.f32 %v3901, %v4699
      %v4704 = vadd.f32 %v3902, %v4700
      %v4705 = vadd.f32 %v3903, %v4701
      %s4706 = scalar_lea.vmem %s49, 1
      %v4707 = vld [vmem:[%s4706] sm:$0x1]
      %s4708 = scalar_lea.vmem %s51, 1
      %v4709 = vld [vmem:[%s4708] sm:$0x1]
      %v4710 = vsel %vm1740, %v4702, 0.0
      %4711 = vadd.xlane.f32.xlu0 %v4710
      %v4712 = vpop.xlane.xlu0 %4711
      %v4713 = vsel %vm1740, %v4703, 0.0
      %4714 = vadd.xlane.f32.xlu0 %v4713
      %v4715 = vpop.xlane.xlu0 %4714
      %v4716 = vsel %vm1740, %v4704, 0.0
      %4717 = vadd.xlane.f32.xlu0 %v4716
      %v4718 = vpop.xlane.xlu0 %4717
      %v4719 = vsel %vm1740, %v4705, 0.0
      %4720 = vadd.xlane.f32.xlu0 %v4719
      %v4721 = vpop.xlane.xlu0 %4720
      %v4722 = vmul.f32 %v4712, %v1726
      %v4723 = vmul.f32 %v4715, %v1726
      %v4724 = vmul.f32 %v4718, %v1726
      %v4725 = vmul.f32 %v4721, %v1726
      %v4726 = vsub.f32 %v4702, %v4722
      %v4727 = vsub.f32 %v4703, %v4723
      %v4728 = vsub.f32 %v4704, %v4724
      %v4729 = vsub.f32 %v4705, %v4725
      %v4730 = vmul.f32 %v4726, %v4726
      %v4731 = vmul.f32 %v4727, %v4727
      %v4732 = vmul.f32 %v4728, %v4728
      %v4733 = vmul.f32 %v4729, %v4729
      %v4734 = vsel %vm1740, %v4730, 0.0
      %4735 = vadd.xlane.f32.xlu0 %v4734
      %v4736 = vpop.xlane.xlu0 %4735
      %v4737 = vsel %vm1740, %v4731, 0.0
      %4738 = vadd.xlane.f32.xlu0 %v4737
      %v4739 = vpop.xlane.xlu0 %4738
      %v4740 = vsel %vm1740, %v4732, 0.0
      %4741 = vadd.xlane.f32.xlu0 %v4740
      %v4742 = vpop.xlane.xlu0 %4741
      %v4743 = vsel %vm1740, %v4733, 0.0
      %4744 = vadd.xlane.f32.xlu0 %v4743
      %v4745 = vpop.xlane.xlu0 %4744
      %v4746 = vmul.f32 %v4736, %v1726
      %v4747 = vmul.f32 %v4739, %v1726
      %v4748 = vmul.f32 %v4742, %v1726
      %v4749 = vmul.f32 %v4745, %v1726
      %v4750 = vadd.f32 %v4746, 1e-05
      %v4751 = vadd.f32 %v4747, 1e-05
      %v4752 = vadd.f32 %v4748, 1e-05
      %v4753 = vadd.f32 %v4749, 1e-05
      %v4754 = vrsqrt.pop %v4750
      %v4755 = vrsqrt.pop %v4751
      %v4756 = vrsqrt.pop %v4752
      %v4757 = vrsqrt.pop %v4753
      %v4758 = vmul.f32 %v4726, %v4754
      %v4759 = vmul.f32 %v4727, %v4755
      %v4760 = vmul.f32 %v4728, %v4756
      %v4761 = vmul.f32 %v4729, %v4757
      %v4763 = vlaneseq
      %v4764 = vshrl.u32 %v4763, 7
      %v4765 = vsub.s32 0, %v4764
      %v4766 = vrot.slane %v4707, %v4765
      %v4768 = vmul.f32 %v4758, %v4766
      %v4769 = vmul.f32 %v4759, %v4766
      %v4770 = vmul.f32 %v4760, %v4766
      %v4771 = vmul.f32 %v4761, %v4766
      %v4773 = vlaneseq
      %v4774 = vshrl.u32 %v4773, 7
      %v4775 = vsub.s32 0, %v4774
      %v4776 = vrot.slane %v4709, %v4775
      %v4778 = vadd.f32 %v4768, %v4776
      %v4779 = vadd.f32 %v4769, %v4776
      %v4780 = vadd.f32 %v4770, %v4776
      %v4781 = vadd.f32 %v4771, %v4776
      %s4782 = scalar_lea.vmem %s53, 32
      %v4783 = vld [vmem:[%s4782] sm:$0xff]
      %v4784 = vld [vmem:[%s4782 + $0x8] sm:$0xff]
      %v4785 = vld [vmem:[%s4782 + $0x10] sm:$0xff]
      %v4786 = vld [vmem:[%s4782 + $0x18] sm:$0xff]
      %s4787 = scalar_lea.vmem %s55, 1
      %v4788 = vld [vmem:[%s4787] sm:$0x1]
      %v4790 = vlaneseq
      %v4791 = vshrl.u32 %v4790, 7
      %v4792 = vsub.s32 0, %v4791
      %v4793 = vrot.slane %v4788, %v4792
      %v4796 = vsel %vm1740, %v4778, 0
      %v4799 = vsel %vm1740, %v4779, 0
      %v4802 = vsel %vm1740, %v4780, 0
      %v4805 = vsel %vm1740, %v4781, 0
      %4807 = vmatprep.subr.mxu0 0.0
      %4808 = vmatpush1.msra.mxu0 %v4783
      %4809 = vmatprep.subr.mxu0 0.0
      %4810 = vmatpush1.msra.mxu0 %v4784
      %4811 = vmatprep.subr.mxu0 0.0
      %4812 = vmatpush1.msra.mxu0 %v4785
      %4813 = vmatprep.subr.mxu0 0.0
      %4814 = vmatpush1.msra.mxu0 %v4786
      %4815 = vmatprep.subr.mxu0 0.0
      %4816 = vmatpush1.msra.mxu0 0.0
      %4817 = vmatprep.subr.mxu0 0.0
      %4818 = vmatpush1.msra.mxu0 0.0
      %4819 = vmatprep.subr.mxu0 0.0
      %4820 = vmatpush1.msra.mxu0 0.0
      %4821 = vmatprep.subr.mxu0 0.0
      %4822 = vmatpush1.msra.mxu0 0.0
      %4823 = vmatprep.subr.mxu0 0.0
      %4824 = vmatpush1.msra.mxu0 0.0
      %4825 = vmatprep.subr.mxu0 0.0
      %4826 = vmatpush1.msra.mxu0 0.0
      %4827 = vmatprep.subr.mxu0 0.0
      %4828 = vmatpush1.msra.mxu0 0.0
      %4829 = vmatprep.subr.mxu0 0.0
      %4830 = vmatpush1.msra.mxu0 0.0
      %4831 = vmatprep.subr.mxu0 0.0
      %4832 = vmatpush1.msra.mxu0 0.0
      %4833 = vmatprep.subr.mxu0 0.0
      %4834 = vmatpush1.msra.mxu0 0.0
      %4835 = vmatprep.subr.mxu0 0.0
      %4836 = vmatpush1.msra.mxu0 0.0
      %4837 = vmatprep.subr.mxu0 0.0
      %4838 = vmatpush1.msra.mxu0 0.0
      %4839 = vmatprep.subr.mxu0 0.0
      %4840 = vmatpush1.msra.mxu0 0.0
      %4841 = vmatprep.subr.mxu0 0.0
      %4842 = vmatpush1.msra.mxu0 0.0
      %4843 = vmatprep.subr.mxu0 0.0
      %4844 = vmatpush1.msra.mxu0 0.0
      %4845 = vmatprep.subr.mxu0 0.0
      %4846 = vmatpush1.msra.mxu0 0.0
      %4847 = vmatprep.subr.mxu0 0.0
      %4848 = vmatpush1.msra.mxu0 0.0
      %4849 = vmatprep.subr.mxu0 0.0
      %4850 = vmatpush1.msra.mxu0 0.0
      %4851 = vmatprep.subr.mxu0 0.0
      %4852 = vmatpush1.msra.mxu0 0.0
      %4853 = vmatprep.subr.mxu0 0.0
      %4854 = vmatpush1.msra.mxu0 0.0
      %4855 = vmatprep.subr.mxu0 0.0
      %4856 = vmatpush1.msra.mxu0 0.0
      %4857 = vmatprep.subr.mxu0 0.0
      %4858 = vmatpush1.msra.mxu0 0.0
      %4859 = vmatprep.subr.mxu0 0.0
      %4860 = vmatpush1.msra.mxu0 0.0
      %4861 = vmatprep.subr.mxu0 0.0
      %4862 = vmatpush1.msra.mxu0 0.0
      %4863 = vmatprep.subr.mxu0 0.0
      %4864 = vmatpush1.msra.mxu0 0.0
      %4865 = vmatprep.subr.mxu0 0.0
      %4866 = vmatpush1.msra.mxu0 0.0
      %4867 = vmatprep.subr.mxu0 0.0
      %4868 = vmatpush1.msra.mxu0 0.0
      %4869 = vmatprep.subr.mxu0 0.0
      %4870 = vmatpush1.msra.mxu0 0.0
      %4871 = vmatprep.mubr.f32.mxu0 0.0
      %4872 = vmatmul.mubr.f32.gmra.mrb[0].mxu0 %v4796
      %v4873 = vpop.f32.mrb[0].mxu0
      %v4874 = vadd.f32 %v4793, %v4873
      %v4875 = vpop.f32.mrb[0].mxu0
      %4876 = vmatprep.mubr.f32.mxu0 0.0
      %4877 = vmatmul.mubr.f32.gmra.mrb[0].mxu0 %v4799
      %v4878 = vpop.f32.mrb[0].mxu0
      %v4879 = vadd.f32 %v4793, %v4878
      %v4880 = vpop.f32.mrb[0].mxu0
      %4881 = vmatprep.mubr.f32.mxu0 0.0
      %4882 = vmatmul.mubr.f32.gmra.mrb[0].mxu0 %v4802
      %v4883 = vpop.f32.mrb[0].mxu0
      %v4884 = vadd.f32 %v4793, %v4883
      %v4885 = vpop.f32.mrb[0].mxu0
      %4886 = vmatprep.mubr.f32.mxu0 0.0
      %4887 = vmatmul.mubr.f32.gmra.mrb[0].mxu0 %v4805
      %v4888 = vpop.f32.mrb[0].mxu0
      %v4889 = vadd.f32 %v4793, %v4888
      %v4890 = vpop.f32.mrb[0].mxu0
      %4891 = vdwg.mxu0
      %s4892 = scalar_lea.vmem %s1385, 32
      %v4893 = vld [vmem:[%s4892] sm:$0xff]
      %v4894 = vld [vmem:[%s4892 + $0x8] sm:$0xff]
      %v4895 = vld [vmem:[%s4892 + $0x10] sm:$0xff]
      %v4896 = vld [vmem:[%s4892 + $0x18] sm:$0xff]
      %4897 = vmatprep.subr.mxu0 0.0
      %4898 = vmatpush1.msra.mxu0 %v4893
      %4899 = vmatprep.subr.mxu0 0.0
      %4900 = vmatpush1.msra.mxu0 %v4894
      %4901 = vmatprep.subr.mxu0 0.0
      %4902 = vmatpush1.msra.mxu0 %v4895
      %4903 = vmatprep.subr.mxu0 0.0
      %4904 = vmatpush1.msra.mxu0 %v4896
      %4905 = vmatprep.subr.mxu0 0.0
      %4906 = vmatpush1.msra.mxu0 0.0
      %4907 = vmatprep.subr.mxu0 0.0
      %4908 = vmatpush1.msra.mxu0 0.0
      %4909 = vmatprep.subr.mxu0 0.0
      %4910 = vmatpush1.msra.mxu0 0.0
      %4911 = vmatprep.subr.mxu0 0.0
      %4912 = vmatpush1.msra.mxu0 0.0
      %4913 = vmatprep.subr.mxu0 0.0
      %4914 = vmatpush1.msra.mxu0 0.0
      %4915 = vmatprep.subr.mxu0 0.0
      %4916 = vmatpush1.msra.mxu0 0.0
      %4917 = vmatprep.subr.mxu0 0.0
      %4918 = vmatpush1.msra.mxu0 0.0
      %4919 = vmatprep.subr.mxu0 0.0
      %4920 = vmatpush1.msra.mxu0 0.0
      %4921 = vmatprep.subr.mxu0 0.0
      %4922 = vmatpush1.msra.mxu0 0.0
      %4923 = vmatprep.subr.mxu0 0.0
      %4924 = vmatpush1.msra.mxu0 0.0
      %4925 = vmatprep.subr.mxu0 0.0
      %4926 = vmatpush1.msra.mxu0 0.0
      %4927 = vmatprep.subr.mxu0 0.0
      %4928 = vmatpush1.msra.mxu0 0.0
      %4929 = vmatprep.subr.mxu0 0.0
      %4930 = vmatpush1.msra.mxu0 0.0
      %4931 = vmatprep.subr.mxu0 0.0
      %4932 = vmatpush1.msra.mxu0 0.0
      %4933 = vmatprep.subr.mxu0 0.0
      %4934 = vmatpush1.msra.mxu0 0.0
      %4935 = vmatprep.subr.mxu0 0.0
      %4936 = vmatpush1.msra.mxu0 0.0
      %4937 = vmatprep.subr.mxu0 0.0
      %4938 = vmatpush1.msra.mxu0 0.0
      %4939 = vmatprep.subr.mxu0 0.0
      %4940 = vmatpush1.msra.mxu0 0.0
      %4941 = vmatprep.subr.mxu0 0.0
      %4942 = vmatpush1.msra.mxu0 0.0
      %4943 = vmatprep.subr.mxu0 0.0
      %4944 = vmatpush1.msra.mxu0 0.0
      %4945 = vmatprep.subr.mxu0 0.0
      %4946 = vmatpush1.msra.mxu0 0.0
      %4947 = vmatprep.subr.mxu0 0.0
      %4948 = vmatpush1.msra.mxu0 0.0
      %4949 = vmatprep.subr.mxu0 0.0
      %4950 = vmatpush1.msra.mxu0 0.0
      %4951 = vmatprep.subr.mxu0 0.0
      %4952 = vmatpush1.msra.mxu0 0.0
      %4953 = vmatprep.subr.mxu0 0.0
      %4954 = vmatpush1.msra.mxu0 0.0
      %4955 = vmatprep.subr.mxu0 0.0
      %4956 = vmatpush1.msra.mxu0 0.0
      %4957 = vmatprep.subr.mxu0 0.0
      %4958 = vmatpush1.msra.mxu0 0.0
      %4959 = vmatprep.subr.mxu0 0.0
      %4960 = vmatpush1.msra.mxu0 0.0
      %4961 = vmatprep.mubr.f32.mxu0 0.0
      %4962 = vmatmul.mubr.f32.gmra.mrb[0].mxu0 %v4796
      %v4963 = vpop.f32.mrb[0].mxu0
      %v4964 = vadd.f32 0.0, %v4963
      %v4965 = vpop.f32.mrb[0].mxu0
      %4966 = vmatprep.mubr.f32.mxu0 0.0
      %4967 = vmatmul.mubr.f32.gmra.mrb[0].mxu0 %v4799
      %v4968 = vpop.f32.mrb[0].mxu0
      %v4969 = vadd.f32 0.0, %v4968
      %v4970 = vpop.f32.mrb[0].mxu0
      %4971 = vmatprep.mubr.f32.mxu0 0.0
      %4972 = vmatmul.mubr.f32.gmra.mrb[0].mxu0 %v4802
      %v4973 = vpop.f32.mrb[0].mxu0
      %v4974 = vadd.f32 0.0, %v4973
      %v4975 = vpop.f32.mrb[0].mxu0
      %4976 = vmatprep.mubr.f32.mxu0 0.0
      %4977 = vmatmul.mubr.f32.gmra.mrb[0].mxu0 %v4805
      %v4978 = vpop.f32.mrb[0].mxu0
      %v4979 = vadd.f32 0.0, %v4978
      %v4980 = vpop.f32.mrb[0].mxu0
      %4981 = vdwg.mxu0
      %s4982 = scalar_lea.vmem %s1392, 4
      %v4983 = vld [vmem:[%s4982] sm:$0xf]
      %v4985 = vsel %vm1643, %v4964, 0
      %v4988 = vsel %vm1643, %v4969, 0
      %v4991 = vsel %vm1643, %v4974, 0
      %v4994 = vsel %vm1643, %v4979, 0
      %v4997 = vsel %vm1647, %v4983, 0
      %4999 = vmatprep.subr.mxu0 0.0
      %5000 = vmatpush1.msra.mxu0 %v4997
      %5001 = vmatprep.subr.mxu0 0.0
      %5002 = vmatpush1.msra.mxu0 0.0
      %5003 = vmatprep.subr.mxu0 0.0
      %5004 = vmatpush1.msra.mxu0 0.0
      %5005 = vmatprep.subr.mxu0 0.0
      %5006 = vmatpush1.msra.mxu0 0.0
      %5007 = vmatprep.subr.mxu0 0.0
      %5008 = vmatpush1.msra.mxu0 0.0
      %5009 = vmatprep.subr.mxu0 0.0
      %5010 = vmatpush1.msra.mxu0 0.0
      %5011 = vmatprep.subr.mxu0 0.0
      %5012 = vmatpush1.msra.mxu0 0.0
      %5013 = vmatprep.subr.mxu0 0.0
      %5014 = vmatpush1.msra.mxu0 0.0
      %5015 = vmatprep.subr.mxu0 0.0
      %5016 = vmatpush1.msra.mxu0 0.0
      %5017 = vmatprep.subr.mxu0 0.0
      %5018 = vmatpush1.msra.mxu0 0.0
      %5019 = vmatprep.subr.mxu0 0.0
      %5020 = vmatpush1.msra.mxu0 0.0
      %5021 = vmatprep.subr.mxu0 0.0
      %5022 = vmatpush1.msra.mxu0 0.0
      %5023 = vmatprep.subr.mxu0 0.0
      %5024 = vmatpush1.msra.mxu0 0.0
      %5025 = vmatprep.subr.mxu0 0.0
      %5026 = vmatpush1.msra.mxu0 0.0
      %5027 = vmatprep.subr.mxu0 0.0
      %5028 = vmatpush1.msra.mxu0 0.0
      %5029 = vmatprep.subr.mxu0 0.0
      %5030 = vmatpush1.msra.mxu0 0.0
      %5031 = vmatprep.subr.mxu0 0.0
      %5032 = vmatpush1.msra.mxu0 0.0
      %5033 = vmatprep.subr.mxu0 0.0
      %5034 = vmatpush1.msra.mxu0 0.0
      %5035 = vmatprep.subr.mxu0 0.0
      %5036 = vmatpush1.msra.mxu0 0.0
      %5037 = vmatprep.subr.mxu0 0.0
      %5038 = vmatpush1.msra.mxu0 0.0
      %5039 = vmatprep.subr.mxu0 0.0
      %5040 = vmatpush1.msra.mxu0 0.0
      %5041 = vmatprep.subr.mxu0 0.0
      %5042 = vmatpush1.msra.mxu0 0.0
      %5043 = vmatprep.subr.mxu0 0.0
      %5044 = vmatpush1.msra.mxu0 0.0
      %5045 = vmatprep.subr.mxu0 0.0
      %5046 = vmatpush1.msra.mxu0 0.0
      %5047 = vmatprep.subr.mxu0 0.0
      %5048 = vmatpush1.msra.mxu0 0.0
      %5049 = vmatprep.subr.mxu0 0.0
      %5050 = vmatpush1.msra.mxu0 0.0
      %5051 = vmatprep.subr.mxu0 0.0
      %5052 = vmatpush1.msra.mxu0 0.0
      %5053 = vmatprep.subr.mxu0 0.0
      %5054 = vmatpush1.msra.mxu0 0.0
      %5055 = vmatprep.subr.mxu0 0.0
      %5056 = vmatpush1.msra.mxu0 0.0
      %5057 = vmatprep.subr.mxu0 0.0
      %5058 = vmatpush1.msra.mxu0 0.0
      %5059 = vmatprep.subr.mxu0 0.0
      %5060 = vmatpush1.msra.mxu0 0.0
      %5061 = vmatprep.subr.mxu0 0.0
      %5062 = vmatpush1.msra.mxu0 0.0
      %5063 = vmatprep.mubr.f32.mxu0 0.0
      %5064 = vmatmul.mubr.f32.gmra.mrb[0].mxu0 %v4985
      %v5065 = vpop.f32.mrb[0].mxu0
      %v5066 = vadd.f32 0.0, %v5065
      %v5067 = vpop.f32.mrb[0].mxu0
      %5068 = vmatprep.mubr.f32.mxu0 0.0
      %5069 = vmatmul.mubr.f32.gmra.mrb[0].mxu0 %v4988
      %v5070 = vpop.f32.mrb[0].mxu0
      %v5071 = vadd.f32 0.0, %v5070
      %v5072 = vpop.f32.mrb[0].mxu0
      %5073 = vmatprep.mubr.f32.mxu0 0.0
      %5074 = vmatmul.mubr.f32.gmra.mrb[0].mxu0 %v4991
      %v5075 = vpop.f32.mrb[0].mxu0
      %v5076 = vadd.f32 0.0, %v5075
      %v5077 = vpop.f32.mrb[0].mxu0
      %5078 = vmatprep.mubr.f32.mxu0 0.0
      %5079 = vmatmul.mubr.f32.gmra.mrb[0].mxu0 %v4994
      %v5080 = vpop.f32.mrb[0].mxu0
      %v5081 = vadd.f32 0.0, %v5080
      %v5082 = vpop.f32.mrb[0].mxu0
      %5083 = vdwg.mxu0
      %s5084 = scalar_lea.vmem %s1399, 32
      %v5085 = vld [vmem:[%s5084] sm:$0xff]
      %v5086 = vld [vmem:[%s5084 + $0x8] sm:$0xff]
      %v5087 = vld [vmem:[%s5084 + $0x10] sm:$0xff]
      %v5088 = vld [vmem:[%s5084 + $0x18] sm:$0xff]
      %5089 = vmatprep.subr.mxu0 0.0
      %5090 = vmatpush1.msra.mxu0 %v5085
      %5091 = vmatprep.subr.mxu0 0.0
      %5092 = vmatpush1.msra.mxu0 %v5086
      %5093 = vmatprep.subr.mxu0 0.0
      %5094 = vmatpush1.msra.mxu0 %v5087
      %5095 = vmatprep.subr.mxu0 0.0
      %5096 = vmatpush1.msra.mxu0 %v5088
      %5097 = vmatprep.subr.mxu0 0.0
      %5098 = vmatpush1.msra.mxu0 0.0
      %5099 = vmatprep.subr.mxu0 0.0
      %5100 = vmatpush1.msra.mxu0 0.0
      %5101 = vmatprep.subr.mxu0 0.0
      %5102 = vmatpush1.msra.mxu0 0.0
      %5103 = vmatprep.subr.mxu0 0.0
      %5104 = vmatpush1.msra.mxu0 0.0
      %5105 = vmatprep.subr.mxu0 0.0
      %5106 = vmatpush1.msra.mxu0 0.0
      %5107 = vmatprep.subr.mxu0 0.0
      %5108 = vmatpush1.msra.mxu0 0.0
      %5109 = vmatprep.subr.mxu0 0.0
      %5110 = vmatpush1.msra.mxu0 0.0
      %5111 = vmatprep.subr.mxu0 0.0
      %5112 = vmatpush1.msra.mxu0 0.0
      %5113 = vmatprep.subr.mxu0 0.0
      %5114 = vmatpush1.msra.mxu0 0.0
      %5115 = vmatprep.subr.mxu0 0.0
      %5116 = vmatpush1.msra.mxu0 0.0
      %5117 = vmatprep.subr.mxu0 0.0
      %5118 = vmatpush1.msra.mxu0 0.0
      %5119 = vmatprep.subr.mxu0 0.0
      %5120 = vmatpush1.msra.mxu0 0.0
      %5121 = vmatprep.subr.mxu0 0.0
      %5122 = vmatpush1.msra.mxu0 0.0
      %5123 = vmatprep.subr.mxu0 0.0
      %5124 = vmatpush1.msra.mxu0 0.0
      %5125 = vmatprep.subr.mxu0 0.0
      %5126 = vmatpush1.msra.mxu0 0.0
      %5127 = vmatprep.subr.mxu0 0.0
      %5128 = vmatpush1.msra.mxu0 0.0
      %5129 = vmatprep.subr.mxu0 0.0
      %5130 = vmatpush1.msra.mxu0 0.0
      %5131 = vmatprep.subr.mxu0 0.0
      %5132 = vmatpush1.msra.mxu0 0.0
      %5133 = vmatprep.subr.mxu0 0.0
      %5134 = vmatpush1.msra.mxu0 0.0
      %5135 = vmatprep.subr.mxu0 0.0
      %5136 = vmatpush1.msra.mxu0 0.0
      %5137 = vmatprep.subr.mxu0 0.0
      %5138 = vmatpush1.msra.mxu0 0.0
      %5139 = vmatprep.subr.mxu0 0.0
      %5140 = vmatpush1.msra.mxu0 0.0
      %5141 = vmatprep.subr.mxu0 0.0
      %5142 = vmatpush1.msra.mxu0 0.0
      %5143 = vmatprep.subr.mxu0 0.0
      %5144 = vmatpush1.msra.mxu0 0.0
      %5145 = vmatprep.subr.mxu0 0.0
      %5146 = vmatpush1.msra.mxu0 0.0
      %5147 = vmatprep.subr.mxu0 0.0
      %5148 = vmatpush1.msra.mxu0 0.0
      %5149 = vmatprep.subr.mxu0 0.0
      %5150 = vmatpush1.msra.mxu0 0.0
      %5151 = vmatprep.subr.mxu0 0.0
      %5152 = vmatpush1.msra.mxu0 0.0
      %5153 = vmatprep.mubr.f32.mxu0 0.0
      %5154 = vmatmul.mubr.f32.gmra.mrb[0].mxu0 %v4796
      %v5155 = vpop.f32.mrb[0].mxu0
      %v5156 = vadd.f32 0.0, %v5155
      %v5157 = vpop.f32.mrb[0].mxu0
      %5158 = vmatprep.mubr.f32.mxu0 0.0
      %5159 = vmatmul.mubr.f32.gmra.mrb[0].mxu0 %v4799
      %v5160 = vpop.f32.mrb[0].mxu0
      %v5161 = vadd.f32 0.0, %v5160
      %v5162 = vpop.f32.mrb[0].mxu0
      %5163 = vmatprep.mubr.f32.mxu0 0.0
      %5164 = vmatmul.mubr.f32.gmra.mrb[0].mxu0 %v4802
      %v5165 = vpop.f32.mrb[0].mxu0
      %v5166 = vadd.f32 0.0, %v5165
      %v5167 = vpop.f32.mrb[0].mxu0
      %5168 = vmatprep.mubr.f32.mxu0 0.0
      %5169 = vmatmul.mubr.f32.gmra.mrb[0].mxu0 %v4805
      %v5170 = vpop.f32.mrb[0].mxu0
      %v5171 = vadd.f32 0.0, %v5170
      %v5172 = vpop.f32.mrb[0].mxu0
      %5173 = vdwg.mxu0
      %s5174 = scalar_lea.vmem %s1406, 4
      %v5175 = vld [vmem:[%s5174] sm:$0xf]
      %v5177 = vsel %vm1643, %v5156, 0
      %v5180 = vsel %vm1643, %v5161, 0
      %v5183 = vsel %vm1643, %v5166, 0
      %v5186 = vsel %vm1643, %v5171, 0
      %v5189 = vsel %vm1647, %v5175, 0
      %5191 = vmatprep.subr.mxu0 0.0
      %5192 = vmatpush1.msra.mxu0 %v5189
      %5193 = vmatprep.subr.mxu0 0.0
      %5194 = vmatpush1.msra.mxu0 0.0
      %5195 = vmatprep.subr.mxu0 0.0
      %5196 = vmatpush1.msra.mxu0 0.0
      %5197 = vmatprep.subr.mxu0 0.0
      %5198 = vmatpush1.msra.mxu0 0.0
      %5199 = vmatprep.subr.mxu0 0.0
      %5200 = vmatpush1.msra.mxu0 0.0
      %5201 = vmatprep.subr.mxu0 0.0
      %5202 = vmatpush1.msra.mxu0 0.0
      %5203 = vmatprep.subr.mxu0 0.0
      %5204 = vmatpush1.msra.mxu0 0.0
      %5205 = vmatprep.subr.mxu0 0.0
      %5206 = vmatpush1.msra.mxu0 0.0
      %5207 = vmatprep.subr.mxu0 0.0
      %5208 = vmatpush1.msra.mxu0 0.0
      %5209 = vmatprep.subr.mxu0 0.0
      %5210 = vmatpush1.msra.mxu0 0.0
      %5211 = vmatprep.subr.mxu0 0.0
      %5212 = vmatpush1.msra.mxu0 0.0
      %5213 = vmatprep.subr.mxu0 0.0
      %5214 = vmatpush1.msra.mxu0 0.0
      %5215 = vmatprep.subr.mxu0 0.0
      %5216 = vmatpush1.msra.mxu0 0.0
      %5217 = vmatprep.subr.mxu0 0.0
      %5218 = vmatpush1.msra.mxu0 0.0
      %5219 = vmatprep.subr.mxu0 0.0
      %5220 = vmatpush1.msra.mxu0 0.0
      %5221 = vmatprep.subr.mxu0 0.0
      %5222 = vmatpush1.msra.mxu0 0.0
      %5223 = vmatprep.subr.mxu0 0.0
      %5224 = vmatpush1.msra.mxu0 0.0
      %5225 = vmatprep.subr.mxu0 0.0
      %5226 = vmatpush1.msra.mxu0 0.0
      %5227 = vmatprep.subr.mxu0 0.0
      %5228 = vmatpush1.msra.mxu0 0.0
      %5229 = vmatprep.subr.mxu0 0.0
      %5230 = vmatpush1.msra.mxu0 0.0
      %5231 = vmatprep.subr.mxu0 0.0
      %5232 = vmatpush1.msra.mxu0 0.0
      %5233 = vmatprep.subr.mxu0 0.0
      %5234 = vmatpush1.msra.mxu0 0.0
      %5235 = vmatprep.subr.mxu0 0.0
      %5236 = vmatpush1.msra.mxu0 0.0
      %5237 = vmatprep.subr.mxu0 0.0
      %5238 = vmatpush1.msra.mxu0 0.0
      %5239 = vmatprep.subr.mxu0 0.0
      %5240 = vmatpush1.msra.mxu0 0.0
      %5241 = vmatprep.subr.mxu0 0.0
      %5242 = vmatpush1.msra.mxu0 0.0
      %5243 = vmatprep.subr.mxu0 0.0
      %5244 = vmatpush1.msra.mxu0 0.0
      %5245 = vmatprep.subr.mxu0 0.0
      %5246 = vmatpush1.msra.mxu0 0.0
      %5247 = vmatprep.subr.mxu0 0.0
      %5248 = vmatpush1.msra.mxu0 0.0
      %5249 = vmatprep.subr.mxu0 0.0
      %5250 = vmatpush1.msra.mxu0 0.0
      %5251 = vmatprep.subr.mxu0 0.0
      %5252 = vmatpush1.msra.mxu0 0.0
      %5253 = vmatprep.subr.mxu0 0.0
      %5254 = vmatpush1.msra.mxu0 0.0
      %5255 = vmatprep.mubr.f32.mxu0 0.0
      %5256 = vmatmul.mubr.f32.gmra.mrb[0].mxu0 %v5177
      %v5257 = vpop.f32.mrb[0].mxu0
      %v5258 = vadd.f32 0.0, %v5257
      %v5259 = vpop.f32.mrb[0].mxu0
      %5260 = vmatprep.mubr.f32.mxu0 0.0
      %5261 = vmatmul.mubr.f32.gmra.mrb[0].mxu0 %v5180
      %v5262 = vpop.f32.mrb[0].mxu0
      %v5263 = vadd.f32 0.0, %v5262
      %v5264 = vpop.f32.mrb[0].mxu0
      %5265 = vmatprep.mubr.f32.mxu0 0.0
      %5266 = vmatmul.mubr.f32.gmra.mrb[0].mxu0 %v5183
      %v5267 = vpop.f32.mrb[0].mxu0
      %v5268 = vadd.f32 0.0, %v5267
      %v5269 = vpop.f32.mrb[0].mxu0
      %5270 = vmatprep.mubr.f32.mxu0 0.0
      %5271 = vmatmul.mubr.f32.gmra.mrb[0].mxu0 %v5186
      %v5272 = vpop.f32.mrb[0].mxu0
      %v5273 = vadd.f32 0.0, %v5272
      %v5274 = vpop.f32.mrb[0].mxu0
      %5275 = vdwg.mxu0
      %v5276 = vadd.f32 %v4874, %v5066
      %v5277 = vadd.f32 %v4879, %v5071
      %v5278 = vadd.f32 %v4884, %v5076
      %v5279 = vadd.f32 %v4889, %v5081
      %v5280 = vmul.f32 %v5276, 0.35355338
      %v5281 = vmul.f32 %v5277, 0.35355338
      %v5282 = vmul.f32 %v5278, 0.35355338
      %v5283 = vmul.f32 %v5279, 0.35355338
      %5288 = vrot.lane.b32.xlu0 %v5258, 64
      %v5289 = vpop.permute.xlu0 %5288
      %5290 = vrot.lane.b32.xlu0 %v5263, 64
      %v5291 = vpop.permute.xlu0 %5290
      %5292 = vrot.lane.b32.xlu0 %v5268, 64
      %v5293 = vpop.permute.xlu0 %5292
      %5294 = vrot.lane.b32.xlu0 %v5273, 64
      %v5295 = vpop.permute.xlu0 %5294
      %v5300 = vadd.f32 %v4874, %v5289
      %v5301 = vadd.f32 %v4879, %v5291
      %v5302 = vadd.f32 %v4884, %v5293
      %v5303 = vadd.f32 %v4889, %v5295
      %5308 = vrot.lane.b32.xlu0 %v4874, 96
      %v5309 = vpop.permute.xlu0 %5308
      %5310 = vrot.lane.b32.xlu0 %v4879, 96
      %v5311 = vpop.permute.xlu0 %5310
      %5312 = vrot.lane.b32.xlu0 %v4884, 96
      %v5313 = vpop.permute.xlu0 %5312
      %5314 = vrot.lane.b32.xlu0 %v4889, 96
      %v5315 = vpop.permute.xlu0 %5314
      %v5317 = vsel %vm2413, %v5280, 0
      %v5320 = vsel %vm2413, %v5281, 0
      %v5323 = vsel %vm2413, %v5282, 0
      %v5326 = vsel %vm2413, %v5283, 0
      %v5328 = vsel %vm2413, %v5309, 0
      %v5330 = vsel %vm2413, %v5311, 0
      %v5332 = vsel %vm2413, %v5313, 0
      %v5334 = vsel %vm2413, %v5315, 0
      %5336 = vmatprep.subr.mxu0 0.0
      %5337 = vmatpush1.xpose.msra.mxu0 %v5328
      %5338 = vmatprep.subr.mxu0 0.0
      %5339 = vmatpush1.xpose.msra.mxu0 %v5330
      %5340 = vmatprep.subr.mxu0 0.0
      %5341 = vmatpush1.xpose.msra.mxu0 %v5332
      %5342 = vmatprep.subr.mxu0 0.0
      %5343 = vmatpush1.xpose.msra.mxu0 %v5334
      %5344 = vmatprep.subr.mxu0 0.0
      %5345 = vmatpush1.xpose.msra.mxu0 0.0
      %5346 = vmatprep.subr.mxu0 0.0
      %5347 = vmatpush1.xpose.msra.mxu0 0.0
      %5348 = vmatprep.subr.mxu0 0.0
      %5349 = vmatpush1.xpose.msra.mxu0 0.0
      %5350 = vmatprep.subr.mxu0 0.0
      %5351 = vmatpush1.xpose.msra.mxu0 0.0
      %5352 = vmatprep.subr.mxu0 0.0
      %5353 = vmatpush1.xpose.msra.mxu0 0.0
      %5354 = vmatprep.subr.mxu0 0.0
      %5355 = vmatpush1.xpose.msra.mxu0 0.0
      %5356 = vmatprep.subr.mxu0 0.0
      %5357 = vmatpush1.xpose.msra.mxu0 0.0
      %5358 = vmatprep.subr.mxu0 0.0
      %5359 = vmatpush1.xpose.msra.mxu0 0.0
      %5360 = vmatprep.subr.mxu0 0.0
      %5361 = vmatpush1.xpose.msra.mxu0 0.0
      %5362 = vmatprep.subr.mxu0 0.0
      %5363 = vmatpush1.xpose.msra.mxu0 0.0
      %5364 = vmatprep.subr.mxu0 0.0
      %5365 = vmatpush1.xpose.msra.mxu0 0.0
      %5366 = vmatprep.subr.mxu0 0.0
      %5367 = vmatpush1.xpose.msra.mxu0 0.0
      %5368 = vmatprep.subr.mxu0 0.0
      %5369 = vmatpush1.xpose.msra.mxu0 0.0
      %5370 = vmatprep.subr.mxu0 0.0
      %5371 = vmatpush1.xpose.msra.mxu0 0.0
      %5372 = vmatprep.subr.mxu0 0.0
      %5373 = vmatpush1.xpose.msra.mxu0 0.0
      %5374 = vmatprep.subr.mxu0 0.0
      %5375 = vmatpush1.xpose.msra.mxu0 0.0
      %5376 = vmatprep.subr.mxu0 0.0
      %5377 = vmatpush1.xpose.msra.mxu0 0.0
      %5378 = vmatprep.subr.mxu0 0.0
      %5379 = vmatpush1.xpose.msra.mxu0 0.0
      %5380 = vmatprep.subr.mxu0 0.0
      %5381 = vmatpush1.xpose.msra.mxu0 0.0
      %5382 = vmatprep.subr.mxu0 0.0
      %5383 = vmatpush1.xpose.msra.mxu0 0.0
      %5384 = vmatprep.subr.mxu0 0.0
      %5385 = vmatpush1.xpose.msra.mxu0 0.0
      %5386 = vmatprep.subr.mxu0 0.0
      %5387 = vmatpush1.xpose.msra.mxu0 0.0
      %5388 = vmatprep.subr.mxu0 0.0
      %5389 = vmatpush1.xpose.msra.mxu0 0.0
      %5390 = vmatprep.subr.mxu0 0.0
      %5391 = vmatpush1.xpose.msra.mxu0 0.0
      %5392 = vmatprep.subr.mxu0 0.0
      %5393 = vmatpush1.xpose.msra.mxu0 0.0
      %5394 = vmatprep.subr.mxu0 0.0
      %5395 = vmatpush1.xpose.msra.mxu0 0.0
      %5396 = vmatprep.subr.mxu0 0.0
      %5397 = vmatpush1.xpose.msra.mxu0 0.0
      %5398 = vmatprep.subr.mxu0 0.0
      %5399 = vmatpush1.xpose.msra.mxu0 0.0
      %5400 = vmatprep.mubr.f32.mxu0 0.0
      %5401 = vmatmul.mubr.f32.gmra.mrb[0].mxu0 %v5317
      %v5402 = vpop.f32.mrb[0].mxu0
      %v5403 = vadd.f32 %v1807, %v5402
      %v5404 = vpop.f32.mrb[0].mxu0
      %5405 = vmatprep.mubr.f32.mxu0 0.0
      %5406 = vmatmul.mubr.f32.gmra.mrb[0].mxu0 %v5320
      %v5407 = vpop.f32.mrb[0].mxu0
      %v5408 = vadd.f32 %v1808, %v5407
      %v5409 = vpop.f32.mrb[0].mxu0
      %5410 = vmatprep.mubr.f32.mxu0 0.0
      %5411 = vmatmul.mubr.f32.gmra.mrb[0].mxu0 %v5323
      %v5412 = vpop.f32.mrb[0].mxu0
      %v5413 = vadd.f32 %v1809, %v5412
      %v5414 = vpop.f32.mrb[0].mxu0
      %5415 = vmatprep.mubr.f32.mxu0 0.0
      %5416 = vmatmul.mubr.f32.gmra.mrb[0].mxu0 %v5326
      %v5417 = vpop.f32.mrb[0].mxu0
      %v5418 = vadd.f32 %v1810, %v5417
      %v5419 = vpop.f32.mrb[0].mxu0
      %5420 = vdwg.mxu0
      %v5421 = vsel %vm1740, %v5403, -inf
      %5422 = vmax.xlane.f32.xlu0 %v5421
      %v5423 = vpop.xlane.xlu0 %5422
      %v5424 = vsel %vm1740, %v5408, -inf
      %5425 = vmax.xlane.f32.xlu0 %v5424
      %v5426 = vpop.xlane.xlu0 %5425
      %v5427 = vsel %vm1740, %v5413, -inf
      %5428 = vmax.xlane.f32.xlu0 %v5427
      %v5429 = vpop.xlane.xlu0 %5428
      %v5430 = vsel %vm1740, %v5418, -inf
      %5431 = vmax.xlane.f32.xlu0 %v5430
      %v5432 = vpop.xlane.xlu0 %5431
      %v5433 = vsub.f32 %v5403, %v5423
      %v5434 = vsub.f32 %v5408, %v5426
      %v5435 = vsub.f32 %v5413, %v5429
      %v5436 = vsub.f32 %v5418, %v5432
      %v5437 = vmul.f32 %v5433, 1.442695
      %v5438 = vpow.pop %v5437
      %v5439 = vmul.f32 %v5434, 1.442695
      %v5440 = vpow.pop %v5439
      %v5441 = vmul.f32 %v5435, 1.442695
      %v5442 = vpow.pop %v5441
      %v5443 = vmul.f32 %v5436, 1.442695
      %v5444 = vpow.pop %v5443
      %v5445 = vsel %vm1740, %v5438, 0.0
      %5446 = vadd.xlane.f32.xlu0 %v5445
      %v5447 = vpop.xlane.xlu0 %5446
      %v5448 = vsel %vm1740, %v5440, 0.0
      %5449 = vadd.xlane.f32.xlu0 %v5448
      %v5450 = vpop.xlane.xlu0 %5449
      %v5451 = vsel %vm1740, %v5442, 0.0
      %5452 = vadd.xlane.f32.xlu0 %v5451
      %v5453 = vpop.xlane.xlu0 %5452
      %v5454 = vsel %vm1740, %v5444, 0.0
      %5455 = vadd.xlane.f32.xlu0 %v5454
      %v5456 = vpop.xlane.xlu0 %5455
      %v5457 = vrcp.pop %v5447
      %v5458 = vmul.f32 %v5438, %v5457
      %v5459 = vrcp.pop %v5450
      %v5460 = vmul.f32 %v5440, %v5459
      %v5461 = vrcp.pop %v5453
      %v5462 = vmul.f32 %v5442, %v5461
      %v5463 = vrcp.pop %v5456
      %v5464 = vmul.f32 %v5444, %v5463
      %5469 = vrot.lane.b32.xlu0 %v5300, 64
      %v5470 = vpop.permute.xlu0 %5469
      %5471 = vrot.lane.b32.xlu0 %v5301, 64
      %v5472 = vpop.permute.xlu0 %5471
      %5473 = vrot.lane.b32.xlu0 %v5302, 64
      %v5474 = vpop.permute.xlu0 %5473
      %5475 = vrot.lane.b32.xlu0 %v5303, 64
      %v5476 = vpop.permute.xlu0 %5475
      %v5482 = vsel %vm1740, %v5458, 0
      %v5485 = vsel %vm1740, %v5460, 0
      %v5488 = vsel %vm1740, %v5462, 0
      %v5491 = vsel %vm1740, %v5464, 0
      %5493 = vmatprep.subr.mxu0 0.0
      %5494 = vmatpush1.msra.mxu0 %v5470
      %5495 = vmatprep.subr.mxu0 0.0
      %5496 = vmatpush1.msra.mxu0 %v5472
      %5497 = vmatprep.subr.mxu0 0.0
      %5498 = vmatpush1.msra.mxu0 %v5474
      %5499 = vmatprep.subr.mxu0 0.0
      %5500 = vmatpush1.msra.mxu0 %v5476
      %5501 = vmatprep.subr.mxu0 0.0
      %5502 = vmatpush1.msra.mxu0 0.0
      %5503 = vmatprep.subr.mxu0 0.0
      %5504 = vmatpush1.msra.mxu0 0.0
      %5505 = vmatprep.subr.mxu0 0.0
      %5506 = vmatpush1.msra.mxu0 0.0
      %5507 = vmatprep.subr.mxu0 0.0
      %5508 = vmatpush1.msra.mxu0 0.0
      %5509 = vmatprep.subr.mxu0 0.0
      %5510 = vmatpush1.msra.mxu0 0.0
      %5511 = vmatprep.subr.mxu0 0.0
      %5512 = vmatpush1.msra.mxu0 0.0
      %5513 = vmatprep.subr.mxu0 0.0
      %5514 = vmatpush1.msra.mxu0 0.0
      %5515 = vmatprep.subr.mxu0 0.0
      %5516 = vmatpush1.msra.mxu0 0.0
      %5517 = vmatprep.subr.mxu0 0.0
      %5518 = vmatpush1.msra.mxu0 0.0
      %5519 = vmatprep.subr.mxu0 0.0
      %5520 = vmatpush1.msra.mxu0 0.0
      %5521 = vmatprep.subr.mxu0 0.0
      %5522 = vmatpush1.msra.mxu0 0.0
      %5523 = vmatprep.subr.mxu0 0.0
      %5524 = vmatpush1.msra.mxu0 0.0
      %5525 = vmatprep.subr.mxu0 0.0
      %5526 = vmatpush1.msra.mxu0 0.0
      %5527 = vmatprep.subr.mxu0 0.0
      %5528 = vmatpush1.msra.mxu0 0.0
      %5529 = vmatprep.subr.mxu0 0.0
      %5530 = vmatpush1.msra.mxu0 0.0
      %5531 = vmatprep.subr.mxu0 0.0
      %5532 = vmatpush1.msra.mxu0 0.0
      %5533 = vmatprep.subr.mxu0 0.0
      %5534 = vmatpush1.msra.mxu0 0.0
      %5535 = vmatprep.subr.mxu0 0.0
      %5536 = vmatpush1.msra.mxu0 0.0
      %5537 = vmatprep.subr.mxu0 0.0
      %5538 = vmatpush1.msra.mxu0 0.0
      %5539 = vmatprep.subr.mxu0 0.0
      %5540 = vmatpush1.msra.mxu0 0.0
      %5541 = vmatprep.subr.mxu0 0.0
      %5542 = vmatpush1.msra.mxu0 0.0
      %5543 = vmatprep.subr.mxu0 0.0
      %5544 = vmatpush1.msra.mxu0 0.0
      %5545 = vmatprep.subr.mxu0 0.0
      %5546 = vmatpush1.msra.mxu0 0.0
      %5547 = vmatprep.subr.mxu0 0.0
      %5548 = vmatpush1.msra.mxu0 0.0
      %5549 = vmatprep.subr.mxu0 0.0
      %5550 = vmatpush1.msra.mxu0 0.0
      %5551 = vmatprep.subr.mxu0 0.0
      %5552 = vmatpush1.msra.mxu0 0.0
      %5553 = vmatprep.subr.mxu0 0.0
      %5554 = vmatpush1.msra.mxu0 0.0
      %5555 = vmatprep.subr.mxu0 0.0
      %5556 = vmatpush1.msra.mxu0 0.0
      %5557 = vmatprep.mubr.f32.mxu0 0.0
      %5558 = vmatmul.mubr.f32.gmra.mrb[0].mxu0 %v5482
      %v5559 = vpop.f32.mrb[0].mxu0
      %v5560 = vadd.f32 0.0, %v5559
      %v5561 = vpop.f32.mrb[0].mxu0
      %5562 = vmatprep.mubr.f32.mxu0 0.0
      %5563 = vmatmul.mubr.f32.gmra.mrb[0].mxu0 %v5485
      %v5564 = vpop.f32.mrb[0].mxu0
      %v5565 = vadd.f32 0.0, %v5564
      %v5566 = vpop.f32.mrb[0].mxu0
      %5567 = vmatprep.mubr.f32.mxu0 0.0
      %5568 = vmatmul.mubr.f32.gmra.mrb[0].mxu0 %v5488
      %v5569 = vpop.f32.mrb[0].mxu0
      %v5570 = vadd.f32 0.0, %v5569
      %v5571 = vpop.f32.mrb[0].mxu0
      %5572 = vmatprep.mubr.f32.mxu0 0.0
      %5573 = vmatmul.mubr.f32.gmra.mrb[0].mxu0 %v5491
      %v5574 = vpop.f32.mrb[0].mxu0
      %v5575 = vadd.f32 0.0, %v5574
      %v5576 = vpop.f32.mrb[0].mxu0
      %5577 = vdwg.mxu0
      %s5578 = scalar_lea.vmem %s57, 32
      %v5579 = vld [vmem:[%s5578] sm:$0xff]
      %5580 = vrot.lane.b32.xlu0 %v5280, 120
      %v5581 = vpop.permute.xlu0 %5580
      %5582 = vrot.lane.b32.xlu0 %v5281, 120
      %v5583 = vpop.permute.xlu0 %5582
      %5584 = vrot.lane.b32.xlu0 %v5282, 120
      %v5585 = vpop.permute.xlu0 %5584
      %5586 = vrot.lane.b32.xlu0 %v5283, 120
      %v5587 = vpop.permute.xlu0 %5586
      %5588 = vrot.lane.b32.xlu0 %v4874, 88
      %v5589 = vpop.permute.xlu0 %5588
      %5590 = vrot.lane.b32.xlu0 %v4879, 88
      %v5591 = vpop.permute.xlu0 %5590
      %5592 = vrot.lane.b32.xlu0 %v4884, 88
      %v5593 = vpop.permute.xlu0 %5592
      %5594 = vrot.lane.b32.xlu0 %v4889, 88
      %v5595 = vpop.permute.xlu0 %5594
      %v5596 = vsel %vm2413, %v5581, 0
      %v5598 = vsel %vm2413, %v5583, 0
      %v5600 = vsel %vm2413, %v5585, 0
      %v5602 = vsel %vm2413, %v5587, 0
      %v5604 = vsel %vm2413, %v5589, 0
      %v5606 = vsel %vm2413, %v5591, 0
      %v5608 = vsel %vm2413, %v5593, 0
      %v5610 = vsel %vm2413, %v5595, 0
      %5612 = vmatprep.subr.mxu0 0.0
      %5613 = vmatpush1.xpose.msra.mxu0 %v5604
      %5614 = vmatprep.subr.mxu0 0.0
      %5615 = vmatpush1.xpose.msra.mxu0 %v5606
      %5616 = vmatprep.subr.mxu0 0.0
      %5617 = vmatpush1.xpose.msra.mxu0 %v5608
      %5618 = vmatprep.subr.mxu0 0.0
      %5619 = vmatpush1.xpose.msra.mxu0 %v5610
      %5620 = vmatprep.subr.mxu0 0.0
      %5621 = vmatpush1.xpose.msra.mxu0 0.0
      %5622 = vmatprep.subr.mxu0 0.0
      %5623 = vmatpush1.xpose.msra.mxu0 0.0
      %5624 = vmatprep.subr.mxu0 0.0
      %5625 = vmatpush1.xpose.msra.mxu0 0.0
      %5626 = vmatprep.subr.mxu0 0.0
      %5627 = vmatpush1.xpose.msra.mxu0 0.0
      %5628 = vmatprep.subr.mxu0 0.0
      %5629 = vmatpush1.xpose.msra.mxu0 0.0
      %5630 = vmatprep.subr.mxu0 0.0
      %5631 = vmatpush1.xpose.msra.mxu0 0.0
      %5632 = vmatprep.subr.mxu0 0.0
      %5633 = vmatpush1.xpose.msra.mxu0 0.0
      %5634 = vmatprep.subr.mxu0 0.0
      %5635 = vmatpush1.xpose.msra.mxu0 0.0
      %5636 = vmatprep.subr.mxu0 0.0
      %5637 = vmatpush1.xpose.msra.mxu0 0.0
      %5638 = vmatprep.subr.mxu0 0.0
      %5639 = vmatpush1.xpose.msra.mxu0 0.0
      %5640 = vmatprep.subr.mxu0 0.0
      %5641 = vmatpush1.xpose.msra.mxu0 0.0
      %5642 = vmatprep.subr.mxu0 0.0
      %5643 = vmatpush1.xpose.msra.mxu0 0.0
      %5644 = vmatprep.subr.mxu0 0.0
      %5645 = vmatpush1.xpose.msra.mxu0 0.0
      %5646 = vmatprep.subr.mxu0 0.0
      %5647 = vmatpush1.xpose.msra.mxu0 0.0
      %5648 = vmatprep.subr.mxu0 0.0
      %5649 = vmatpush1.xpose.msra.mxu0 0.0
      %5650 = vmatprep.subr.mxu0 0.0
      %5651 = vmatpush1.xpose.msra.mxu0 0.0
      %5652 = vmatprep.subr.mxu0 0.0
      %5653 = vmatpush1.xpose.msra.mxu0 0.0
      %5654 = vmatprep.subr.mxu0 0.0
      %5655 = vmatpush1.xpose.msra.mxu0 0.0
      %5656 = vmatprep.subr.mxu0 0.0
      %5657 = vmatpush1.xpose.msra.mxu0 0.0
      %5658 = vmatprep.subr.mxu0 0.0
      %5659 = vmatpush1.xpose.msra.mxu0 0.0
      %5660 = vmatprep.subr.mxu0 0.0
      %5661 = vmatpush1.xpose.msra.mxu0 0.0
      %5662 = vmatprep.subr.mxu0 0.0
      %5663 = vmatpush1.xpose.msra.mxu0 0.0
      %5664 = vmatprep.subr.mxu0 0.0
      %5665 = vmatpush1.xpose.msra.mxu0 0.0
      %5666 = vmatprep.subr.mxu0 0.0
      %5667 = vmatpush1.xpose.msra.mxu0 0.0
      %5668 = vmatprep.subr.mxu0 0.0
      %5669 = vmatpush1.xpose.msra.mxu0 0.0
      %5670 = vmatprep.subr.mxu0 0.0
      %5671 = vmatpush1.xpose.msra.mxu0 0.0
      %5672 = vmatprep.subr.mxu0 0.0
      %5673 = vmatpush1.xpose.msra.mxu0 0.0
      %5674 = vmatprep.subr.mxu0 0.0
      %5675 = vmatpush1.xpose.msra.mxu0 0.0
      %5676 = vmatprep.mubr.f32.mxu0 0.0
      %5677 = vmatmul.mubr.f32.gmra.mrb[0].mxu0 %v5596
      %v5678 = vpop.f32.mrb[0].mxu0
      %v5679 = vadd.f32 %v1807, %v5678
      %v5680 = vpop.f32.mrb[0].mxu0
      %5681 = vmatprep.mubr.f32.mxu0 0.0
      %5682 = vmatmul.mubr.f32.gmra.mrb[0].mxu0 %v5598
      %v5683 = vpop.f32.mrb[0].mxu0
      %v5684 = vadd.f32 %v1808, %v5683
      %v5685 = vpop.f32.mrb[0].mxu0
      %5686 = vmatprep.mubr.f32.mxu0 0.0
      %5687 = vmatmul.mubr.f32.gmra.mrb[0].mxu0 %v5600
      %v5688 = vpop.f32.mrb[0].mxu0
      %v5689 = vadd.f32 %v1809, %v5688
      %v5690 = vpop.f32.mrb[0].mxu0
      %5691 = vmatprep.mubr.f32.mxu0 0.0
      %5692 = vmatmul.mubr.f32.gmra.mrb[0].mxu0 %v5602
      %v5693 = vpop.f32.mrb[0].mxu0
      %v5694 = vadd.f32 %v1810, %v5693
      %v5695 = vpop.f32.mrb[0].mxu0
      %5696 = vdwg.mxu0
      %v5697 = vsel %vm1740, %v5679, -inf
      %5698 = vmax.xlane.f32.xlu0 %v5697
      %v5699 = vpop.xlane.xlu0 %5698
      %v5700 = vsel %vm1740, %v5684, -inf
      %5701 = vmax.xlane.f32.xlu0 %v5700
      %v5702 = vpop.xlane.xlu0 %5701
      %v5703 = vsel %vm1740, %v5689, -inf
      %5704 = vmax.xlane.f32.xlu0 %v5703
      %v5705 = vpop.xlane.xlu0 %5704
      %v5706 = vsel %vm1740, %v5694, -inf
      %5707 = vmax.xlane.f32.xlu0 %v5706
      %v5708 = vpop.xlane.xlu0 %5707
      %v5709 = vsub.f32 %v5679, %v5699
      %v5710 = vsub.f32 %v5684, %v5702
      %v5711 = vsub.f32 %v5689, %v5705
      %v5712 = vsub.f32 %v5694, %v5708
      %v5713 = vmul.f32 %v5709, 1.442695
      %v5714 = vpow.pop %v5713
      %v5715 = vmul.f32 %v5710, 1.442695
      %v5716 = vpow.pop %v5715
      %v5717 = vmul.f32 %v5711, 1.442695
      %v5718 = vpow.pop %v5717
      %v5719 = vmul.f32 %v5712, 1.442695
      %v5720 = vpow.pop %v5719
      %v5721 = vsel %vm1740, %v5714, 0.0
      %5722 = vadd.xlane.f32.xlu0 %v5721
      %v5723 = vpop.xlane.xlu0 %5722
      %v5724 = vsel %vm1740, %v5716, 0.0
      %5725 = vadd.xlane.f32.xlu0 %v5724
      %v5726 = vpop.xlane.xlu0 %5725
      %v5727 = vsel %vm1740, %v5718, 0.0
      %5728 = vadd.xlane.f32.xlu0 %v5727
      %v5729 = vpop.xlane.xlu0 %5728
      %v5730 = vsel %vm1740, %v5720, 0.0
      %5731 = vadd.xlane.f32.xlu0 %v5730
      %v5732 = vpop.xlane.xlu0 %5731
      %v5733 = vrcp.pop %v5723
      %v5734 = vmul.f32 %v5714, %v5733
      %v5735 = vrcp.pop %v5726
      %v5736 = vmul.f32 %v5716, %v5735
      %v5737 = vrcp.pop %v5729
      %v5738 = vmul.f32 %v5718, %v5737
      %v5739 = vrcp.pop %v5732
      %v5740 = vmul.f32 %v5720, %v5739
      %5741 = vrot.lane.b32.xlu0 %v5300, 56
      %v5742 = vpop.permute.xlu0 %5741
      %5743 = vrot.lane.b32.xlu0 %v5301, 56
      %v5744 = vpop.permute.xlu0 %5743
      %5745 = vrot.lane.b32.xlu0 %v5302, 56
      %v5746 = vpop.permute.xlu0 %5745
      %5747 = vrot.lane.b32.xlu0 %v5303, 56
      %v5748 = vpop.permute.xlu0 %5747
      %v5754 = vsel %vm1740, %v5734, 0
      %v5757 = vsel %vm1740, %v5736, 0
      %v5760 = vsel %vm1740, %v5738, 0
      %v5763 = vsel %vm1740, %v5740, 0
      %5765 = vmatprep.subr.mxu0 0.0
      %5766 = vmatpush1.msra.mxu0 %v5742
      %5767 = vmatprep.subr.mxu0 0.0
      %5768 = vmatpush1.msra.mxu0 %v5744
      %5769 = vmatprep.subr.mxu0 0.0
      %5770 = vmatpush1.msra.mxu0 %v5746
      %5771 = vmatprep.subr.mxu0 0.0
      %5772 = vmatpush1.msra.mxu0 %v5748
      %5773 = vmatprep.subr.mxu0 0.0
      %5774 = vmatpush1.msra.mxu0 0.0
      %5775 = vmatprep.subr.mxu0 0.0
      %5776 = vmatpush1.msra.mxu0 0.0
      %5777 = vmatprep.subr.mxu0 0.0
      %5778 = vmatpush1.msra.mxu0 0.0
      %5779 = vmatprep.subr.mxu0 0.0
      %5780 = vmatpush1.msra.mxu0 0.0
      %5781 = vmatprep.subr.mxu0 0.0
      %5782 = vmatpush1.msra.mxu0 0.0
      %5783 = vmatprep.subr.mxu0 0.0
      %5784 = vmatpush1.msra.mxu0 0.0
      %5785 = vmatprep.subr.mxu0 0.0
      %5786 = vmatpush1.msra.mxu0 0.0
      %5787 = vmatprep.subr.mxu0 0.0
      %5788 = vmatpush1.msra.mxu0 0.0
      %5789 = vmatprep.subr.mxu0 0.0
      %5790 = vmatpush1.msra.mxu0 0.0
      %5791 = vmatprep.subr.mxu0 0.0
      %5792 = vmatpush1.msra.mxu0 0.0
      %5793 = vmatprep.subr.mxu0 0.0
      %5794 = vmatpush1.msra.mxu0 0.0
      %5795 = vmatprep.subr.mxu0 0.0
      %5796 = vmatpush1.msra.mxu0 0.0
      %5797 = vmatprep.subr.mxu0 0.0
      %5798 = vmatpush1.msra.mxu0 0.0
      %5799 = vmatprep.subr.mxu0 0.0
      %5800 = vmatpush1.msra.mxu0 0.0
      %5801 = vmatprep.subr.mxu0 0.0
      %5802 = vmatpush1.msra.mxu0 0.0
      %5803 = vmatprep.subr.mxu0 0.0
      %5804 = vmatpush1.msra.mxu0 0.0
      %5805 = vmatprep.subr.mxu0 0.0
      %5806 = vmatpush1.msra.mxu0 0.0
      %5807 = vmatprep.subr.mxu0 0.0
      %5808 = vmatpush1.msra.mxu0 0.0
      %5809 = vmatprep.subr.mxu0 0.0
      %5810 = vmatpush1.msra.mxu0 0.0
      %5811 = vmatprep.subr.mxu0 0.0
      %5812 = vmatpush1.msra.mxu0 0.0
      %5813 = vmatprep.subr.mxu0 0.0
      %5814 = vmatpush1.msra.mxu0 0.0
      %5815 = vmatprep.subr.mxu0 0.0
      %5816 = vmatpush1.msra.mxu0 0.0
      %5817 = vmatprep.subr.mxu0 0.0
      %5818 = vmatpush1.msra.mxu0 0.0
      %5819 = vmatprep.subr.mxu0 0.0
      %5820 = vmatpush1.msra.mxu0 0.0
      %5821 = vmatprep.subr.mxu0 0.0
      %5822 = vmatpush1.msra.mxu0 0.0
      %5823 = vmatprep.subr.mxu0 0.0
      %5824 = vmatpush1.msra.mxu0 0.0
      %5825 = vmatprep.subr.mxu0 0.0
      %5826 = vmatpush1.msra.mxu0 0.0
      %5827 = vmatprep.subr.mxu0 0.0
      %5828 = vmatpush1.msra.mxu0 0.0
      %5829 = vmatprep.mubr.f32.mxu0 0.0
      %5830 = vmatmul.mubr.f32.gmra.mrb[0].mxu0 %v5754
      %v5831 = vpop.f32.mrb[0].mxu0
      %v5832 = vadd.f32 0.0, %v5831
      %v5833 = vpop.f32.mrb[0].mxu0
      %5834 = vmatprep.mubr.f32.mxu0 0.0
      %5835 = vmatmul.mubr.f32.gmra.mrb[0].mxu0 %v5757
      %v5836 = vpop.f32.mrb[0].mxu0
      %v5837 = vadd.f32 0.0, %v5836
      %v5838 = vpop.f32.mrb[0].mxu0
      %5839 = vmatprep.mubr.f32.mxu0 0.0
      %5840 = vmatmul.mubr.f32.gmra.mrb[0].mxu0 %v5760
      %v5841 = vpop.f32.mrb[0].mxu0
      %v5842 = vadd.f32 0.0, %v5841
      %v5843 = vpop.f32.mrb[0].mxu0
      %5844 = vmatprep.mubr.f32.mxu0 0.0
      %5845 = vmatmul.mubr.f32.gmra.mrb[0].mxu0 %v5763
      %v5846 = vpop.f32.mrb[0].mxu0
      %v5847 = vadd.f32 0.0, %v5846
      %v5848 = vpop.f32.mrb[0].mxu0
      %5849 = vdwg.mxu0
      %s5850 = scalar_lea.vmem %s57, 40
      %v5851 = vld [vmem:[%s5850] sm:$0xff]
      %v5853 = vsel %vm2413, %v5832, 0
      %v5856 = vsel %vm2413, %v5837, 0
      %v5859 = vsel %vm2413, %v5842, 0
      %v5862 = vsel %vm2413, %v5847, 0
      %5864 = vmatprep.subr.mxu0 0.0
      %5865 = vmatpush1.msra.mxu0 %v5851
      %5866 = vmatprep.subr.mxu0 0.0
      %5867 = vmatpush1.msra.mxu0 0.0
      %5868 = vmatprep.subr.mxu0 0.0
      %5869 = vmatpush1.msra.mxu0 0.0
      %5870 = vmatprep.subr.mxu0 0.0
      %5871 = vmatpush1.msra.mxu0 0.0
      %5872 = vmatprep.subr.mxu0 0.0
      %5873 = vmatpush1.msra.mxu0 0.0
      %5874 = vmatprep.subr.mxu0 0.0
      %5875 = vmatpush1.msra.mxu0 0.0
      %5876 = vmatprep.subr.mxu0 0.0
      %5877 = vmatpush1.msra.mxu0 0.0
      %5878 = vmatprep.subr.mxu0 0.0
      %5879 = vmatpush1.msra.mxu0 0.0
      %5880 = vmatprep.subr.mxu0 0.0
      %5881 = vmatpush1.msra.mxu0 0.0
      %5882 = vmatprep.subr.mxu0 0.0
      %5883 = vmatpush1.msra.mxu0 0.0
      %5884 = vmatprep.subr.mxu0 0.0
      %5885 = vmatpush1.msra.mxu0 0.0
      %5886 = vmatprep.subr.mxu0 0.0
      %5887 = vmatpush1.msra.mxu0 0.0
      %5888 = vmatprep.subr.mxu0 0.0
      %5889 = vmatpush1.msra.mxu0 0.0
      %5890 = vmatprep.subr.mxu0 0.0
      %5891 = vmatpush1.msra.mxu0 0.0
      %5892 = vmatprep.subr.mxu0 0.0
      %5893 = vmatpush1.msra.mxu0 0.0
      %5894 = vmatprep.subr.mxu0 0.0
      %5895 = vmatpush1.msra.mxu0 0.0
      %5896 = vmatprep.subr.mxu0 0.0
      %5897 = vmatpush1.msra.mxu0 0.0
      %5898 = vmatprep.subr.mxu0 0.0
      %5899 = vmatpush1.msra.mxu0 0.0
      %5900 = vmatprep.subr.mxu0 0.0
      %5901 = vmatpush1.msra.mxu0 0.0
      %5902 = vmatprep.subr.mxu0 0.0
      %5903 = vmatpush1.msra.mxu0 0.0
      %5904 = vmatprep.subr.mxu0 0.0
      %5905 = vmatpush1.msra.mxu0 0.0
      %5906 = vmatprep.subr.mxu0 0.0
      %5907 = vmatpush1.msra.mxu0 0.0
      %5908 = vmatprep.subr.mxu0 0.0
      %5909 = vmatpush1.msra.mxu0 0.0
      %5910 = vmatprep.subr.mxu0 0.0
      %5911 = vmatpush1.msra.mxu0 0.0
      %5912 = vmatprep.subr.mxu0 0.0
      %5913 = vmatpush1.msra.mxu0 0.0
      %5914 = vmatprep.subr.mxu0 0.0
      %5915 = vmatpush1.msra.mxu0 0.0
      %5916 = vmatprep.subr.mxu0 0.0
      %5917 = vmatpush1.msra.mxu0 0.0
      %5918 = vmatprep.subr.mxu0 0.0
      %5919 = vmatpush1.msra.mxu0 0.0
      %5920 = vmatprep.subr.mxu0 0.0
      %5921 = vmatpush1.msra.mxu0 0.0
      %5922 = vmatprep.subr.mxu0 0.0
      %5923 = vmatpush1.msra.mxu0 0.0
      %5924 = vmatprep.subr.mxu0 0.0
      %5925 = vmatpush1.msra.mxu0 0.0
      %5926 = vmatprep.subr.mxu0 0.0
      %5927 = vmatpush1.msra.mxu0 0.0
      %5928 = vmatprep.mubr.f32.mxu0 0.0
      %5929 = vmatmul.mubr.f32.gmra.mrb[0].mxu0 %v5853
      %v5930 = vpop.f32.mrb[0].mxu0
      %v5931 = vadd.f32 0.0, %v5930
      %v5932 = vpop.f32.mrb[0].mxu0
      %5933 = vmatprep.mubr.f32.mxu0 0.0
      %5934 = vmatmul.mubr.f32.gmra.mrb[0].mxu0 %v5856
      %v5935 = vpop.f32.mrb[0].mxu0
      %v5936 = vadd.f32 0.0, %v5935
      %v5937 = vpop.f32.mrb[0].mxu0
      %5938 = vmatprep.mubr.f32.mxu0 0.0
      %5939 = vmatmul.mubr.f32.gmra.mrb[0].mxu0 %v5859
      %v5940 = vpop.f32.mrb[0].mxu0
      %v5941 = vadd.f32 0.0, %v5940
      %v5942 = vpop.f32.mrb[0].mxu0
      %5943 = vmatprep.mubr.f32.mxu0 0.0
      %5944 = vmatmul.mubr.f32.gmra.mrb[0].mxu0 %v5862
      %v5945 = vpop.f32.mrb[0].mxu0
      %v5946 = vadd.f32 0.0, %v5945
      %v5947 = vpop.f32.mrb[0].mxu0
      %5948 = vdwg.mxu0
      %v5950 = vsel %vm2413, %v5560, 0
      %v5953 = vsel %vm2413, %v5565, 0
      %v5956 = vsel %vm2413, %v5570, 0
      %v5959 = vsel %vm2413, %v5575, 0
      %5961 = vmatprep.subr.mxu0 0.0
      %5962 = vmatpush1.msra.mxu0 %v5579
      %5963 = vmatprep.subr.mxu0 0.0
      %5964 = vmatpush1.msra.mxu0 0.0
      %5965 = vmatprep.subr.mxu0 0.0
      %5966 = vmatpush1.msra.mxu0 0.0
      %5967 = vmatprep.subr.mxu0 0.0
      %5968 = vmatpush1.msra.mxu0 0.0
      %5969 = vmatprep.subr.mxu0 0.0
      %5970 = vmatpush1.msra.mxu0 0.0
      %5971 = vmatprep.subr.mxu0 0.0
      %5972 = vmatpush1.msra.mxu0 0.0
      %5973 = vmatprep.subr.mxu0 0.0
      %5974 = vmatpush1.msra.mxu0 0.0
      %5975 = vmatprep.subr.mxu0 0.0
      %5976 = vmatpush1.msra.mxu0 0.0
      %5977 = vmatprep.subr.mxu0 0.0
      %5978 = vmatpush1.msra.mxu0 0.0
      %5979 = vmatprep.subr.mxu0 0.0
      %5980 = vmatpush1.msra.mxu0 0.0
      %5981 = vmatprep.subr.mxu0 0.0
      %5982 = vmatpush1.msra.mxu0 0.0
      %5983 = vmatprep.subr.mxu0 0.0
      %5984 = vmatpush1.msra.mxu0 0.0
      %5985 = vmatprep.subr.mxu0 0.0
      %5986 = vmatpush1.msra.mxu0 0.0
      %5987 = vmatprep.subr.mxu0 0.0
      %5988 = vmatpush1.msra.mxu0 0.0
      %5989 = vmatprep.subr.mxu0 0.0
      %5990 = vmatpush1.msra.mxu0 0.0
      %5991 = vmatprep.subr.mxu0 0.0
      %5992 = vmatpush1.msra.mxu0 0.0
      %5993 = vmatprep.subr.mxu0 0.0
      %5994 = vmatpush1.msra.mxu0 0.0
      %5995 = vmatprep.subr.mxu0 0.0
      %5996 = vmatpush1.msra.mxu0 0.0
      %5997 = vmatprep.subr.mxu0 0.0
      %5998 = vmatpush1.msra.mxu0 0.0
      %5999 = vmatprep.subr.mxu0 0.0
      %6000 = vmatpush1.msra.mxu0 0.0
      %6001 = vmatprep.subr.mxu0 0.0
      %6002 = vmatpush1.msra.mxu0 0.0
      %6003 = vmatprep.subr.mxu0 0.0
      %6004 = vmatpush1.msra.mxu0 0.0
      %6005 = vmatprep.subr.mxu0 0.0
      %6006 = vmatpush1.msra.mxu0 0.0
      %6007 = vmatprep.subr.mxu0 0.0
      %6008 = vmatpush1.msra.mxu0 0.0
      %6009 = vmatprep.subr.mxu0 0.0
      %6010 = vmatpush1.msra.mxu0 0.0
      %6011 = vmatprep.subr.mxu0 0.0
      %6012 = vmatpush1.msra.mxu0 0.0
      %6013 = vmatprep.subr.mxu0 0.0
      %6014 = vmatpush1.msra.mxu0 0.0
      %6015 = vmatprep.subr.mxu0 0.0
      %6016 = vmatpush1.msra.mxu0 0.0
      %6017 = vmatprep.subr.mxu0 0.0
      %6018 = vmatpush1.msra.mxu0 0.0
      %6019 = vmatprep.subr.mxu0 0.0
      %6020 = vmatpush1.msra.mxu0 0.0
      %6021 = vmatprep.subr.mxu0 0.0
      %6022 = vmatpush1.msra.mxu0 0.0
      %6023 = vmatprep.subr.mxu0 0.0
      %6024 = vmatpush1.msra.mxu0 0.0
      %6025 = vmatprep.mubr.f32.mxu0 0.0
      %6026 = vmatmul.mubr.f32.gmra.mrb[0].mxu0 %v5950
      %v6027 = vpop.f32.mrb[0].mxu0
      %v6028 = vadd.f32 %v5931, %v6027
      %v6029 = vpop.f32.mrb[0].mxu0
      %6030 = vmatprep.mubr.f32.mxu0 0.0
      %6031 = vmatmul.mubr.f32.gmra.mrb[0].mxu0 %v5953
      %v6032 = vpop.f32.mrb[0].mxu0
      %v6033 = vadd.f32 %v5936, %v6032
      %v6034 = vpop.f32.mrb[0].mxu0
      %6035 = vmatprep.mubr.f32.mxu0 0.0
      %6036 = vmatmul.mubr.f32.gmra.mrb[0].mxu0 %v5956
      %v6037 = vpop.f32.mrb[0].mxu0
      %v6038 = vadd.f32 %v5941, %v6037
      %v6039 = vpop.f32.mrb[0].mxu0
      %6040 = vmatprep.mubr.f32.mxu0 0.0
      %6041 = vmatmul.mubr.f32.gmra.mrb[0].mxu0 %v5959
      %v6042 = vpop.f32.mrb[0].mxu0
      %v6043 = vadd.f32 %v5946, %v6042
      %v6044 = vpop.f32.mrb[0].mxu0
      %6045 = vdwg.mxu0
      %6046 = vrot.lane.b32.xlu0 %v5280, 112
      %v6047 = vpop.permute.xlu0 %6046
      %6048 = vrot.lane.b32.xlu0 %v5281, 112
      %v6049 = vpop.permute.xlu0 %6048
      %6050 = vrot.lane.b32.xlu0 %v5282, 112
      %v6051 = vpop.permute.xlu0 %6050
      %6052 = vrot.lane.b32.xlu0 %v5283, 112
      %v6053 = vpop.permute.xlu0 %6052
      %6054 = vrot.lane.b32.xlu0 %v4874, 80
      %v6055 = vpop.permute.xlu0 %6054
      %6056 = vrot.lane.b32.xlu0 %v4879, 80
      %v6057 = vpop.permute.xlu0 %6056
      %6058 = vrot.lane.b32.xlu0 %v4884, 80
      %v6059 = vpop.permute.xlu0 %6058
      %6060 = vrot.lane.b32.xlu0 %v4889, 80
      %v6061 = vpop.permute.xlu0 %6060
      %v6062 = vsel %vm2413, %v6047, 0
      %v6064 = vsel %vm2413, %v6049, 0
      %v6066 = vsel %vm2413, %v6051, 0
      %v6068 = vsel %vm2413, %v6053, 0
      %v6070 = vsel %vm2413, %v6055, 0
      %v6072 = vsel %vm2413, %v6057, 0
      %v6074 = vsel %vm2413, %v6059, 0
      %v6076 = vsel %vm2413, %v6061, 0
      %6078 = vmatprep.subr.mxu0 0.0
      %6079 = vmatpush1.xpose.msra.mxu0 %v6070
      %6080 = vmatprep.subr.mxu0 0.0
      %6081 = vmatpush1.xpose.msra.mxu0 %v6072
      %6082 = vmatprep.subr.mxu0 0.0
      %6083 = vmatpush1.xpose.msra.mxu0 %v6074
      %6084 = vmatprep.subr.mxu0 0.0
      %6085 = vmatpush1.xpose.msra.mxu0 %v6076
      %6086 = vmatprep.subr.mxu0 0.0
      %6087 = vmatpush1.xpose.msra.mxu0 0.0
      %6088 = vmatprep.subr.mxu0 0.0
      %6089 = vmatpush1.xpose.msra.mxu0 0.0
      %6090 = vmatprep.subr.mxu0 0.0
      %6091 = vmatpush1.xpose.msra.mxu0 0.0
      %6092 = vmatprep.subr.mxu0 0.0
      %6093 = vmatpush1.xpose.msra.mxu0 0.0
      %6094 = vmatprep.subr.mxu0 0.0
      %6095 = vmatpush1.xpose.msra.mxu0 0.0
      %6096 = vmatprep.subr.mxu0 0.0
      %6097 = vmatpush1.xpose.msra.mxu0 0.0
      %6098 = vmatprep.subr.mxu0 0.0
      %6099 = vmatpush1.xpose.msra.mxu0 0.0
      %6100 = vmatprep.subr.mxu0 0.0
      %6101 = vmatpush1.xpose.msra.mxu0 0.0
      %6102 = vmatprep.subr.mxu0 0.0
      %6103 = vmatpush1.xpose.msra.mxu0 0.0
      %6104 = vmatprep.subr.mxu0 0.0
      %6105 = vmatpush1.xpose.msra.mxu0 0.0
      %6106 = vmatprep.subr.mxu0 0.0
      %6107 = vmatpush1.xpose.msra.mxu0 0.0
      %6108 = vmatprep.subr.mxu0 0.0
      %6109 = vmatpush1.xpose.msra.mxu0 0.0
      %6110 = vmatprep.subr.mxu0 0.0
      %6111 = vmatpush1.xpose.msra.mxu0 0.0
      %6112 = vmatprep.subr.mxu0 0.0
      %6113 = vmatpush1.xpose.msra.mxu0 0.0
      %6114 = vmatprep.subr.mxu0 0.0
      %6115 = vmatpush1.xpose.msra.mxu0 0.0
      %6116 = vmatprep.subr.mxu0 0.0
      %6117 = vmatpush1.xpose.msra.mxu0 0.0
      %6118 = vmatprep.subr.mxu0 0.0
      %6119 = vmatpush1.xpose.msra.mxu0 0.0
      %6120 = vmatprep.subr.mxu0 0.0
      %6121 = vmatpush1.xpose.msra.mxu0 0.0
      %6122 = vmatprep.subr.mxu0 0.0
      %6123 = vmatpush1.xpose.msra.mxu0 0.0
      %6124 = vmatprep.subr.mxu0 0.0
      %6125 = vmatpush1.xpose.msra.mxu0 0.0
      %6126 = vmatprep.subr.mxu0 0.0
      %6127 = vmatpush1.xpose.msra.mxu0 0.0
      %6128 = vmatprep.subr.mxu0 0.0
      %6129 = vmatpush1.xpose.msra.mxu0 0.0
      %6130 = vmatprep.subr.mxu0 0.0
      %6131 = vmatpush1.xpose.msra.mxu0 0.0
      %6132 = vmatprep.subr.mxu0 0.0
      %6133 = vmatpush1.xpose.msra.mxu0 0.0
      %6134 = vmatprep.subr.mxu0 0.0
      %6135 = vmatpush1.xpose.msra.mxu0 0.0
      %6136 = vmatprep.subr.mxu0 0.0
      %6137 = vmatpush1.xpose.msra.mxu0 0.0
      %6138 = vmatprep.subr.mxu0 0.0
      %6139 = vmatpush1.xpose.msra.mxu0 0.0
      %6140 = vmatprep.subr.mxu0 0.0
      %6141 = vmatpush1.xpose.msra.mxu0 0.0
      %6142 = vmatprep.mubr.f32.mxu0 0.0
      %6143 = vmatmul.mubr.f32.gmra.mrb[0].mxu0 %v6062
      %v6144 = vpop.f32.mrb[0].mxu0
      %v6145 = vadd.f32 %v1807, %v6144
      %v6146 = vpop.f32.mrb[0].mxu0
      %6147 = vmatprep.mubr.f32.mxu0 0.0
      %6148 = vmatmul.mubr.f32.gmra.mrb[0].mxu0 %v6064
      %v6149 = vpop.f32.mrb[0].mxu0
      %v6150 = vadd.f32 %v1808, %v6149
      %v6151 = vpop.f32.mrb[0].mxu0
      %6152 = vmatprep.mubr.f32.mxu0 0.0
      %6153 = vmatmul.mubr.f32.gmra.mrb[0].mxu0 %v6066
      %v6154 = vpop.f32.mrb[0].mxu0
      %v6155 = vadd.f32 %v1809, %v6154
      %v6156 = vpop.f32.mrb[0].mxu0
      %6157 = vmatprep.mubr.f32.mxu0 0.0
      %6158 = vmatmul.mubr.f32.gmra.mrb[0].mxu0 %v6068
      %v6159 = vpop.f32.mrb[0].mxu0
      %v6160 = vadd.f32 %v1810, %v6159
      %v6161 = vpop.f32.mrb[0].mxu0
      %6162 = vdwg.mxu0
      %v6163 = vsel %vm1740, %v6145, -inf
      %6164 = vmax.xlane.f32.xlu0 %v6163
      %v6165 = vpop.xlane.xlu0 %6164
      %v6166 = vsel %vm1740, %v6150, -inf
      %6167 = vmax.xlane.f32.xlu0 %v6166
      %v6168 = vpop.xlane.xlu0 %6167
      %v6169 = vsel %vm1740, %v6155, -inf
      %6170 = vmax.xlane.f32.xlu0 %v6169
      %v6171 = vpop.xlane.xlu0 %6170
      %v6172 = vsel %vm1740, %v6160, -inf
      %6173 = vmax.xlane.f32.xlu0 %v6172
      %v6174 = vpop.xlane.xlu0 %6173
      %v6175 = vsub.f32 %v6145, %v6165
      %v6176 = vsub.f32 %v6150, %v6168
      %v6177 = vsub.f32 %v6155, %v6171
      %v6178 = vsub.f32 %v6160, %v6174
      %v6179 = vmul.f32 %v6175, 1.442695
      %v6180 = vpow.pop %v6179
      %v6181 = vmul.f32 %v6176, 1.442695
      %v6182 = vpow.pop %v6181
      %v6183 = vmul.f32 %v6177, 1.442695
      %v6184 = vpow.pop %v6183
      %v6185 = vmul.f32 %v6178, 1.442695
      %v6186 = vpow.pop %v6185
      %v6187 = vsel %vm1740, %v6180, 0.0
      %6188 = vadd.xlane.f32.xlu0 %v6187
      %v6189 = vpop.xlane.xlu0 %6188
      %v6190 = vsel %vm1740, %v6182, 0.0
      %6191 = vadd.xlane.f32.xlu0 %v6190
      %v6192 = vpop.xlane.xlu0 %6191
      %v6193 = vsel %vm1740, %v6184, 0.0
      %6194 = vadd.xlane.f32.xlu0 %v6193
      %v6195 = vpop.xlane.xlu0 %6194
      %v6196 = vsel %vm1740, %v6186, 0.0
      %6197 = vadd.xlane.f32.xlu0 %v6196
      %v6198 = vpop.xlane.xlu0 %6197
      %v6199 = vrcp.pop %v6189
      %v6200 = vmul.f32 %v6180, %v6199
      %v6201 = vrcp.pop %v6192
      %v6202 = vmul.f32 %v6182, %v6201
      %v6203 = vrcp.pop %v6195
      %v6204 = vmul.f32 %v6184, %v6203
      %v6205 = vrcp.pop %v6198
      %v6206 = vmul.f32 %v6186, %v6205
      %6207 = vrot.lane.b32.xlu0 %v5300, 48
      %v6208 = vpop.permute.xlu0 %6207
      %6209 = vrot.lane.b32.xlu0 %v5301, 48
      %v6210 = vpop.permute.xlu0 %6209
      %6211 = vrot.lane.b32.xlu0 %v5302, 48
      %v6212 = vpop.permute.xlu0 %6211
      %6213 = vrot.lane.b32.xlu0 %v5303, 48
      %v6214 = vpop.permute.xlu0 %6213
      %v6220 = vsel %vm1740, %v6200, 0
      %v6223 = vsel %vm1740, %v6202, 0
      %v6226 = vsel %vm1740, %v6204, 0
      %v6229 = vsel %vm1740, %v6206, 0
      %6231 = vmatprep.subr.mxu0 0.0
      %6232 = vmatpush1.msra.mxu0 %v6208
      %6233 = vmatprep.subr.mxu0 0.0
      %6234 = vmatpush1.msra.mxu0 %v6210
      %6235 = vmatprep.subr.mxu0 0.0
      %6236 = vmatpush1.msra.mxu0 %v6212
      %6237 = vmatprep.subr.mxu0 0.0
      %6238 = vmatpush1.msra.mxu0 %v6214
      %6239 = vmatprep.subr.mxu0 0.0
      %6240 = vmatpush1.msra.mxu0 0.0
      %6241 = vmatprep.subr.mxu0 0.0
      %6242 = vmatpush1.msra.mxu0 0.0
      %6243 = vmatprep.subr.mxu0 0.0
      %6244 = vmatpush1.msra.mxu0 0.0
      %6245 = vmatprep.subr.mxu0 0.0
      %6246 = vmatpush1.msra.mxu0 0.0
      %6247 = vmatprep.subr.mxu0 0.0
      %6248 = vmatpush1.msra.mxu0 0.0
      %6249 = vmatprep.subr.mxu0 0.0
      %6250 = vmatpush1.msra.mxu0 0.0
      %6251 = vmatprep.subr.mxu0 0.0
      %6252 = vmatpush1.msra.mxu0 0.0
      %6253 = vmatprep.subr.mxu0 0.0
      %6254 = vmatpush1.msra.mxu0 0.0
      %6255 = vmatprep.subr.mxu0 0.0
      %6256 = vmatpush1.msra.mxu0 0.0
      %6257 = vmatprep.subr.mxu0 0.0
      %6258 = vmatpush1.msra.mxu0 0.0
      %6259 = vmatprep.subr.mxu0 0.0
      %6260 = vmatpush1.msra.mxu0 0.0
      %6261 = vmatprep.subr.mxu0 0.0
      %6262 = vmatpush1.msra.mxu0 0.0
      %6263 = vmatprep.subr.mxu0 0.0
      %6264 = vmatpush1.msra.mxu0 0.0
      %6265 = vmatprep.subr.mxu0 0.0
      %6266 = vmatpush1.msra.mxu0 0.0
      %6267 = vmatprep.subr.mxu0 0.0
      %6268 = vmatpush1.msra.mxu0 0.0
      %6269 = vmatprep.subr.mxu0 0.0
      %6270 = vmatpush1.msra.mxu0 0.0
      %6271 = vmatprep.subr.mxu0 0.0
      %6272 = vmatpush1.msra.mxu0 0.0
      %6273 = vmatprep.subr.mxu0 0.0
      %6274 = vmatpush1.msra.mxu0 0.0
      %6275 = vmatprep.subr.mxu0 0.0
      %6276 = vmatpush1.msra.mxu0 0.0
      %6277 = vmatprep.subr.mxu0 0.0
      %6278 = vmatpush1.msra.mxu0 0.0
      %6279 = vmatprep.subr.mxu0 0.0
      %6280 = vmatpush1.msra.mxu0 0.0
      %6281 = vmatprep.subr.mxu0 0.0
      %6282 = vmatpush1.msra.mxu0 0.0
      %6283 = vmatprep.subr.mxu0 0.0
      %6284 = vmatpush1.msra.mxu0 0.0
      %6285 = vmatprep.subr.mxu0 0.0
      %6286 = vmatpush1.msra.mxu0 0.0
      %6287 = vmatprep.subr.mxu0 0.0
      %6288 = vmatpush1.msra.mxu0 0.0
      %6289 = vmatprep.subr.mxu0 0.0
      %6290 = vmatpush1.msra.mxu0 0.0
      %6291 = vmatprep.subr.mxu0 0.0
      %6292 = vmatpush1.msra.mxu0 0.0
      %6293 = vmatprep.subr.mxu0 0.0
      %6294 = vmatpush1.msra.mxu0 0.0
      %6295 = vmatprep.mubr.f32.mxu0 0.0
      %6296 = vmatmul.mubr.f32.gmra.mrb[0].mxu0 %v6220
      %v6297 = vpop.f32.mrb[0].mxu0
      %v6298 = vadd.f32 0.0, %v6297
      %v6299 = vpop.f32.mrb[0].mxu0
      %6300 = vmatprep.mubr.f32.mxu0 0.0
      %6301 = vmatmul.mubr.f32.gmra.mrb[0].mxu0 %v6223
      %v6302 = vpop.f32.mrb[0].mxu0
      %v6303 = vadd.f32 0.0, %v6302
      %v6304 = vpop.f32.mrb[0].mxu0
      %6305 = vmatprep.mubr.f32.mxu0 0.0
      %6306 = vmatmul.mubr.f32.gmra.mrb[0].mxu0 %v6226
      %v6307 = vpop.f32.mrb[0].mxu0
      %v6308 = vadd.f32 0.0, %v6307
      %v6309 = vpop.f32.mrb[0].mxu0
      %6310 = vmatprep.mubr.f32.mxu0 0.0
      %6311 = vmatmul.mubr.f32.gmra.mrb[0].mxu0 %v6229
      %v6312 = vpop.f32.mrb[0].mxu0
      %v6313 = vadd.f32 0.0, %v6312
      %v6314 = vpop.f32.mrb[0].mxu0
      %6315 = vdwg.mxu0
      %s6316 = scalar_lea.vmem %s57, 48
      %v6317 = vld [vmem:[%s6316] sm:$0xff]
      %v6319 = vsel %vm2413, %v6298, 0
      %v6322 = vsel %vm2413, %v6303, 0
      %v6325 = vsel %vm2413, %v6308, 0
      %v6328 = vsel %vm2413, %v6313, 0
      %6330 = vmatprep.subr.mxu0 0.0
      %6331 = vmatpush1.msra.mxu0 %v6317
      %6332 = vmatprep.subr.mxu0 0.0
      %6333 = vmatpush1.msra.mxu0 0.0
      %6334 = vmatprep.subr.mxu0 0.0
      %6335 = vmatpush1.msra.mxu0 0.0
      %6336 = vmatprep.subr.mxu0 0.0
      %6337 = vmatpush1.msra.mxu0 0.0
      %6338 = vmatprep.subr.mxu0 0.0
      %6339 = vmatpush1.msra.mxu0 0.0
      %6340 = vmatprep.subr.mxu0 0.0
      %6341 = vmatpush1.msra.mxu0 0.0
      %6342 = vmatprep.subr.mxu0 0.0
      %6343 = vmatpush1.msra.mxu0 0.0
      %6344 = vmatprep.subr.mxu0 0.0
      %6345 = vmatpush1.msra.mxu0 0.0
      %6346 = vmatprep.subr.mxu0 0.0
      %6347 = vmatpush1.msra.mxu0 0.0
      %6348 = vmatprep.subr.mxu0 0.0
      %6349 = vmatpush1.msra.mxu0 0.0
      %6350 = vmatprep.subr.mxu0 0.0
      %6351 = vmatpush1.msra.mxu0 0.0
      %6352 = vmatprep.subr.mxu0 0.0
      %6353 = vmatpush1.msra.mxu0 0.0
      %6354 = vmatprep.subr.mxu0 0.0
      %6355 = vmatpush1.msra.mxu0 0.0
      %6356 = vmatprep.subr.mxu0 0.0
      %6357 = vmatpush1.msra.mxu0 0.0
      %6358 = vmatprep.subr.mxu0 0.0
      %6359 = vmatpush1.msra.mxu0 0.0
      %6360 = vmatprep.subr.mxu0 0.0
      %6361 = vmatpush1.msra.mxu0 0.0
      %6362 = vmatprep.subr.mxu0 0.0
      %6363 = vmatpush1.msra.mxu0 0.0
      %6364 = vmatprep.subr.mxu0 0.0
      %6365 = vmatpush1.msra.mxu0 0.0
      %6366 = vmatprep.subr.mxu0 0.0
      %6367 = vmatpush1.msra.mxu0 0.0
      %6368 = vmatprep.subr.mxu0 0.0
      %6369 = vmatpush1.msra.mxu0 0.0
      %6370 = vmatprep.subr.mxu0 0.0
      %6371 = vmatpush1.msra.mxu0 0.0
      %6372 = vmatprep.subr.mxu0 0.0
      %6373 = vmatpush1.msra.mxu0 0.0
      %6374 = vmatprep.subr.mxu0 0.0
      %6375 = vmatpush1.msra.mxu0 0.0
      %6376 = vmatprep.subr.mxu0 0.0
      %6377 = vmatpush1.msra.mxu0 0.0
      %6378 = vmatprep.subr.mxu0 0.0
      %6379 = vmatpush1.msra.mxu0 0.0
      %6380 = vmatprep.subr.mxu0 0.0
      %6381 = vmatpush1.msra.mxu0 0.0
      %6382 = vmatprep.subr.mxu0 0.0
      %6383 = vmatpush1.msra.mxu0 0.0
      %6384 = vmatprep.subr.mxu0 0.0
      %6385 = vmatpush1.msra.mxu0 0.0
      %6386 = vmatprep.subr.mxu0 0.0
      %6387 = vmatpush1.msra.mxu0 0.0
      %6388 = vmatprep.subr.mxu0 0.0
      %6389 = vmatpush1.msra.mxu0 0.0
      %6390 = vmatprep.subr.mxu0 0.0
      %6391 = vmatpush1.msra.mxu0 0.0
      %6392 = vmatprep.subr.mxu0 0.0
      %6393 = vmatpush1.msra.mxu0 0.0
      %6394 = vmatprep.mubr.f32.mxu0 0.0
      %6395 = vmatmul.mubr.f32.gmra.mrb[0].mxu0 %v6319
      %v6396 = vpop.f32.mrb[0].mxu0
      %v6397 = vadd.f32 0.0, %v6396
      %v6398 = vpop.f32.mrb[0].mxu0
      %6399 = vmatprep.mubr.f32.mxu0 0.0
      %6400 = vmatmul.mubr.f32.gmra.mrb[0].mxu0 %v6322
      %v6401 = vpop.f32.mrb[0].mxu0
      %v6402 = vadd.f32 0.0, %v6401
      %v6403 = vpop.f32.mrb[0].mxu0
      %6404 = vmatprep.mubr.f32.mxu0 0.0
      %6405 = vmatmul.mubr.f32.gmra.mrb[0].mxu0 %v6325
      %v6406 = vpop.f32.mrb[0].mxu0
      %v6407 = vadd.f32 0.0, %v6406
      %v6408 = vpop.f32.mrb[0].mxu0
      %6409 = vmatprep.mubr.f32.mxu0 0.0
      %6410 = vmatmul.mubr.f32.gmra.mrb[0].mxu0 %v6328
      %v6411 = vpop.f32.mrb[0].mxu0
      %v6412 = vadd.f32 0.0, %v6411
      %v6413 = vpop.f32.mrb[0].mxu0
      %6414 = vdwg.mxu0
      %v6415 = vadd.f32 %v6028, %v6397
      %v6416 = vadd.f32 %v6033, %v6402
      %v6417 = vadd.f32 %v6038, %v6407
      %v6418 = vadd.f32 %v6043, %v6412
      %6419 = vrot.lane.b32.xlu0 %v5280, 104
      %v6420 = vpop.permute.xlu0 %6419
      %6421 = vrot.lane.b32.xlu0 %v5281, 104
      %v6422 = vpop.permute.xlu0 %6421
      %6423 = vrot.lane.b32.xlu0 %v5282, 104
      %v6424 = vpop.permute.xlu0 %6423
      %6425 = vrot.lane.b32.xlu0 %v5283, 104
      %v6426 = vpop.permute.xlu0 %6425
      %6427 = vrot.lane.b32.xlu0 %v4874, 72
      %v6428 = vpop.permute.xlu0 %6427
      %6429 = vrot.lane.b32.xlu0 %v4879, 72
      %v6430 = vpop.permute.xlu0 %6429
      %6431 = vrot.lane.b32.xlu0 %v4884, 72
      %v6432 = vpop.permute.xlu0 %6431
      %6433 = vrot.lane.b32.xlu0 %v4889, 72
      %v6434 = vpop.permute.xlu0 %6433
      %v6435 = vsel %vm2413, %v6420, 0
      %v6437 = vsel %vm2413, %v6422, 0
      %v6439 = vsel %vm2413, %v6424, 0
      %v6441 = vsel %vm2413, %v6426, 0
      %v6443 = vsel %vm2413, %v6428, 0
      %v6445 = vsel %vm2413, %v6430, 0
      %v6447 = vsel %vm2413, %v6432, 0
      %v6449 = vsel %vm2413, %v6434, 0
      %6451 = vmatprep.subr.mxu0 0.0
      %6452 = vmatpush1.xpose.msra.mxu0 %v6443
      %6453 = vmatprep.subr.mxu0 0.0
      %6454 = vmatpush1.xpose.msra.mxu0 %v6445
      %6455 = vmatprep.subr.mxu0 0.0
      %6456 = vmatpush1.xpose.msra.mxu0 %v6447
      %6457 = vmatprep.subr.mxu0 0.0
      %6458 = vmatpush1.xpose.msra.mxu0 %v6449
      %6459 = vmatprep.subr.mxu0 0.0
      %6460 = vmatpush1.xpose.msra.mxu0 0.0
      %6461 = vmatprep.subr.mxu0 0.0
      %6462 = vmatpush1.xpose.msra.mxu0 0.0
      %6463 = vmatprep.subr.mxu0 0.0
      %6464 = vmatpush1.xpose.msra.mxu0 0.0
      %6465 = vmatprep.subr.mxu0 0.0
      %6466 = vmatpush1.xpose.msra.mxu0 0.0
      %6467 = vmatprep.subr.mxu0 0.0
      %6468 = vmatpush1.xpose.msra.mxu0 0.0
      %6469 = vmatprep.subr.mxu0 0.0
      %6470 = vmatpush1.xpose.msra.mxu0 0.0
      %6471 = vmatprep.subr.mxu0 0.0
      %6472 = vmatpush1.xpose.msra.mxu0 0.0
      %6473 = vmatprep.subr.mxu0 0.0
      %6474 = vmatpush1.xpose.msra.mxu0 0.0
      %6475 = vmatprep.subr.mxu0 0.0
      %6476 = vmatpush1.xpose.msra.mxu0 0.0
      %6477 = vmatprep.subr.mxu0 0.0
      %6478 = vmatpush1.xpose.msra.mxu0 0.0
      %6479 = vmatprep.subr.mxu0 0.0
      %6480 = vmatpush1.xpose.msra.mxu0 0.0
      %6481 = vmatprep.subr.mxu0 0.0
      %6482 = vmatpush1.xpose.msra.mxu0 0.0
      %6483 = vmatprep.subr.mxu0 0.0
      %6484 = vmatpush1.xpose.msra.mxu0 0.0
      %6485 = vmatprep.subr.mxu0 0.0
      %6486 = vmatpush1.xpose.msra.mxu0 0.0
      %6487 = vmatprep.subr.mxu0 0.0
      %6488 = vmatpush1.xpose.msra.mxu0 0.0
      %6489 = vmatprep.subr.mxu0 0.0
      %6490 = vmatpush1.xpose.msra.mxu0 0.0
      %6491 = vmatprep.subr.mxu0 0.0
      %6492 = vmatpush1.xpose.msra.mxu0 0.0
      %6493 = vmatprep.subr.mxu0 0.0
      %6494 = vmatpush1.xpose.msra.mxu0 0.0
      %6495 = vmatprep.subr.mxu0 0.0
      %6496 = vmatpush1.xpose.msra.mxu0 0.0
      %6497 = vmatprep.subr.mxu0 0.0
      %6498 = vmatpush1.xpose.msra.mxu0 0.0
      %6499 = vmatprep.subr.mxu0 0.0
      %6500 = vmatpush1.xpose.msra.mxu0 0.0
      %6501 = vmatprep.subr.mxu0 0.0
      %6502 = vmatpush1.xpose.msra.mxu0 0.0
      %6503 = vmatprep.subr.mxu0 0.0
      %6504 = vmatpush1.xpose.msra.mxu0 0.0
      %6505 = vmatprep.subr.mxu0 0.0
      %6506 = vmatpush1.xpose.msra.mxu0 0.0
      %6507 = vmatprep.subr.mxu0 0.0
      %6508 = vmatpush1.xpose.msra.mxu0 0.0
      %6509 = vmatprep.subr.mxu0 0.0
      %6510 = vmatpush1.xpose.msra.mxu0 0.0
      %6511 = vmatprep.subr.mxu0 0.0
      %6512 = vmatpush1.xpose.msra.mxu0 0.0
      %6513 = vmatprep.subr.mxu0 0.0
      %6514 = vmatpush1.xpose.msra.mxu0 0.0
      %6515 = vmatprep.mubr.f32.mxu0 0.0
      %6516 = vmatmul.mubr.f32.gmra.mrb[0].mxu0 %v6435
      %v6517 = vpop.f32.mrb[0].mxu0
      %v6518 = vadd.f32 %v1807, %v6517
      %v6519 = vpop.f32.mrb[0].mxu0
      %6520 = vmatprep.mubr.f32.mxu0 0.0
      %6521 = vmatmul.mubr.f32.gmra.mrb[0].mxu0 %v6437
      %v6522 = vpop.f32.mrb[0].mxu0
      %v6523 = vadd.f32 %v1808, %v6522
      %v6524 = vpop.f32.mrb[0].mxu0
      %6525 = vmatprep.mubr.f32.mxu0 0.0
      %6526 = vmatmul.mubr.f32.gmra.mrb[0].mxu0 %v6439
      %v6527 = vpop.f32.mrb[0].mxu0
      %v6528 = vadd.f32 %v1809, %v6527
      %v6529 = vpop.f32.mrb[0].mxu0
      %6530 = vmatprep.mubr.f32.mxu0 0.0
      %6531 = vmatmul.mubr.f32.gmra.mrb[0].mxu0 %v6441
      %v6532 = vpop.f32.mrb[0].mxu0
      %v6533 = vadd.f32 %v1810, %v6532
      %v6534 = vpop.f32.mrb[0].mxu0
      %6535 = vdwg.mxu0
      %v6536 = vsel %vm1740, %v6518, -inf
      %6537 = vmax.xlane.f32.xlu0 %v6536
      %v6538 = vpop.xlane.xlu0 %6537
      %v6539 = vsel %vm1740, %v6523, -inf
      %6540 = vmax.xlane.f32.xlu0 %v6539
      %v6541 = vpop.xlane.xlu0 %6540
      %v6542 = vsel %vm1740, %v6528, -inf
      %6543 = vmax.xlane.f32.xlu0 %v6542
      %v6544 = vpop.xlane.xlu0 %6543
      %v6545 = vsel %vm1740, %v6533, -inf
      %6546 = vmax.xlane.f32.xlu0 %v6545
      %v6547 = vpop.xlane.xlu0 %6546
      %v6548 = vsub.f32 %v6518, %v6538
      %v6549 = vsub.f32 %v6523, %v6541
      %v6550 = vsub.f32 %v6528, %v6544
      %v6551 = vsub.f32 %v6533, %v6547
      %v6552 = vmul.f32 %v6548, 1.442695
      %v6553 = vpow.pop %v6552
      %v6554 = vmul.f32 %v6549, 1.442695
      %v6555 = vpow.pop %v6554
      %v6556 = vmul.f32 %v6550, 1.442695
      %v6557 = vpow.pop %v6556
      %v6558 = vmul.f32 %v6551, 1.442695
      %v6559 = vpow.pop %v6558
      %v6560 = vsel %vm1740, %v6553, 0.0
      %6561 = vadd.xlane.f32.xlu0 %v6560
      %v6562 = vpop.xlane.xlu0 %6561
      %v6563 = vsel %vm1740, %v6555, 0.0
      %6564 = vadd.xlane.f32.xlu0 %v6563
      %v6565 = vpop.xlane.xlu0 %6564
      %v6566 = vsel %vm1740, %v6557, 0.0
      %6567 = vadd.xlane.f32.xlu0 %v6566
      %v6568 = vpop.xlane.xlu0 %6567
      %v6569 = vsel %vm1740, %v6559, 0.0
      %6570 = vadd.xlane.f32.xlu0 %v6569
      %v6571 = vpop.xlane.xlu0 %6570
      %v6572 = vrcp.pop %v6562
      %v6573 = vmul.f32 %v6553, %v6572
      %v6574 = vrcp.pop %v6565
      %v6575 = vmul.f32 %v6555, %v6574
      %v6576 = vrcp.pop %v6568
      %v6577 = vmul.f32 %v6557, %v6576
      %v6578 = vrcp.pop %v6571
      %v6579 = vmul.f32 %v6559, %v6578
      %6580 = vrot.lane.b32.xlu0 %v5300, 40
      %v6581 = vpop.permute.xlu0 %6580
      %6582 = vrot.lane.b32.xlu0 %v5301, 40
      %v6583 = vpop.permute.xlu0 %6582
      %6584 = vrot.lane.b32.xlu0 %v5302, 40
      %v6585 = vpop.permute.xlu0 %6584
      %6586 = vrot.lane.b32.xlu0 %v5303, 40
      %v6587 = vpop.permute.xlu0 %6586
      %v6593 = vsel %vm1740, %v6573, 0
      %v6596 = vsel %vm1740, %v6575, 0
      %v6599 = vsel %vm1740, %v6577, 0
      %v6602 = vsel %vm1740, %v6579, 0
      %6604 = vmatprep.subr.mxu0 0.0
      %6605 = vmatpush1.msra.mxu0 %v6581
      %6606 = vmatprep.subr.mxu0 0.0
      %6607 = vmatpush1.msra.mxu0 %v6583
      %6608 = vmatprep.subr.mxu0 0.0
      %6609 = vmatpush1.msra.mxu0 %v6585
      %6610 = vmatprep.subr.mxu0 0.0
      %6611 = vmatpush1.msra.mxu0 %v6587
      %6612 = vmatprep.subr.mxu0 0.0
      %6613 = vmatpush1.msra.mxu0 0.0
      %6614 = vmatprep.subr.mxu0 0.0
      %6615 = vmatpush1.msra.mxu0 0.0
      %6616 = vmatprep.subr.mxu0 0.0
      %6617 = vmatpush1.msra.mxu0 0.0
      %6618 = vmatprep.subr.mxu0 0.0
      %6619 = vmatpush1.msra.mxu0 0.0
      %6620 = vmatprep.subr.mxu0 0.0
      %6621 = vmatpush1.msra.mxu0 0.0
      %6622 = vmatprep.subr.mxu0 0.0
      %6623 = vmatpush1.msra.mxu0 0.0
      %6624 = vmatprep.subr.mxu0 0.0
      %6625 = vmatpush1.msra.mxu0 0.0
      %6626 = vmatprep.subr.mxu0 0.0
      %6627 = vmatpush1.msra.mxu0 0.0
      %6628 = vmatprep.subr.mxu0 0.0
      %6629 = vmatpush1.msra.mxu0 0.0
      %6630 = vmatprep.subr.mxu0 0.0
      %6631 = vmatpush1.msra.mxu0 0.0
      %6632 = vmatprep.subr.mxu0 0.0
      %6633 = vmatpush1.msra.mxu0 0.0
      %6634 = vmatprep.subr.mxu0 0.0
      %6635 = vmatpush1.msra.mxu0 0.0
      %6636 = vmatprep.subr.mxu0 0.0
      %6637 = vmatpush1.msra.mxu0 0.0
      %6638 = vmatprep.subr.mxu0 0.0
      %6639 = vmatpush1.msra.mxu0 0.0
      %6640 = vmatprep.subr.mxu0 0.0
      %6641 = vmatpush1.msra.mxu0 0.0
      %6642 = vmatprep.subr.mxu0 0.0
      %6643 = vmatpush1.msra.mxu0 0.0
      %6644 = vmatprep.subr.mxu0 0.0
      %6645 = vmatpush1.msra.mxu0 0.0
      %6646 = vmatprep.subr.mxu0 0.0
      %6647 = vmatpush1.msra.mxu0 0.0
      %6648 = vmatprep.subr.mxu0 0.0
      %6649 = vmatpush1.msra.mxu0 0.0
      %6650 = vmatprep.subr.mxu0 0.0
      %6651 = vmatpush1.msra.mxu0 0.0
      %6652 = vmatprep.subr.mxu0 0.0
      %6653 = vmatpush1.msra.mxu0 0.0
      %6654 = vmatprep.subr.mxu0 0.0
      %6655 = vmatpush1.msra.mxu0 0.0
      %6656 = vmatprep.subr.mxu0 0.0
      %6657 = vmatpush1.msra.mxu0 0.0
      %6658 = vmatprep.subr.mxu0 0.0
      %6659 = vmatpush1.msra.mxu0 0.0
      %6660 = vmatprep.subr.mxu0 0.0
      %6661 = vmatpush1.msra.mxu0 0.0
      %6662 = vmatprep.subr.mxu0 0.0
      %6663 = vmatpush1.msra.mxu0 0.0
      %6664 = vmatprep.subr.mxu0 0.0
      %6665 = vmatpush1.msra.mxu0 0.0
      %6666 = vmatprep.subr.mxu0 0.0
      %6667 = vmatpush1.msra.mxu0 0.0
      %6668 = vmatprep.mubr.f32.mxu0 0.0
      %6669 = vmatmul.mubr.f32.gmra.mrb[0].mxu0 %v6593
      %v6670 = vpop.f32.mrb[0].mxu0
      %v6671 = vadd.f32 0.0, %v6670
      %v6672 = vpop.f32.mrb[0].mxu0
      %6673 = vmatprep.mubr.f32.mxu0 0.0
      %6674 = vmatmul.mubr.f32.gmra.mrb[0].mxu0 %v6596
      %v6675 = vpop.f32.mrb[0].mxu0
      %v6676 = vadd.f32 0.0, %v6675
      %v6677 = vpop.f32.mrb[0].mxu0
      %6678 = vmatprep.mubr.f32.mxu0 0.0
      %6679 = vmatmul.mubr.f32.gmra.mrb[0].mxu0 %v6599
      %v6680 = vpop.f32.mrb[0].mxu0
      %v6681 = vadd.f32 0.0, %v6680
      %v6682 = vpop.f32.mrb[0].mxu0
      %6683 = vmatprep.mubr.f32.mxu0 0.0
      %6684 = vmatmul.mubr.f32.gmra.mrb[0].mxu0 %v6602
      %v6685 = vpop.f32.mrb[0].mxu0
      %v6686 = vadd.f32 0.0, %v6685
      %v6687 = vpop.f32.mrb[0].mxu0
      %6688 = vdwg.mxu0
      %s6689 = scalar_lea.vmem %s57, 56
      %v6690 = vld [vmem:[%s6689] sm:$0xff]
      %v6692 = vsel %vm2413, %v6671, 0
      %v6695 = vsel %vm2413, %v6676, 0
      %v6698 = vsel %vm2413, %v6681, 0
      %v6701 = vsel %vm2413, %v6686, 0
      %6703 = vmatprep.subr.mxu0 0.0
      %6704 = vmatpush1.msra.mxu0 %v6690
      %6705 = vmatprep.subr.mxu0 0.0
      %6706 = vmatpush1.msra.mxu0 0.0
      %6707 = vmatprep.subr.mxu0 0.0
      %6708 = vmatpush1.msra.mxu0 0.0
      %6709 = vmatprep.subr.mxu0 0.0
      %6710 = vmatpush1.msra.mxu0 0.0
      %6711 = vmatprep.subr.mxu0 0.0
      %6712 = vmatpush1.msra.mxu0 0.0
      %6713 = vmatprep.subr.mxu0 0.0
      %6714 = vmatpush1.msra.mxu0 0.0
      %6715 = vmatprep.subr.mxu0 0.0
      %6716 = vmatpush1.msra.mxu0 0.0
      %6717 = vmatprep.subr.mxu0 0.0
      %6718 = vmatpush1.msra.mxu0 0.0
      %6719 = vmatprep.subr.mxu0 0.0
      %6720 = vmatpush1.msra.mxu0 0.0
      %6721 = vmatprep.subr.mxu0 0.0
      %6722 = vmatpush1.msra.mxu0 0.0
      %6723 = vmatprep.subr.mxu0 0.0
      %6724 = vmatpush1.msra.mxu0 0.0
      %6725 = vmatprep.subr.mxu0 0.0
      %6726 = vmatpush1.msra.mxu0 0.0
      %6727 = vmatprep.subr.mxu0 0.0
      %6728 = vmatpush1.msra.mxu0 0.0
      %6729 = vmatprep.subr.mxu0 0.0
      %6730 = vmatpush1.msra.mxu0 0.0
      %6731 = vmatprep.subr.mxu0 0.0
      %6732 = vmatpush1.msra.mxu0 0.0
      %6733 = vmatprep.subr.mxu0 0.0
      %6734 = vmatpush1.msra.mxu0 0.0
      %6735 = vmatprep.subr.mxu0 0.0
      %6736 = vmatpush1.msra.mxu0 0.0
      %6737 = vmatprep.subr.mxu0 0.0
      %6738 = vmatpush1.msra.mxu0 0.0
      %6739 = vmatprep.subr.mxu0 0.0
      %6740 = vmatpush1.msra.mxu0 0.0
      %6741 = vmatprep.subr.mxu0 0.0
      %6742 = vmatpush1.msra.mxu0 0.0
      %6743 = vmatprep.subr.mxu0 0.0
      %6744 = vmatpush1.msra.mxu0 0.0
      %6745 = vmatprep.subr.mxu0 0.0
      %6746 = vmatpush1.msra.mxu0 0.0
      %6747 = vmatprep.subr.mxu0 0.0
      %6748 = vmatpush1.msra.mxu0 0.0
      %6749 = vmatprep.subr.mxu0 0.0
      %6750 = vmatpush1.msra.mxu0 0.0
      %6751 = vmatprep.subr.mxu0 0.0
      %6752 = vmatpush1.msra.mxu0 0.0
      %6753 = vmatprep.subr.mxu0 0.0
      %6754 = vmatpush1.msra.mxu0 0.0
      %6755 = vmatprep.subr.mxu0 0.0
      %6756 = vmatpush1.msra.mxu0 0.0
      %6757 = vmatprep.subr.mxu0 0.0
      %6758 = vmatpush1.msra.mxu0 0.0
      %6759 = vmatprep.subr.mxu0 0.0
      %6760 = vmatpush1.msra.mxu0 0.0
      %6761 = vmatprep.subr.mxu0 0.0
      %6762 = vmatpush1.msra.mxu0 0.0
      %6763 = vmatprep.subr.mxu0 0.0
      %6764 = vmatpush1.msra.mxu0 0.0
      %6765 = vmatprep.subr.mxu0 0.0
      %6766 = vmatpush1.msra.mxu0 0.0
      %6767 = vmatprep.mubr.f32.mxu0 0.0
      %6768 = vmatmul.mubr.f32.gmra.mrb[0].mxu0 %v6692
      %v6769 = vpop.f32.mrb[0].mxu0
      %v6770 = vadd.f32 0.0, %v6769
      %v6771 = vpop.f32.mrb[0].mxu0
      %6772 = vmatprep.mubr.f32.mxu0 0.0
      %6773 = vmatmul.mubr.f32.gmra.mrb[0].mxu0 %v6695
      %v6774 = vpop.f32.mrb[0].mxu0
      %v6775 = vadd.f32 0.0, %v6774
      %v6776 = vpop.f32.mrb[0].mxu0
      %6777 = vmatprep.mubr.f32.mxu0 0.0
      %6778 = vmatmul.mubr.f32.gmra.mrb[0].mxu0 %v6698
      %v6779 = vpop.f32.mrb[0].mxu0
      %v6780 = vadd.f32 0.0, %v6779
      %v6781 = vpop.f32.mrb[0].mxu0
      %6782 = vmatprep.mubr.f32.mxu0 0.0
      %6783 = vmatmul.mubr.f32.gmra.mrb[0].mxu0 %v6701
      %v6784 = vpop.f32.mrb[0].mxu0
      %v6785 = vadd.f32 0.0, %v6784
      %v6786 = vpop.f32.mrb[0].mxu0
      %6787 = vdwg.mxu0
      %v6788 = vadd.f32 %v6415, %v6770
      %v6789 = vadd.f32 %v6416, %v6775
      %v6790 = vadd.f32 %v6417, %v6780
      %v6791 = vadd.f32 %v6418, %v6785
      %v6792 = vadd.f32 %v4702, %v6788
      %v6793 = vadd.f32 %v4703, %v6789
      %v6794 = vadd.f32 %v4704, %v6790
      %v6795 = vadd.f32 %v4705, %v6791
      %s6796 = scalar_lea.vmem %s59, 1
      %v6797 = vld [vmem:[%s6796] sm:$0x1]
      %v6799 = vlaneseq
      %v6800 = vshrl.u32 %v6799, 7
      %v6801 = vsub.s32 0, %v6800
      %v6802 = vrot.slane %v6797, %v6801
      %v6804 = vadd.f32 %v6792, %v6802
      %v6805 = vadd.f32 %v6793, %v6802
      %v6806 = vadd.f32 %v6794, %v6802
      %v6807 = vadd.f32 %v6795, %v6802
      %s6808 = scalar_lea.vmem %s61, 1
      %v6809 = vld [vmem:[%s6808] sm:$0x1]
      %s6810 = scalar_lea.vmem %s63, 1
      %v6811 = vld [vmem:[%s6810] sm:$0x1]
      %v6812 = vsel %vm1740, %v6804, 0.0
      %6813 = vadd.xlane.f32.xlu0 %v6812
      %v6814 = vpop.xlane.xlu0 %6813
      %v6815 = vsel %vm1740, %v6805, 0.0
      %6816 = vadd.xlane.f32.xlu0 %v6815
      %v6817 = vpop.xlane.xlu0 %6816
      %v6818 = vsel %vm1740, %v6806, 0.0
      %6819 = vadd.xlane.f32.xlu0 %v6818
      %v6820 = vpop.xlane.xlu0 %6819
      %v6821 = vsel %vm1740, %v6807, 0.0
      %6822 = vadd.xlane.f32.xlu0 %v6821
      %v6823 = vpop.xlane.xlu0 %6822
      %v6824 = vmul.f32 %v6814, %v1726
      %v6825 = vmul.f32 %v6817, %v1726
      %v6826 = vmul.f32 %v6820, %v1726
      %v6827 = vmul.f32 %v6823, %v1726
      %v6828 = vsub.f32 %v6804, %v6824
      %v6829 = vsub.f32 %v6805, %v6825
      %v6830 = vsub.f32 %v6806, %v6826
      %v6831 = vsub.f32 %v6807, %v6827
      %v6832 = vmul.f32 %v6828, %v6828
      %v6833 = vmul.f32 %v6829, %v6829
      %v6834 = vmul.f32 %v6830, %v6830
      %v6835 = vmul.f32 %v6831, %v6831
      %v6836 = vsel %vm1740, %v6832, 0.0
      %6837 = vadd.xlane.f32.xlu0 %v6836
      %v6838 = vpop.xlane.xlu0 %6837
      %v6839 = vsel %vm1740, %v6833, 0.0
      %6840 = vadd.xlane.f32.xlu0 %v6839
      %v6841 = vpop.xlane.xlu0 %6840
      %v6842 = vsel %vm1740, %v6834, 0.0
      %6843 = vadd.xlane.f32.xlu0 %v6842
      %v6844 = vpop.xlane.xlu0 %6843
      %v6845 = vsel %vm1740, %v6835, 0.0
      %6846 = vadd.xlane.f32.xlu0 %v6845
      %v6847 = vpop.xlane.xlu0 %6846
      %v6848 = vmul.f32 %v6838, %v1726
      %v6849 = vmul.f32 %v6841, %v1726
      %v6850 = vmul.f32 %v6844, %v1726
      %v6851 = vmul.f32 %v6847, %v1726
      %v6852 = vadd.f32 %v6848, 1e-05
      %v6853 = vadd.f32 %v6849, 1e-05
      %v6854 = vadd.f32 %v6850, 1e-05
      %v6855 = vadd.f32 %v6851, 1e-05
      %v6856 = vrsqrt.pop %v6852
      %v6857 = vrsqrt.pop %v6853
      %v6858 = vrsqrt.pop %v6854
      %v6859 = vrsqrt.pop %v6855
      %v6860 = vmul.f32 %v6828, %v6856
      %v6861 = vmul.f32 %v6829, %v6857
      %v6862 = vmul.f32 %v6830, %v6858
      %v6863 = vmul.f32 %v6831, %v6859
      %v6865 = vlaneseq
      %v6866 = vshrl.u32 %v6865, 7
      %v6867 = vsub.s32 0, %v6866
      %v6868 = vrot.slane %v6809, %v6867
      %v6870 = vmul.f32 %v6860, %v6868
      %v6871 = vmul.f32 %v6861, %v6868
      %v6872 = vmul.f32 %v6862, %v6868
      %v6873 = vmul.f32 %v6863, %v6868
      %v6875 = vlaneseq
      %v6876 = vshrl.u32 %v6875, 7
      %v6877 = vsub.s32 0, %v6876
      %v6878 = vrot.slane %v6811, %v6877
      %v6880 = vadd.f32 %v6870, %v6878
      %v6881 = vadd.f32 %v6871, %v6878
      %v6882 = vadd.f32 %v6872, %v6878
      %v6883 = vadd.f32 %v6873, %v6878
      %s6884 = scalar_lea.vmem %s65, 32
      %v6885 = vld [vmem:[%s6884] sm:$0xff]
      %v6886 = vld [vmem:[%s6884 + $0x8] sm:$0xff]
      %v6887 = vld [vmem:[%s6884 + $0x10] sm:$0xff]
      %v6888 = vld [vmem:[%s6884 + $0x18] sm:$0xff]
      %s6889 = scalar_lea.vmem %s67, 1
      %v6890 = vld [vmem:[%s6889] sm:$0x1]
      %v6892 = vlaneseq
      %v6893 = vshrl.u32 %v6892, 7
      %v6894 = vsub.s32 0, %v6893
      %v6895 = vrot.slane %v6890, %v6894
      %v6898 = vsel %vm1740, %v6880, 0
      %v6901 = vsel %vm1740, %v6881, 0
      %v6904 = vsel %vm1740, %v6882, 0
      %v6907 = vsel %vm1740, %v6883, 0
      %6909 = vmatprep.subr.mxu0 0.0
      %6910 = vmatpush1.msra.mxu0 %v6885
      %6911 = vmatprep.subr.mxu0 0.0
      %6912 = vmatpush1.msra.mxu0 %v6886
      %6913 = vmatprep.subr.mxu0 0.0
      %6914 = vmatpush1.msra.mxu0 %v6887
      %6915 = vmatprep.subr.mxu0 0.0
      %6916 = vmatpush1.msra.mxu0 %v6888
      %6917 = vmatprep.subr.mxu0 0.0
      %6918 = vmatpush1.msra.mxu0 0.0
      %6919 = vmatprep.subr.mxu0 0.0
      %6920 = vmatpush1.msra.mxu0 0.0
      %6921 = vmatprep.subr.mxu0 0.0
      %6922 = vmatpush1.msra.mxu0 0.0
      %6923 = vmatprep.subr.mxu0 0.0
      %6924 = vmatpush1.msra.mxu0 0.0
      %6925 = vmatprep.subr.mxu0 0.0
      %6926 = vmatpush1.msra.mxu0 0.0
      %6927 = vmatprep.subr.mxu0 0.0
      %6928 = vmatpush1.msra.mxu0 0.0
      %6929 = vmatprep.subr.mxu0 0.0
      %6930 = vmatpush1.msra.mxu0 0.0
      %6931 = vmatprep.subr.mxu0 0.0
      %6932 = vmatpush1.msra.mxu0 0.0
      %6933 = vmatprep.subr.mxu0 0.0
      %6934 = vmatpush1.msra.mxu0 0.0
      %6935 = vmatprep.subr.mxu0 0.0
      %6936 = vmatpush1.msra.mxu0 0.0
      %6937 = vmatprep.subr.mxu0 0.0
      %6938 = vmatpush1.msra.mxu0 0.0
      %6939 = vmatprep.subr.mxu0 0.0
      %6940 = vmatpush1.msra.mxu0 0.0
      %6941 = vmatprep.subr.mxu0 0.0
      %6942 = vmatpush1.msra.mxu0 0.0
      %6943 = vmatprep.subr.mxu0 0.0
      %6944 = vmatpush1.msra.mxu0 0.0
      %6945 = vmatprep.subr.mxu0 0.0
      %6946 = vmatpush1.msra.mxu0 0.0
      %6947 = vmatprep.subr.mxu0 0.0
      %6948 = vmatpush1.msra.mxu0 0.0
      %6949 = vmatprep.subr.mxu0 0.0
      %6950 = vmatpush1.msra.mxu0 0.0
      %6951 = vmatprep.subr.mxu0 0.0
      %6952 = vmatpush1.msra.mxu0 0.0
      %6953 = vmatprep.subr.mxu0 0.0
      %6954 = vmatpush1.msra.mxu0 0.0
      %6955 = vmatprep.subr.mxu0 0.0
      %6956 = vmatpush1.msra.mxu0 0.0
      %6957 = vmatprep.subr.mxu0 0.0
      %6958 = vmatpush1.msra.mxu0 0.0
      %6959 = vmatprep.subr.mxu0 0.0
      %6960 = vmatpush1.msra.mxu0 0.0
      %6961 = vmatprep.subr.mxu0 0.0
      %6962 = vmatpush1.msra.mxu0 0.0
      %6963 = vmatprep.subr.mxu0 0.0
      %6964 = vmatpush1.msra.mxu0 0.0
      %6965 = vmatprep.subr.mxu0 0.0
      %6966 = vmatpush1.msra.mxu0 0.0
      %6967 = vmatprep.subr.mxu0 0.0
      %6968 = vmatpush1.msra.mxu0 0.0
      %6969 = vmatprep.subr.mxu0 0.0
      %6970 = vmatpush1.msra.mxu0 0.0
      %6971 = vmatprep.subr.mxu0 0.0
      %6972 = vmatpush1.msra.mxu0 0.0
      %6973 = vmatprep.mubr.f32.mxu0 0.0
      %6974 = vmatmul.mubr.f32.gmra.mrb[0].mxu0 %v6898
      %v6975 = vpop.f32.mrb[0].mxu0
      %v6976 = vadd.f32 %v6895, %v6975
      %v6977 = vpop.f32.mrb[0].mxu0
      %6978 = vmatprep.mubr.f32.mxu0 0.0
      %6979 = vmatmul.mubr.f32.gmra.mrb[0].mxu0 %v6901
      %v6980 = vpop.f32.mrb[0].mxu0
      %v6981 = vadd.f32 %v6895, %v6980
      %v6982 = vpop.f32.mrb[0].mxu0
      %6983 = vmatprep.mubr.f32.mxu0 0.0
      %6984 = vmatmul.mubr.f32.gmra.mrb[0].mxu0 %v6904
      %v6985 = vpop.f32.mrb[0].mxu0
      %v6986 = vadd.f32 %v6895, %v6985
      %v6987 = vpop.f32.mrb[0].mxu0
      %6988 = vmatprep.mubr.f32.mxu0 0.0
      %6989 = vmatmul.mubr.f32.gmra.mrb[0].mxu0 %v6907
      %v6990 = vpop.f32.mrb[0].mxu0
      %v6991 = vadd.f32 %v6895, %v6990
      %v6992 = vpop.f32.mrb[0].mxu0
      %6993 = vdwg.mxu0
      %s6994 = scalar_lea.vmem %s1413, 32
      %v6995 = vld [vmem:[%s6994] sm:$0xff]
      %v6996 = vld [vmem:[%s6994 + $0x8] sm:$0xff]
      %v6997 = vld [vmem:[%s6994 + $0x10] sm:$0xff]
      %v6998 = vld [vmem:[%s6994 + $0x18] sm:$0xff]
      %6999 = vmatprep.subr.mxu0 0.0
      %7000 = vmatpush1.msra.mxu0 %v6995
      %7001 = vmatprep.subr.mxu0 0.0
      %7002 = vmatpush1.msra.mxu0 %v6996
      %7003 = vmatprep.subr.mxu0 0.0
      %7004 = vmatpush1.msra.mxu0 %v6997
      %7005 = vmatprep.subr.mxu0 0.0
      %7006 = vmatpush1.msra.mxu0 %v6998
      %7007 = vmatprep.subr.mxu0 0.0
      %7008 = vmatpush1.msra.mxu0 0.0
      %7009 = vmatprep.subr.mxu0 0.0
      %7010 = vmatpush1.msra.mxu0 0.0
      %7011 = vmatprep.subr.mxu0 0.0
      %7012 = vmatpush1.msra.mxu0 0.0
      %7013 = vmatprep.subr.mxu0 0.0
      %7014 = vmatpush1.msra.mxu0 0.0
      %7015 = vmatprep.subr.mxu0 0.0
      %7016 = vmatpush1.msra.mxu0 0.0
      %7017 = vmatprep.subr.mxu0 0.0
      %7018 = vmatpush1.msra.mxu0 0.0
      %7019 = vmatprep.subr.mxu0 0.0
      %7020 = vmatpush1.msra.mxu0 0.0
      %7021 = vmatprep.subr.mxu0 0.0
      %7022 = vmatpush1.msra.mxu0 0.0
      %7023 = vmatprep.subr.mxu0 0.0
      %7024 = vmatpush1.msra.mxu0 0.0
      %7025 = vmatprep.subr.mxu0 0.0
      %7026 = vmatpush1.msra.mxu0 0.0
      %7027 = vmatprep.subr.mxu0 0.0
      %7028 = vmatpush1.msra.mxu0 0.0
      %7029 = vmatprep.subr.mxu0 0.0
      %7030 = vmatpush1.msra.mxu0 0.0
      %7031 = vmatprep.subr.mxu0 0.0
      %7032 = vmatpush1.msra.mxu0 0.0
      %7033 = vmatprep.subr.mxu0 0.0
      %7034 = vmatpush1.msra.mxu0 0.0
      %7035 = vmatprep.subr.mxu0 0.0
      %7036 = vmatpush1.msra.mxu0 0.0
      %7037 = vmatprep.subr.mxu0 0.0
      %7038 = vmatpush1.msra.mxu0 0.0
      %7039 = vmatprep.subr.mxu0 0.0
      %7040 = vmatpush1.msra.mxu0 0.0
      %7041 = vmatprep.subr.mxu0 0.0
      %7042 = vmatpush1.msra.mxu0 0.0
      %7043 = vmatprep.subr.mxu0 0.0
      %7044 = vmatpush1.msra.mxu0 0.0
      %7045 = vmatprep.subr.mxu0 0.0
      %7046 = vmatpush1.msra.mxu0 0.0
      %7047 = vmatprep.subr.mxu0 0.0
      %7048 = vmatpush1.msra.mxu0 0.0
      %7049 = vmatprep.subr.mxu0 0.0
      %7050 = vmatpush1.msra.mxu0 0.0
      %7051 = vmatprep.subr.mxu0 0.0
      %7052 = vmatpush1.msra.mxu0 0.0
      %7053 = vmatprep.subr.mxu0 0.0
      %7054 = vmatpush1.msra.mxu0 0.0
      %7055 = vmatprep.subr.mxu0 0.0
      %7056 = vmatpush1.msra.mxu0 0.0
      %7057 = vmatprep.subr.mxu0 0.0
      %7058 = vmatpush1.msra.mxu0 0.0
      %7059 = vmatprep.subr.mxu0 0.0
      %7060 = vmatpush1.msra.mxu0 0.0
      %7061 = vmatprep.subr.mxu0 0.0
      %7062 = vmatpush1.msra.mxu0 0.0
      %7063 = vmatprep.mubr.f32.mxu0 0.0
      %7064 = vmatmul.mubr.f32.gmra.mrb[0].mxu0 %v6898
      %v7065 = vpop.f32.mrb[0].mxu0
      %v7066 = vadd.f32 0.0, %v7065
      %v7067 = vpop.f32.mrb[0].mxu0
      %7068 = vmatprep.mubr.f32.mxu0 0.0
      %7069 = vmatmul.mubr.f32.gmra.mrb[0].mxu0 %v6901
      %v7070 = vpop.f32.mrb[0].mxu0
      %v7071 = vadd.f32 0.0, %v7070
      %v7072 = vpop.f32.mrb[0].mxu0
      %7073 = vmatprep.mubr.f32.mxu0 0.0
      %7074 = vmatmul.mubr.f32.gmra.mrb[0].mxu0 %v6904
      %v7075 = vpop.f32.mrb[0].mxu0
      %v7076 = vadd.f32 0.0, %v7075
      %v7077 = vpop.f32.mrb[0].mxu0
      %7078 = vmatprep.mubr.f32.mxu0 0.0
      %7079 = vmatmul.mubr.f32.gmra.mrb[0].mxu0 %v6907
      %v7080 = vpop.f32.mrb[0].mxu0
      %v7081 = vadd.f32 0.0, %v7080
      %v7082 = vpop.f32.mrb[0].mxu0
      %7083 = vdwg.mxu0
      %s7084 = scalar_lea.vmem %s1420, 4
      %v7085 = vld [vmem:[%s7084] sm:$0xf]
      %v7087 = vsel %vm1643, %v7066, 0
      %v7090 = vsel %vm1643, %v7071, 0
      %v7093 = vsel %vm1643, %v7076, 0
      %v7096 = vsel %vm1643, %v7081, 0
      %v7099 = vsel %vm1647, %v7085, 0
      %7101 = vmatprep.subr.mxu0 0.0
      %7102 = vmatpush1.msra.mxu0 %v7099
      %7103 = vmatprep.subr.mxu0 0.0
      %7104 = vmatpush1.msra.mxu0 0.0
      %7105 = vmatprep.subr.mxu0 0.0
      %7106 = vmatpush1.msra.mxu0 0.0
      %7107 = vmatprep.subr.mxu0 0.0
      %7108 = vmatpush1.msra.mxu0 0.0
      %7109 = vmatprep.subr.mxu0 0.0
      %7110 = vmatpush1.msra.mxu0 0.0
      %7111 = vmatprep.subr.mxu0 0.0
      %7112 = vmatpush1.msra.mxu0 0.0
      %7113 = vmatprep.subr.mxu0 0.0
      %7114 = vmatpush1.msra.mxu0 0.0
      %7115 = vmatprep.subr.mxu0 0.0
      %7116 = vmatpush1.msra.mxu0 0.0
      %7117 = vmatprep.subr.mxu0 0.0
      %7118 = vmatpush1.msra.mxu0 0.0
      %7119 = vmatprep.subr.mxu0 0.0
      %7120 = vmatpush1.msra.mxu0 0.0
      %7121 = vmatprep.subr.mxu0 0.0
      %7122 = vmatpush1.msra.mxu0 0.0
      %7123 = vmatprep.subr.mxu0 0.0
      %7124 = vmatpush1.msra.mxu0 0.0
      %7125 = vmatprep.subr.mxu0 0.0
      %7126 = vmatpush1.msra.mxu0 0.0
      %7127 = vmatprep.subr.mxu0 0.0
      %7128 = vmatpush1.msra.mxu0 0.0
      %7129 = vmatprep.subr.mxu0 0.0
      %7130 = vmatpush1.msra.mxu0 0.0
      %7131 = vmatprep.subr.mxu0 0.0
      %7132 = vmatpush1.msra.mxu0 0.0
      %7133 = vmatprep.subr.mxu0 0.0
      %7134 = vmatpush1.msra.mxu0 0.0
      %7135 = vmatprep.subr.mxu0 0.0
      %7136 = vmatpush1.msra.mxu0 0.0
      %7137 = vmatprep.subr.mxu0 0.0
      %7138 = vmatpush1.msra.mxu0 0.0
      %7139 = vmatprep.subr.mxu0 0.0
      %7140 = vmatpush1.msra.mxu0 0.0
      %7141 = vmatprep.subr.mxu0 0.0
      %7142 = vmatpush1.msra.mxu0 0.0
      %7143 = vmatprep.subr.mxu0 0.0
      %7144 = vmatpush1.msra.mxu0 0.0
      %7145 = vmatprep.subr.mxu0 0.0
      %7146 = vmatpush1.msra.mxu0 0.0
      %7147 = vmatprep.subr.mxu0 0.0
      %7148 = vmatpush1.msra.mxu0 0.0
      %7149 = vmatprep.subr.mxu0 0.0
      %7150 = vmatpush1.msra.mxu0 0.0
      %7151 = vmatprep.subr.mxu0 0.0
      %7152 = vmatpush1.msra.mxu0 0.0
      %7153 = vmatprep.subr.mxu0 0.0
      %7154 = vmatpush1.msra.mxu0 0.0
      %7155 = vmatprep.subr.mxu0 0.0
      %7156 = vmatpush1.msra.mxu0 0.0
      %7157 = vmatprep.subr.mxu0 0.0
      %7158 = vmatpush1.msra.mxu0 0.0
      %7159 = vmatprep.subr.mxu0 0.0
      %7160 = vmatpush1.msra.mxu0 0.0
      %7161 = vmatprep.subr.mxu0 0.0
      %7162 = vmatpush1.msra.mxu0 0.0
      %7163 = vmatprep.subr.mxu0 0.0
      %7164 = vmatpush1.msra.mxu0 0.0
      %7165 = vmatprep.mubr.f32.mxu0 0.0
      %7166 = vmatmul.mubr.f32.gmra.mrb[0].mxu0 %v7087
      %v7167 = vpop.f32.mrb[0].mxu0
      %v7168 = vadd.f32 0.0, %v7167
      %v7169 = vpop.f32.mrb[0].mxu0
      %7170 = vmatprep.mubr.f32.mxu0 0.0
      %7171 = vmatmul.mubr.f32.gmra.mrb[0].mxu0 %v7090
      %v7172 = vpop.f32.mrb[0].mxu0
      %v7173 = vadd.f32 0.0, %v7172
      %v7174 = vpop.f32.mrb[0].mxu0
      %7175 = vmatprep.mubr.f32.mxu0 0.0
      %7176 = vmatmul.mubr.f32.gmra.mrb[0].mxu0 %v7093
      %v7177 = vpop.f32.mrb[0].mxu0
      %v7178 = vadd.f32 0.0, %v7177
      %v7179 = vpop.f32.mrb[0].mxu0
      %7180 = vmatprep.mubr.f32.mxu0 0.0
      %7181 = vmatmul.mubr.f32.gmra.mrb[0].mxu0 %v7096
      %v7182 = vpop.f32.mrb[0].mxu0
      %v7183 = vadd.f32 0.0, %v7182
      %v7184 = vpop.f32.mrb[0].mxu0
      %7185 = vdwg.mxu0
      %v7186 = vadd.f32 %v6976, %v7168
      %v7187 = vadd.f32 %v6981, %v7173
      %v7188 = vadd.f32 %v6986, %v7178
      %v7189 = vadd.f32 %v6991, %v7183
      %v7190 = vmul.f32 %v7186, 0.70710677
      %v7191 = vmul.f32 %v7187, 0.70710677
      %v7192 = vmul.f32 %v7188, 0.70710677
      %v7193 = vmul.f32 %v7189, 0.70710677
      %v7194 = vand.u32 2147483647, %v7190
      %v7195 = vand.u32 2147483647, %v7191
      %v7196 = vand.u32 2147483647, %v7192
      %v7197 = vand.u32 2147483647, %v7193
      %v7198 = vmul.f32 %v7194, 0.3275911
      %v7199 = vmul.f32 %v7195, 0.3275911
      %v7200 = vmul.f32 %v7196, 0.3275911
      %v7201 = vmul.f32 %v7197, 0.3275911
      %v7202 = vadd.f32 %v7198, 1.0
      %v7203 = vadd.f32 %v7199, 1.0
      %v7204 = vadd.f32 %v7200, 1.0
      %v7205 = vadd.f32 %v7201, 1.0
      %v7206 = vrcp.pop %v7202
      %v7207 = vmul.f32 1.0, %v7206
      %v7208 = vrcp.pop %v7203
      %v7209 = vmul.f32 1.0, %v7208
      %v7210 = vrcp.pop %v7204
      %v7211 = vmul.f32 1.0, %v7210
      %v7212 = vrcp.pop %v7205
      %v7213 = vmul.f32 1.0, %v7212
      %v7214 = vmul.f32 %v7207, 1.0614054
      %v7215 = vmul.f32 %v7209, 1.0614054
      %v7216 = vmul.f32 %v7211, 1.0614054
      %v7217 = vmul.f32 %v7213, 1.0614054
      %v7218 = vsub.f32 %v7214, 1.4531521
      %v7219 = vsub.f32 %v7215, 1.4531521
      %v7220 = vsub.f32 %v7216, 1.4531521
      %v7221 = vsub.f32 %v7217, 1.4531521
      %v7222 = vmul.f32 %v7218, %v7207
      %v7223 = vmul.f32 %v7219, %v7209
      %v7224 = vmul.f32 %v7220, %v7211
      %v7225 = vmul.f32 %v7221, %v7213
      %v7226 = vadd.f32 %v7222, 1.4214138
      %v7227 = vadd.f32 %v7223, 1.4214138
      %v7228 = vadd.f32 %v7224, 1.4214138
      %v7229 = vadd.f32 %v7225, 1.4214138
      %v7230 = vmul.f32 %v7226, %v7207
      %v7231 = vmul.f32 %v7227, %v7209
      %v7232 = vmul.f32 %v7228, %v7211
      %v7233 = vmul.f32 %v7229, %v7213
      %v7234 = vsub.f32 %v7230, 0.28449672
      %v7235 = vsub.f32 %v7231, 0.28449672
      %v7236 = vsub.f32 %v7232, 0.28449672
      %v7237 = vsub.f32 %v7233, 0.28449672
      %v7238 = vmul.f32 %v7234, %v7207
      %v7239 = vmul.f32 %v7235, %v7209
      %v7240 = vmul.f32 %v7236, %v7211
      %v7241 = vmul.f32 %v7237, %v7213
      %v7242 = vadd.f32 %v7238, 0.2548296
      %v7243 = vadd.f32 %v7239, 0.2548296
      %v7244 = vadd.f32 %v7240, 0.2548296
      %v7245 = vadd.f32 %v7241, 0.2548296
      %v7246 = vmul.f32 %v7242, %v7207
      %v7247 = vmul.f32 %v7243, %v7209
      %v7248 = vmul.f32 %v7244, %v7211
      %v7249 = vmul.f32 %v7245, %v7213
      %v7250 = vsub.f32 0.0, %v7194
      %v7251 = vsub.f32 0.0, %v7195
      %v7252 = vsub.f32 0.0, %v7196
      %v7253 = vsub.f32 0.0, %v7197
      %v7254 = vmul.f32 %v7250, %v7194
      %v7255 = vmul.f32 %v7251, %v7195
      %v7256 = vmul.f32 %v7252, %v7196
      %v7257 = vmul.f32 %v7253, %v7197
      %v7258 = vmul.f32 %v7254, 1.442695
      %v7259 = vpow.pop %v7258
      %v7260 = vmul.f32 %v7255, 1.442695
      %v7261 = vpow.pop %v7260
      %v7262 = vmul.f32 %v7256, 1.442695
      %v7263 = vpow.pop %v7262
      %v7264 = vmul.f32 %v7257, 1.442695
      %v7265 = vpow.pop %v7264
      %v7266 = vmul.f32 %v7246, %v7259
      %v7267 = vmul.f32 %v7247, %v7261
      %v7268 = vmul.f32 %v7248, %v7263
      %v7269 = vmul.f32 %v7249, %v7265
      %v7270 = vsub.f32 1.0, %v7266
      %v7271 = vsub.f32 1.0, %v7267
      %v7272 = vsub.f32 1.0, %v7268
      %v7273 = vsub.f32 1.0, %v7269
      %vm7274 = vcmp.ge.f32.partialorder %v7190, 0.0
      %vm7275 = vcmp.ge.f32.partialorder %v7191, 0.0
      %vm7276 = vcmp.ge.f32.partialorder %v7192, 0.0
      %vm7277 = vcmp.ge.f32.partialorder %v7193, 0.0
      %v7278 = vsub.f32 0.0, %v7270
      %v7279 = vsub.f32 0.0, %v7271
      %v7280 = vsub.f32 0.0, %v7272
      %v7281 = vsub.f32 0.0, %v7273
      %v7282 = vsel %vm7274, %v7270, %v7278
      %v7283 = vsel %vm7275, %v7271, %v7279
      %v7284 = vsel %vm7276, %v7272, %v7280
      %v7285 = vsel %vm7277, %v7273, %v7281
      %v7286 = vmul.f32 %v7186, 0.5
      %v7287 = vmul.f32 %v7187, 0.5
      %v7288 = vmul.f32 %v7188, 0.5
      %v7289 = vmul.f32 %v7189, 0.5
      %v7290 = vadd.f32 %v7282, 1.0
      %v7291 = vadd.f32 %v7283, 1.0
      %v7292 = vadd.f32 %v7284, 1.0
      %v7293 = vadd.f32 %v7285, 1.0
      %v7294 = vmul.f32 %v7286, %v7290
      %v7295 = vmul.f32 %v7287, %v7291
      %v7296 = vmul.f32 %v7288, %v7292
      %v7297 = vmul.f32 %v7289, %v7293
      %s7298 = scalar_lea.vmem %s69, 128
      %v7299 = vld [vmem:[%s7298] sm:$0xff]
      %v7300 = vld [vmem:[%s7298 + $0x8] sm:$0xff]
      %v7301 = vld [vmem:[%s7298 + $0x10] sm:$0xff]
      %v7302 = vld [vmem:[%s7298 + $0x18] sm:$0xff]
      %v7303 = vld [vmem:[%s7298 + $0x20] sm:$0xff]
      %v7304 = vld [vmem:[%s7298 + $0x28] sm:$0xff]
      %v7305 = vld [vmem:[%s7298 + $0x30] sm:$0xff]
      %v7306 = vld [vmem:[%s7298 + $0x38] sm:$0xff]
      %v7307 = vld [vmem:[%s7298 + $0x40] sm:$0xff]
      %v7308 = vld [vmem:[%s7298 + $0x48] sm:$0xff]
      %v7309 = vld [vmem:[%s7298 + $0x50] sm:$0xff]
      %v7310 = vld [vmem:[%s7298 + $0x58] sm:$0xff]
      %v7311 = vld [vmem:[%s7298 + $0x60] sm:$0xff]
      %v7312 = vld [vmem:[%s7298 + $0x68] sm:$0xff]
      %v7313 = vld [vmem:[%s7298 + $0x70] sm:$0xff]
      %v7314 = vld [vmem:[%s7298 + $0x78] sm:$0xff]
      %s7315 = scalar_lea.vmem %s71, 1
      %v7316 = vld [vmem:[%s7315] sm:$0x1]
      %v7318 = vlaneseq
      %v7319 = vshrl.u32 %v7318, 7
      %v7320 = vsub.s32 0, %v7319
      %v7321 = vrot.slane %v7316, %v7320
      %7323 = vmatprep.subr.mxu0 0.0
      %7324 = vmatpush1.msra.mxu0 %v7299
      %7325 = vmatprep.subr.mxu0 0.0
      %7326 = vmatpush1.msra.mxu0 %v7300
      %7327 = vmatprep.subr.mxu0 0.0
      %7328 = vmatpush1.msra.mxu0 %v7301
      %7329 = vmatprep.subr.mxu0 0.0
      %7330 = vmatpush1.msra.mxu0 %v7302
      %7331 = vmatprep.subr.mxu0 0.0
      %7332 = vmatpush1.msra.mxu0 %v7303
      %7333 = vmatprep.subr.mxu0 0.0
      %7334 = vmatpush1.msra.mxu0 %v7304
      %7335 = vmatprep.subr.mxu0 0.0
      %7336 = vmatpush1.msra.mxu0 %v7305
      %7337 = vmatprep.subr.mxu0 0.0
      %7338 = vmatpush1.msra.mxu0 %v7306
      %7339 = vmatprep.subr.mxu0 0.0
      %7340 = vmatpush1.msra.mxu0 %v7307
      %7341 = vmatprep.subr.mxu0 0.0
      %7342 = vmatpush1.msra.mxu0 %v7308
      %7343 = vmatprep.subr.mxu0 0.0
      %7344 = vmatpush1.msra.mxu0 %v7309
      %7345 = vmatprep.subr.mxu0 0.0
      %7346 = vmatpush1.msra.mxu0 %v7310
      %7347 = vmatprep.subr.mxu0 0.0
      %7348 = vmatpush1.msra.mxu0 %v7311
      %7349 = vmatprep.subr.mxu0 0.0
      %7350 = vmatpush1.msra.mxu0 %v7312
      %7351 = vmatprep.subr.mxu0 0.0
      %7352 = vmatpush1.msra.mxu0 %v7313
      %7353 = vmatprep.subr.mxu0 0.0
      %7354 = vmatpush1.msra.mxu0 %v7314
      %7355 = vmatprep.subr.mxu0 0.0
      %7356 = vmatpush1.msra.mxu0 0.0
      %7357 = vmatprep.subr.mxu0 0.0
      %7358 = vmatpush1.msra.mxu0 0.0
      %7359 = vmatprep.subr.mxu0 0.0
      %7360 = vmatpush1.msra.mxu0 0.0
      %7361 = vmatprep.subr.mxu0 0.0
      %7362 = vmatpush1.msra.mxu0 0.0
      %7363 = vmatprep.subr.mxu0 0.0
      %7364 = vmatpush1.msra.mxu0 0.0
      %7365 = vmatprep.subr.mxu0 0.0
      %7366 = vmatpush1.msra.mxu0 0.0
      %7367 = vmatprep.subr.mxu0 0.0
      %7368 = vmatpush1.msra.mxu0 0.0
      %7369 = vmatprep.subr.mxu0 0.0
      %7370 = vmatpush1.msra.mxu0 0.0
      %7371 = vmatprep.subr.mxu0 0.0
      %7372 = vmatpush1.msra.mxu0 0.0
      %7373 = vmatprep.subr.mxu0 0.0
      %7374 = vmatpush1.msra.mxu0 0.0
      %7375 = vmatprep.subr.mxu0 0.0
      %7376 = vmatpush1.msra.mxu0 0.0
      %7377 = vmatprep.subr.mxu0 0.0
      %7378 = vmatpush1.msra.mxu0 0.0
      %7379 = vmatprep.subr.mxu0 0.0
      %7380 = vmatpush1.msra.mxu0 0.0
      %7381 = vmatprep.subr.mxu0 0.0
      %7382 = vmatpush1.msra.mxu0 0.0
      %7383 = vmatprep.subr.mxu0 0.0
      %7384 = vmatpush1.msra.mxu0 0.0
      %7385 = vmatprep.subr.mxu0 0.0
      %7386 = vmatpush1.msra.mxu0 0.0
      %7387 = vmatprep.mubr.f32.mxu0 0.0
      %7388 = vmatmul.mubr.f32.gmra.mrb[0].mxu0 %v7294
      %v7389 = vpop.f32.mrb[0].mxu0
      %v7390 = vadd.f32 %v7321, %v7389
      %v7391 = vpop.f32.mrb[0].mxu0
      %7392 = vmatprep.mubr.f32.mxu0 0.0
      %7393 = vmatmul.mubr.f32.gmra.mrb[0].mxu0 %v7295
      %v7394 = vpop.f32.mrb[0].mxu0
      %v7395 = vadd.f32 %v7321, %v7394
      %v7396 = vpop.f32.mrb[0].mxu0
      %7397 = vmatprep.mubr.f32.mxu0 0.0
      %7398 = vmatmul.mubr.f32.gmra.mrb[0].mxu0 %v7296
      %v7399 = vpop.f32.mrb[0].mxu0
      %v7400 = vadd.f32 %v7321, %v7399
      %v7401 = vpop.f32.mrb[0].mxu0
      %7402 = vmatprep.mubr.f32.mxu0 0.0
      %7403 = vmatmul.mubr.f32.gmra.mrb[0].mxu0 %v7297
      %v7404 = vpop.f32.mrb[0].mxu0
      %v7405 = vadd.f32 %v7321, %v7404
      %v7406 = vpop.f32.mrb[0].mxu0
      %7407 = vdwg.mxu0
      %s7408 = scalar_lea.vmem %s1427, 128
      %v7409 = vld [vmem:[%s7408] sm:$0xff]
      %v7410 = vld [vmem:[%s7408 + $0x8] sm:$0xff]
      %v7411 = vld [vmem:[%s7408 + $0x10] sm:$0xff]
      %v7412 = vld [vmem:[%s7408 + $0x18] sm:$0xff]
      %v7413 = vld [vmem:[%s7408 + $0x20] sm:$0xff]
      %v7414 = vld [vmem:[%s7408 + $0x28] sm:$0xff]
      %v7415 = vld [vmem:[%s7408 + $0x30] sm:$0xff]
      %v7416 = vld [vmem:[%s7408 + $0x38] sm:$0xff]
      %v7417 = vld [vmem:[%s7408 + $0x40] sm:$0xff]
      %v7418 = vld [vmem:[%s7408 + $0x48] sm:$0xff]
      %v7419 = vld [vmem:[%s7408 + $0x50] sm:$0xff]
      %v7420 = vld [vmem:[%s7408 + $0x58] sm:$0xff]
      %v7421 = vld [vmem:[%s7408 + $0x60] sm:$0xff]
      %v7422 = vld [vmem:[%s7408 + $0x68] sm:$0xff]
      %v7423 = vld [vmem:[%s7408 + $0x70] sm:$0xff]
      %v7424 = vld [vmem:[%s7408 + $0x78] sm:$0xff]
      %7425 = vmatprep.subr.mxu0 0.0
      %7426 = vmatpush1.msra.mxu0 %v7409
      %7427 = vmatprep.subr.mxu0 0.0
      %7428 = vmatpush1.msra.mxu0 %v7410
      %7429 = vmatprep.subr.mxu0 0.0
      %7430 = vmatpush1.msra.mxu0 %v7411
      %7431 = vmatprep.subr.mxu0 0.0
      %7432 = vmatpush1.msra.mxu0 %v7412
      %7433 = vmatprep.subr.mxu0 0.0
      %7434 = vmatpush1.msra.mxu0 %v7413
      %7435 = vmatprep.subr.mxu0 0.0
      %7436 = vmatpush1.msra.mxu0 %v7414
      %7437 = vmatprep.subr.mxu0 0.0
      %7438 = vmatpush1.msra.mxu0 %v7415
      %7439 = vmatprep.subr.mxu0 0.0
      %7440 = vmatpush1.msra.mxu0 %v7416
      %7441 = vmatprep.subr.mxu0 0.0
      %7442 = vmatpush1.msra.mxu0 %v7417
      %7443 = vmatprep.subr.mxu0 0.0
      %7444 = vmatpush1.msra.mxu0 %v7418
      %7445 = vmatprep.subr.mxu0 0.0
      %7446 = vmatpush1.msra.mxu0 %v7419
      %7447 = vmatprep.subr.mxu0 0.0
      %7448 = vmatpush1.msra.mxu0 %v7420
      %7449 = vmatprep.subr.mxu0 0.0
      %7450 = vmatpush1.msra.mxu0 %v7421
      %7451 = vmatprep.subr.mxu0 0.0
      %7452 = vmatpush1.msra.mxu0 %v7422
      %7453 = vmatprep.subr.mxu0 0.0
      %7454 = vmatpush1.msra.mxu0 %v7423
      %7455 = vmatprep.subr.mxu0 0.0
      %7456 = vmatpush1.msra.mxu0 %v7424
      %7457 = vmatprep.subr.mxu0 0.0
      %7458 = vmatpush1.msra.mxu0 0.0
      %7459 = vmatprep.subr.mxu0 0.0
      %7460 = vmatpush1.msra.mxu0 0.0
      %7461 = vmatprep.subr.mxu0 0.0
      %7462 = vmatpush1.msra.mxu0 0.0
      %7463 = vmatprep.subr.mxu0 0.0
      %7464 = vmatpush1.msra.mxu0 0.0
      %7465 = vmatprep.subr.mxu0 0.0
      %7466 = vmatpush1.msra.mxu0 0.0
      %7467 = vmatprep.subr.mxu0 0.0
      %7468 = vmatpush1.msra.mxu0 0.0
      %7469 = vmatprep.subr.mxu0 0.0
      %7470 = vmatpush1.msra.mxu0 0.0
      %7471 = vmatprep.subr.mxu0 0.0
      %7472 = vmatpush1.msra.mxu0 0.0
      %7473 = vmatprep.subr.mxu0 0.0
      %7474 = vmatpush1.msra.mxu0 0.0
      %7475 = vmatprep.subr.mxu0 0.0
      %7476 = vmatpush1.msra.mxu0 0.0
      %7477 = vmatprep.subr.mxu0 0.0
      %7478 = vmatpush1.msra.mxu0 0.0
      %7479 = vmatprep.subr.mxu0 0.0
      %7480 = vmatpush1.msra.mxu0 0.0
      %7481 = vmatprep.subr.mxu0 0.0
      %7482 = vmatpush1.msra.mxu0 0.0
      %7483 = vmatprep.subr.mxu0 0.0
      %7484 = vmatpush1.msra.mxu0 0.0
      %7485 = vmatprep.subr.mxu0 0.0
      %7486 = vmatpush1.msra.mxu0 0.0
      %7487 = vmatprep.subr.mxu0 0.0
      %7488 = vmatpush1.msra.mxu0 0.0
      %7489 = vmatprep.mubr.f32.mxu0 0.0
      %7490 = vmatmul.mubr.f32.gmra.mrb[0].mxu0 %v7294
      %v7491 = vpop.f32.mrb[0].mxu0
      %v7492 = vadd.f32 0.0, %v7491
      %v7493 = vpop.f32.mrb[0].mxu0
      %7494 = vmatprep.mubr.f32.mxu0 0.0
      %7495 = vmatmul.mubr.f32.gmra.mrb[0].mxu0 %v7295
      %v7496 = vpop.f32.mrb[0].mxu0
      %v7497 = vadd.f32 0.0, %v7496
      %v7498 = vpop.f32.mrb[0].mxu0
      %7499 = vmatprep.mubr.f32.mxu0 0.0
      %7500 = vmatmul.mubr.f32.gmra.mrb[0].mxu0 %v7296
      %v7501 = vpop.f32.mrb[0].mxu0
      %v7502 = vadd.f32 0.0, %v7501
      %v7503 = vpop.f32.mrb[0].mxu0
      %7504 = vmatprep.mubr.f32.mxu0 0.0
      %7505 = vmatmul.mubr.f32.gmra.mrb[0].mxu0 %v7297
      %v7506 = vpop.f32.mrb[0].mxu0
      %v7507 = vadd.f32 0.0, %v7506
      %v7508 = vpop.f32.mrb[0].mxu0
      %7509 = vdwg.mxu0
      %s7510 = scalar_lea.vmem %s1434, 4
      %v7511 = vld [vmem:[%s7510] sm:$0xf]
      %v7513 = vsel %vm1643, %v7492, 0
      %v7516 = vsel %vm1643, %v7497, 0
      %v7519 = vsel %vm1643, %v7502, 0
      %v7522 = vsel %vm1643, %v7507, 0
      %v7525 = vsel %vm1647, %v7511, 0
      %7527 = vmatprep.subr.mxu0 0.0
      %7528 = vmatpush1.msra.mxu0 %v7525
      %7529 = vmatprep.subr.mxu0 0.0
      %7530 = vmatpush1.msra.mxu0 0.0
      %7531 = vmatprep.subr.mxu0 0.0
      %7532 = vmatpush1.msra.mxu0 0.0
      %7533 = vmatprep.subr.mxu0 0.0
      %7534 = vmatpush1.msra.mxu0 0.0
      %7535 = vmatprep.subr.mxu0 0.0
      %7536 = vmatpush1.msra.mxu0 0.0
      %7537 = vmatprep.subr.mxu0 0.0
      %7538 = vmatpush1.msra.mxu0 0.0
      %7539 = vmatprep.subr.mxu0 0.0
      %7540 = vmatpush1.msra.mxu0 0.0
      %7541 = vmatprep.subr.mxu0 0.0
      %7542 = vmatpush1.msra.mxu0 0.0
      %7543 = vmatprep.subr.mxu0 0.0
      %7544 = vmatpush1.msra.mxu0 0.0
      %7545 = vmatprep.subr.mxu0 0.0
      %7546 = vmatpush1.msra.mxu0 0.0
      %7547 = vmatprep.subr.mxu0 0.0
      %7548 = vmatpush1.msra.mxu0 0.0
      %7549 = vmatprep.subr.mxu0 0.0
      %7550 = vmatpush1.msra.mxu0 0.0
      %7551 = vmatprep.subr.mxu0 0.0
      %7552 = vmatpush1.msra.mxu0 0.0
      %7553 = vmatprep.subr.mxu0 0.0
      %7554 = vmatpush1.msra.mxu0 0.0
      %7555 = vmatprep.subr.mxu0 0.0
      %7556 = vmatpush1.msra.mxu0 0.0
      %7557 = vmatprep.subr.mxu0 0.0
      %7558 = vmatpush1.msra.mxu0 0.0
      %7559 = vmatprep.subr.mxu0 0.0
      %7560 = vmatpush1.msra.mxu0 0.0
      %7561 = vmatprep.subr.mxu0 0.0
      %7562 = vmatpush1.msra.mxu0 0.0
      %7563 = vmatprep.subr.mxu0 0.0
      %7564 = vmatpush1.msra.mxu0 0.0
      %7565 = vmatprep.subr.mxu0 0.0
      %7566 = vmatpush1.msra.mxu0 0.0
      %7567 = vmatprep.subr.mxu0 0.0
      %7568 = vmatpush1.msra.mxu0 0.0
      %7569 = vmatprep.subr.mxu0 0.0
      %7570 = vmatpush1.msra.mxu0 0.0
      %7571 = vmatprep.subr.mxu0 0.0
      %7572 = vmatpush1.msra.mxu0 0.0
      %7573 = vmatprep.subr.mxu0 0.0
      %7574 = vmatpush1.msra.mxu0 0.0
      %7575 = vmatprep.subr.mxu0 0.0
      %7576 = vmatpush1.msra.mxu0 0.0
      %7577 = vmatprep.subr.mxu0 0.0
      %7578 = vmatpush1.msra.mxu0 0.0
      %7579 = vmatprep.subr.mxu0 0.0
      %7580 = vmatpush1.msra.mxu0 0.0
      %7581 = vmatprep.subr.mxu0 0.0
      %7582 = vmatpush1.msra.mxu0 0.0
      %7583 = vmatprep.subr.mxu0 0.0
      %7584 = vmatpush1.msra.mxu0 0.0
      %7585 = vmatprep.subr.mxu0 0.0
      %7586 = vmatpush1.msra.mxu0 0.0
      %7587 = vmatprep.subr.mxu0 0.0
      %7588 = vmatpush1.msra.mxu0 0.0
      %7589 = vmatprep.subr.mxu0 0.0
      %7590 = vmatpush1.msra.mxu0 0.0
      %7591 = vmatprep.mubr.f32.mxu0 0.0
      %7592 = vmatmul.mubr.f32.gmra.mrb[0].mxu0 %v7513
      %v7593 = vpop.f32.mrb[0].mxu0
      %v7594 = vadd.f32 0.0, %v7593
      %v7595 = vpop.f32.mrb[0].mxu0
      %7596 = vmatprep.mubr.f32.mxu0 0.0
      %7597 = vmatmul.mubr.f32.gmra.mrb[0].mxu0 %v7516
      %v7598 = vpop.f32.mrb[0].mxu0
      %v7599 = vadd.f32 0.0, %v7598
      %v7600 = vpop.f32.mrb[0].mxu0
      %7601 = vmatprep.mubr.f32.mxu0 0.0
      %7602 = vmatmul.mubr.f32.gmra.mrb[0].mxu0 %v7519
      %v7603 = vpop.f32.mrb[0].mxu0
      %v7604 = vadd.f32 0.0, %v7603
      %v7605 = vpop.f32.mrb[0].mxu0
      %7606 = vmatprep.mubr.f32.mxu0 0.0
      %7607 = vmatmul.mubr.f32.gmra.mrb[0].mxu0 %v7522
      %v7608 = vpop.f32.mrb[0].mxu0
      %v7609 = vadd.f32 0.0, %v7608
      %v7610 = vpop.f32.mrb[0].mxu0
      %7611 = vdwg.mxu0
      %v7612 = vadd.f32 %v7390, %v7594
      %v7613 = vadd.f32 %v7395, %v7599
      %v7614 = vadd.f32 %v7400, %v7604
      %v7615 = vadd.f32 %v7405, %v7609
      %v7616 = vadd.f32 %v6804, %v7612
      %v7617 = vadd.f32 %v6805, %v7613
      %v7618 = vadd.f32 %v6806, %v7614
      %v7619 = vadd.f32 %v6807, %v7615
      %v7620 = vld [vmem:[%s75] sm:$0xff]
      %v7621 = vld [vmem:[%s75 + $0x8] sm:$0xff]
      %v7622 = vld [vmem:[%s75 + $0x10] sm:$0xff]
      %v7623 = vld [vmem:[%s75 + $0x18] sm:$0xff]
      %v7624 = vld [vmem:[%s77] sm:$0x1]
      %v7626 = vlaneseq
      %v7627 = vshrl.u32 %v7626, 7
      %v7628 = vsub.s32 0, %v7627
      %v7629 = vrot.slane %v7624, %v7628
      %v7632 = vsel %vm1740, %v7616, 0
      %v7635 = vsel %vm1740, %v7617, 0
      %v7638 = vsel %vm1740, %v7618, 0
      %v7641 = vsel %vm1740, %v7619, 0
      %7643 = vmatprep.subr.mxu0 0.0
      %7644 = vmatpush1.msra.mxu0 %v7620
      %7645 = vmatprep.subr.mxu0 0.0
      %7646 = vmatpush1.msra.mxu0 %v7621
      %7647 = vmatprep.subr.mxu0 0.0
      %7648 = vmatpush1.msra.mxu0 %v7622
      %7649 = vmatprep.subr.mxu0 0.0
      %7650 = vmatpush1.msra.mxu0 %v7623
      %7651 = vmatprep.subr.mxu0 0.0
      %7652 = vmatpush1.msra.mxu0 0.0
      %7653 = vmatprep.subr.mxu0 0.0
      %7654 = vmatpush1.msra.mxu0 0.0
      %7655 = vmatprep.subr.mxu0 0.0
      %7656 = vmatpush1.msra.mxu0 0.0
      %7657 = vmatprep.subr.mxu0 0.0
      %7658 = vmatpush1.msra.mxu0 0.0
      %7659 = vmatprep.subr.mxu0 0.0
      %7660 = vmatpush1.msra.mxu0 0.0
      %7661 = vmatprep.subr.mxu0 0.0
      %7662 = vmatpush1.msra.mxu0 0.0
      %7663 = vmatprep.subr.mxu0 0.0
      %7664 = vmatpush1.msra.mxu0 0.0
      %7665 = vmatprep.subr.mxu0 0.0
      %7666 = vmatpush1.msra.mxu0 0.0
      %7667 = vmatprep.subr.mxu0 0.0
      %7668 = vmatpush1.msra.mxu0 0.0
      %7669 = vmatprep.subr.mxu0 0.0
      %7670 = vmatpush1.msra.mxu0 0.0
      %7671 = vmatprep.subr.mxu0 0.0
      %7672 = vmatpush1.msra.mxu0 0.0
      %7673 = vmatprep.subr.mxu0 0.0
      %7674 = vmatpush1.msra.mxu0 0.0
      %7675 = vmatprep.subr.mxu0 0.0
      %7676 = vmatpush1.msra.mxu0 0.0
      %7677 = vmatprep.subr.mxu0 0.0
      %7678 = vmatpush1.msra.mxu0 0.0
      %7679 = vmatprep.subr.mxu0 0.0
      %7680 = vmatpush1.msra.mxu0 0.0
      %7681 = vmatprep.subr.mxu0 0.0
      %7682 = vmatpush1.msra.mxu0 0.0
      %7683 = vmatprep.subr.mxu0 0.0
      %7684 = vmatpush1.msra.mxu0 0.0
      %7685 = vmatprep.subr.mxu0 0.0
      %7686 = vmatpush1.msra.mxu0 0.0
      %7687 = vmatprep.subr.mxu0 0.0
      %7688 = vmatpush1.msra.mxu0 0.0
      %7689 = vmatprep.subr.mxu0 0.0
      %7690 = vmatpush1.msra.mxu0 0.0
      %7691 = vmatprep.subr.mxu0 0.0
      %7692 = vmatpush1.msra.mxu0 0.0
      %7693 = vmatprep.subr.mxu0 0.0
      %7694 = vmatpush1.msra.mxu0 0.0
      %7695 = vmatprep.subr.mxu0 0.0
      %7696 = vmatpush1.msra.mxu0 0.0
      %7697 = vmatprep.subr.mxu0 0.0
      %7698 = vmatpush1.msra.mxu0 0.0
      %7699 = vmatprep.subr.mxu0 0.0
      %7700 = vmatpush1.msra.mxu0 0.0
      %7701 = vmatprep.subr.mxu0 0.0
      %7702 = vmatpush1.msra.mxu0 0.0
      %7703 = vmatprep.subr.mxu0 0.0
      %7704 = vmatpush1.msra.mxu0 0.0
      %7705 = vmatprep.subr.mxu0 0.0
      %7706 = vmatpush1.msra.mxu0 0.0
      %7707 = vmatprep.mubr.f32.mxu0 0.0
      %7708 = vmatmul.mubr.f32.gmra.mrb[0].mxu0 %v7632
      %v7709 = vpop.f32.mrb[0].mxu0
      %v7710 = vadd.f32 %v7629, %v7709
      %v7711 = vpop.f32.mrb[0].mxu0
      %7712 = vmatprep.mubr.f32.mxu0 0.0
      %7713 = vmatmul.mubr.f32.gmra.mrb[0].mxu0 %v7635
      %v7714 = vpop.f32.mrb[0].mxu0
      %v7715 = vadd.f32 %v7629, %v7714
      %v7716 = vpop.f32.mrb[0].mxu0
      %7717 = vmatprep.mubr.f32.mxu0 0.0
      %7718 = vmatmul.mubr.f32.gmra.mrb[0].mxu0 %v7638
      %v7719 = vpop.f32.mrb[0].mxu0
      %v7720 = vadd.f32 %v7629, %v7719
      %v7721 = vpop.f32.mrb[0].mxu0
      %7722 = vmatprep.mubr.f32.mxu0 0.0
      %7723 = vmatmul.mubr.f32.gmra.mrb[0].mxu0 %v7641
      %v7724 = vpop.f32.mrb[0].mxu0
      %v7725 = vadd.f32 %v7629, %v7724
      %v7726 = vpop.f32.mrb[0].mxu0
      %7727 = vdwg.mxu0
      %v7728 = vlaneseq
      %v7729 = vand.u32 %v7728, 127
      %vm7730 = vcmp.lt.s32.totalorder %v7729, 4
      %v7731 = vtanh.pop %v7710
      %v7732 = vtanh.pop %v7715
      %v7733 = vtanh.pop %v7720
      %v7734 = vtanh.pop %v7725
      %vm7735 = vcmp.eq.s32.totalorder %v7729, 4
      %v7736 = vxor.u32 %v7710, 2147483648
      %v7737 = vxor.u32 %v7715, 2147483648
      %v7738 = vxor.u32 %v7720, 2147483648
      %v7739 = vxor.u32 %v7725, 2147483648
      %v7740 = vmul.f32 %v7736, 1.442695
      %v7741 = vpow.pop %v7740
      %v7742 = vmul.f32 %v7737, 1.442695
      %v7743 = vpow.pop %v7742
      %v7744 = vmul.f32 %v7738, 1.442695
      %v7745 = vpow.pop %v7744
      %v7746 = vmul.f32 %v7739, 1.442695
      %v7747 = vpow.pop %v7746
      %v7748 = vadd.f32 %v7741, 1.0
      %v7749 = vadd.f32 %v7743, 1.0
      %v7750 = vadd.f32 %v7745, 1.0
      %v7751 = vadd.f32 %v7747, 1.0
      %v7752 = vrcp.pop %v7748
      %v7753 = vmul.f32 1.0, %v7752
      %v7754 = vrcp.pop %v7749
      %v7755 = vmul.f32 1.0, %v7754
      %v7756 = vrcp.pop %v7750
      %v7757 = vmul.f32 1.0, %v7756
      %v7758 = vrcp.pop %v7751
      %v7759 = vmul.f32 1.0, %v7758
      %v7760 = vsel %vm7735, %v7753, %v7710
      %v7761 = vsel %vm7735, %v7755, %v7715
      %v7762 = vsel %vm7735, %v7757, %v7720
      %v7763 = vsel %vm7735, %v7759, %v7725
      %v7764 = vsel %vm7730, %v7731, %v7760
      %v7765 = vsel %vm7730, %v7732, %v7761
      %v7766 = vsel %vm7730, %v7733, %v7762
      %v7767 = vsel %vm7730, %v7734, %v7763
      %7768 = vst [vmem:[%s1440] sm:$0xff] %v7764
      %7769 = vst [vmem:[%s1440 + $0x8] sm:$0xff] %v7765
      %7770 = vst [vmem:[%s1440 + $0x10] sm:$0xff] %v7766
      %7771 = vst [vmem:[%s1440 + $0x18] sm:$0xff] %v7767
      %p7772 = scmp.lt.s32.totalorder %s96, 1
      %s7773 = scalar_select %p7772, %s96, 1
      %s7774 = smul.addr %s7773, 4
      %s7775 = smul.addr %s7774, 8
      %s7776 = scalar_lea.vmem %s79, %s7775
      // Predicated region
      $region173: #{_lambda_.1} parent=171 // pred_check
        %p7777 = pneg %p993
      $region174: #{_lambda_.1} parent=171 // pred_check_branch
        %7779 = sbr.rel (%p7777) target = $region176
      $region175: #{_lambda_.1} parent=171 // pred_region
        _
      $region176: #{_lambda_.1} parent=171 // pred_fallthru
        _
    $region172: #{_lambda_.1} parent=5 // pred_fallthru
      _
    %p7780 = scmp.le.s32.totalorder 2, %s91
    // Predicated region
    $region177: #{_lambda_.1} parent=5 // pred_check
      %p7781 = pneg %p7780
    $region178: #{_lambda_.1} parent=5 // pred_check_branch
      %7783 = sbr.rel (%p7781) target = $region180
    $region179: #{_lambda_.1} parent=5 // pred_region
      %s7784 = ssub.s32 %s91, 2
      // Predicated region
      $region181: #{_lambda_.1} parent=179 // pred_check
        %p7785 = pneg %p999
      $region182: #{_lambda_.1} parent=179 // pred_check_branch
        %7787 = sbr.rel (%p7785) target = $region184
      $region183: #{_lambda_.1} parent=179 // pred_region
        %p7788 = scmp.lt.s32.totalorder %s97, 1
        %s7789 = scalar_select %p7788, %s97, 1
        %s7790 = smul.addr %s7789, 4
        %s7791 = smul.addr %s7790, 8
        %s7792 = scalar_lea.vmem %s79, %s7791
      $region184: #{_lambda_.1} parent=179 // pred_fallthru
        _
    $region180: #{_lambda_.1} parent=5 // pred_fallthru
      _
  $region6: #{_lambda_.1} parent=0 // loop_footer
    %s95 = sadd.s32 1, %s91
  $region7: #{_lambda_.1} parent=0 // loop_footer_branch
    %90 = sbr.rel target = $region3
  $region8: #{_lambda_.1} parent=0 // loop_exit
    _

</llo_original>
